<compile_context>
chip_gen: v7x
topology: tpu7x:2x2x1
jax: 0.10.0
libtpu: 0.0.40
codegen_flags: <defaults>
</compile_context>

<pallas_src>
import functools

import jax
import jax.numpy as jnp
from jax.experimental import pallas as pl
from jax.experimental.pallas import tpu as pltpu


# ----------------------------------------------------------------------------
# Fused whole-network kernel (one image per grid step)
# ----------------------------------------------------------------------------
def _forward_kernel(*refs, treedef, n_leaves, h0, w0):
    x_ref = refs[0]
    p = jax.tree_util.tree_unflatten(treedef, refs[1:1 + n_leaves])
    o_ref = refs[1 + n_leaves]

    mask_cache = {}

    def masks_for(h, w):
        """Hoisted border-validity masks for one spatial size (no int div)."""
        key = (h, w)
        if key not in mask_cache:
            hw = h * w
            r = jax.lax.broadcasted_iota(jnp.int32, (1, hw), 1)
            col = jnp.bitwise_and(r, w - 1)              # w is a power of two
            mask_cache[key] = {
                -1: r >= w,                              # row valid for di=-1
                +1: r < (h - 1) * w,                     # row valid for di=+1
                "cl": col > 0,                           # col valid for dj=-1
                "ch": col < (w - 1),                     # col valid for dj=+1
            }
        return mask_cache[key]

    def conv3x3(xv, layer, h, w, relu, residual=None, sub=None):
        """3x3 conv + folded BN as ONE (Cout, 9*Cin) x (9*Cin, HW) matmul."""
        hw = h * w
        m = masks_for(h, w)
        taps = []
        for di in (-1, 0, 1):
            for dj in (-1, 0, 1):
                s = di * w + dj
                xs = xv if s == 0 else pltpu.roll(xv, (-s) % hw, axis=1)
                mask = None
                if di != 0:
                    mask = m[di]
                if dj != 0:
                    cm = m["cl"] if dj < 0 else m["ch"]
                    mask = cm if mask is None else jnp.logical_and(mask, cm)
                if mask is not None:
                    xs = jnp.where(mask, xs, 0.0)
                taps.append(xs)
        patches = jnp.concatenate(taps, axis=0).astype(jnp.bfloat16)
        acc = jnp.dot(layer["w"][...], patches,
                      preferred_element_type=jnp.float32)        # (Cout, HW)
        if sub is not None:                       # stride-2: subsample lanes
            acc = jnp.dot(acc, sub[...], preferred_element_type=jnp.float32)
        y = acc + layer["b"][...]
        if residual is not None:
            y = y + residual
        if relu:
            y = jnp.maximum(y, 0.0)
        return y

    def conv1x1(xv, layer, sub=None):
        """1x1 conv + folded BN (shortcut downsample); subsample input first."""
        if sub is not None:
            xv = jnp.dot(xv, sub[...], preferred_element_type=jnp.float32)
        y = jnp.dot(layer["w"][...], xv.astype(jnp.bfloat16),
                    preferred_element_type=jnp.float32)
        return y + layer["b"][...]

    # ---- backbone (channels-first (C, H*W) activations, f32 on-chip) ------
    x = x_ref[0].astype(jnp.float32)                      # (Cin_pad, H*W)
    h, w = h0, w0
    x = conv3x3(x, p["stem"], h, w, relu=True)
    for si, stage in enumerate(p["stages"]):
        for bi, blk in enumerate(stage):
            stride = 2 if (si > 0 and bi == 0) else 1
            sub = p["sub"][h] if stride == 2 else None
            identity = conv1x1(x, blk["down"], sub) if "down" in blk else x
            x = conv3x3(x, blk["conv1"], h, w, relu=True, sub=sub)
            if stride == 2:
                h, w = h // 2, w // 2
            x = conv3x3(x, blk["conv2"], h, w, relu=True, residual=identity)

    # ---- global average pool + fc, all in f32 ------------------------------
    # mean(W @ X, axis=1) == W @ mean(X, axis=1): keeps the matmul N = HW.
    logits = jnp.mean(jnp.dot(p["fc"]["w"][...], x,
                              preferred_element_type=jnp.float32),
                      axis=1, keepdims=True) + p["fc"]["b"][...]
    o_ref[0] = logits                                     # (npad, 1) f32


# ----------------------------------------------------------------------------
# Wrapper: one pallas_call over the batch
# ----------------------------------------------------------------------------
def incremental_net_forward(x_nchw, folded, num_classes):
    """IncrementalNet.forward: logits = fc(avgpool(backbone(x)))."""
    n, c, h, w = x_nchw.shape
    hw = h * w
    cin_pad = folded["stem"]["w"].shape[1] // 9
    x = x_nchw.reshape(n, c, hw).astype(jnp.float32)      # NCHW == channels-first
    if cin_pad > c:                     # one-time pad of the NETWORK input only
        x = jnp.pad(x, ((0, 0), (0, cin_pad - c), (0, 0)))

    leaves, treedef = jax.tree_util.tree_flatten(folded)
    assert all(leaf.ndim == 2 for leaf in leaves)
    npad = folded["fc"]["w"].shape[0]

    kernel = functools.partial(_forward_kernel, treedef=treedef,
                               n_leaves=len(leaves), h0=h, w0=w)
    in_specs = [pl.BlockSpec((1, cin_pad, hw), lambda i: (i, 0, 0))]
    # All weights resident: full-array blocks with a constant index map.
    in_specs += [pl.BlockSpec(leaf.shape, lambda i: (0, 0)) for leaf in leaves]

    out = pl.pallas_call(
        kernel,
        out_shape=jax.ShapeDtypeStruct((n, npad, 1), jnp.float32),
        grid=(n,),                               # >=2 steps: v7x megacore
        in_specs=in_specs,
        out_specs=pl.BlockSpec((1, npad, 1), lambda i: (i, 0, 0)),
        compiler_params=pltpu.CompilerParams(
            dimension_semantics=("parallel",)),
    )(x, *leaves)
    return out.reshape(n, npad)[:, :num_classes]


# ----------------------------------------------------------------------------
# One-time inference folding of PyTorch-layout parameters
# ----------------------------------------------------------------------------
def _fold_conv_bn(layer, pad_cin_to=None):
    """Fold BN into the conv: channels-first matmul layout.

    Returns w: (Cout, k*k*Cin) bf16 (BN scale folded in), b: (Cout, 1) f32.
    """
    w = layer["w"]                                   # (Cout, Cin, kh, kw)
    cout, cin, kh, kw = w.shape
    eps = 1e-5
    scale = layer["gamma"] * jax.lax.rsqrt(layer["var"] + eps)
    bias = layer["beta"] - layer["mean"] * scale
    wt = jnp.transpose(w, (0, 2, 3, 1))              # (Cout, kh, kw, Cin)
    if pad_cin_to is not None and pad_cin_to > cin:
        wt = jnp.pad(wt, ((0, 0), (0, 0), (0, 0), (0, pad_cin_to - cin)))
        cin = pad_cin_to
    wmat = wt.reshape(cout, kh * kw * cin) * scale[:, None]
    return {"w": wmat.astype(jnp.bfloat16),
            "b": bias.reshape(cout, 1).astype(jnp.float32)}


def _subsample_matrix(h, w):
    """(h*w, (h//2)*(w//2)) 0/1 selection matrix for a stride-2 grid."""
    ho, wo = h // 2, w // 2
    rows = (2 * jnp.arange(ho)[:, None] * w + 2 * jnp.arange(wo)[None, :]).reshape(-1)
    cols = jnp.arange(ho * wo)
    return jnp.zeros((h * w, ho * wo), jnp.float32).at[rows, cols].set(1.0)


def fold_params(params, img_size):
    assert img_size & (img_size - 1) == 0, "spatial size must be a power of two"
    bb = params["backbone"]
    stem_cin = bb["stem"]["w"].shape[1]
    folded = {
        "stem": _fold_conv_bn(bb["stem"], pad_cin_to=max(8, stem_cin)),
        "stages": [[{k: _fold_conv_bn(v) for k, v in blk.items()}
                    for blk in stage] for stage in bb["stages"]],
    }
    # Stride-2 subsample matrices, keyed by each downsampling block's input size.
    subs, h = {}, img_size
    for _ in range(1, len(bb["stages"])):
        subs[h] = _subsample_matrix(h, h)
        h //= 2
    folded["sub"] = subs
    # FC head: classes padded to a 128 multiple, kept in f32.
    w, b = params["fc"]["w"], params["fc"]["b"]
    ncls, feat = w.shape
    npad = max(128, ((ncls + 127) // 128) * 128)
    folded["fc"] = {
        "w": jnp.zeros((npad, feat), jnp.float32).at[:ncls].set(w),
        "b": jnp.zeros((npad, 1), jnp.float32).at[:ncls, 0].set(b),
    }
    return folded


# ----------------------------------------------------------------------------
# Deterministic parameter construction (PyTorch layouts)
# ----------------------------------------------------------------------------
def init_conv_bn(key, cin, cout, k):
    kw_, kg, kb, km, kv = jax.random.split(key, 5)
    fan_in = cin * k * k
    w = jax.random.normal(kw_, (cout, cin, k, k), jnp.float32) * (2.0 / fan_in) ** 0.5
    gamma = 1.0 + 0.1 * jax.random.normal(kg, (cout,), jnp.float32)
    beta = 0.1 * jax.random.normal(kb, (cout,), jnp.float32)
    mean = 0.1 * jax.random.normal(km, (cout,), jnp.float32)
    var = 1.0 + 0.1 * jax.random.uniform(kv, (cout,), jnp.float32)
    return {"w": w, "gamma": gamma, "beta": beta, "mean": mean, "var": var}


def init_params(key, in_ch=3, widths=(8, 16, 32, 64), blocks=(2, 2, 2, 2),
                num_classes=10):
    keys = iter(jax.random.split(key, 128))
    params = {"backbone": {"stem": init_conv_bn(next(keys), in_ch, widths[0], 3)}}
    stages, cin = [], widths[0]
    for s, (cout, nblk) in enumerate(zip(widths, blocks)):
        stage = []
        for b in range(nblk):
            blk = {"conv1": init_conv_bn(next(keys), cin, cout, 3),
                   "conv2": init_conv_bn(next(keys), cout, cout, 3)}
            if b == 0 and (s > 0 or cin != cout):
                blk["down"] = init_conv_bn(next(keys), cin, cout, 1)
            stage.append(blk)
            cin = cout
        stages.append(stage)
    params["backbone"]["stages"] = stages
    kfw, kfb = jax.random.split(next(keys))
    params["fc"] = {
        "w": jax.random.normal(kfw, (num_classes, widths[-1]), jnp.float32)
             * (1.0 / widths[-1]) ** 0.5,
        "b": 0.01 * jax.random.normal(kfb, (num_classes,), jnp.float32),
    }
    return params


# TODO(synk): at real ResNet-18/34/50 widths (64-512 channels, 32x32+ inputs)
# the everything-resident single-kernel plan needs spatial (HW) tiling, a K
# grid axis with an f32 accumulator, and pltpu.CompilerParams(vmem_limit_bytes)
# sized for v5e's 16 MiB scoped / v7x's 64 MiB physical VMEM.
# TODO(synk): for batch==1 on v7x, add a second "parallel" grid axis (e.g.
# split output channels) so both TensorCores get work.

if __name__ == "__main__":
    key = jax.random.PRNGKey(0)
    kx, kp = jax.random.split(key)
    x = jax.random.normal(kx, (2, 3, 16, 16), jnp.float32)   # NCHW like PyTorch
    params = init_params(kp, in_ch=3, num_classes=10)
    folded = fold_params(params, img_size=16)                # fold once, not per call

    fwd = jax.jit(incremental_net_forward, static_argnames=("num_classes",))
    out = fwd(x, folded, num_classes=10)
    out = jax.block_until_ready(out)
    assert out.shape == (2, 10) and out.dtype == jnp.float32
    print("KERNEL_OK")
</pallas_src>

<mosaic_0001>
module attributes {stable_mosaic.version = 11 : i64} {
  func.func @_forward_kernel(%arg0: i32, %arg1: memref<1x8x256xf32, #tpu.memory_space<vmem>>, %arg2: memref<128x1xf32, #tpu.memory_space<vmem>>, %arg3: memref<128x64xf32, #tpu.memory_space<vmem>>, %arg4: memref<8x1xf32, #tpu.memory_space<vmem>>, %arg5: memref<8x72xbf16, #tpu.memory_space<vmem>>, %arg6: memref<8x1xf32, #tpu.memory_space<vmem>>, %arg7: memref<8x72xbf16, #tpu.memory_space<vmem>>, %arg8: memref<8x1xf32, #tpu.memory_space<vmem>>, %arg9: memref<8x72xbf16, #tpu.memory_space<vmem>>, %arg10: memref<8x1xf32, #tpu.memory_space<vmem>>, %arg11: memref<8x72xbf16, #tpu.memory_space<vmem>>, %arg12: memref<16x1xf32, #tpu.memory_space<vmem>>, %arg13: memref<16x72xbf16, #tpu.memory_space<vmem>>, %arg14: memref<16x1xf32, #tpu.memory_space<vmem>>, %arg15: memref<16x144xbf16, #tpu.memory_space<vmem>>, %arg16: memref<16x1xf32, #tpu.memory_space<vmem>>, %arg17: memref<16x8xbf16, #tpu.memory_space<vmem>>, %arg18: memref<16x1xf32, #tpu.memory_space<vmem>>, %arg19: memref<16x144xbf16, #tpu.memory_space<vmem>>, %arg20: memref<16x1xf32, #tpu.memory_space<vmem>>, %arg21: memref<16x144xbf16, #tpu.memory_space<vmem>>, %arg22: memref<32x1xf32, #tpu.memory_space<vmem>>, %arg23: memref<32x144xbf16, #tpu.memory_space<vmem>>, %arg24: memref<32x1xf32, #tpu.memory_space<vmem>>, %arg25: memref<32x288xbf16, #tpu.memory_space<vmem>>, %arg26: memref<32x1xf32, #tpu.memory_space<vmem>>, %arg27: memref<32x16xbf16, #tpu.memory_space<vmem>>, %arg28: memref<32x1xf32, #tpu.memory_space<vmem>>, %arg29: memref<32x288xbf16, #tpu.memory_space<vmem>>, %arg30: memref<32x1xf32, #tpu.memory_space<vmem>>, %arg31: memref<32x288xbf16, #tpu.memory_space<vmem>>, %arg32: memref<64x1xf32, #tpu.memory_space<vmem>>, %arg33: memref<64x288xbf16, #tpu.memory_space<vmem>>, %arg34: memref<64x1xf32, #tpu.memory_space<vmem>>, %arg35: memref<64x576xbf16, #tpu.memory_space<vmem>>, %arg36: memref<64x1xf32, #tpu.memory_space<vmem>>, %arg37: memref<64x32xbf16, #tpu.memory_space<vmem>>, %arg38: memref<64x1xf32, #tpu.memory_space<vmem>>, %arg39: memref<64x576xbf16, #tpu.memory_space<vmem>>, %arg40: memref<64x1xf32, #tpu.memory_space<vmem>>, %arg41: memref<64x576xbf16, #tpu.memory_space<vmem>>, %arg42: memref<8x1xf32, #tpu.memory_space<vmem>>, %arg43: memref<8x72xbf16, #tpu.memory_space<vmem>>, %arg44: memref<16x4xf32, #tpu.memory_space<vmem>>, %arg45: memref<64x16xf32, #tpu.memory_space<vmem>>, %arg46: memref<256x64xf32, #tpu.memory_space<vmem>>, %arg47: memref<1x128x1xf32, #tpu.memory_space<vmem>>) attributes {dimension_semantics = [#tpu.dimension_semantics<parallel>], iteration_bounds = array<i64: 2>, scalar_prefetch = 0 : i64, scratch_operands = 0 : i64, tpu.core_type = #tpu.core_type<tc>, window_params = [{transform_indices = @transform_0, window_bounds = array<i64: 1, 8, 256>}, {pipeline_mode = #tpu.pipeline_mode<synchronous>, transform_indices = @transform_1, window_bounds = array<i64: 128, 1>}, {pipeline_mode = #tpu.pipeline_mode<synchronous>, transform_indices = @transform_2, window_bounds = array<i64: 128, 64>}, {pipeline_mode = #tpu.pipeline_mode<synchronous>, transform_indices = @transform_3, window_bounds = array<i64: 8, 1>}, {pipeline_mode = #tpu.pipeline_mode<synchronous>, transform_indices = @transform_4, window_bounds = array<i64: 8, 72>}, {pipeline_mode = #tpu.pipeline_mode<synchronous>, transform_indices = @transform_5, window_bounds = array<i64: 8, 1>}, {pipeline_mode = #tpu.pipeline_mode<synchronous>, transform_indices = @transform_6, window_bounds = array<i64: 8, 72>}, {pipeline_mode = #tpu.pipeline_mode<synchronous>, transform_indices = @transform_7, window_bounds = array<i64: 8, 1>}, {pipeline_mode = #tpu.pipeline_mode<synchronous>, transform_indices = @transform_8, window_bounds = array<i64: 8, 72>}, {pipeline_mode = #tpu.pipeline_mode<synchronous>, transform_indices = @transform_9, window_bounds = array<i64: 8, 1>}, {pipeline_mode = #tpu.pipeline_mode<synchronous>, transform_indices = @transform_10, window_bounds = array<i64: 8, 72>}, {pipeline_mode = #tpu.pipeline_mode<synchronous>, transform_indices = @transform_11, window_bounds = array<i64: 16, 1>}, {pipeline_mode = #tpu.pipeline_mode<synchronous>, transform_indices = @transform_12, window_bounds = array<i64: 16, 72>}, {pipeline_mode = #tpu.pipeline_mode<synchronous>, transform_indices = @transform_13, window_bounds = array<i64: 16, 1>}, {pipeline_mode = #tpu.pipeline_mode<synchronous>, transform_indices = @transform_14, window_bounds = array<i64: 16, 144>}, {pipeline_mode = #tpu.pipeline_mode<synchronous>, transform_indices = @transform_15, window_bounds = array<i64: 16, 1>}, {pipeline_mode = #tpu.pipeline_mode<synchronous>, transform_indices = @transform_16, window_bounds = array<i64: 16, 8>}, {pipeline_mode = #tpu.pipeline_mode<synchronous>, transform_indices = @transform_17, window_bounds = array<i64: 16, 1>}, {pipeline_mode = #tpu.pipeline_mode<synchronous>, transform_indices = @transform_18, window_bounds = array<i64: 16, 144>}, {pipeline_mode = #tpu.pipeline_mode<synchronous>, transform_indices = @transform_19, window_bounds = array<i64: 16, 1>}, {pipeline_mode = #tpu.pipeline_mode<synchronous>, transform_indices = @transform_20, window_bounds = array<i64: 16, 144>}, {pipeline_mode = #tpu.pipeline_mode<synchronous>, transform_indices = @transform_21, window_bounds = array<i64: 32, 1>}, {pipeline_mode = #tpu.pipeline_mode<synchronous>, transform_indices = @transform_22, window_bounds = array<i64: 32, 144>}, {pipeline_mode = #tpu.pipeline_mode<synchronous>, transform_indices = @transform_23, window_bounds = array<i64: 32, 1>}, {pipeline_mode = #tpu.pipeline_mode<synchronous>, transform_indices = @transform_24, window_bounds = array<i64: 32, 288>}, {pipeline_mode = #tpu.pipeline_mode<synchronous>, transform_indices = @transform_25, window_bounds = array<i64: 32, 1>}, {pipeline_mode = #tpu.pipeline_mode<synchronous>, transform_indices = @transform_26, window_bounds = array<i64: 32, 16>}, {pipeline_mode = #tpu.pipeline_mode<synchronous>, transform_indices = @transform_27, window_bounds = array<i64: 32, 1>}, {pipeline_mode = #tpu.pipeline_mode<synchronous>, transform_indices = @transform_28, window_bounds = array<i64: 32, 288>}, {pipeline_mode = #tpu.pipeline_mode<synchronous>, transform_indices = @transform_29, window_bounds = array<i64: 32, 1>}, {pipeline_mode = #tpu.pipeline_mode<synchronous>, transform_indices = @transform_30, window_bounds = array<i64: 32, 288>}, {pipeline_mode = #tpu.pipeline_mode<synchronous>, transform_indices = @transform_31, window_bounds = array<i64: 64, 1>}, {pipeline_mode = #tpu.pipeline_mode<synchronous>, transform_indices = @transform_32, window_bounds = array<i64: 64, 288>}, {pipeline_mode = #tpu.pipeline_mode<synchronous>, transform_indices = @transform_33, window_bounds = array<i64: 64, 1>}, {pipeline_mode = #tpu.pipeline_mode<synchronous>, transform_indices = @transform_34, window_bounds = array<i64: 64, 576>}, {pipeline_mode = #tpu.pipeline_mode<synchronous>, transform_indices = @transform_35, window_bounds = array<i64: 64, 1>}, {pipeline_mode = #tpu.pipeline_mode<synchronous>, transform_indices = @transform_36, window_bounds = array<i64: 64, 32>}, {pipeline_mode = #tpu.pipeline_mode<synchronous>, transform_indices = @transform_37, window_bounds = array<i64: 64, 1>}, {pipeline_mode = #tpu.pipeline_mode<synchronous>, transform_indices = @transform_38, window_bounds = array<i64: 64, 576>}, {pipeline_mode = #tpu.pipeline_mode<synchronous>, transform_indices = @transform_39, window_bounds = array<i64: 64, 1>}, {pipeline_mode = #tpu.pipeline_mode<synchronous>, transform_indices = @transform_40, window_bounds = array<i64: 64, 576>}, {pipeline_mode = #tpu.pipeline_mode<synchronous>, transform_indices = @transform_41, window_bounds = array<i64: 8, 1>}, {pipeline_mode = #tpu.pipeline_mode<synchronous>, transform_indices = @transform_42, window_bounds = array<i64: 8, 72>}, {pipeline_mode = #tpu.pipeline_mode<synchronous>, transform_indices = @transform_43, window_bounds = array<i64: 16, 4>}, {pipeline_mode = #tpu.pipeline_mode<synchronous>, transform_indices = @transform_44, window_bounds = array<i64: 64, 16>}, {pipeline_mode = #tpu.pipeline_mode<synchronous>, transform_indices = @transform_45, window_bounds = array<i64: 256, 64>}, {transform_indices = @transform_46, window_bounds = array<i64: 1, 128, 1>}]} {
    %c0 = arith.constant 0 : index
    %c0_0 = arith.constant 0 : index
    %c0_1 = arith.constant 0 : index
    %0 = vector.load %arg1[%c0, %c0_0, %c0_1] : memref<1x8x256xf32, #tpu.memory_space<vmem>>, vector<1x8x256xf32>
    %1 = vector.shape_cast %0 : vector<1x8x256xf32> to vector<8x256xf32>
    %2 = tpu.iota {dimensions = array<i32: 1>} : vector<1x256xi32>
    %c15_i32 = arith.constant 15 : i32
    %3 = vector.broadcast %c15_i32 : i32 to vector<1x256xi32>
    %4 = arith.andi %2, %3 : vector<1x256xi32>
    %c16_i32 = arith.constant 16 : i32
    %5 = vector.broadcast %c16_i32 : i32 to vector<1x256xi32>
    %6 = arith.cmpi sge, %2, %5 : vector<1x256xi32>
    %c240_i32 = arith.constant 240 : i32
    %7 = vector.broadcast %c240_i32 : i32 to vector<1x256xi32>
    %8 = arith.cmpi slt, %2, %7 : vector<1x256xi32>
    %c0_i32 = arith.constant 0 : i32
    %9 = vector.broadcast %c0_i32 : i32 to vector<1x256xi32>
    %10 = arith.cmpi sgt, %4, %9 : vector<1x256xi32>
    %c15_i32_2 = arith.constant 15 : i32
    %11 = vector.broadcast %c15_i32_2 : i32 to vector<1x256xi32>
    %12 = arith.cmpi slt, %4, %11 : vector<1x256xi32>
    %c17_i32 = arith.constant 17 : i32
    %13 = tpu.dynamic_rotate %1 by %c17_i32 dim 1 : vector<8x256xf32>, i32 -> vector<8x256xf32>
    %14 = arith.andi %6, %10 : vector<1x256xi1>
    %cst = arith.constant 0.000000e+00 : f32
    %15 = vector.shape_cast %14 : vector<1x256xi1> to vector<1x256xi1>
    %16 = vector.broadcast %15 : vector<1x256xi1> to vector<8x256xi1>
    %17 = vector.broadcast %cst : f32 to vector<8x256xf32>
    %18 = arith.select %16, %13, %17 : vector<8x256xi1>, vector<8x256xf32>
    %c16_i32_3 = arith.constant 16 : i32
    %19 = tpu.dynamic_rotate %1 by %c16_i32_3 dim 1 : vector<8x256xf32>, i32 -> vector<8x256xf32>
    %cst_4 = arith.constant 0.000000e+00 : f32
    %20 = vector.shape_cast %6 : vector<1x256xi1> to vector<1x256xi1>
    %21 = vector.broadcast %20 : vector<1x256xi1> to vector<8x256xi1>
    %22 = vector.broadcast %cst_4 : f32 to vector<8x256xf32>
    %23 = arith.select %21, %19, %22 : vector<8x256xi1>, vector<8x256xf32>
    %c15_i32_5 = arith.constant 15 : i32
    %24 = tpu.dynamic_rotate %1 by %c15_i32_5 dim 1 : vector<8x256xf32>, i32 -> vector<8x256xf32>
    %25 = arith.andi %6, %12 : vector<1x256xi1>
    %cst_6 = arith.constant 0.000000e+00 : f32
    %26 = vector.shape_cast %25 : vector<1x256xi1> to vector<1x256xi1>
    %27 = vector.broadcast %26 : vector<1x256xi1> to vector<8x256xi1>
    %28 = vector.broadcast %cst_6 : f32 to vector<8x256xf32>
    %29 = arith.select %27, %24, %28 : vector<8x256xi1>, vector<8x256xf32>
    %c1_i32 = arith.constant 1 : i32
    %30 = tpu.dynamic_rotate %1 by %c1_i32 dim 1 : vector<8x256xf32>, i32 -> vector<8x256xf32>
    %cst_7 = arith.constant 0.000000e+00 : f32
    %31 = vector.shape_cast %10 : vector<1x256xi1> to vector<1x256xi1>
    %32 = vector.broadcast %31 : vector<1x256xi1> to vector<8x256xi1>
    %33 = vector.broadcast %cst_7 : f32 to vector<8x256xf32>
    %34 = arith.select %32, %30, %33 : vector<8x256xi1>, vector<8x256xf32>
    %c255_i32 = arith.constant 255 : i32
    %35 = tpu.dynamic_rotate %1 by %c255_i32 dim 1 : vector<8x256xf32>, i32 -> vector<8x256xf32>
    %cst_8 = arith.constant 0.000000e+00 : f32
    %36 = vector.shape_cast %12 : vector<1x256xi1> to vector<1x256xi1>
    %37 = vector.broadcast %36 : vector<1x256xi1> to vector<8x256xi1>
    %38 = vector.broadcast %cst_8 : f32 to vector<8x256xf32>
    %39 = arith.select %37, %35, %38 : vector<8x256xi1>, vector<8x256xf32>
    %c241_i32 = arith.constant 241 : i32
    %40 = tpu.dynamic_rotate %1 by %c241_i32 dim 1 : vector<8x256xf32>, i32 -> vector<8x256xf32>
    %41 = arith.andi %8, %10 : vector<1x256xi1>
    %cst_9 = arith.constant 0.000000e+00 : f32
    %42 = vector.shape_cast %41 : vector<1x256xi1> to vector<1x256xi1>
    %43 = vector.broadcast %42 : vector<1x256xi1> to vector<8x256xi1>
    %44 = vector.broadcast %cst_9 : f32 to vector<8x256xf32>
    %45 = arith.select %43, %40, %44 : vector<8x256xi1>, vector<8x256xf32>
    %c240_i32_10 = arith.constant 240 : i32
    %46 = tpu.dynamic_rotate %1 by %c240_i32_10 dim 1 : vector<8x256xf32>, i32 -> vector<8x256xf32>
    %cst_11 = arith.constant 0.000000e+00 : f32
    %47 = vector.shape_cast %8 : vector<1x256xi1> to vector<1x256xi1>
    %48 = vector.broadcast %47 : vector<1x256xi1> to vector<8x256xi1>
    %49 = vector.broadcast %cst_11 : f32 to vector<8x256xf32>
    %50 = arith.select %48, %46, %49 : vector<8x256xi1>, vector<8x256xf32>
    %c239_i32 = arith.constant 239 : i32
    %51 = tpu.dynamic_rotate %1 by %c239_i32 dim 1 : vector<8x256xf32>, i32 -> vector<8x256xf32>
    %52 = arith.andi %8, %12 : vector<1x256xi1>
    %cst_12 = arith.constant 0.000000e+00 : f32
    %53 = vector.shape_cast %52 : vector<1x256xi1> to vector<1x256xi1>
    %54 = vector.broadcast %53 : vector<1x256xi1> to vector<8x256xi1>
    %55 = vector.broadcast %cst_12 : f32 to vector<8x256xf32>
    %56 = arith.select %54, %51, %55 : vector<8x256xi1>, vector<8x256xf32>
    %57 = tpu.concatenate %18, %23, %29, %34, %1, %39, %45, %50, %56 in 0 : vector<8x256xf32>, vector<8x256xf32>, vector<8x256xf32>, vector<8x256xf32>, vector<8x256xf32>, vector<8x256xf32>, vector<8x256xf32>, vector<8x256xf32>, vector<8x256xf32> -> vector<72x256xf32>
    %58 = arith.truncf %57 : vector<72x256xf32> to vector<72x256xbf16>
    %c0_13 = arith.constant 0 : index
    %c0_14 = arith.constant 0 : index
    %59 = vector.load %arg43[%c0_13, %c0_14] : memref<8x72xbf16, #tpu.memory_space<vmem>>, vector<8x72xbf16>
    %cst_15 = arith.constant dense<0.000000e+00> : vector<8x256xf32>
    %60 = tpu.matmul %59, %58, %cst_15 {dimension_numbers = #tpu.dot_dimension_numbers<[1], [0], [0], [1], [0, 0, 1, 1], [], []>} : vector<8x72xbf16>, vector<72x256xbf16>, vector<8x256xf32> -> vector<8x256xf32>
    %c0_16 = arith.constant 0 : index
    %c0_17 = arith.constant 0 : index
    %61 = vector.load %arg42[%c0_16, %c0_17] : memref<8x1xf32, #tpu.memory_space<vmem>>, vector<8x1xf32>
    %62 = vector.broadcast %61 : vector<8x1xf32> to vector<8x256xf32>
    %63 = arith.addf %60, %62 : vector<8x256xf32>
    %cst_18 = arith.constant 0.000000e+00 : f32
    %64 = vector.broadcast %cst_18 : f32 to vector<8x256xf32>
    %65 = arith.maximumf %63, %64 : vector<8x256xf32>
    %c17_i32_19 = arith.constant 17 : i32
    %66 = tpu.dynamic_rotate %65 by %c17_i32_19 dim 1 : vector<8x256xf32>, i32 -> vector<8x256xf32>
    %67 = arith.andi %6, %10 : vector<1x256xi1>
    %cst_20 = arith.constant 0.000000e+00 : f32
    %68 = vector.shape_cast %67 : vector<1x256xi1> to vector<1x256xi1>
    %69 = vector.broadcast %68 : vector<1x256xi1> to vector<8x256xi1>
    %70 = vector.broadcast %cst_20 : f32 to vector<8x256xf32>
    %71 = arith.select %69, %66, %70 : vector<8x256xi1>, vector<8x256xf32>
    %c16_i32_21 = arith.constant 16 : i32
    %72 = tpu.dynamic_rotate %65 by %c16_i32_21 dim 1 : vector<8x256xf32>, i32 -> vector<8x256xf32>
    %cst_22 = arith.constant 0.000000e+00 : f32
    %73 = vector.shape_cast %6 : vector<1x256xi1> to vector<1x256xi1>
    %74 = vector.broadcast %73 : vector<1x256xi1> to vector<8x256xi1>
    %75 = vector.broadcast %cst_22 : f32 to vector<8x256xf32>
    %76 = arith.select %74, %72, %75 : vector<8x256xi1>, vector<8x256xf32>
    %c15_i32_23 = arith.constant 15 : i32
    %77 = tpu.dynamic_rotate %65 by %c15_i32_23 dim 1 : vector<8x256xf32>, i32 -> vector<8x256xf32>
    %78 = arith.andi %6, %12 : vector<1x256xi1>
    %cst_24 = arith.constant 0.000000e+00 : f32
    %79 = vector.shape_cast %78 : vector<1x256xi1> to vector<1x256xi1>
    %80 = vector.broadcast %79 : vector<1x256xi1> to vector<8x256xi1>
    %81 = vector.broadcast %cst_24 : f32 to vector<8x256xf32>
    %82 = arith.select %80, %77, %81 : vector<8x256xi1>, vector<8x256xf32>
    %c1_i32_25 = arith.constant 1 : i32
    %83 = tpu.dynamic_rotate %65 by %c1_i32_25 dim 1 : vector<8x256xf32>, i32 -> vector<8x256xf32>
    %cst_26 = arith.constant 0.000000e+00 : f32
    %84 = vector.shape_cast %10 : vector<1x256xi1> to vector<1x256xi1>
    %85 = vector.broadcast %84 : vector<1x256xi1> to vector<8x256xi1>
    %86 = vector.broadcast %cst_26 : f32 to vector<8x256xf32>
    %87 = arith.select %85, %83, %86 : vector<8x256xi1>, vector<8x256xf32>
    %c255_i32_27 = arith.constant 255 : i32
    %88 = tpu.dynamic_rotate %65 by %c255_i32_27 dim 1 : vector<8x256xf32>, i32 -> vector<8x256xf32>
    %cst_28 = arith.constant 0.000000e+00 : f32
    %89 = vector.shape_cast %12 : vector<1x256xi1> to vector<1x256xi1>
    %90 = vector.broadcast %89 : vector<1x256xi1> to vector<8x256xi1>
    %91 = vector.broadcast %cst_28 : f32 to vector<8x256xf32>
    %92 = arith.select %90, %88, %91 : vector<8x256xi1>, vector<8x256xf32>
    %c241_i32_29 = arith.constant 241 : i32
    %93 = tpu.dynamic_rotate %65 by %c241_i32_29 dim 1 : vector<8x256xf32>, i32 -> vector<8x256xf32>
    %94 = arith.andi %8, %10 : vector<1x256xi1>
    %cst_30 = arith.constant 0.000000e+00 : f32
    %95 = vector.shape_cast %94 : vector<1x256xi1> to vector<1x256xi1>
    %96 = vector.broadcast %95 : vector<1x256xi1> to vector<8x256xi1>
    %97 = vector.broadcast %cst_30 : f32 to vector<8x256xf32>
    %98 = arith.select %96, %93, %97 : vector<8x256xi1>, vector<8x256xf32>
    %c240_i32_31 = arith.constant 240 : i32
    %99 = tpu.dynamic_rotate %65 by %c240_i32_31 dim 1 : vector<8x256xf32>, i32 -> vector<8x256xf32>
    %cst_32 = arith.constant 0.000000e+00 : f32
    %100 = vector.shape_cast %8 : vector<1x256xi1> to vector<1x256xi1>
    %101 = vector.broadcast %100 : vector<1x256xi1> to vector<8x256xi1>
    %102 = vector.broadcast %cst_32 : f32 to vector<8x256xf32>
    %103 = arith.select %101, %99, %102 : vector<8x256xi1>, vector<8x256xf32>
    %c239_i32_33 = arith.constant 239 : i32
    %104 = tpu.dynamic_rotate %65 by %c239_i32_33 dim 1 : vector<8x256xf32>, i32 -> vector<8x256xf32>
    %105 = arith.andi %8, %12 : vector<1x256xi1>
    %cst_34 = arith.constant 0.000000e+00 : f32
    %106 = vector.shape_cast %105 : vector<1x256xi1> to vector<1x256xi1>
    %107 = vector.broadcast %106 : vector<1x256xi1> to vector<8x256xi1>
    %108 = vector.broadcast %cst_34 : f32 to vector<8x256xf32>
    %109 = arith.select %107, %104, %108 : vector<8x256xi1>, vector<8x256xf32>
    %110 = tpu.concatenate %71, %76, %82, %87, %65, %92, %98, %103, %109 in 0 : vector<8x256xf32>, vector<8x256xf32>, vector<8x256xf32>, vector<8x256xf32>, vector<8x256xf32>, vector<8x256xf32>, vector<8x256xf32>, vector<8x256xf32>, vector<8x256xf32> -> vector<72x256xf32>
    %111 = arith.truncf %110 : vector<72x256xf32> to vector<72x256xbf16>
    %c0_35 = arith.constant 0 : index
    %c0_36 = arith.constant 0 : index
    %112 = vector.load %arg5[%c0_35, %c0_36] : memref<8x72xbf16, #tpu.memory_space<vmem>>, vector<8x72xbf16>
    %cst_37 = arith.constant dense<0.000000e+00> : vector<8x256xf32>
    %113 = tpu.matmul %112, %111, %cst_37 {dimension_numbers = #tpu.dot_dimension_numbers<[1], [0], [0], [1], [0, 0, 1, 1], [], []>} : vector<8x72xbf16>, vector<72x256xbf16>, vector<8x256xf32> -> vector<8x256xf32>
    %c0_38 = arith.constant 0 : index
    %c0_39 = arith.constant 0 : index
    %114 = vector.load %arg4[%c0_38, %c0_39] : memref<8x1xf32, #tpu.memory_space<vmem>>, vector<8x1xf32>
    %115 = vector.broadcast %114 : vector<8x1xf32> to vector<8x256xf32>
    %116 = arith.addf %113, %115 : vector<8x256xf32>
    %cst_40 = arith.constant 0.000000e+00 : f32
    %117 = vector.broadcast %cst_40 : f32 to vector<8x256xf32>
    %118 = arith.maximumf %116, %117 : vector<8x256xf32>
    %c17_i32_41 = arith.constant 17 : i32
    %119 = tpu.dynamic_rotate %118 by %c17_i32_41 dim 1 : vector<8x256xf32>, i32 -> vector<8x256xf32>
    %120 = arith.andi %6, %10 : vector<1x256xi1>
    %cst_42 = arith.constant 0.000000e+00 : f32
    %121 = vector.shape_cast %120 : vector<1x256xi1> to vector<1x256xi1>
    %122 = vector.broadcast %121 : vector<1x256xi1> to vector<8x256xi1>
    %123 = vector.broadcast %cst_42 : f32 to vector<8x256xf32>
    %124 = arith.select %122, %119, %123 : vector<8x256xi1>, vector<8x256xf32>
    %c16_i32_43 = arith.constant 16 : i32
    %125 = tpu.dynamic_rotate %118 by %c16_i32_43 dim 1 : vector<8x256xf32>, i32 -> vector<8x256xf32>
    %cst_44 = arith.constant 0.000000e+00 : f32
    %126 = vector.shape_cast %6 : vector<1x256xi1> to vector<1x256xi1>
    %127 = vector.broadcast %126 : vector<1x256xi1> to vector<8x256xi1>
    %128 = vector.broadcast %cst_44 : f32 to vector<8x256xf32>
    %129 = arith.select %127, %125, %128 : vector<8x256xi1>, vector<8x256xf32>
    %c15_i32_45 = arith.constant 15 : i32
    %130 = tpu.dynamic_rotate %118 by %c15_i32_45 dim 1 : vector<8x256xf32>, i32 -> vector<8x256xf32>
    %131 = arith.andi %6, %12 : vector<1x256xi1>
    %cst_46 = arith.constant 0.000000e+00 : f32
    %132 = vector.shape_cast %131 : vector<1x256xi1> to vector<1x256xi1>
    %133 = vector.broadcast %132 : vector<1x256xi1> to vector<8x256xi1>
    %134 = vector.broadcast %cst_46 : f32 to vector<8x256xf32>
    %135 = arith.select %133, %130, %134 : vector<8x256xi1>, vector<8x256xf32>
    %c1_i32_47 = arith.constant 1 : i32
    %136 = tpu.dynamic_rotate %118 by %c1_i32_47 dim 1 : vector<8x256xf32>, i32 -> vector<8x256xf32>
    %cst_48 = arith.constant 0.000000e+00 : f32
    %137 = vector.shape_cast %10 : vector<1x256xi1> to vector<1x256xi1>
    %138 = vector.broadcast %137 : vector<1x256xi1> to vector<8x256xi1>
    %139 = vector.broadcast %cst_48 : f32 to vector<8x256xf32>
    %140 = arith.select %138, %136, %139 : vector<8x256xi1>, vector<8x256xf32>
    %c255_i32_49 = arith.constant 255 : i32
    %141 = tpu.dynamic_rotate %118 by %c255_i32_49 dim 1 : vector<8x256xf32>, i32 -> vector<8x256xf32>
    %cst_50 = arith.constant 0.000000e+00 : f32
    %142 = vector.shape_cast %12 : vector<1x256xi1> to vector<1x256xi1>
    %143 = vector.broadcast %142 : vector<1x256xi1> to vector<8x256xi1>
    %144 = vector.broadcast %cst_50 : f32 to vector<8x256xf32>
    %145 = arith.select %143, %141, %144 : vector<8x256xi1>, vector<8x256xf32>
    %c241_i32_51 = arith.constant 241 : i32
    %146 = tpu.dynamic_rotate %118 by %c241_i32_51 dim 1 : vector<8x256xf32>, i32 -> vector<8x256xf32>
    %147 = arith.andi %8, %10 : vector<1x256xi1>
    %cst_52 = arith.constant 0.000000e+00 : f32
    %148 = vector.shape_cast %147 : vector<1x256xi1> to vector<1x256xi1>
    %149 = vector.broadcast %148 : vector<1x256xi1> to vector<8x256xi1>
    %150 = vector.broadcast %cst_52 : f32 to vector<8x256xf32>
    %151 = arith.select %149, %146, %150 : vector<8x256xi1>, vector<8x256xf32>
    %c240_i32_53 = arith.constant 240 : i32
    %152 = tpu.dynamic_rotate %118 by %c240_i32_53 dim 1 : vector<8x256xf32>, i32 -> vector<8x256xf32>
    %cst_54 = arith.constant 0.000000e+00 : f32
    %153 = vector.shape_cast %8 : vector<1x256xi1> to vector<1x256xi1>
    %154 = vector.broadcast %153 : vector<1x256xi1> to vector<8x256xi1>
    %155 = vector.broadcast %cst_54 : f32 to vector<8x256xf32>
    %156 = arith.select %154, %152, %155 : vector<8x256xi1>, vector<8x256xf32>
    %c239_i32_55 = arith.constant 239 : i32
    %157 = tpu.dynamic_rotate %118 by %c239_i32_55 dim 1 : vector<8x256xf32>, i32 -> vector<8x256xf32>
    %158 = arith.andi %8, %12 : vector<1x256xi1>
    %cst_56 = arith.constant 0.000000e+00 : f32
    %159 = vector.shape_cast %158 : vector<1x256xi1> to vector<1x256xi1>
    %160 = vector.broadcast %159 : vector<1x256xi1> to vector<8x256xi1>
    %161 = vector.broadcast %cst_56 : f32 to vector<8x256xf32>
    %162 = arith.select %160, %157, %161 : vector<8x256xi1>, vector<8x256xf32>
    %163 = tpu.concatenate %124, %129, %135, %140, %118, %145, %151, %156, %162 in 0 : vector<8x256xf32>, vector<8x256xf32>, vector<8x256xf32>, vector<8x256xf32>, vector<8x256xf32>, vector<8x256xf32>, vector<8x256xf32>, vector<8x256xf32>, vector<8x256xf32> -> vector<72x256xf32>
    %164 = arith.truncf %163 : vector<72x256xf32> to vector<72x256xbf16>
    %c0_57 = arith.constant 0 : index
    %c0_58 = arith.constant 0 : index
    %165 = vector.load %arg7[%c0_57, %c0_58] : memref<8x72xbf16, #tpu.memory_space<vmem>>, vector<8x72xbf16>
    %cst_59 = arith.constant dense<0.000000e+00> : vector<8x256xf32>
    %166 = tpu.matmul %165, %164, %cst_59 {dimension_numbers = #tpu.dot_dimension_numbers<[1], [0], [0], [1], [0, 0, 1, 1], [], []>} : vector<8x72xbf16>, vector<72x256xbf16>, vector<8x256xf32> -> vector<8x256xf32>
    %c0_60 = arith.constant 0 : index
    %c0_61 = arith.constant 0 : index
    %167 = vector.load %arg6[%c0_60, %c0_61] : memref<8x1xf32, #tpu.memory_space<vmem>>, vector<8x1xf32>
    %168 = vector.broadcast %167 : vector<8x1xf32> to vector<8x256xf32>
    %169 = arith.addf %166, %168 : vector<8x256xf32>
    %170 = arith.addf %169, %65 : vector<8x256xf32>
    %cst_62 = arith.constant 0.000000e+00 : f32
    %171 = vector.broadcast %cst_62 : f32 to vector<8x256xf32>
    %172 = arith.maximumf %170, %171 : vector<8x256xf32>
    %c17_i32_63 = arith.constant 17 : i32
    %173 = tpu.dynamic_rotate %172 by %c17_i32_63 dim 1 : vector<8x256xf32>, i32 -> vector<8x256xf32>
    %174 = arith.andi %6, %10 : vector<1x256xi1>
    %cst_64 = arith.constant 0.000000e+00 : f32
    %175 = vector.shape_cast %174 : vector<1x256xi1> to vector<1x256xi1>
    %176 = vector.broadcast %175 : vector<1x256xi1> to vector<8x256xi1>
    %177 = vector.broadcast %cst_64 : f32 to vector<8x256xf32>
    %178 = arith.select %176, %173, %177 : vector<8x256xi1>, vector<8x256xf32>
    %c16_i32_65 = arith.constant 16 : i32
    %179 = tpu.dynamic_rotate %172 by %c16_i32_65 dim 1 : vector<8x256xf32>, i32 -> vector<8x256xf32>
    %cst_66 = arith.constant 0.000000e+00 : f32
    %180 = vector.shape_cast %6 : vector<1x256xi1> to vector<1x256xi1>
    %181 = vector.broadcast %180 : vector<1x256xi1> to vector<8x256xi1>
    %182 = vector.broadcast %cst_66 : f32 to vector<8x256xf32>
    %183 = arith.select %181, %179, %182 : vector<8x256xi1>, vector<8x256xf32>
    %c15_i32_67 = arith.constant 15 : i32
    %184 = tpu.dynamic_rotate %172 by %c15_i32_67 dim 1 : vector<8x256xf32>, i32 -> vector<8x256xf32>
    %185 = arith.andi %6, %12 : vector<1x256xi1>
    %cst_68 = arith.constant 0.000000e+00 : f32
    %186 = vector.shape_cast %185 : vector<1x256xi1> to vector<1x256xi1>
    %187 = vector.broadcast %186 : vector<1x256xi1> to vector<8x256xi1>
    %188 = vector.broadcast %cst_68 : f32 to vector<8x256xf32>
    %189 = arith.select %187, %184, %188 : vector<8x256xi1>, vector<8x256xf32>
    %c1_i32_69 = arith.constant 1 : i32
    %190 = tpu.dynamic_rotate %172 by %c1_i32_69 dim 1 : vector<8x256xf32>, i32 -> vector<8x256xf32>
    %cst_70 = arith.constant 0.000000e+00 : f32
    %191 = vector.shape_cast %10 : vector<1x256xi1> to vector<1x256xi1>
    %192 = vector.broadcast %191 : vector<1x256xi1> to vector<8x256xi1>
    %193 = vector.broadcast %cst_70 : f32 to vector<8x256xf32>
    %194 = arith.select %192, %190, %193 : vector<8x256xi1>, vector<8x256xf32>
    %c255_i32_71 = arith.constant 255 : i32
    %195 = tpu.dynamic_rotate %172 by %c255_i32_71 dim 1 : vector<8x256xf32>, i32 -> vector<8x256xf32>
    %cst_72 = arith.constant 0.000000e+00 : f32
    %196 = vector.shape_cast %12 : vector<1x256xi1> to vector<1x256xi1>
    %197 = vector.broadcast %196 : vector<1x256xi1> to vector<8x256xi1>
    %198 = vector.broadcast %cst_72 : f32 to vector<8x256xf32>
    %199 = arith.select %197, %195, %198 : vector<8x256xi1>, vector<8x256xf32>
    %c241_i32_73 = arith.constant 241 : i32
    %200 = tpu.dynamic_rotate %172 by %c241_i32_73 dim 1 : vector<8x256xf32>, i32 -> vector<8x256xf32>
    %201 = arith.andi %8, %10 : vector<1x256xi1>
    %cst_74 = arith.constant 0.000000e+00 : f32
    %202 = vector.shape_cast %201 : vector<1x256xi1> to vector<1x256xi1>
    %203 = vector.broadcast %202 : vector<1x256xi1> to vector<8x256xi1>
    %204 = vector.broadcast %cst_74 : f32 to vector<8x256xf32>
    %205 = arith.select %203, %200, %204 : vector<8x256xi1>, vector<8x256xf32>
    %c240_i32_75 = arith.constant 240 : i32
    %206 = tpu.dynamic_rotate %172 by %c240_i32_75 dim 1 : vector<8x256xf32>, i32 -> vector<8x256xf32>
    %cst_76 = arith.constant 0.000000e+00 : f32
    %207 = vector.shape_cast %8 : vector<1x256xi1> to vector<1x256xi1>
    %208 = vector.broadcast %207 : vector<1x256xi1> to vector<8x256xi1>
    %209 = vector.broadcast %cst_76 : f32 to vector<8x256xf32>
    %210 = arith.select %208, %206, %209 : vector<8x256xi1>, vector<8x256xf32>
    %c239_i32_77 = arith.constant 239 : i32
    %211 = tpu.dynamic_rotate %172 by %c239_i32_77 dim 1 : vector<8x256xf32>, i32 -> vector<8x256xf32>
    %212 = arith.andi %8, %12 : vector<1x256xi1>
    %cst_78 = arith.constant 0.000000e+00 : f32
    %213 = vector.shape_cast %212 : vector<1x256xi1> to vector<1x256xi1>
    %214 = vector.broadcast %213 : vector<1x256xi1> to vector<8x256xi1>
    %215 = vector.broadcast %cst_78 : f32 to vector<8x256xf32>
    %216 = arith.select %214, %211, %215 : vector<8x256xi1>, vector<8x256xf32>
    %217 = tpu.concatenate %178, %183, %189, %194, %172, %199, %205, %210, %216 in 0 : vector<8x256xf32>, vector<8x256xf32>, vector<8x256xf32>, vector<8x256xf32>, vector<8x256xf32>, vector<8x256xf32>, vector<8x256xf32>, vector<8x256xf32>, vector<8x256xf32> -> vector<72x256xf32>
    %218 = arith.truncf %217 : vector<72x256xf32> to vector<72x256xbf16>
    %c0_79 = arith.constant 0 : index
    %c0_80 = arith.constant 0 : index
    %219 = vector.load %arg9[%c0_79, %c0_80] : memref<8x72xbf16, #tpu.memory_space<vmem>>, vector<8x72xbf16>
    %cst_81 = arith.constant dense<0.000000e+00> : vector<8x256xf32>
    %220 = tpu.matmul %219, %218, %cst_81 {dimension_numbers = #tpu.dot_dimension_numbers<[1], [0], [0], [1], [0, 0, 1, 1], [], []>} : vector<8x72xbf16>, vector<72x256xbf16>, vector<8x256xf32> -> vector<8x256xf32>
    %c0_82 = arith.constant 0 : index
    %c0_83 = arith.constant 0 : index
    %221 = vector.load %arg8[%c0_82, %c0_83] : memref<8x1xf32, #tpu.memory_space<vmem>>, vector<8x1xf32>
    %222 = vector.broadcast %221 : vector<8x1xf32> to vector<8x256xf32>
    %223 = arith.addf %220, %222 : vector<8x256xf32>
    %cst_84 = arith.constant 0.000000e+00 : f32
    %224 = vector.broadcast %cst_84 : f32 to vector<8x256xf32>
    %225 = arith.maximumf %223, %224 : vector<8x256xf32>
    %c17_i32_85 = arith.constant 17 : i32
    %226 = tpu.dynamic_rotate %225 by %c17_i32_85 dim 1 : vector<8x256xf32>, i32 -> vector<8x256xf32>
    %227 = arith.andi %6, %10 : vector<1x256xi1>
    %cst_86 = arith.constant 0.000000e+00 : f32
    %228 = vector.shape_cast %227 : vector<1x256xi1> to vector<1x256xi1>
    %229 = vector.broadcast %228 : vector<1x256xi1> to vector<8x256xi1>
    %230 = vector.broadcast %cst_86 : f32 to vector<8x256xf32>
    %231 = arith.select %229, %226, %230 : vector<8x256xi1>, vector<8x256xf32>
    %c16_i32_87 = arith.constant 16 : i32
    %232 = tpu.dynamic_rotate %225 by %c16_i32_87 dim 1 : vector<8x256xf32>, i32 -> vector<8x256xf32>
    %cst_88 = arith.constant 0.000000e+00 : f32
    %233 = vector.shape_cast %6 : vector<1x256xi1> to vector<1x256xi1>
    %234 = vector.broadcast %233 : vector<1x256xi1> to vector<8x256xi1>
    %235 = vector.broadcast %cst_88 : f32 to vector<8x256xf32>
    %236 = arith.select %234, %232, %235 : vector<8x256xi1>, vector<8x256xf32>
    %c15_i32_89 = arith.constant 15 : i32
    %237 = tpu.dynamic_rotate %225 by %c15_i32_89 dim 1 : vector<8x256xf32>, i32 -> vector<8x256xf32>
    %238 = arith.andi %6, %12 : vector<1x256xi1>
    %cst_90 = arith.constant 0.000000e+00 : f32
    %239 = vector.shape_cast %238 : vector<1x256xi1> to vector<1x256xi1>
    %240 = vector.broadcast %239 : vector<1x256xi1> to vector<8x256xi1>
    %241 = vector.broadcast %cst_90 : f32 to vector<8x256xf32>
    %242 = arith.select %240, %237, %241 : vector<8x256xi1>, vector<8x256xf32>
    %c1_i32_91 = arith.constant 1 : i32
    %243 = tpu.dynamic_rotate %225 by %c1_i32_91 dim 1 : vector<8x256xf32>, i32 -> vector<8x256xf32>
    %cst_92 = arith.constant 0.000000e+00 : f32
    %244 = vector.shape_cast %10 : vector<1x256xi1> to vector<1x256xi1>
    %245 = vector.broadcast %244 : vector<1x256xi1> to vector<8x256xi1>
    %246 = vector.broadcast %cst_92 : f32 to vector<8x256xf32>
    %247 = arith.select %245, %243, %246 : vector<8x256xi1>, vector<8x256xf32>
    %c255_i32_93 = arith.constant 255 : i32
    %248 = tpu.dynamic_rotate %225 by %c255_i32_93 dim 1 : vector<8x256xf32>, i32 -> vector<8x256xf32>
    %cst_94 = arith.constant 0.000000e+00 : f32
    %249 = vector.shape_cast %12 : vector<1x256xi1> to vector<1x256xi1>
    %250 = vector.broadcast %249 : vector<1x256xi1> to vector<8x256xi1>
    %251 = vector.broadcast %cst_94 : f32 to vector<8x256xf32>
    %252 = arith.select %250, %248, %251 : vector<8x256xi1>, vector<8x256xf32>
    %c241_i32_95 = arith.constant 241 : i32
    %253 = tpu.dynamic_rotate %225 by %c241_i32_95 dim 1 : vector<8x256xf32>, i32 -> vector<8x256xf32>
    %254 = arith.andi %8, %10 : vector<1x256xi1>
    %cst_96 = arith.constant 0.000000e+00 : f32
    %255 = vector.shape_cast %254 : vector<1x256xi1> to vector<1x256xi1>
    %256 = vector.broadcast %255 : vector<1x256xi1> to vector<8x256xi1>
    %257 = vector.broadcast %cst_96 : f32 to vector<8x256xf32>
    %258 = arith.select %256, %253, %257 : vector<8x256xi1>, vector<8x256xf32>
    %c240_i32_97 = arith.constant 240 : i32
    %259 = tpu.dynamic_rotate %225 by %c240_i32_97 dim 1 : vector<8x256xf32>, i32 -> vector<8x256xf32>
    %cst_98 = arith.constant 0.000000e+00 : f32
    %260 = vector.shape_cast %8 : vector<1x256xi1> to vector<1x256xi1>
    %261 = vector.broadcast %260 : vector<1x256xi1> to vector<8x256xi1>
    %262 = vector.broadcast %cst_98 : f32 to vector<8x256xf32>
    %263 = arith.select %261, %259, %262 : vector<8x256xi1>, vector<8x256xf32>
    %c239_i32_99 = arith.constant 239 : i32
    %264 = tpu.dynamic_rotate %225 by %c239_i32_99 dim 1 : vector<8x256xf32>, i32 -> vector<8x256xf32>
    %265 = arith.andi %8, %12 : vector<1x256xi1>
    %cst_100 = arith.constant 0.000000e+00 : f32
    %266 = vector.shape_cast %265 : vector<1x256xi1> to vector<1x256xi1>
    %267 = vector.broadcast %266 : vector<1x256xi1> to vector<8x256xi1>
    %268 = vector.broadcast %cst_100 : f32 to vector<8x256xf32>
    %269 = arith.select %267, %264, %268 : vector<8x256xi1>, vector<8x256xf32>
    %270 = tpu.concatenate %231, %236, %242, %247, %225, %252, %258, %263, %269 in 0 : vector<8x256xf32>, vector<8x256xf32>, vector<8x256xf32>, vector<8x256xf32>, vector<8x256xf32>, vector<8x256xf32>, vector<8x256xf32>, vector<8x256xf32>, vector<8x256xf32> -> vector<72x256xf32>
    %271 = arith.truncf %270 : vector<72x256xf32> to vector<72x256xbf16>
    %c0_101 = arith.constant 0 : index
    %c0_102 = arith.constant 0 : index
    %272 = vector.load %arg11[%c0_101, %c0_102] : memref<8x72xbf16, #tpu.memory_space<vmem>>, vector<8x72xbf16>
    %cst_103 = arith.constant dense<0.000000e+00> : vector<8x256xf32>
    %273 = tpu.matmul %272, %271, %cst_103 {dimension_numbers = #tpu.dot_dimension_numbers<[1], [0], [0], [1], [0, 0, 1, 1], [], []>} : vector<8x72xbf16>, vector<72x256xbf16>, vector<8x256xf32> -> vector<8x256xf32>
    %c0_104 = arith.constant 0 : index
    %c0_105 = arith.constant 0 : index
    %274 = vector.load %arg10[%c0_104, %c0_105] : memref<8x1xf32, #tpu.memory_space<vmem>>, vector<8x1xf32>
    %275 = vector.broadcast %274 : vector<8x1xf32> to vector<8x256xf32>
    %276 = arith.addf %273, %275 : vector<8x256xf32>
    %277 = arith.addf %276, %172 : vector<8x256xf32>
    %cst_106 = arith.constant 0.000000e+00 : f32
    %278 = vector.broadcast %cst_106 : f32 to vector<8x256xf32>
    %279 = arith.maximumf %277, %278 : vector<8x256xf32>
    %c0_107 = arith.constant 0 : index
    %c0_108 = arith.constant 0 : index
    %280 = vector.load %arg46[%c0_107, %c0_108] : memref<256x64xf32, #tpu.memory_space<vmem>>, vector<256x64xf32>
    %cst_109 = arith.constant dense<0.000000e+00> : vector<8x64xf32>
    %281 = tpu.matmul %279, %280, %cst_109 {dimension_numbers = #tpu.dot_dimension_numbers<[1], [0], [0], [1], [0, 0, 1, 1], [], []>} : vector<8x256xf32>, vector<256x64xf32>, vector<8x64xf32> -> vector<8x64xf32>
    %c0_110 = arith.constant 0 : index
    %c0_111 = arith.constant 0 : index
    %282 = vector.load %arg17[%c0_110, %c0_111] : memref<16x8xbf16, #tpu.memory_space<vmem>>, vector<16x8xbf16>
    %283 = arith.truncf %281 : vector<8x64xf32> to vector<8x64xbf16>
    %cst_112 = arith.constant dense<0.000000e+00> : vector<16x64xf32>
    %284 = tpu.matmul %282, %283, %cst_112 {dimension_numbers = #tpu.dot_dimension_numbers<[1], [0], [0], [1], [0, 0, 1, 1], [], []>} : vector<16x8xbf16>, vector<8x64xbf16>, vector<16x64xf32> -> vector<16x64xf32>
    %c0_113 = arith.constant 0 : index
    %c0_114 = arith.constant 0 : index
    %285 = vector.load %arg16[%c0_113, %c0_114] : memref<16x1xf32, #tpu.memory_space<vmem>>, vector<16x1xf32>
    %286 = vector.broadcast %285 : vector<16x1xf32> to vector<16x64xf32>
    %287 = arith.addf %284, %286 : vector<16x64xf32>
    %c17_i32_115 = arith.constant 17 : i32
    %288 = tpu.dynamic_rotate %279 by %c17_i32_115 dim 1 : vector<8x256xf32>, i32 -> vector<8x256xf32>
    %289 = arith.andi %6, %10 : vector<1x256xi1>
    %cst_116 = arith.constant 0.000000e+00 : f32
    %290 = vector.shape_cast %289 : vector<1x256xi1> to vector<1x256xi1>
    %291 = vector.broadcast %290 : vector<1x256xi1> to vector<8x256xi1>
    %292 = vector.broadcast %cst_116 : f32 to vector<8x256xf32>
    %293 = arith.select %291, %288, %292 : vector<8x256xi1>, vector<8x256xf32>
    %c16_i32_117 = arith.constant 16 : i32
    %294 = tpu.dynamic_rotate %279 by %c16_i32_117 dim 1 : vector<8x256xf32>, i32 -> vector<8x256xf32>
    %cst_118 = arith.constant 0.000000e+00 : f32
    %295 = vector.shape_cast %6 : vector<1x256xi1> to vector<1x256xi1>
    %296 = vector.broadcast %295 : vector<1x256xi1> to vector<8x256xi1>
    %297 = vector.broadcast %cst_118 : f32 to vector<8x256xf32>
    %298 = arith.select %296, %294, %297 : vector<8x256xi1>, vector<8x256xf32>
    %c15_i32_119 = arith.constant 15 : i32
    %299 = tpu.dynamic_rotate %279 by %c15_i32_119 dim 1 : vector<8x256xf32>, i32 -> vector<8x256xf32>
    %300 = arith.andi %6, %12 : vector<1x256xi1>
    %cst_120 = arith.constant 0.000000e+00 : f32
    %301 = vector.shape_cast %300 : vector<1x256xi1> to vector<1x256xi1>
    %302 = vector.broadcast %301 : vector<1x256xi1> to vector<8x256xi1>
    %303 = vector.broadcast %cst_120 : f32 to vector<8x256xf32>
    %304 = arith.select %302, %299, %303 : vector<8x256xi1>, vector<8x256xf32>
    %c1_i32_121 = arith.constant 1 : i32
    %305 = tpu.dynamic_rotate %279 by %c1_i32_121 dim 1 : vector<8x256xf32>, i32 -> vector<8x256xf32>
    %cst_122 = arith.constant 0.000000e+00 : f32
    %306 = vector.shape_cast %10 : vector<1x256xi1> to vector<1x256xi1>
    %307 = vector.broadcast %306 : vector<1x256xi1> to vector<8x256xi1>
    %308 = vector.broadcast %cst_122 : f32 to vector<8x256xf32>
    %309 = arith.select %307, %305, %308 : vector<8x256xi1>, vector<8x256xf32>
    %c255_i32_123 = arith.constant 255 : i32
    %310 = tpu.dynamic_rotate %279 by %c255_i32_123 dim 1 : vector<8x256xf32>, i32 -> vector<8x256xf32>
    %cst_124 = arith.constant 0.000000e+00 : f32
    %311 = vector.shape_cast %12 : vector<1x256xi1> to vector<1x256xi1>
    %312 = vector.broadcast %311 : vector<1x256xi1> to vector<8x256xi1>
    %313 = vector.broadcast %cst_124 : f32 to vector<8x256xf32>
    %314 = arith.select %312, %310, %313 : vector<8x256xi1>, vector<8x256xf32>
    %c241_i32_125 = arith.constant 241 : i32
    %315 = tpu.dynamic_rotate %279 by %c241_i32_125 dim 1 : vector<8x256xf32>, i32 -> vector<8x256xf32>
    %316 = arith.andi %8, %10 : vector<1x256xi1>
    %cst_126 = arith.constant 0.000000e+00 : f32
    %317 = vector.shape_cast %316 : vector<1x256xi1> to vector<1x256xi1>
    %318 = vector.broadcast %317 : vector<1x256xi1> to vector<8x256xi1>
    %319 = vector.broadcast %cst_126 : f32 to vector<8x256xf32>
    %320 = arith.select %318, %315, %319 : vector<8x256xi1>, vector<8x256xf32>
    %c240_i32_127 = arith.constant 240 : i32
    %321 = tpu.dynamic_rotate %279 by %c240_i32_127 dim 1 : vector<8x256xf32>, i32 -> vector<8x256xf32>
    %cst_128 = arith.constant 0.000000e+00 : f32
    %322 = vector.shape_cast %8 : vector<1x256xi1> to vector<1x256xi1>
    %323 = vector.broadcast %322 : vector<1x256xi1> to vector<8x256xi1>
    %324 = vector.broadcast %cst_128 : f32 to vector<8x256xf32>
    %325 = arith.select %323, %321, %324 : vector<8x256xi1>, vector<8x256xf32>
    %c239_i32_129 = arith.constant 239 : i32
    %326 = tpu.dynamic_rotate %279 by %c239_i32_129 dim 1 : vector<8x256xf32>, i32 -> vector<8x256xf32>
    %327 = arith.andi %8, %12 : vector<1x256xi1>
    %cst_130 = arith.constant 0.000000e+00 : f32
    %328 = vector.shape_cast %327 : vector<1x256xi1> to vector<1x256xi1>
    %329 = vector.broadcast %328 : vector<1x256xi1> to vector<8x256xi1>
    %330 = vector.broadcast %cst_130 : f32 to vector<8x256xf32>
    %331 = arith.select %329, %326, %330 : vector<8x256xi1>, vector<8x256xf32>
    %332 = tpu.concatenate %293, %298, %304, %309, %279, %314, %320, %325, %331 in 0 : vector<8x256xf32>, vector<8x256xf32>, vector<8x256xf32>, vector<8x256xf32>, vector<8x256xf32>, vector<8x256xf32>, vector<8x256xf32>, vector<8x256xf32>, vector<8x256xf32> -> vector<72x256xf32>
    %333 = arith.truncf %332 : vector<72x256xf32> to vector<72x256xbf16>
    %c0_131 = arith.constant 0 : index
    %c0_132 = arith.constant 0 : index
    %334 = vector.load %arg13[%c0_131, %c0_132] : memref<16x72xbf16, #tpu.memory_space<vmem>>, vector<16x72xbf16>
    %cst_133 = arith.constant dense<0.000000e+00> : vector<16x256xf32>
    %335 = tpu.matmul %334, %333, %cst_133 {dimension_numbers = #tpu.dot_dimension_numbers<[1], [0], [0], [1], [0, 0, 1, 1], [], []>} : vector<16x72xbf16>, vector<72x256xbf16>, vector<16x256xf32> -> vector<16x256xf32>
    %c0_134 = arith.constant 0 : index
    %c0_135 = arith.constant 0 : index
    %336 = vector.load %arg46[%c0_134, %c0_135] : memref<256x64xf32, #tpu.memory_space<vmem>>, vector<256x64xf32>
    %cst_136 = arith.constant dense<0.000000e+00> : vector<16x64xf32>
    %337 = tpu.matmul %335, %336, %cst_136 {dimension_numbers = #tpu.dot_dimension_numbers<[1], [0], [0], [1], [0, 0, 1, 1], [], []>} : vector<16x256xf32>, vector<256x64xf32>, vector<16x64xf32> -> vector<16x64xf32>
    %c0_137 = arith.constant 0 : index
    %c0_138 = arith.constant 0 : index
    %338 = vector.load %arg12[%c0_137, %c0_138] : memref<16x1xf32, #tpu.memory_space<vmem>>, vector<16x1xf32>
    %339 = vector.broadcast %338 : vector<16x1xf32> to vector<16x64xf32>
    %340 = arith.addf %337, %339 : vector<16x64xf32>
    %cst_139 = arith.constant 0.000000e+00 : f32
    %341 = vector.broadcast %cst_139 : f32 to vector<16x64xf32>
    %342 = arith.maximumf %340, %341 : vector<16x64xf32>
    %343 = tpu.iota {dimensions = array<i32: 1>} : vector<1x64xi32>
    %c7_i32 = arith.constant 7 : i32
    %344 = vector.broadcast %c7_i32 : i32 to vector<1x64xi32>
    %345 = arith.andi %343, %344 : vector<1x64xi32>
    %c8_i32 = arith.constant 8 : i32
    %346 = vector.broadcast %c8_i32 : i32 to vector<1x64xi32>
    %347 = arith.cmpi sge, %343, %346 : vector<1x64xi32>
    %c56_i32 = arith.constant 56 : i32
    %348 = vector.broadcast %c56_i32 : i32 to vector<1x64xi32>
    %349 = arith.cmpi slt, %343, %348 : vector<1x64xi32>
    %c0_i32_140 = arith.constant 0 : i32
    %350 = vector.broadcast %c0_i32_140 : i32 to vector<1x64xi32>
    %351 = arith.cmpi sgt, %345, %350 : vector<1x64xi32>
    %c7_i32_141 = arith.constant 7 : i32
    %352 = vector.broadcast %c7_i32_141 : i32 to vector<1x64xi32>
    %353 = arith.cmpi slt, %345, %352 : vector<1x64xi32>
    %c9_i32 = arith.constant 9 : i32
    %354 = tpu.dynamic_rotate %342 by %c9_i32 dim 1 : vector<16x64xf32>, i32 -> vector<16x64xf32>
    %355 = arith.andi %347, %351 : vector<1x64xi1>
    %cst_142 = arith.constant 0.000000e+00 : f32
    %356 = vector.shape_cast %355 : vector<1x64xi1> to vector<1x64xi1>
    %357 = vector.broadcast %356 : vector<1x64xi1> to vector<16x64xi1>
    %358 = vector.broadcast %cst_142 : f32 to vector<16x64xf32>
    %359 = arith.select %357, %354, %358 : vector<16x64xi1>, vector<16x64xf32>
    %c8_i32_143 = arith.constant 8 : i32
    %360 = tpu.dynamic_rotate %342 by %c8_i32_143 dim 1 : vector<16x64xf32>, i32 -> vector<16x64xf32>
    %cst_144 = arith.constant 0.000000e+00 : f32
    %361 = vector.shape_cast %347 : vector<1x64xi1> to vector<1x64xi1>
    %362 = vector.broadcast %361 : vector<1x64xi1> to vector<16x64xi1>
    %363 = vector.broadcast %cst_144 : f32 to vector<16x64xf32>
    %364 = arith.select %362, %360, %363 : vector<16x64xi1>, vector<16x64xf32>
    %c7_i32_145 = arith.constant 7 : i32
    %365 = tpu.dynamic_rotate %342 by %c7_i32_145 dim 1 : vector<16x64xf32>, i32 -> vector<16x64xf32>
    %366 = arith.andi %347, %353 : vector<1x64xi1>
    %cst_146 = arith.constant 0.000000e+00 : f32
    %367 = vector.shape_cast %366 : vector<1x64xi1> to vector<1x64xi1>
    %368 = vector.broadcast %367 : vector<1x64xi1> to vector<16x64xi1>
    %369 = vector.broadcast %cst_146 : f32 to vector<16x64xf32>
    %370 = arith.select %368, %365, %369 : vector<16x64xi1>, vector<16x64xf32>
    %c1_i32_147 = arith.constant 1 : i32
    %371 = tpu.dynamic_rotate %342 by %c1_i32_147 dim 1 : vector<16x64xf32>, i32 -> vector<16x64xf32>
    %cst_148 = arith.constant 0.000000e+00 : f32
    %372 = vector.shape_cast %351 : vector<1x64xi1> to vector<1x64xi1>
    %373 = vector.broadcast %372 : vector<1x64xi1> to vector<16x64xi1>
    %374 = vector.broadcast %cst_148 : f32 to vector<16x64xf32>
    %375 = arith.select %373, %371, %374 : vector<16x64xi1>, vector<16x64xf32>
    %c63_i32 = arith.constant 63 : i32
    %376 = tpu.dynamic_rotate %342 by %c63_i32 dim 1 : vector<16x64xf32>, i32 -> vector<16x64xf32>
    %cst_149 = arith.constant 0.000000e+00 : f32
    %377 = vector.shape_cast %353 : vector<1x64xi1> to vector<1x64xi1>
    %378 = vector.broadcast %377 : vector<1x64xi1> to vector<16x64xi1>
    %379 = vector.broadcast %cst_149 : f32 to vector<16x64xf32>
    %380 = arith.select %378, %376, %379 : vector<16x64xi1>, vector<16x64xf32>
    %c57_i32 = arith.constant 57 : i32
    %381 = tpu.dynamic_rotate %342 by %c57_i32 dim 1 : vector<16x64xf32>, i32 -> vector<16x64xf32>
    %382 = arith.andi %349, %351 : vector<1x64xi1>
    %cst_150 = arith.constant 0.000000e+00 : f32
    %383 = vector.shape_cast %382 : vector<1x64xi1> to vector<1x64xi1>
    %384 = vector.broadcast %383 : vector<1x64xi1> to vector<16x64xi1>
    %385 = vector.broadcast %cst_150 : f32 to vector<16x64xf32>
    %386 = arith.select %384, %381, %385 : vector<16x64xi1>, vector<16x64xf32>
    %c56_i32_151 = arith.constant 56 : i32
    %387 = tpu.dynamic_rotate %342 by %c56_i32_151 dim 1 : vector<16x64xf32>, i32 -> vector<16x64xf32>
    %cst_152 = arith.constant 0.000000e+00 : f32
    %388 = vector.shape_cast %349 : vector<1x64xi1> to vector<1x64xi1>
    %389 = vector.broadcast %388 : vector<1x64xi1> to vector<16x64xi1>
    %390 = vector.broadcast %cst_152 : f32 to vector<16x64xf32>
    %391 = arith.select %389, %387, %390 : vector<16x64xi1>, vector<16x64xf32>
    %c55_i32 = arith.constant 55 : i32
    %392 = tpu.dynamic_rotate %342 by %c55_i32 dim 1 : vector<16x64xf32>, i32 -> vector<16x64xf32>
    %393 = arith.andi %349, %353 : vector<1x64xi1>
    %cst_153 = arith.constant 0.000000e+00 : f32
    %394 = vector.shape_cast %393 : vector<1x64xi1> to vector<1x64xi1>
    %395 = vector.broadcast %394 : vector<1x64xi1> to vector<16x64xi1>
    %396 = vector.broadcast %cst_153 : f32 to vector<16x64xf32>
    %397 = arith.select %395, %392, %396 : vector<16x64xi1>, vector<16x64xf32>
    %398 = tpu.concatenate %359, %364, %370, %375, %342, %380, %386, %391, %397 in 0 : vector<16x64xf32>, vector<16x64xf32>, vector<16x64xf32>, vector<16x64xf32>, vector<16x64xf32>, vector<16x64xf32>, vector<16x64xf32>, vector<16x64xf32>, vector<16x64xf32> -> vector<144x64xf32>
    %399 = arith.truncf %398 : vector<144x64xf32> to vector<144x64xbf16>
    %c0_154 = arith.constant 0 : index
    %c0_155 = arith.constant 0 : index
    %400 = vector.load %arg15[%c0_154, %c0_155] : memref<16x144xbf16, #tpu.memory_space<vmem>>, vector<16x144xbf16>
    %cst_156 = arith.constant dense<0.000000e+00> : vector<16x64xf32>
    %401 = tpu.matmul %400, %399, %cst_156 {dimension_numbers = #tpu.dot_dimension_numbers<[1], [0], [0], [1], [0, 0, 1, 1], [], []>} : vector<16x144xbf16>, vector<144x64xbf16>, vector<16x64xf32> -> vector<16x64xf32>
    %c0_157 = arith.constant 0 : index
    %c0_158 = arith.constant 0 : index
    %402 = vector.load %arg14[%c0_157, %c0_158] : memref<16x1xf32, #tpu.memory_space<vmem>>, vector<16x1xf32>
    %403 = vector.broadcast %402 : vector<16x1xf32> to vector<16x64xf32>
    %404 = arith.addf %401, %403 : vector<16x64xf32>
    %405 = arith.addf %404, %287 : vector<16x64xf32>
    %cst_159 = arith.constant 0.000000e+00 : f32
    %406 = vector.broadcast %cst_159 : f32 to vector<16x64xf32>
    %407 = arith.maximumf %405, %406 : vector<16x64xf32>
    %c9_i32_160 = arith.constant 9 : i32
    %408 = tpu.dynamic_rotate %407 by %c9_i32_160 dim 1 : vector<16x64xf32>, i32 -> vector<16x64xf32>
    %409 = arith.andi %347, %351 : vector<1x64xi1>
    %cst_161 = arith.constant 0.000000e+00 : f32
    %410 = vector.shape_cast %409 : vector<1x64xi1> to vector<1x64xi1>
    %411 = vector.broadcast %410 : vector<1x64xi1> to vector<16x64xi1>
    %412 = vector.broadcast %cst_161 : f32 to vector<16x64xf32>
    %413 = arith.select %411, %408, %412 : vector<16x64xi1>, vector<16x64xf32>
    %c8_i32_162 = arith.constant 8 : i32
    %414 = tpu.dynamic_rotate %407 by %c8_i32_162 dim 1 : vector<16x64xf32>, i32 -> vector<16x64xf32>
    %cst_163 = arith.constant 0.000000e+00 : f32
    %415 = vector.shape_cast %347 : vector<1x64xi1> to vector<1x64xi1>
    %416 = vector.broadcast %415 : vector<1x64xi1> to vector<16x64xi1>
    %417 = vector.broadcast %cst_163 : f32 to vector<16x64xf32>
    %418 = arith.select %416, %414, %417 : vector<16x64xi1>, vector<16x64xf32>
    %c7_i32_164 = arith.constant 7 : i32
    %419 = tpu.dynamic_rotate %407 by %c7_i32_164 dim 1 : vector<16x64xf32>, i32 -> vector<16x64xf32>
    %420 = arith.andi %347, %353 : vector<1x64xi1>
    %cst_165 = arith.constant 0.000000e+00 : f32
    %421 = vector.shape_cast %420 : vector<1x64xi1> to vector<1x64xi1>
    %422 = vector.broadcast %421 : vector<1x64xi1> to vector<16x64xi1>
    %423 = vector.broadcast %cst_165 : f32 to vector<16x64xf32>
    %424 = arith.select %422, %419, %423 : vector<16x64xi1>, vector<16x64xf32>
    %c1_i32_166 = arith.constant 1 : i32
    %425 = tpu.dynamic_rotate %407 by %c1_i32_166 dim 1 : vector<16x64xf32>, i32 -> vector<16x64xf32>
    %cst_167 = arith.constant 0.000000e+00 : f32
    %426 = vector.shape_cast %351 : vector<1x64xi1> to vector<1x64xi1>
    %427 = vector.broadcast %426 : vector<1x64xi1> to vector<16x64xi1>
    %428 = vector.broadcast %cst_167 : f32 to vector<16x64xf32>
    %429 = arith.select %427, %425, %428 : vector<16x64xi1>, vector<16x64xf32>
    %c63_i32_168 = arith.constant 63 : i32
    %430 = tpu.dynamic_rotate %407 by %c63_i32_168 dim 1 : vector<16x64xf32>, i32 -> vector<16x64xf32>
    %cst_169 = arith.constant 0.000000e+00 : f32
    %431 = vector.shape_cast %353 : vector<1x64xi1> to vector<1x64xi1>
    %432 = vector.broadcast %431 : vector<1x64xi1> to vector<16x64xi1>
    %433 = vector.broadcast %cst_169 : f32 to vector<16x64xf32>
    %434 = arith.select %432, %430, %433 : vector<16x64xi1>, vector<16x64xf32>
    %c57_i32_170 = arith.constant 57 : i32
    %435 = tpu.dynamic_rotate %407 by %c57_i32_170 dim 1 : vector<16x64xf32>, i32 -> vector<16x64xf32>
    %436 = arith.andi %349, %351 : vector<1x64xi1>
    %cst_171 = arith.constant 0.000000e+00 : f32
    %437 = vector.shape_cast %436 : vector<1x64xi1> to vector<1x64xi1>
    %438 = vector.broadcast %437 : vector<1x64xi1> to vector<16x64xi1>
    %439 = vector.broadcast %cst_171 : f32 to vector<16x64xf32>
    %440 = arith.select %438, %435, %439 : vector<16x64xi1>, vector<16x64xf32>
    %c56_i32_172 = arith.constant 56 : i32
    %441 = tpu.dynamic_rotate %407 by %c56_i32_172 dim 1 : vector<16x64xf32>, i32 -> vector<16x64xf32>
    %cst_173 = arith.constant 0.000000e+00 : f32
    %442 = vector.shape_cast %349 : vector<1x64xi1> to vector<1x64xi1>
    %443 = vector.broadcast %442 : vector<1x64xi1> to vector<16x64xi1>
    %444 = vector.broadcast %cst_173 : f32 to vector<16x64xf32>
    %445 = arith.select %443, %441, %444 : vector<16x64xi1>, vector<16x64xf32>
    %c55_i32_174 = arith.constant 55 : i32
    %446 = tpu.dynamic_rotate %407 by %c55_i32_174 dim 1 : vector<16x64xf32>, i32 -> vector<16x64xf32>
    %447 = arith.andi %349, %353 : vector<1x64xi1>
    %cst_175 = arith.constant 0.000000e+00 : f32
    %448 = vector.shape_cast %447 : vector<1x64xi1> to vector<1x64xi1>
    %449 = vector.broadcast %448 : vector<1x64xi1> to vector<16x64xi1>
    %450 = vector.broadcast %cst_175 : f32 to vector<16x64xf32>
    %451 = arith.select %449, %446, %450 : vector<16x64xi1>, vector<16x64xf32>
    %452 = tpu.concatenate %413, %418, %424, %429, %407, %434, %440, %445, %451 in 0 : vector<16x64xf32>, vector<16x64xf32>, vector<16x64xf32>, vector<16x64xf32>, vector<16x64xf32>, vector<16x64xf32>, vector<16x64xf32>, vector<16x64xf32>, vector<16x64xf32> -> vector<144x64xf32>
    %453 = arith.truncf %452 : vector<144x64xf32> to vector<144x64xbf16>
    %c0_176 = arith.constant 0 : index
    %c0_177 = arith.constant 0 : index
    %454 = vector.load %arg19[%c0_176, %c0_177] : memref<16x144xbf16, #tpu.memory_space<vmem>>, vector<16x144xbf16>
    %cst_178 = arith.constant dense<0.000000e+00> : vector<16x64xf32>
    %455 = tpu.matmul %454, %453, %cst_178 {dimension_numbers = #tpu.dot_dimension_numbers<[1], [0], [0], [1], [0, 0, 1, 1], [], []>} : vector<16x144xbf16>, vector<144x64xbf16>, vector<16x64xf32> -> vector<16x64xf32>
    %c0_179 = arith.constant 0 : index
    %c0_180 = arith.constant 0 : index
    %456 = vector.load %arg18[%c0_179, %c0_180] : memref<16x1xf32, #tpu.memory_space<vmem>>, vector<16x1xf32>
    %457 = vector.broadcast %456 : vector<16x1xf32> to vector<16x64xf32>
    %458 = arith.addf %455, %457 : vector<16x64xf32>
    %cst_181 = arith.constant 0.000000e+00 : f32
    %459 = vector.broadcast %cst_181 : f32 to vector<16x64xf32>
    %460 = arith.maximumf %458, %459 : vector<16x64xf32>
    %c9_i32_182 = arith.constant 9 : i32
    %461 = tpu.dynamic_rotate %460 by %c9_i32_182 dim 1 : vector<16x64xf32>, i32 -> vector<16x64xf32>
    %462 = arith.andi %347, %351 : vector<1x64xi1>
    %cst_183 = arith.constant 0.000000e+00 : f32
    %463 = vector.shape_cast %462 : vector<1x64xi1> to vector<1x64xi1>
    %464 = vector.broadcast %463 : vector<1x64xi1> to vector<16x64xi1>
    %465 = vector.broadcast %cst_183 : f32 to vector<16x64xf32>
    %466 = arith.select %464, %461, %465 : vector<16x64xi1>, vector<16x64xf32>
    %c8_i32_184 = arith.constant 8 : i32
    %467 = tpu.dynamic_rotate %460 by %c8_i32_184 dim 1 : vector<16x64xf32>, i32 -> vector<16x64xf32>
    %cst_185 = arith.constant 0.000000e+00 : f32
    %468 = vector.shape_cast %347 : vector<1x64xi1> to vector<1x64xi1>
    %469 = vector.broadcast %468 : vector<1x64xi1> to vector<16x64xi1>
    %470 = vector.broadcast %cst_185 : f32 to vector<16x64xf32>
    %471 = arith.select %469, %467, %470 : vector<16x64xi1>, vector<16x64xf32>
    %c7_i32_186 = arith.constant 7 : i32
    %472 = tpu.dynamic_rotate %460 by %c7_i32_186 dim 1 : vector<16x64xf32>, i32 -> vector<16x64xf32>
    %473 = arith.andi %347, %353 : vector<1x64xi1>
    %cst_187 = arith.constant 0.000000e+00 : f32
    %474 = vector.shape_cast %473 : vector<1x64xi1> to vector<1x64xi1>
    %475 = vector.broadcast %474 : vector<1x64xi1> to vector<16x64xi1>
    %476 = vector.broadcast %cst_187 : f32 to vector<16x64xf32>
    %477 = arith.select %475, %472, %476 : vector<16x64xi1>, vector<16x64xf32>
    %c1_i32_188 = arith.constant 1 : i32
    %478 = tpu.dynamic_rotate %460 by %c1_i32_188 dim 1 : vector<16x64xf32>, i32 -> vector<16x64xf32>
    %cst_189 = arith.constant 0.000000e+00 : f32
    %479 = vector.shape_cast %351 : vector<1x64xi1> to vector<1x64xi1>
    %480 = vector.broadcast %479 : vector<1x64xi1> to vector<16x64xi1>
    %481 = vector.broadcast %cst_189 : f32 to vector<16x64xf32>
    %482 = arith.select %480, %478, %481 : vector<16x64xi1>, vector<16x64xf32>
    %c63_i32_190 = arith.constant 63 : i32
    %483 = tpu.dynamic_rotate %460 by %c63_i32_190 dim 1 : vector<16x64xf32>, i32 -> vector<16x64xf32>
    %cst_191 = arith.constant 0.000000e+00 : f32
    %484 = vector.shape_cast %353 : vector<1x64xi1> to vector<1x64xi1>
    %485 = vector.broadcast %484 : vector<1x64xi1> to vector<16x64xi1>
    %486 = vector.broadcast %cst_191 : f32 to vector<16x64xf32>
    %487 = arith.select %485, %483, %486 : vector<16x64xi1>, vector<16x64xf32>
    %c57_i32_192 = arith.constant 57 : i32
    %488 = tpu.dynamic_rotate %460 by %c57_i32_192 dim 1 : vector<16x64xf32>, i32 -> vector<16x64xf32>
    %489 = arith.andi %349, %351 : vector<1x64xi1>
    %cst_193 = arith.constant 0.000000e+00 : f32
    %490 = vector.shape_cast %489 : vector<1x64xi1> to vector<1x64xi1>
    %491 = vector.broadcast %490 : vector<1x64xi1> to vector<16x64xi1>
    %492 = vector.broadcast %cst_193 : f32 to vector<16x64xf32>
    %493 = arith.select %491, %488, %492 : vector<16x64xi1>, vector<16x64xf32>
    %c56_i32_194 = arith.constant 56 : i32
    %494 = tpu.dynamic_rotate %460 by %c56_i32_194 dim 1 : vector<16x64xf32>, i32 -> vector<16x64xf32>
    %cst_195 = arith.constant 0.000000e+00 : f32
    %495 = vector.shape_cast %349 : vector<1x64xi1> to vector<1x64xi1>
    %496 = vector.broadcast %495 : vector<1x64xi1> to vector<16x64xi1>
    %497 = vector.broadcast %cst_195 : f32 to vector<16x64xf32>
    %498 = arith.select %496, %494, %497 : vector<16x64xi1>, vector<16x64xf32>
    %c55_i32_196 = arith.constant 55 : i32
    %499 = tpu.dynamic_rotate %460 by %c55_i32_196 dim 1 : vector<16x64xf32>, i32 -> vector<16x64xf32>
    %500 = arith.andi %349, %353 : vector<1x64xi1>
    %cst_197 = arith.constant 0.000000e+00 : f32
    %501 = vector.shape_cast %500 : vector<1x64xi1> to vector<1x64xi1>
    %502 = vector.broadcast %501 : vector<1x64xi1> to vector<16x64xi1>
    %503 = vector.broadcast %cst_197 : f32 to vector<16x64xf32>
    %504 = arith.select %502, %499, %503 : vector<16x64xi1>, vector<16x64xf32>
    %505 = tpu.concatenate %466, %471, %477, %482, %460, %487, %493, %498, %504 in 0 : vector<16x64xf32>, vector<16x64xf32>, vector<16x64xf32>, vector<16x64xf32>, vector<16x64xf32>, vector<16x64xf32>, vector<16x64xf32>, vector<16x64xf32>, vector<16x64xf32> -> vector<144x64xf32>
    %506 = arith.truncf %505 : vector<144x64xf32> to vector<144x64xbf16>
    %c0_198 = arith.constant 0 : index
    %c0_199 = arith.constant 0 : index
    %507 = vector.load %arg21[%c0_198, %c0_199] : memref<16x144xbf16, #tpu.memory_space<vmem>>, vector<16x144xbf16>
    %cst_200 = arith.constant dense<0.000000e+00> : vector<16x64xf32>
    %508 = tpu.matmul %507, %506, %cst_200 {dimension_numbers = #tpu.dot_dimension_numbers<[1], [0], [0], [1], [0, 0, 1, 1], [], []>} : vector<16x144xbf16>, vector<144x64xbf16>, vector<16x64xf32> -> vector<16x64xf32>
    %c0_201 = arith.constant 0 : index
    %c0_202 = arith.constant 0 : index
    %509 = vector.load %arg20[%c0_201, %c0_202] : memref<16x1xf32, #tpu.memory_space<vmem>>, vector<16x1xf32>
    %510 = vector.broadcast %509 : vector<16x1xf32> to vector<16x64xf32>
    %511 = arith.addf %508, %510 : vector<16x64xf32>
    %512 = arith.addf %511, %407 : vector<16x64xf32>
    %cst_203 = arith.constant 0.000000e+00 : f32
    %513 = vector.broadcast %cst_203 : f32 to vector<16x64xf32>
    %514 = arith.maximumf %512, %513 : vector<16x64xf32>
    %c0_204 = arith.constant 0 : index
    %c0_205 = arith.constant 0 : index
    %515 = vector.load %arg45[%c0_204, %c0_205] : memref<64x16xf32, #tpu.memory_space<vmem>>, vector<64x16xf32>
    %cst_206 = arith.constant dense<0.000000e+00> : vector<16x16xf32>
    %516 = tpu.matmul %514, %515, %cst_206 {dimension_numbers = #tpu.dot_dimension_numbers<[1], [0], [0], [1], [0, 0, 1, 1], [], []>} : vector<16x64xf32>, vector<64x16xf32>, vector<16x16xf32> -> vector<16x16xf32>
    %c0_207 = arith.constant 0 : index
    %c0_208 = arith.constant 0 : index
    %517 = vector.load %arg27[%c0_207, %c0_208] : memref<32x16xbf16, #tpu.memory_space<vmem>>, vector<32x16xbf16>
    %518 = arith.truncf %516 : vector<16x16xf32> to vector<16x16xbf16>
    %cst_209 = arith.constant dense<0.000000e+00> : vector<32x16xf32>
    %519 = tpu.matmul %517, %518, %cst_209 {dimension_numbers = #tpu.dot_dimension_numbers<[1], [0], [0], [1], [0, 0, 1, 1], [], []>} : vector<32x16xbf16>, vector<16x16xbf16>, vector<32x16xf32> -> vector<32x16xf32>
    %c0_210 = arith.constant 0 : index
    %c0_211 = arith.constant 0 : index
    %520 = vector.load %arg26[%c0_210, %c0_211] : memref<32x1xf32, #tpu.memory_space<vmem>>, vector<32x1xf32>
    %521 = vector.broadcast %520 : vector<32x1xf32> to vector<32x16xf32>
    %522 = arith.addf %519, %521 : vector<32x16xf32>
    %c9_i32_212 = arith.constant 9 : i32
    %523 = tpu.dynamic_rotate %514 by %c9_i32_212 dim 1 : vector<16x64xf32>, i32 -> vector<16x64xf32>
    %524 = arith.andi %347, %351 : vector<1x64xi1>
    %cst_213 = arith.constant 0.000000e+00 : f32
    %525 = vector.shape_cast %524 : vector<1x64xi1> to vector<1x64xi1>
    %526 = vector.broadcast %525 : vector<1x64xi1> to vector<16x64xi1>
    %527 = vector.broadcast %cst_213 : f32 to vector<16x64xf32>
    %528 = arith.select %526, %523, %527 : vector<16x64xi1>, vector<16x64xf32>
    %c8_i32_214 = arith.constant 8 : i32
    %529 = tpu.dynamic_rotate %514 by %c8_i32_214 dim 1 : vector<16x64xf32>, i32 -> vector<16x64xf32>
    %cst_215 = arith.constant 0.000000e+00 : f32
    %530 = vector.shape_cast %347 : vector<1x64xi1> to vector<1x64xi1>
    %531 = vector.broadcast %530 : vector<1x64xi1> to vector<16x64xi1>
    %532 = vector.broadcast %cst_215 : f32 to vector<16x64xf32>
    %533 = arith.select %531, %529, %532 : vector<16x64xi1>, vector<16x64xf32>
    %c7_i32_216 = arith.constant 7 : i32
    %534 = tpu.dynamic_rotate %514 by %c7_i32_216 dim 1 : vector<16x64xf32>, i32 -> vector<16x64xf32>
    %535 = arith.andi %347, %353 : vector<1x64xi1>
    %cst_217 = arith.constant 0.000000e+00 : f32
    %536 = vector.shape_cast %535 : vector<1x64xi1> to vector<1x64xi1>
    %537 = vector.broadcast %536 : vector<1x64xi1> to vector<16x64xi1>
    %538 = vector.broadcast %cst_217 : f32 to vector<16x64xf32>
    %539 = arith.select %537, %534, %538 : vector<16x64xi1>, vector<16x64xf32>
    %c1_i32_218 = arith.constant 1 : i32
    %540 = tpu.dynamic_rotate %514 by %c1_i32_218 dim 1 : vector<16x64xf32>, i32 -> vector<16x64xf32>
    %cst_219 = arith.constant 0.000000e+00 : f32
    %541 = vector.shape_cast %351 : vector<1x64xi1> to vector<1x64xi1>
    %542 = vector.broadcast %541 : vector<1x64xi1> to vector<16x64xi1>
    %543 = vector.broadcast %cst_219 : f32 to vector<16x64xf32>
    %544 = arith.select %542, %540, %543 : vector<16x64xi1>, vector<16x64xf32>
    %c63_i32_220 = arith.constant 63 : i32
    %545 = tpu.dynamic_rotate %514 by %c63_i32_220 dim 1 : vector<16x64xf32>, i32 -> vector<16x64xf32>
    %cst_221 = arith.constant 0.000000e+00 : f32
    %546 = vector.shape_cast %353 : vector<1x64xi1> to vector<1x64xi1>
    %547 = vector.broadcast %546 : vector<1x64xi1> to vector<16x64xi1>
    %548 = vector.broadcast %cst_221 : f32 to vector<16x64xf32>
    %549 = arith.select %547, %545, %548 : vector<16x64xi1>, vector<16x64xf32>
    %c57_i32_222 = arith.constant 57 : i32
    %550 = tpu.dynamic_rotate %514 by %c57_i32_222 dim 1 : vector<16x64xf32>, i32 -> vector<16x64xf32>
    %551 = arith.andi %349, %351 : vector<1x64xi1>
    %cst_223 = arith.constant 0.000000e+00 : f32
    %552 = vector.shape_cast %551 : vector<1x64xi1> to vector<1x64xi1>
    %553 = vector.broadcast %552 : vector<1x64xi1> to vector<16x64xi1>
    %554 = vector.broadcast %cst_223 : f32 to vector<16x64xf32>
    %555 = arith.select %553, %550, %554 : vector<16x64xi1>, vector<16x64xf32>
    %c56_i32_224 = arith.constant 56 : i32
    %556 = tpu.dynamic_rotate %514 by %c56_i32_224 dim 1 : vector<16x64xf32>, i32 -> vector<16x64xf32>
    %cst_225 = arith.constant 0.000000e+00 : f32
    %557 = vector.shape_cast %349 : vector<1x64xi1> to vector<1x64xi1>
    %558 = vector.broadcast %557 : vector<1x64xi1> to vector<16x64xi1>
    %559 = vector.broadcast %cst_225 : f32 to vector<16x64xf32>
    %560 = arith.select %558, %556, %559 : vector<16x64xi1>, vector<16x64xf32>
    %c55_i32_226 = arith.constant 55 : i32
    %561 = tpu.dynamic_rotate %514 by %c55_i32_226 dim 1 : vector<16x64xf32>, i32 -> vector<16x64xf32>
    %562 = arith.andi %349, %353 : vector<1x64xi1>
    %cst_227 = arith.constant 0.000000e+00 : f32
    %563 = vector.shape_cast %562 : vector<1x64xi1> to vector<1x64xi1>
    %564 = vector.broadcast %563 : vector<1x64xi1> to vector<16x64xi1>
    %565 = vector.broadcast %cst_227 : f32 to vector<16x64xf32>
    %566 = arith.select %564, %561, %565 : vector<16x64xi1>, vector<16x64xf32>
    %567 = tpu.concatenate %528, %533, %539, %544, %514, %549, %555, %560, %566 in 0 : vector<16x64xf32>, vector<16x64xf32>, vector<16x64xf32>, vector<16x64xf32>, vector<16x64xf32>, vector<16x64xf32>, vector<16x64xf32>, vector<16x64xf32>, vector<16x64xf32> -> vector<144x64xf32>
    %568 = arith.truncf %567 : vector<144x64xf32> to vector<144x64xbf16>
    %c0_228 = arith.constant 0 : index
    %c0_229 = arith.constant 0 : index
    %569 = vector.load %arg23[%c0_228, %c0_229] : memref<32x144xbf16, #tpu.memory_space<vmem>>, vector<32x144xbf16>
    %cst_230 = arith.constant dense<0.000000e+00> : vector<32x64xf32>
    %570 = tpu.matmul %569, %568, %cst_230 {dimension_numbers = #tpu.dot_dimension_numbers<[1], [0], [0], [1], [0, 0, 1, 1], [], []>} : vector<32x144xbf16>, vector<144x64xbf16>, vector<32x64xf32> -> vector<32x64xf32>
    %c0_231 = arith.constant 0 : index
    %c0_232 = arith.constant 0 : index
    %571 = vector.load %arg45[%c0_231, %c0_232] : memref<64x16xf32, #tpu.memory_space<vmem>>, vector<64x16xf32>
    %cst_233 = arith.constant dense<0.000000e+00> : vector<32x16xf32>
    %572 = tpu.matmul %570, %571, %cst_233 {dimension_numbers = #tpu.dot_dimension_numbers<[1], [0], [0], [1], [0, 0, 1, 1], [], []>} : vector<32x64xf32>, vector<64x16xf32>, vector<32x16xf32> -> vector<32x16xf32>
    %c0_234 = arith.constant 0 : index
    %c0_235 = arith.constant 0 : index
    %573 = vector.load %arg22[%c0_234, %c0_235] : memref<32x1xf32, #tpu.memory_space<vmem>>, vector<32x1xf32>
    %574 = vector.broadcast %573 : vector<32x1xf32> to vector<32x16xf32>
    %575 = arith.addf %572, %574 : vector<32x16xf32>
    %cst_236 = arith.constant 0.000000e+00 : f32
    %576 = vector.broadcast %cst_236 : f32 to vector<32x16xf32>
    %577 = arith.maximumf %575, %576 : vector<32x16xf32>
    %578 = tpu.iota {dimensions = array<i32: 1>} : vector<1x16xi32>
    %c3_i32 = arith.constant 3 : i32
    %579 = vector.broadcast %c3_i32 : i32 to vector<1x16xi32>
    %580 = arith.andi %578, %579 : vector<1x16xi32>
    %c4_i32 = arith.constant 4 : i32
    %581 = vector.broadcast %c4_i32 : i32 to vector<1x16xi32>
    %582 = arith.cmpi sge, %578, %581 : vector<1x16xi32>
    %c12_i32 = arith.constant 12 : i32
    %583 = vector.broadcast %c12_i32 : i32 to vector<1x16xi32>
    %584 = arith.cmpi slt, %578, %583 : vector<1x16xi32>
    %c0_i32_237 = arith.constant 0 : i32
    %585 = vector.broadcast %c0_i32_237 : i32 to vector<1x16xi32>
    %586 = arith.cmpi sgt, %580, %585 : vector<1x16xi32>
    %c3_i32_238 = arith.constant 3 : i32
    %587 = vector.broadcast %c3_i32_238 : i32 to vector<1x16xi32>
    %588 = arith.cmpi slt, %580, %587 : vector<1x16xi32>
    %c5_i32 = arith.constant 5 : i32
    %589 = tpu.dynamic_rotate %577 by %c5_i32 dim 1 : vector<32x16xf32>, i32 -> vector<32x16xf32>
    %590 = arith.andi %582, %586 : vector<1x16xi1>
    %cst_239 = arith.constant 0.000000e+00 : f32
    %591 = vector.shape_cast %590 : vector<1x16xi1> to vector<1x16xi1>
    %592 = vector.broadcast %591 : vector<1x16xi1> to vector<32x16xi1>
    %593 = vector.broadcast %cst_239 : f32 to vector<32x16xf32>
    %594 = arith.select %592, %589, %593 : vector<32x16xi1>, vector<32x16xf32>
    %c4_i32_240 = arith.constant 4 : i32
    %595 = tpu.dynamic_rotate %577 by %c4_i32_240 dim 1 : vector<32x16xf32>, i32 -> vector<32x16xf32>
    %cst_241 = arith.constant 0.000000e+00 : f32
    %596 = vector.shape_cast %582 : vector<1x16xi1> to vector<1x16xi1>
    %597 = vector.broadcast %596 : vector<1x16xi1> to vector<32x16xi1>
    %598 = vector.broadcast %cst_241 : f32 to vector<32x16xf32>
    %599 = arith.select %597, %595, %598 : vector<32x16xi1>, vector<32x16xf32>
    %c3_i32_242 = arith.constant 3 : i32
    %600 = tpu.dynamic_rotate %577 by %c3_i32_242 dim 1 : vector<32x16xf32>, i32 -> vector<32x16xf32>
    %601 = arith.andi %582, %588 : vector<1x16xi1>
    %cst_243 = arith.constant 0.000000e+00 : f32
    %602 = vector.shape_cast %601 : vector<1x16xi1> to vector<1x16xi1>
    %603 = vector.broadcast %602 : vector<1x16xi1> to vector<32x16xi1>
    %604 = vector.broadcast %cst_243 : f32 to vector<32x16xf32>
    %605 = arith.select %603, %600, %604 : vector<32x16xi1>, vector<32x16xf32>
    %c1_i32_244 = arith.constant 1 : i32
    %606 = tpu.dynamic_rotate %577 by %c1_i32_244 dim 1 : vector<32x16xf32>, i32 -> vector<32x16xf32>
    %cst_245 = arith.constant 0.000000e+00 : f32
    %607 = vector.shape_cast %586 : vector<1x16xi1> to vector<1x16xi1>
    %608 = vector.broadcast %607 : vector<1x16xi1> to vector<32x16xi1>
    %609 = vector.broadcast %cst_245 : f32 to vector<32x16xf32>
    %610 = arith.select %608, %606, %609 : vector<32x16xi1>, vector<32x16xf32>
    %c15_i32_246 = arith.constant 15 : i32
    %611 = tpu.dynamic_rotate %577 by %c15_i32_246 dim 1 : vector<32x16xf32>, i32 -> vector<32x16xf32>
    %cst_247 = arith.constant 0.000000e+00 : f32
    %612 = vector.shape_cast %588 : vector<1x16xi1> to vector<1x16xi1>
    %613 = vector.broadcast %612 : vector<1x16xi1> to vector<32x16xi1>
    %614 = vector.broadcast %cst_247 : f32 to vector<32x16xf32>
    %615 = arith.select %613, %611, %614 : vector<32x16xi1>, vector<32x16xf32>
    %c13_i32 = arith.constant 13 : i32
    %616 = tpu.dynamic_rotate %577 by %c13_i32 dim 1 : vector<32x16xf32>, i32 -> vector<32x16xf32>
    %617 = arith.andi %584, %586 : vector<1x16xi1>
    %cst_248 = arith.constant 0.000000e+00 : f32
    %618 = vector.shape_cast %617 : vector<1x16xi1> to vector<1x16xi1>
    %619 = vector.broadcast %618 : vector<1x16xi1> to vector<32x16xi1>
    %620 = vector.broadcast %cst_248 : f32 to vector<32x16xf32>
    %621 = arith.select %619, %616, %620 : vector<32x16xi1>, vector<32x16xf32>
    %c12_i32_249 = arith.constant 12 : i32
    %622 = tpu.dynamic_rotate %577 by %c12_i32_249 dim 1 : vector<32x16xf32>, i32 -> vector<32x16xf32>
    %cst_250 = arith.constant 0.000000e+00 : f32
    %623 = vector.shape_cast %584 : vector<1x16xi1> to vector<1x16xi1>
    %624 = vector.broadcast %623 : vector<1x16xi1> to vector<32x16xi1>
    %625 = vector.broadcast %cst_250 : f32 to vector<32x16xf32>
    %626 = arith.select %624, %622, %625 : vector<32x16xi1>, vector<32x16xf32>
    %c11_i32 = arith.constant 11 : i32
    %627 = tpu.dynamic_rotate %577 by %c11_i32 dim 1 : vector<32x16xf32>, i32 -> vector<32x16xf32>
    %628 = arith.andi %584, %588 : vector<1x16xi1>
    %cst_251 = arith.constant 0.000000e+00 : f32
    %629 = vector.shape_cast %628 : vector<1x16xi1> to vector<1x16xi1>
    %630 = vector.broadcast %629 : vector<1x16xi1> to vector<32x16xi1>
    %631 = vector.broadcast %cst_251 : f32 to vector<32x16xf32>
    %632 = arith.select %630, %627, %631 : vector<32x16xi1>, vector<32x16xf32>
    %633 = tpu.concatenate %594, %599, %605, %610, %577, %615, %621, %626, %632 in 0 : vector<32x16xf32>, vector<32x16xf32>, vector<32x16xf32>, vector<32x16xf32>, vector<32x16xf32>, vector<32x16xf32>, vector<32x16xf32>, vector<32x16xf32>, vector<32x16xf32> -> vector<288x16xf32>
    %634 = arith.truncf %633 : vector<288x16xf32> to vector<288x16xbf16>
    %c0_252 = arith.constant 0 : index
    %c0_253 = arith.constant 0 : index
    %635 = vector.load %arg25[%c0_252, %c0_253] : memref<32x288xbf16, #tpu.memory_space<vmem>>, vector<32x288xbf16>
    %cst_254 = arith.constant dense<0.000000e+00> : vector<32x16xf32>
    %636 = tpu.matmul %635, %634, %cst_254 {dimension_numbers = #tpu.dot_dimension_numbers<[1], [0], [0], [1], [0, 0, 1, 1], [], []>} : vector<32x288xbf16>, vector<288x16xbf16>, vector<32x16xf32> -> vector<32x16xf32>
    %c0_255 = arith.constant 0 : index
    %c0_256 = arith.constant 0 : index
    %637 = vector.load %arg24[%c0_255, %c0_256] : memref<32x1xf32, #tpu.memory_space<vmem>>, vector<32x1xf32>
    %638 = vector.broadcast %637 : vector<32x1xf32> to vector<32x16xf32>
    %639 = arith.addf %636, %638 : vector<32x16xf32>
    %640 = arith.addf %639, %522 : vector<32x16xf32>
    %cst_257 = arith.constant 0.000000e+00 : f32
    %641 = vector.broadcast %cst_257 : f32 to vector<32x16xf32>
    %642 = arith.maximumf %640, %641 : vector<32x16xf32>
    %c5_i32_258 = arith.constant 5 : i32
    %643 = tpu.dynamic_rotate %642 by %c5_i32_258 dim 1 : vector<32x16xf32>, i32 -> vector<32x16xf32>
    %644 = arith.andi %582, %586 : vector<1x16xi1>
    %cst_259 = arith.constant 0.000000e+00 : f32
    %645 = vector.shape_cast %644 : vector<1x16xi1> to vector<1x16xi1>
    %646 = vector.broadcast %645 : vector<1x16xi1> to vector<32x16xi1>
    %647 = vector.broadcast %cst_259 : f32 to vector<32x16xf32>
    %648 = arith.select %646, %643, %647 : vector<32x16xi1>, vector<32x16xf32>
    %c4_i32_260 = arith.constant 4 : i32
    %649 = tpu.dynamic_rotate %642 by %c4_i32_260 dim 1 : vector<32x16xf32>, i32 -> vector<32x16xf32>
    %cst_261 = arith.constant 0.000000e+00 : f32
    %650 = vector.shape_cast %582 : vector<1x16xi1> to vector<1x16xi1>
    %651 = vector.broadcast %650 : vector<1x16xi1> to vector<32x16xi1>
    %652 = vector.broadcast %cst_261 : f32 to vector<32x16xf32>
    %653 = arith.select %651, %649, %652 : vector<32x16xi1>, vector<32x16xf32>
    %c3_i32_262 = arith.constant 3 : i32
    %654 = tpu.dynamic_rotate %642 by %c3_i32_262 dim 1 : vector<32x16xf32>, i32 -> vector<32x16xf32>
    %655 = arith.andi %582, %588 : vector<1x16xi1>
    %cst_263 = arith.constant 0.000000e+00 : f32
    %656 = vector.shape_cast %655 : vector<1x16xi1> to vector<1x16xi1>
    %657 = vector.broadcast %656 : vector<1x16xi1> to vector<32x16xi1>
    %658 = vector.broadcast %cst_263 : f32 to vector<32x16xf32>
    %659 = arith.select %657, %654, %658 : vector<32x16xi1>, vector<32x16xf32>
    %c1_i32_264 = arith.constant 1 : i32
    %660 = tpu.dynamic_rotate %642 by %c1_i32_264 dim 1 : vector<32x16xf32>, i32 -> vector<32x16xf32>
    %cst_265 = arith.constant 0.000000e+00 : f32
    %661 = vector.shape_cast %586 : vector<1x16xi1> to vector<1x16xi1>
    %662 = vector.broadcast %661 : vector<1x16xi1> to vector<32x16xi1>
    %663 = vector.broadcast %cst_265 : f32 to vector<32x16xf32>
    %664 = arith.select %662, %660, %663 : vector<32x16xi1>, vector<32x16xf32>
    %c15_i32_266 = arith.constant 15 : i32
    %665 = tpu.dynamic_rotate %642 by %c15_i32_266 dim 1 : vector<32x16xf32>, i32 -> vector<32x16xf32>
    %cst_267 = arith.constant 0.000000e+00 : f32
    %666 = vector.shape_cast %588 : vector<1x16xi1> to vector<1x16xi1>
    %667 = vector.broadcast %666 : vector<1x16xi1> to vector<32x16xi1>
    %668 = vector.broadcast %cst_267 : f32 to vector<32x16xf32>
    %669 = arith.select %667, %665, %668 : vector<32x16xi1>, vector<32x16xf32>
    %c13_i32_268 = arith.constant 13 : i32
    %670 = tpu.dynamic_rotate %642 by %c13_i32_268 dim 1 : vector<32x16xf32>, i32 -> vector<32x16xf32>
    %671 = arith.andi %584, %586 : vector<1x16xi1>
    %cst_269 = arith.constant 0.000000e+00 : f32
    %672 = vector.shape_cast %671 : vector<1x16xi1> to vector<1x16xi1>
    %673 = vector.broadcast %672 : vector<1x16xi1> to vector<32x16xi1>
    %674 = vector.broadcast %cst_269 : f32 to vector<32x16xf32>
    %675 = arith.select %673, %670, %674 : vector<32x16xi1>, vector<32x16xf32>
    %c12_i32_270 = arith.constant 12 : i32
    %676 = tpu.dynamic_rotate %642 by %c12_i32_270 dim 1 : vector<32x16xf32>, i32 -> vector<32x16xf32>
    %cst_271 = arith.constant 0.000000e+00 : f32
    %677 = vector.shape_cast %584 : vector<1x16xi1> to vector<1x16xi1>
    %678 = vector.broadcast %677 : vector<1x16xi1> to vector<32x16xi1>
    %679 = vector.broadcast %cst_271 : f32 to vector<32x16xf32>
    %680 = arith.select %678, %676, %679 : vector<32x16xi1>, vector<32x16xf32>
    %c11_i32_272 = arith.constant 11 : i32
    %681 = tpu.dynamic_rotate %642 by %c11_i32_272 dim 1 : vector<32x16xf32>, i32 -> vector<32x16xf32>
    %682 = arith.andi %584, %588 : vector<1x16xi1>
    %cst_273 = arith.constant 0.000000e+00 : f32
    %683 = vector.shape_cast %682 : vector<1x16xi1> to vector<1x16xi1>
    %684 = vector.broadcast %683 : vector<1x16xi1> to vector<32x16xi1>
    %685 = vector.broadcast %cst_273 : f32 to vector<32x16xf32>
    %686 = arith.select %684, %681, %685 : vector<32x16xi1>, vector<32x16xf32>
    %687 = tpu.concatenate %648, %653, %659, %664, %642, %669, %675, %680, %686 in 0 : vector<32x16xf32>, vector<32x16xf32>, vector<32x16xf32>, vector<32x16xf32>, vector<32x16xf32>, vector<32x16xf32>, vector<32x16xf32>, vector<32x16xf32>, vector<32x16xf32> -> vector<288x16xf32>
    %688 = arith.truncf %687 : vector<288x16xf32> to vector<288x16xbf16>
    %c0_274 = arith.constant 0 : index
    %c0_275 = arith.constant 0 : index
    %689 = vector.load %arg29[%c0_274, %c0_275] : memref<32x288xbf16, #tpu.memory_space<vmem>>, vector<32x288xbf16>
    %cst_276 = arith.constant dense<0.000000e+00> : vector<32x16xf32>
    %690 = tpu.matmul %689, %688, %cst_276 {dimension_numbers = #tpu.dot_dimension_numbers<[1], [0], [0], [1], [0, 0, 1, 1], [], []>} : vector<32x288xbf16>, vector<288x16xbf16>, vector<32x16xf32> -> vector<32x16xf32>
    %c0_277 = arith.constant 0 : index
    %c0_278 = arith.constant 0 : index
    %691 = vector.load %arg28[%c0_277, %c0_278] : memref<32x1xf32, #tpu.memory_space<vmem>>, vector<32x1xf32>
    %692 = vector.broadcast %691 : vector<32x1xf32> to vector<32x16xf32>
    %693 = arith.addf %690, %692 : vector<32x16xf32>
    %cst_279 = arith.constant 0.000000e+00 : f32
    %694 = vector.broadcast %cst_279 : f32 to vector<32x16xf32>
    %695 = arith.maximumf %693, %694 : vector<32x16xf32>
    %c5_i32_280 = arith.constant 5 : i32
    %696 = tpu.dynamic_rotate %695 by %c5_i32_280 dim 1 : vector<32x16xf32>, i32 -> vector<32x16xf32>
    %697 = arith.andi %582, %586 : vector<1x16xi1>
    %cst_281 = arith.constant 0.000000e+00 : f32
    %698 = vector.shape_cast %697 : vector<1x16xi1> to vector<1x16xi1>
    %699 = vector.broadcast %698 : vector<1x16xi1> to vector<32x16xi1>
    %700 = vector.broadcast %cst_281 : f32 to vector<32x16xf32>
    %701 = arith.select %699, %696, %700 : vector<32x16xi1>, vector<32x16xf32>
    %c4_i32_282 = arith.constant 4 : i32
    %702 = tpu.dynamic_rotate %695 by %c4_i32_282 dim 1 : vector<32x16xf32>, i32 -> vector<32x16xf32>
    %cst_283 = arith.constant 0.000000e+00 : f32
    %703 = vector.shape_cast %582 : vector<1x16xi1> to vector<1x16xi1>
    %704 = vector.broadcast %703 : vector<1x16xi1> to vector<32x16xi1>
    %705 = vector.broadcast %cst_283 : f32 to vector<32x16xf32>
    %706 = arith.select %704, %702, %705 : vector<32x16xi1>, vector<32x16xf32>
    %c3_i32_284 = arith.constant 3 : i32
    %707 = tpu.dynamic_rotate %695 by %c3_i32_284 dim 1 : vector<32x16xf32>, i32 -> vector<32x16xf32>
    %708 = arith.andi %582, %588 : vector<1x16xi1>
    %cst_285 = arith.constant 0.000000e+00 : f32
    %709 = vector.shape_cast %708 : vector<1x16xi1> to vector<1x16xi1>
    %710 = vector.broadcast %709 : vector<1x16xi1> to vector<32x16xi1>
    %711 = vector.broadcast %cst_285 : f32 to vector<32x16xf32>
    %712 = arith.select %710, %707, %711 : vector<32x16xi1>, vector<32x16xf32>
    %c1_i32_286 = arith.constant 1 : i32
    %713 = tpu.dynamic_rotate %695 by %c1_i32_286 dim 1 : vector<32x16xf32>, i32 -> vector<32x16xf32>
    %cst_287 = arith.constant 0.000000e+00 : f32
    %714 = vector.shape_cast %586 : vector<1x16xi1> to vector<1x16xi1>
    %715 = vector.broadcast %714 : vector<1x16xi1> to vector<32x16xi1>
    %716 = vector.broadcast %cst_287 : f32 to vector<32x16xf32>
    %717 = arith.select %715, %713, %716 : vector<32x16xi1>, vector<32x16xf32>
    %c15_i32_288 = arith.constant 15 : i32
    %718 = tpu.dynamic_rotate %695 by %c15_i32_288 dim 1 : vector<32x16xf32>, i32 -> vector<32x16xf32>
    %cst_289 = arith.constant 0.000000e+00 : f32
    %719 = vector.shape_cast %588 : vector<1x16xi1> to vector<1x16xi1>
    %720 = vector.broadcast %719 : vector<1x16xi1> to vector<32x16xi1>
    %721 = vector.broadcast %cst_289 : f32 to vector<32x16xf32>
    %722 = arith.select %720, %718, %721 : vector<32x16xi1>, vector<32x16xf32>
    %c13_i32_290 = arith.constant 13 : i32
    %723 = tpu.dynamic_rotate %695 by %c13_i32_290 dim 1 : vector<32x16xf32>, i32 -> vector<32x16xf32>
    %724 = arith.andi %584, %586 : vector<1x16xi1>
    %cst_291 = arith.constant 0.000000e+00 : f32
    %725 = vector.shape_cast %724 : vector<1x16xi1> to vector<1x16xi1>
    %726 = vector.broadcast %725 : vector<1x16xi1> to vector<32x16xi1>
    %727 = vector.broadcast %cst_291 : f32 to vector<32x16xf32>
    %728 = arith.select %726, %723, %727 : vector<32x16xi1>, vector<32x16xf32>
    %c12_i32_292 = arith.constant 12 : i32
    %729 = tpu.dynamic_rotate %695 by %c12_i32_292 dim 1 : vector<32x16xf32>, i32 -> vector<32x16xf32>
    %cst_293 = arith.constant 0.000000e+00 : f32
    %730 = vector.shape_cast %584 : vector<1x16xi1> to vector<1x16xi1>
    %731 = vector.broadcast %730 : vector<1x16xi1> to vector<32x16xi1>
    %732 = vector.broadcast %cst_293 : f32 to vector<32x16xf32>
    %733 = arith.select %731, %729, %732 : vector<32x16xi1>, vector<32x16xf32>
    %c11_i32_294 = arith.constant 11 : i32
    %734 = tpu.dynamic_rotate %695 by %c11_i32_294 dim 1 : vector<32x16xf32>, i32 -> vector<32x16xf32>
    %735 = arith.andi %584, %588 : vector<1x16xi1>
    %cst_295 = arith.constant 0.000000e+00 : f32
    %736 = vector.shape_cast %735 : vector<1x16xi1> to vector<1x16xi1>
    %737 = vector.broadcast %736 : vector<1x16xi1> to vector<32x16xi1>
    %738 = vector.broadcast %cst_295 : f32 to vector<32x16xf32>
    %739 = arith.select %737, %734, %738 : vector<32x16xi1>, vector<32x16xf32>
    %740 = tpu.concatenate %701, %706, %712, %717, %695, %722, %728, %733, %739 in 0 : vector<32x16xf32>, vector<32x16xf32>, vector<32x16xf32>, vector<32x16xf32>, vector<32x16xf32>, vector<32x16xf32>, vector<32x16xf32>, vector<32x16xf32>, vector<32x16xf32> -> vector<288x16xf32>
    %741 = arith.truncf %740 : vector<288x16xf32> to vector<288x16xbf16>
    %c0_296 = arith.constant 0 : index
    %c0_297 = arith.constant 0 : index
    %742 = vector.load %arg31[%c0_296, %c0_297] : memref<32x288xbf16, #tpu.memory_space<vmem>>, vector<32x288xbf16>
    %cst_298 = arith.constant dense<0.000000e+00> : vector<32x16xf32>
    %743 = tpu.matmul %742, %741, %cst_298 {dimension_numbers = #tpu.dot_dimension_numbers<[1], [0], [0], [1], [0, 0, 1, 1], [], []>} : vector<32x288xbf16>, vector<288x16xbf16>, vector<32x16xf32> -> vector<32x16xf32>
    %c0_299 = arith.constant 0 : index
    %c0_300 = arith.constant 0 : index
    %744 = vector.load %arg30[%c0_299, %c0_300] : memref<32x1xf32, #tpu.memory_space<vmem>>, vector<32x1xf32>
    %745 = vector.broadcast %744 : vector<32x1xf32> to vector<32x16xf32>
    %746 = arith.addf %743, %745 : vector<32x16xf32>
    %747 = arith.addf %746, %642 : vector<32x16xf32>
    %cst_301 = arith.constant 0.000000e+00 : f32
    %748 = vector.broadcast %cst_301 : f32 to vector<32x16xf32>
    %749 = arith.maximumf %747, %748 : vector<32x16xf32>
    %c0_302 = arith.constant 0 : index
    %c0_303 = arith.constant 0 : index
    %750 = vector.load %arg44[%c0_302, %c0_303] : memref<16x4xf32, #tpu.memory_space<vmem>>, vector<16x4xf32>
    %cst_304 = arith.constant dense<0.000000e+00> : vector<32x4xf32>
    %751 = tpu.matmul %749, %750, %cst_304 {dimension_numbers = #tpu.dot_dimension_numbers<[1], [0], [0], [1], [0, 0, 1, 1], [], []>} : vector<32x16xf32>, vector<16x4xf32>, vector<32x4xf32> -> vector<32x4xf32>
    %c0_305 = arith.constant 0 : index
    %c0_306 = arith.constant 0 : index
    %752 = vector.load %arg37[%c0_305, %c0_306] : memref<64x32xbf16, #tpu.memory_space<vmem>>, vector<64x32xbf16>
    %753 = arith.truncf %751 : vector<32x4xf32> to vector<32x4xbf16>
    %cst_307 = arith.constant dense<0.000000e+00> : vector<64x4xf32>
    %754 = tpu.matmul %752, %753, %cst_307 {dimension_numbers = #tpu.dot_dimension_numbers<[1], [0], [0], [1], [0, 0, 1, 1], [], []>} : vector<64x32xbf16>, vector<32x4xbf16>, vector<64x4xf32> -> vector<64x4xf32>
    %c0_308 = arith.constant 0 : index
    %c0_309 = arith.constant 0 : index
    %755 = vector.load %arg36[%c0_308, %c0_309] : memref<64x1xf32, #tpu.memory_space<vmem>>, vector<64x1xf32>
    %756 = vector.broadcast %755 : vector<64x1xf32> to vector<64x4xf32>
    %757 = arith.addf %754, %756 : vector<64x4xf32>
    %c5_i32_310 = arith.constant 5 : i32
    %758 = tpu.dynamic_rotate %749 by %c5_i32_310 dim 1 : vector<32x16xf32>, i32 -> vector<32x16xf32>
    %759 = arith.andi %582, %586 : vector<1x16xi1>
    %cst_311 = arith.constant 0.000000e+00 : f32
    %760 = vector.shape_cast %759 : vector<1x16xi1> to vector<1x16xi1>
    %761 = vector.broadcast %760 : vector<1x16xi1> to vector<32x16xi1>
    %762 = vector.broadcast %cst_311 : f32 to vector<32x16xf32>
    %763 = arith.select %761, %758, %762 : vector<32x16xi1>, vector<32x16xf32>
    %c4_i32_312 = arith.constant 4 : i32
    %764 = tpu.dynamic_rotate %749 by %c4_i32_312 dim 1 : vector<32x16xf32>, i32 -> vector<32x16xf32>
    %cst_313 = arith.constant 0.000000e+00 : f32
    %765 = vector.shape_cast %582 : vector<1x16xi1> to vector<1x16xi1>
    %766 = vector.broadcast %765 : vector<1x16xi1> to vector<32x16xi1>
    %767 = vector.broadcast %cst_313 : f32 to vector<32x16xf32>
    %768 = arith.select %766, %764, %767 : vector<32x16xi1>, vector<32x16xf32>
    %c3_i32_314 = arith.constant 3 : i32
    %769 = tpu.dynamic_rotate %749 by %c3_i32_314 dim 1 : vector<32x16xf32>, i32 -> vector<32x16xf32>
    %770 = arith.andi %582, %588 : vector<1x16xi1>
    %cst_315 = arith.constant 0.000000e+00 : f32
    %771 = vector.shape_cast %770 : vector<1x16xi1> to vector<1x16xi1>
    %772 = vector.broadcast %771 : vector<1x16xi1> to vector<32x16xi1>
    %773 = vector.broadcast %cst_315 : f32 to vector<32x16xf32>
    %774 = arith.select %772, %769, %773 : vector<32x16xi1>, vector<32x16xf32>
    %c1_i32_316 = arith.constant 1 : i32
    %775 = tpu.dynamic_rotate %749 by %c1_i32_316 dim 1 : vector<32x16xf32>, i32 -> vector<32x16xf32>
    %cst_317 = arith.constant 0.000000e+00 : f32
    %776 = vector.shape_cast %586 : vector<1x16xi1> to vector<1x16xi1>
    %777 = vector.broadcast %776 : vector<1x16xi1> to vector<32x16xi1>
    %778 = vector.broadcast %cst_317 : f32 to vector<32x16xf32>
    %779 = arith.select %777, %775, %778 : vector<32x16xi1>, vector<32x16xf32>
    %c15_i32_318 = arith.constant 15 : i32
    %780 = tpu.dynamic_rotate %749 by %c15_i32_318 dim 1 : vector<32x16xf32>, i32 -> vector<32x16xf32>
    %cst_319 = arith.constant 0.000000e+00 : f32
    %781 = vector.shape_cast %588 : vector<1x16xi1> to vector<1x16xi1>
    %782 = vector.broadcast %781 : vector<1x16xi1> to vector<32x16xi1>
    %783 = vector.broadcast %cst_319 : f32 to vector<32x16xf32>
    %784 = arith.select %782, %780, %783 : vector<32x16xi1>, vector<32x16xf32>
    %c13_i32_320 = arith.constant 13 : i32
    %785 = tpu.dynamic_rotate %749 by %c13_i32_320 dim 1 : vector<32x16xf32>, i32 -> vector<32x16xf32>
    %786 = arith.andi %584, %586 : vector<1x16xi1>
    %cst_321 = arith.constant 0.000000e+00 : f32
    %787 = vector.shape_cast %786 : vector<1x16xi1> to vector<1x16xi1>
    %788 = vector.broadcast %787 : vector<1x16xi1> to vector<32x16xi1>
    %789 = vector.broadcast %cst_321 : f32 to vector<32x16xf32>
    %790 = arith.select %788, %785, %789 : vector<32x16xi1>, vector<32x16xf32>
    %c12_i32_322 = arith.constant 12 : i32
    %791 = tpu.dynamic_rotate %749 by %c12_i32_322 dim 1 : vector<32x16xf32>, i32 -> vector<32x16xf32>
    %cst_323 = arith.constant 0.000000e+00 : f32
    %792 = vector.shape_cast %584 : vector<1x16xi1> to vector<1x16xi1>
    %793 = vector.broadcast %792 : vector<1x16xi1> to vector<32x16xi1>
    %794 = vector.broadcast %cst_323 : f32 to vector<32x16xf32>
    %795 = arith.select %793, %791, %794 : vector<32x16xi1>, vector<32x16xf32>
    %c11_i32_324 = arith.constant 11 : i32
    %796 = tpu.dynamic_rotate %749 by %c11_i32_324 dim 1 : vector<32x16xf32>, i32 -> vector<32x16xf32>
    %797 = arith.andi %584, %588 : vector<1x16xi1>
    %cst_325 = arith.constant 0.000000e+00 : f32
    %798 = vector.shape_cast %797 : vector<1x16xi1> to vector<1x16xi1>
    %799 = vector.broadcast %798 : vector<1x16xi1> to vector<32x16xi1>
    %800 = vector.broadcast %cst_325 : f32 to vector<32x16xf32>
    %801 = arith.select %799, %796, %800 : vector<32x16xi1>, vector<32x16xf32>
    %802 = tpu.concatenate %763, %768, %774, %779, %749, %784, %790, %795, %801 in 0 : vector<32x16xf32>, vector<32x16xf32>, vector<32x16xf32>, vector<32x16xf32>, vector<32x16xf32>, vector<32x16xf32>, vector<32x16xf32>, vector<32x16xf32>, vector<32x16xf32> -> vector<288x16xf32>
    %803 = arith.truncf %802 : vector<288x16xf32> to vector<288x16xbf16>
    %c0_326 = arith.constant 0 : index
    %c0_327 = arith.constant 0 : index
    %804 = vector.load %arg33[%c0_326, %c0_327] : memref<64x288xbf16, #tpu.memory_space<vmem>>, vector<64x288xbf16>
    %cst_328 = arith.constant dense<0.000000e+00> : vector<64x16xf32>
    %805 = tpu.matmul %804, %803, %cst_328 {dimension_numbers = #tpu.dot_dimension_numbers<[1], [0], [0], [1], [0, 0, 1, 1], [], []>} : vector<64x288xbf16>, vector<288x16xbf16>, vector<64x16xf32> -> vector<64x16xf32>
    %c0_329 = arith.constant 0 : index
    %c0_330 = arith.constant 0 : index
    %806 = vector.load %arg44[%c0_329, %c0_330] : memref<16x4xf32, #tpu.memory_space<vmem>>, vector<16x4xf32>
    %cst_331 = arith.constant dense<0.000000e+00> : vector<64x4xf32>
    %807 = tpu.matmul %805, %806, %cst_331 {dimension_numbers = #tpu.dot_dimension_numbers<[1], [0], [0], [1], [0, 0, 1, 1], [], []>} : vector<64x16xf32>, vector<16x4xf32>, vector<64x4xf32> -> vector<64x4xf32>
    %c0_332 = arith.constant 0 : index
    %c0_333 = arith.constant 0 : index
    %808 = vector.load %arg32[%c0_332, %c0_333] : memref<64x1xf32, #tpu.memory_space<vmem>>, vector<64x1xf32>
    %809 = vector.broadcast %808 : vector<64x1xf32> to vector<64x4xf32>
    %810 = arith.addf %807, %809 : vector<64x4xf32>
    %cst_334 = arith.constant 0.000000e+00 : f32
    %811 = vector.broadcast %cst_334 : f32 to vector<64x4xf32>
    %812 = arith.maximumf %810, %811 : vector<64x4xf32>
    %813 = tpu.iota {dimensions = array<i32: 1>} : vector<1x4xi32>
    %c1_i32_335 = arith.constant 1 : i32
    %814 = vector.broadcast %c1_i32_335 : i32 to vector<1x4xi32>
    %815 = arith.andi %813, %814 : vector<1x4xi32>
    %c2_i32 = arith.constant 2 : i32
    %816 = vector.broadcast %c2_i32 : i32 to vector<1x4xi32>
    %817 = arith.cmpi sge, %813, %816 : vector<1x4xi32>
    %c2_i32_336 = arith.constant 2 : i32
    %818 = vector.broadcast %c2_i32_336 : i32 to vector<1x4xi32>
    %819 = arith.cmpi slt, %813, %818 : vector<1x4xi32>
    %c0_i32_337 = arith.constant 0 : i32
    %820 = vector.broadcast %c0_i32_337 : i32 to vector<1x4xi32>
    %821 = arith.cmpi sgt, %815, %820 : vector<1x4xi32>
    %c1_i32_338 = arith.constant 1 : i32
    %822 = vector.broadcast %c1_i32_338 : i32 to vector<1x4xi32>
    %823 = arith.cmpi slt, %815, %822 : vector<1x4xi32>
    %c3_i32_339 = arith.constant 3 : i32
    %824 = tpu.dynamic_rotate %812 by %c3_i32_339 dim 1 : vector<64x4xf32>, i32 -> vector<64x4xf32>
    %825 = arith.andi %817, %821 : vector<1x4xi1>
    %cst_340 = arith.constant 0.000000e+00 : f32
    %826 = vector.shape_cast %825 : vector<1x4xi1> to vector<1x4xi1>
    %827 = vector.broadcast %826 : vector<1x4xi1> to vector<64x4xi1>
    %828 = vector.broadcast %cst_340 : f32 to vector<64x4xf32>
    %829 = arith.select %827, %824, %828 : vector<64x4xi1>, vector<64x4xf32>
    %c2_i32_341 = arith.constant 2 : i32
    %830 = tpu.dynamic_rotate %812 by %c2_i32_341 dim 1 : vector<64x4xf32>, i32 -> vector<64x4xf32>
    %cst_342 = arith.constant 0.000000e+00 : f32
    %831 = vector.shape_cast %817 : vector<1x4xi1> to vector<1x4xi1>
    %832 = vector.broadcast %831 : vector<1x4xi1> to vector<64x4xi1>
    %833 = vector.broadcast %cst_342 : f32 to vector<64x4xf32>
    %834 = arith.select %832, %830, %833 : vector<64x4xi1>, vector<64x4xf32>
    %c1_i32_343 = arith.constant 1 : i32
    %835 = tpu.dynamic_rotate %812 by %c1_i32_343 dim 1 : vector<64x4xf32>, i32 -> vector<64x4xf32>
    %836 = arith.andi %817, %823 : vector<1x4xi1>
    %cst_344 = arith.constant 0.000000e+00 : f32
    %837 = vector.shape_cast %836 : vector<1x4xi1> to vector<1x4xi1>
    %838 = vector.broadcast %837 : vector<1x4xi1> to vector<64x4xi1>
    %839 = vector.broadcast %cst_344 : f32 to vector<64x4xf32>
    %840 = arith.select %838, %835, %839 : vector<64x4xi1>, vector<64x4xf32>
    %c1_i32_345 = arith.constant 1 : i32
    %841 = tpu.dynamic_rotate %812 by %c1_i32_345 dim 1 : vector<64x4xf32>, i32 -> vector<64x4xf32>
    %cst_346 = arith.constant 0.000000e+00 : f32
    %842 = vector.shape_cast %821 : vector<1x4xi1> to vector<1x4xi1>
    %843 = vector.broadcast %842 : vector<1x4xi1> to vector<64x4xi1>
    %844 = vector.broadcast %cst_346 : f32 to vector<64x4xf32>
    %845 = arith.select %843, %841, %844 : vector<64x4xi1>, vector<64x4xf32>
    %c3_i32_347 = arith.constant 3 : i32
    %846 = tpu.dynamic_rotate %812 by %c3_i32_347 dim 1 : vector<64x4xf32>, i32 -> vector<64x4xf32>
    %cst_348 = arith.constant 0.000000e+00 : f32
    %847 = vector.shape_cast %823 : vector<1x4xi1> to vector<1x4xi1>
    %848 = vector.broadcast %847 : vector<1x4xi1> to vector<64x4xi1>
    %849 = vector.broadcast %cst_348 : f32 to vector<64x4xf32>
    %850 = arith.select %848, %846, %849 : vector<64x4xi1>, vector<64x4xf32>
    %c3_i32_349 = arith.constant 3 : i32
    %851 = tpu.dynamic_rotate %812 by %c3_i32_349 dim 1 : vector<64x4xf32>, i32 -> vector<64x4xf32>
    %852 = arith.andi %819, %821 : vector<1x4xi1>
    %cst_350 = arith.constant 0.000000e+00 : f32
    %853 = vector.shape_cast %852 : vector<1x4xi1> to vector<1x4xi1>
    %854 = vector.broadcast %853 : vector<1x4xi1> to vector<64x4xi1>
    %855 = vector.broadcast %cst_350 : f32 to vector<64x4xf32>
    %856 = arith.select %854, %851, %855 : vector<64x4xi1>, vector<64x4xf32>
    %c2_i32_351 = arith.constant 2 : i32
    %857 = tpu.dynamic_rotate %812 by %c2_i32_351 dim 1 : vector<64x4xf32>, i32 -> vector<64x4xf32>
    %cst_352 = arith.constant 0.000000e+00 : f32
    %858 = vector.shape_cast %819 : vector<1x4xi1> to vector<1x4xi1>
    %859 = vector.broadcast %858 : vector<1x4xi1> to vector<64x4xi1>
    %860 = vector.broadcast %cst_352 : f32 to vector<64x4xf32>
    %861 = arith.select %859, %857, %860 : vector<64x4xi1>, vector<64x4xf32>
    %c1_i32_353 = arith.constant 1 : i32
    %862 = tpu.dynamic_rotate %812 by %c1_i32_353 dim 1 : vector<64x4xf32>, i32 -> vector<64x4xf32>
    %863 = arith.andi %819, %823 : vector<1x4xi1>
    %cst_354 = arith.constant 0.000000e+00 : f32
    %864 = vector.shape_cast %863 : vector<1x4xi1> to vector<1x4xi1>
    %865 = vector.broadcast %864 : vector<1x4xi1> to vector<64x4xi1>
    %866 = vector.broadcast %cst_354 : f32 to vector<64x4xf32>
    %867 = arith.select %865, %862, %866 : vector<64x4xi1>, vector<64x4xf32>
    %868 = tpu.concatenate %829, %834, %840, %845, %812, %850, %856, %861, %867 in 0 : vector<64x4xf32>, vector<64x4xf32>, vector<64x4xf32>, vector<64x4xf32>, vector<64x4xf32>, vector<64x4xf32>, vector<64x4xf32>, vector<64x4xf32>, vector<64x4xf32> -> vector<576x4xf32>
    %869 = arith.truncf %868 : vector<576x4xf32> to vector<576x4xbf16>
    %c0_355 = arith.constant 0 : index
    %c0_356 = arith.constant 0 : index
    %870 = vector.load %arg35[%c0_355, %c0_356] : memref<64x576xbf16, #tpu.memory_space<vmem>>, vector<64x576xbf16>
    %cst_357 = arith.constant dense<0.000000e+00> : vector<64x4xf32>
    %871 = tpu.matmul %870, %869, %cst_357 {dimension_numbers = #tpu.dot_dimension_numbers<[1], [0], [0], [1], [0, 0, 1, 1], [], []>} : vector<64x576xbf16>, vector<576x4xbf16>, vector<64x4xf32> -> vector<64x4xf32>
    %c0_358 = arith.constant 0 : index
    %c0_359 = arith.constant 0 : index
    %872 = vector.load %arg34[%c0_358, %c0_359] : memref<64x1xf32, #tpu.memory_space<vmem>>, vector<64x1xf32>
    %873 = vector.broadcast %872 : vector<64x1xf32> to vector<64x4xf32>
    %874 = arith.addf %871, %873 : vector<64x4xf32>
    %875 = arith.addf %874, %757 : vector<64x4xf32>
    %cst_360 = arith.constant 0.000000e+00 : f32
    %876 = vector.broadcast %cst_360 : f32 to vector<64x4xf32>
    %877 = arith.maximumf %875, %876 : vector<64x4xf32>
    %c3_i32_361 = arith.constant 3 : i32
    %878 = tpu.dynamic_rotate %877 by %c3_i32_361 dim 1 : vector<64x4xf32>, i32 -> vector<64x4xf32>
    %879 = arith.andi %817, %821 : vector<1x4xi1>
    %cst_362 = arith.constant 0.000000e+00 : f32
    %880 = vector.shape_cast %879 : vector<1x4xi1> to vector<1x4xi1>
    %881 = vector.broadcast %880 : vector<1x4xi1> to vector<64x4xi1>
    %882 = vector.broadcast %cst_362 : f32 to vector<64x4xf32>
    %883 = arith.select %881, %878, %882 : vector<64x4xi1>, vector<64x4xf32>
    %c2_i32_363 = arith.constant 2 : i32
    %884 = tpu.dynamic_rotate %877 by %c2_i32_363 dim 1 : vector<64x4xf32>, i32 -> vector<64x4xf32>
    %cst_364 = arith.constant 0.000000e+00 : f32
    %885 = vector.shape_cast %817 : vector<1x4xi1> to vector<1x4xi1>
    %886 = vector.broadcast %885 : vector<1x4xi1> to vector<64x4xi1>
    %887 = vector.broadcast %cst_364 : f32 to vector<64x4xf32>
    %888 = arith.select %886, %884, %887 : vector<64x4xi1>, vector<64x4xf32>
    %c1_i32_365 = arith.constant 1 : i32
    %889 = tpu.dynamic_rotate %877 by %c1_i32_365 dim 1 : vector<64x4xf32>, i32 -> vector<64x4xf32>
    %890 = arith.andi %817, %823 : vector<1x4xi1>
    %cst_366 = arith.constant 0.000000e+00 : f32
    %891 = vector.shape_cast %890 : vector<1x4xi1> to vector<1x4xi1>
    %892 = vector.broadcast %891 : vector<1x4xi1> to vector<64x4xi1>
    %893 = vector.broadcast %cst_366 : f32 to vector<64x4xf32>
    %894 = arith.select %892, %889, %893 : vector<64x4xi1>, vector<64x4xf32>
    %c1_i32_367 = arith.constant 1 : i32
    %895 = tpu.dynamic_rotate %877 by %c1_i32_367 dim 1 : vector<64x4xf32>, i32 -> vector<64x4xf32>
    %cst_368 = arith.constant 0.000000e+00 : f32
    %896 = vector.shape_cast %821 : vector<1x4xi1> to vector<1x4xi1>
    %897 = vector.broadcast %896 : vector<1x4xi1> to vector<64x4xi1>
    %898 = vector.broadcast %cst_368 : f32 to vector<64x4xf32>
    %899 = arith.select %897, %895, %898 : vector<64x4xi1>, vector<64x4xf32>
    %c3_i32_369 = arith.constant 3 : i32
    %900 = tpu.dynamic_rotate %877 by %c3_i32_369 dim 1 : vector<64x4xf32>, i32 -> vector<64x4xf32>
    %cst_370 = arith.constant 0.000000e+00 : f32
    %901 = vector.shape_cast %823 : vector<1x4xi1> to vector<1x4xi1>
    %902 = vector.broadcast %901 : vector<1x4xi1> to vector<64x4xi1>
    %903 = vector.broadcast %cst_370 : f32 to vector<64x4xf32>
    %904 = arith.select %902, %900, %903 : vector<64x4xi1>, vector<64x4xf32>
    %c3_i32_371 = arith.constant 3 : i32
    %905 = tpu.dynamic_rotate %877 by %c3_i32_371 dim 1 : vector<64x4xf32>, i32 -> vector<64x4xf32>
    %906 = arith.andi %819, %821 : vector<1x4xi1>
    %cst_372 = arith.constant 0.000000e+00 : f32
    %907 = vector.shape_cast %906 : vector<1x4xi1> to vector<1x4xi1>
    %908 = vector.broadcast %907 : vector<1x4xi1> to vector<64x4xi1>
    %909 = vector.broadcast %cst_372 : f32 to vector<64x4xf32>
    %910 = arith.select %908, %905, %909 : vector<64x4xi1>, vector<64x4xf32>
    %c2_i32_373 = arith.constant 2 : i32
    %911 = tpu.dynamic_rotate %877 by %c2_i32_373 dim 1 : vector<64x4xf32>, i32 -> vector<64x4xf32>
    %cst_374 = arith.constant 0.000000e+00 : f32
    %912 = vector.shape_cast %819 : vector<1x4xi1> to vector<1x4xi1>
    %913 = vector.broadcast %912 : vector<1x4xi1> to vector<64x4xi1>
    %914 = vector.broadcast %cst_374 : f32 to vector<64x4xf32>
    %915 = arith.select %913, %911, %914 : vector<64x4xi1>, vector<64x4xf32>
    %c1_i32_375 = arith.constant 1 : i32
    %916 = tpu.dynamic_rotate %877 by %c1_i32_375 dim 1 : vector<64x4xf32>, i32 -> vector<64x4xf32>
    %917 = arith.andi %819, %823 : vector<1x4xi1>
    %cst_376 = arith.constant 0.000000e+00 : f32
    %918 = vector.shape_cast %917 : vector<1x4xi1> to vector<1x4xi1>
    %919 = vector.broadcast %918 : vector<1x4xi1> to vector<64x4xi1>
    %920 = vector.broadcast %cst_376 : f32 to vector<64x4xf32>
    %921 = arith.select %919, %916, %920 : vector<64x4xi1>, vector<64x4xf32>
    %922 = tpu.concatenate %883, %888, %894, %899, %877, %904, %910, %915, %921 in 0 : vector<64x4xf32>, vector<64x4xf32>, vector<64x4xf32>, vector<64x4xf32>, vector<64x4xf32>, vector<64x4xf32>, vector<64x4xf32>, vector<64x4xf32>, vector<64x4xf32> -> vector<576x4xf32>
    %923 = arith.truncf %922 : vector<576x4xf32> to vector<576x4xbf16>
    %c0_377 = arith.constant 0 : index
    %c0_378 = arith.constant 0 : index
    %924 = vector.load %arg39[%c0_377, %c0_378] : memref<64x576xbf16, #tpu.memory_space<vmem>>, vector<64x576xbf16>
    %cst_379 = arith.constant dense<0.000000e+00> : vector<64x4xf32>
    %925 = tpu.matmul %924, %923, %cst_379 {dimension_numbers = #tpu.dot_dimension_numbers<[1], [0], [0], [1], [0, 0, 1, 1], [], []>} : vector<64x576xbf16>, vector<576x4xbf16>, vector<64x4xf32> -> vector<64x4xf32>
    %c0_380 = arith.constant 0 : index
    %c0_381 = arith.constant 0 : index
    %926 = vector.load %arg38[%c0_380, %c0_381] : memref<64x1xf32, #tpu.memory_space<vmem>>, vector<64x1xf32>
    %927 = vector.broadcast %926 : vector<64x1xf32> to vector<64x4xf32>
    %928 = arith.addf %925, %927 : vector<64x4xf32>
    %cst_382 = arith.constant 0.000000e+00 : f32
    %929 = vector.broadcast %cst_382 : f32 to vector<64x4xf32>
    %930 = arith.maximumf %928, %929 : vector<64x4xf32>
    %c3_i32_383 = arith.constant 3 : i32
    %931 = tpu.dynamic_rotate %930 by %c3_i32_383 dim 1 : vector<64x4xf32>, i32 -> vector<64x4xf32>
    %932 = arith.andi %817, %821 : vector<1x4xi1>
    %cst_384 = arith.constant 0.000000e+00 : f32
    %933 = vector.shape_cast %932 : vector<1x4xi1> to vector<1x4xi1>
    %934 = vector.broadcast %933 : vector<1x4xi1> to vector<64x4xi1>
    %935 = vector.broadcast %cst_384 : f32 to vector<64x4xf32>
    %936 = arith.select %934, %931, %935 : vector<64x4xi1>, vector<64x4xf32>
    %c2_i32_385 = arith.constant 2 : i32
    %937 = tpu.dynamic_rotate %930 by %c2_i32_385 dim 1 : vector<64x4xf32>, i32 -> vector<64x4xf32>
    %cst_386 = arith.constant 0.000000e+00 : f32
    %938 = vector.shape_cast %817 : vector<1x4xi1> to vector<1x4xi1>
    %939 = vector.broadcast %938 : vector<1x4xi1> to vector<64x4xi1>
    %940 = vector.broadcast %cst_386 : f32 to vector<64x4xf32>
    %941 = arith.select %939, %937, %940 : vector<64x4xi1>, vector<64x4xf32>
    %c1_i32_387 = arith.constant 1 : i32
    %942 = tpu.dynamic_rotate %930 by %c1_i32_387 dim 1 : vector<64x4xf32>, i32 -> vector<64x4xf32>
    %943 = arith.andi %817, %823 : vector<1x4xi1>
    %cst_388 = arith.constant 0.000000e+00 : f32
    %944 = vector.shape_cast %943 : vector<1x4xi1> to vector<1x4xi1>
    %945 = vector.broadcast %944 : vector<1x4xi1> to vector<64x4xi1>
    %946 = vector.broadcast %cst_388 : f32 to vector<64x4xf32>
    %947 = arith.select %945, %942, %946 : vector<64x4xi1>, vector<64x4xf32>
    %c1_i32_389 = arith.constant 1 : i32
    %948 = tpu.dynamic_rotate %930 by %c1_i32_389 dim 1 : vector<64x4xf32>, i32 -> vector<64x4xf32>
    %cst_390 = arith.constant 0.000000e+00 : f32
    %949 = vector.shape_cast %821 : vector<1x4xi1> to vector<1x4xi1>
    %950 = vector.broadcast %949 : vector<1x4xi1> to vector<64x4xi1>
    %951 = vector.broadcast %cst_390 : f32 to vector<64x4xf32>
    %952 = arith.select %950, %948, %951 : vector<64x4xi1>, vector<64x4xf32>
    %c3_i32_391 = arith.constant 3 : i32
    %953 = tpu.dynamic_rotate %930 by %c3_i32_391 dim 1 : vector<64x4xf32>, i32 -> vector<64x4xf32>
    %cst_392 = arith.constant 0.000000e+00 : f32
    %954 = vector.shape_cast %823 : vector<1x4xi1> to vector<1x4xi1>
    %955 = vector.broadcast %954 : vector<1x4xi1> to vector<64x4xi1>
    %956 = vector.broadcast %cst_392 : f32 to vector<64x4xf32>
    %957 = arith.select %955, %953, %956 : vector<64x4xi1>, vector<64x4xf32>
    %c3_i32_393 = arith.constant 3 : i32
    %958 = tpu.dynamic_rotate %930 by %c3_i32_393 dim 1 : vector<64x4xf32>, i32 -> vector<64x4xf32>
    %959 = arith.andi %819, %821 : vector<1x4xi1>
    %cst_394 = arith.constant 0.000000e+00 : f32
    %960 = vector.shape_cast %959 : vector<1x4xi1> to vector<1x4xi1>
    %961 = vector.broadcast %960 : vector<1x4xi1> to vector<64x4xi1>
    %962 = vector.broadcast %cst_394 : f32 to vector<64x4xf32>
    %963 = arith.select %961, %958, %962 : vector<64x4xi1>, vector<64x4xf32>
    %c2_i32_395 = arith.constant 2 : i32
    %964 = tpu.dynamic_rotate %930 by %c2_i32_395 dim 1 : vector<64x4xf32>, i32 -> vector<64x4xf32>
    %cst_396 = arith.constant 0.000000e+00 : f32
    %965 = vector.shape_cast %819 : vector<1x4xi1> to vector<1x4xi1>
    %966 = vector.broadcast %965 : vector<1x4xi1> to vector<64x4xi1>
    %967 = vector.broadcast %cst_396 : f32 to vector<64x4xf32>
    %968 = arith.select %966, %964, %967 : vector<64x4xi1>, vector<64x4xf32>
    %c1_i32_397 = arith.constant 1 : i32
    %969 = tpu.dynamic_rotate %930 by %c1_i32_397 dim 1 : vector<64x4xf32>, i32 -> vector<64x4xf32>
    %970 = arith.andi %819, %823 : vector<1x4xi1>
    %cst_398 = arith.constant 0.000000e+00 : f32
    %971 = vector.shape_cast %970 : vector<1x4xi1> to vector<1x4xi1>
    %972 = vector.broadcast %971 : vector<1x4xi1> to vector<64x4xi1>
    %973 = vector.broadcast %cst_398 : f32 to vector<64x4xf32>
    %974 = arith.select %972, %969, %973 : vector<64x4xi1>, vector<64x4xf32>
    %975 = tpu.concatenate %936, %941, %947, %952, %930, %957, %963, %968, %974 in 0 : vector<64x4xf32>, vector<64x4xf32>, vector<64x4xf32>, vector<64x4xf32>, vector<64x4xf32>, vector<64x4xf32>, vector<64x4xf32>, vector<64x4xf32>, vector<64x4xf32> -> vector<576x4xf32>
    %976 = arith.truncf %975 : vector<576x4xf32> to vector<576x4xbf16>
    %c0_399 = arith.constant 0 : index
    %c0_400 = arith.constant 0 : index
    %977 = vector.load %arg41[%c0_399, %c0_400] : memref<64x576xbf16, #tpu.memory_space<vmem>>, vector<64x576xbf16>
    %cst_401 = arith.constant dense<0.000000e+00> : vector<64x4xf32>
    %978 = tpu.matmul %977, %976, %cst_401 {dimension_numbers = #tpu.dot_dimension_numbers<[1], [0], [0], [1], [0, 0, 1, 1], [], []>} : vector<64x576xbf16>, vector<576x4xbf16>, vector<64x4xf32> -> vector<64x4xf32>
    %c0_402 = arith.constant 0 : index
    %c0_403 = arith.constant 0 : index
    %979 = vector.load %arg40[%c0_402, %c0_403] : memref<64x1xf32, #tpu.memory_space<vmem>>, vector<64x1xf32>
    %980 = vector.broadcast %979 : vector<64x1xf32> to vector<64x4xf32>
    %981 = arith.addf %978, %980 : vector<64x4xf32>
    %982 = arith.addf %981, %877 : vector<64x4xf32>
    %cst_404 = arith.constant 0.000000e+00 : f32
    %983 = vector.broadcast %cst_404 : f32 to vector<64x4xf32>
    %984 = arith.maximumf %982, %983 : vector<64x4xf32>
    %c0_405 = arith.constant 0 : index
    %c0_406 = arith.constant 0 : index
    %985 = vector.load %arg3[%c0_405, %c0_406] : memref<128x64xf32, #tpu.memory_space<vmem>>, vector<128x64xf32>
    %cst_407 = arith.constant dense<0.000000e+00> : vector<128x4xf32>
    %986 = tpu.matmul %985, %984, %cst_407 {dimension_numbers = #tpu.dot_dimension_numbers<[1], [0], [0], [1], [0, 0, 1, 1], [], []>} : vector<128x64xf32>, vector<64x4xf32>, vector<128x4xf32> -> vector<128x4xf32>
    %cst_408 = arith.constant dense<0.000000e+00> : vector<128xf32>
    %987 = vector.multi_reduction <add>, %986, %cst_408 [1] : vector<128x4xf32> to vector<128xf32>
    %988 = vector.shape_cast %987 : vector<128xf32> to vector<128x1xf32>
    %cst_409 = arith.constant 4.000000e+00 : f32
    %989 = vector.broadcast %cst_409 : f32 to vector<128x1xf32>
    %990 = arith.divf %988, %989 : vector<128x1xf32>
    %c0_410 = arith.constant 0 : index
    %c0_411 = arith.constant 0 : index
    %991 = vector.load %arg2[%c0_410, %c0_411] : memref<128x1xf32, #tpu.memory_space<vmem>>, vector<128x1xf32>
    %992 = arith.addf %990, %991 : vector<128x1xf32>
    %c0_412 = arith.constant 0 : index
    %c0_413 = arith.constant 0 : index
    %c0_414 = arith.constant 0 : index
    %993 = vector.load %arg47[%c0_412, %c0_413, %c0_414] : memref<1x128x1xf32, #tpu.memory_space<vmem>>, vector<1x128x1xf32>
    %994 = vector.shape_cast %993 : vector<1x128x1xf32> to vector<128x1xf32>
    %995 = vector.shape_cast %992 : vector<128x1xf32> to vector<1x128x1xf32>
    tpu.vector_store %arg47[%c0_412, %c0_413, %c0_414], %995 {strides = array<i32>} : memref<1x128x1xf32, #tpu.memory_space<vmem>>, vector<1x128x1xf32>,
    return
  }
  func.func @transform_0(%arg0: i32) -> (i32, i32, i32) {
    %c0_i32 = arith.constant 0 : i32
    %c0_i32_0 = arith.constant 0 : i32
    %c0_i32_1 = arith.constant 0 : i32
    return %arg0, %c0_i32, %c0_i32_0 : i32, i32, i32
  }
  func.func @transform_1(%arg0: i32) -> (i32, i32) {
    %c0_i32 = arith.constant 0 : i32
    %c0_i32_0 = arith.constant 0 : i32
    %c0_i32_1 = arith.constant 0 : i32
    return %c0_i32, %c0_i32_0 : i32, i32
  }
  func.func @transform_2(%arg0: i32) -> (i32, i32) {
    %c0_i32 = arith.constant 0 : i32
    %c0_i32_0 = arith.constant 0 : i32
    %c0_i32_1 = arith.constant 0 : i32
    return %c0_i32, %c0_i32_0 : i32, i32
  }
  func.func @transform_3(%arg0: i32) -> (i32, i32) {
    %c0_i32 = arith.constant 0 : i32
    %c0_i32_0 = arith.constant 0 : i32
    %c0_i32_1 = arith.constant 0 : i32
    return %c0_i32, %c0_i32_0 : i32, i32
  }
  func.func @transform_4(%arg0: i32) -> (i32, i32) {
    %c0_i32 = arith.constant 0 : i32
    %c0_i32_0 = arith.constant 0 : i32
    %c0_i32_1 = arith.constant 0 : i32
    return %c0_i32, %c0_i32_0 : i32, i32
  }
  func.func @transform_5(%arg0: i32) -> (i32, i32) {
    %c0_i32 = arith.constant 0 : i32
    %c0_i32_0 = arith.constant 0 : i32
    %c0_i32_1 = arith.constant 0 : i32
    return %c0_i32, %c0_i32_0 : i32, i32
  }
  func.func @transform_6(%arg0: i32) -> (i32, i32) {
    %c0_i32 = arith.constant 0 : i32
    %c0_i32_0 = arith.constant 0 : i32
    %c0_i32_1 = arith.constant 0 : i32
    return %c0_i32, %c0_i32_0 : i32, i32
  }
  func.func @transform_7(%arg0: i32) -> (i32, i32) {
    %c0_i32 = arith.constant 0 : i32
    %c0_i32_0 = arith.constant 0 : i32
    %c0_i32_1 = arith.constant 0 : i32
    return %c0_i32, %c0_i32_0 : i32, i32
  }
  func.func @transform_8(%arg0: i32) -> (i32, i32) {
    %c0_i32 = arith.constant 0 : i32
    %c0_i32_0 = arith.constant 0 : i32
    %c0_i32_1 = arith.constant 0 : i32
    return %c0_i32, %c0_i32_0 : i32, i32
  }
  func.func @transform_9(%arg0: i32) -> (i32, i32) {
    %c0_i32 = arith.constant 0 : i32
    %c0_i32_0 = arith.constant 0 : i32
    %c0_i32_1 = arith.constant 0 : i32
    return %c0_i32, %c0_i32_0 : i32, i32
  }
  func.func @transform_10(%arg0: i32) -> (i32, i32) {
    %c0_i32 = arith.constant 0 : i32
    %c0_i32_0 = arith.constant 0 : i32
    %c0_i32_1 = arith.constant 0 : i32
    return %c0_i32, %c0_i32_0 : i32, i32
  }
  func.func @transform_11(%arg0: i32) -> (i32, i32) {
    %c0_i32 = arith.constant 0 : i32
    %c0_i32_0 = arith.constant 0 : i32
    %c0_i32_1 = arith.constant 0 : i32
    return %c0_i32, %c0_i32_0 : i32, i32
  }
  func.func @transform_12(%arg0: i32) -> (i32, i32) {
    %c0_i32 = arith.constant 0 : i32
    %c0_i32_0 = arith.constant 0 : i32
    %c0_i32_1 = arith.constant 0 : i32
    return %c0_i32, %c0_i32_0 : i32, i32
  }
  func.func @transform_13(%arg0: i32) -> (i32, i32) {
    %c0_i32 = arith.constant 0 : i32
    %c0_i32_0 = arith.constant 0 : i32
    %c0_i32_1 = arith.constant 0 : i32
    return %c0_i32, %c0_i32_0 : i32, i32
  }
  func.func @transform_14(%arg0: i32) -> (i32, i32) {
    %c0_i32 = arith.constant 0 : i32
    %c0_i32_0 = arith.constant 0 : i32
    %c0_i32_1 = arith.constant 0 : i32
    return %c0_i32, %c0_i32_0 : i32, i32
  }
  func.func @transform_15(%arg0: i32) -> (i32, i32) {
    %c0_i32 = arith.constant 0 : i32
    %c0_i32_0 = arith.constant 0 : i32
    %c0_i32_1 = arith.constant 0 : i32
    return %c0_i32, %c0_i32_0 : i32, i32
  }
  func.func @transform_16(%arg0: i32) -> (i32, i32) {
    %c0_i32 = arith.constant 0 : i32
    %c0_i32_0 = arith.constant 0 : i32
    %c0_i32_1 = arith.constant 0 : i32
    return %c0_i32, %c0_i32_0 : i32, i32
  }
  func.func @transform_17(%arg0: i32) -> (i32, i32) {
    %c0_i32 = arith.constant 0 : i32
    %c0_i32_0 = arith.constant 0 : i32
    %c0_i32_1 = arith.constant 0 : i32
    return %c0_i32, %c0_i32_0 : i32, i32
  }
  func.func @transform_18(%arg0: i32) -> (i32, i32) {
    %c0_i32 = arith.constant 0 : i32
    %c0_i32_0 = arith.constant 0 : i32
    %c0_i32_1 = arith.constant 0 : i32
    return %c0_i32, %c0_i32_0 : i32, i32
  }
  func.func @transform_19(%arg0: i32) -> (i32, i32) {
    %c0_i32 = arith.constant 0 : i32
    %c0_i32_0 = arith.constant 0 : i32
    %c0_i32_1 = arith.constant 0 : i32
    return %c0_i32, %c0_i32_0 : i32, i32
  }
  func.func @transform_20(%arg0: i32) -> (i32, i32) {
    %c0_i32 = arith.constant 0 : i32
    %c0_i32_0 = arith.constant 0 : i32
    %c0_i32_1 = arith.constant 0 : i32
    return %c0_i32, %c0_i32_0 : i32, i32
  }
  func.func @transform_21(%arg0: i32) -> (i32, i32) {
    %c0_i32 = arith.constant 0 : i32
    %c0_i32_0 = arith.constant 0 : i32
    %c0_i32_1 = arith.constant 0 : i32
    return %c0_i32, %c0_i32_0 : i32, i32
  }
  func.func @transform_22(%arg0: i32) -> (i32, i32) {
    %c0_i32 = arith.constant 0 : i32
    %c0_i32_0 = arith.constant 0 : i32
    %c0_i32_1 = arith.constant 0 : i32
    return %c0_i32, %c0_i32_0 : i32, i32
  }
  func.func @transform_23(%arg0: i32) -> (i32, i32) {
    %c0_i32 = arith.constant 0 : i32
    %c0_i32_0 = arith.constant 0 : i32
    %c0_i32_1 = arith.constant 0 : i32
    return %c0_i32, %c0_i32_0 : i32, i32
  }
  func.func @transform_24(%arg0: i32) -> (i32, i32) {
    %c0_i32 = arith.constant 0 : i32
    %c0_i32_0 = arith.constant 0 : i32
    %c0_i32_1 = arith.constant 0 : i32
    return %c0_i32, %c0_i32_0 : i32, i32
  }
  func.func @transform_25(%arg0: i32) -> (i32, i32) {
    %c0_i32 = arith.constant 0 : i32
    %c0_i32_0 = arith.constant 0 : i32
    %c0_i32_1 = arith.constant 0 : i32
    return %c0_i32, %c0_i32_0 : i32, i32
  }
  func.func @transform_26(%arg0: i32) -> (i32, i32) {
    %c0_i32 = arith.constant 0 : i32
    %c0_i32_0 = arith.constant 0 : i32
    %c0_i32_1 = arith.constant 0 : i32
    return %c0_i32, %c0_i32_0 : i32, i32
  }
  func.func @transform_27(%arg0: i32) -> (i32, i32) {
    %c0_i32 = arith.constant 0 : i32
    %c0_i32_0 = arith.constant 0 : i32
    %c0_i32_1 = arith.constant 0 : i32
    return %c0_i32, %c0_i32_0 : i32, i32
  }
  func.func @transform_28(%arg0: i32) -> (i32, i32) {
    %c0_i32 = arith.constant 0 : i32
    %c0_i32_0 = arith.constant 0 : i32
    %c0_i32_1 = arith.constant 0 : i32
    return %c0_i32, %c0_i32_0 : i32, i32
  }
  func.func @transform_29(%arg0: i32) -> (i32, i32) {
    %c0_i32 = arith.constant 0 : i32
    %c0_i32_0 = arith.constant 0 : i32
    %c0_i32_1 = arith.constant 0 : i32
    return %c0_i32, %c0_i32_0 : i32, i32
  }
  func.func @transform_30(%arg0: i32) -> (i32, i32) {
    %c0_i32 = arith.constant 0 : i32
    %c0_i32_0 = arith.constant 0 : i32
    %c0_i32_1 = arith.constant 0 : i32
    return %c0_i32, %c0_i32_0 : i32, i32
  }
  func.func @transform_31(%arg0: i32) -> (i32, i32) {
    %c0_i32 = arith.constant 0 : i32
    %c0_i32_0 = arith.constant 0 : i32
    %c0_i32_1 = arith.constant 0 : i32
    return %c0_i32, %c0_i32_0 : i32, i32
  }
  func.func @transform_32(%arg0: i32) -> (i32, i32) {
    %c0_i32 = arith.constant 0 : i32
    %c0_i32_0 = arith.constant 0 : i32
    %c0_i32_1 = arith.constant 0 : i32
    return %c0_i32, %c0_i32_0 : i32, i32
  }
  func.func @transform_33(%arg0: i32) -> (i32, i32) {
    %c0_i32 = arith.constant 0 : i32
    %c0_i32_0 = arith.constant 0 : i32
    %c0_i32_1 = arith.constant 0 : i32
    return %c0_i32, %c0_i32_0 : i32, i32
  }
  func.func @transform_34(%arg0: i32) -> (i32, i32) {
    %c0_i32 = arith.constant 0 : i32
    %c0_i32_0 = arith.constant 0 : i32
    %c0_i32_1 = arith.constant 0 : i32
    return %c0_i32, %c0_i32_0 : i32, i32
  }
  func.func @transform_35(%arg0: i32) -> (i32, i32) {
    %c0_i32 = arith.constant 0 : i32
    %c0_i32_0 = arith.constant 0 : i32
    %c0_i32_1 = arith.constant 0 : i32
    return %c0_i32, %c0_i32_0 : i32, i32
  }
  func.func @transform_36(%arg0: i32) -> (i32, i32) {
    %c0_i32 = arith.constant 0 : i32
    %c0_i32_0 = arith.constant 0 : i32
    %c0_i32_1 = arith.constant 0 : i32
    return %c0_i32, %c0_i32_0 : i32, i32
  }
  func.func @transform_37(%arg0: i32) -> (i32, i32) {
    %c0_i32 = arith.constant 0 : i32
    %c0_i32_0 = arith.constant 0 : i32
    %c0_i32_1 = arith.constant 0 : i32
    return %c0_i32, %c0_i32_0 : i32, i32
  }
  func.func @transform_38(%arg0: i32) -> (i32, i32) {
    %c0_i32 = arith.constant 0 : i32
    %c0_i32_0 = arith.constant 0 : i32
    %c0_i32_1 = arith.constant 0 : i32
    return %c0_i32, %c0_i32_0 : i32, i32
  }
  func.func @transform_39(%arg0: i32) -> (i32, i32) {
    %c0_i32 = arith.constant 0 : i32
    %c0_i32_0 = arith.constant 0 : i32
    %c0_i32_1 = arith.constant 0 : i32
    return %c0_i32, %c0_i32_0 : i32, i32
  }
  func.func @transform_40(%arg0: i32) -> (i32, i32) {
    %c0_i32 = arith.constant 0 : i32
    %c0_i32_0 = arith.constant 0 : i32
    %c0_i32_1 = arith.constant 0 : i32
    return %c0_i32, %c0_i32_0 : i32, i32
  }
  func.func @transform_41(%arg0: i32) -> (i32, i32) {
    %c0_i32 = arith.constant 0 : i32
    %c0_i32_0 = arith.constant 0 : i32
    %c0_i32_1 = arith.constant 0 : i32
    return %c0_i32, %c0_i32_0 : i32, i32
  }
  func.func @transform_42(%arg0: i32) -> (i32, i32) {
    %c0_i32 = arith.constant 0 : i32
    %c0_i32_0 = arith.constant 0 : i32
    %c0_i32_1 = arith.constant 0 : i32
    return %c0_i32, %c0_i32_0 : i32, i32
  }
  func.func @transform_43(%arg0: i32) -> (i32, i32) {
    %c0_i32 = arith.constant 0 : i32
    %c0_i32_0 = arith.constant 0 : i32
    %c0_i32_1 = arith.constant 0 : i32
    return %c0_i32, %c0_i32_0 : i32, i32
  }
  func.func @transform_44(%arg0: i32) -> (i32, i32) {
    %c0_i32 = arith.constant 0 : i32
    %c0_i32_0 = arith.constant 0 : i32
    %c0_i32_1 = arith.constant 0 : i32
    return %c0_i32, %c0_i32_0 : i32, i32
  }
  func.func @transform_45(%arg0: i32) -> (i32, i32) {
    %c0_i32 = arith.constant 0 : i32
    %c0_i32_0 = arith.constant 0 : i32
    %c0_i32_1 = arith.constant 0 : i32
    return %c0_i32, %c0_i32_0 : i32, i32
  }
  func.func @transform_46(%arg0: i32) -> (i32, i32, i32) {
    %c0_i32 = arith.constant 0 : i32
    %c0_i32_0 = arith.constant 0 : i32
    %c0_i32_1 = arith.constant 0 : i32
    return %arg0, %c0_i32, %c0_i32_0 : i32, i32, i32
  }
}

</mosaic_0001>

<llo_original>
// kernel: incremental_net_forward.1
$region0: #{incremental_net_forward.1}
  #allocation0 [shape = 'u32[]', space=smem, size = 0x4, offset = 0x4, fixed_abs, tag = 'smem constant byte address 0x4 - core index']
  #allocation1 [shape = 'u32[144,128]{1,0:T(1,128)}', space=vmem, size = 0x12000, scoped, tag = 'internal scratch']
  %s0 = inlined_call_operand.smem [shape: u32[47], index: -1, kind: input, shape index: {}]
  %s1 = sld [smem:[%s0]]
  %s2 = scalar_lea.smem %s0, 1
  %s3 = sld [smem:[%s2]]
  %s4 = scalar_lea.smem %s0, 2
  %s5 = sld [smem:[%s4]]
  %s6 = scalar_lea.smem %s0, 3
  %s7 = sld [smem:[%s6]]
  %s8 = scalar_lea.smem %s0, 4
  %s9 = sld [smem:[%s8]]
  %s10 = scalar_lea.smem %s0, 5
  %s11 = sld [smem:[%s10]]
  %s12 = scalar_lea.smem %s0, 6
  %s13 = sld [smem:[%s12]]
  %s14 = scalar_lea.smem %s0, 7
  %s15 = sld [smem:[%s14]]
  %s16 = scalar_lea.smem %s0, 8
  %s17 = sld [smem:[%s16]]
  %s18 = scalar_lea.smem %s0, 9
  %s19 = sld [smem:[%s18]]
  %s20 = scalar_lea.smem %s0, 10
  %s21 = sld [smem:[%s20]]
  %s22 = scalar_lea.smem %s0, 11
  %s23 = sld [smem:[%s22]]
  %s24 = scalar_lea.smem %s0, 12
  %s25 = sld [smem:[%s24]]
  %s26 = scalar_lea.smem %s0, 13
  %s27 = sld [smem:[%s26]]
  %s28 = scalar_lea.smem %s0, 14
  %s29 = sld [smem:[%s28]]
  %s30 = scalar_lea.smem %s0, 15
  %s31 = sld [smem:[%s30]]
  %s32 = scalar_lea.smem %s0, 16
  %s33 = sld [smem:[%s32]]
  %s34 = scalar_lea.smem %s0, 17
  %s35 = sld [smem:[%s34]]
  %s36 = scalar_lea.smem %s0, 18
  %s37 = sld [smem:[%s36]]
  %s38 = scalar_lea.smem %s0, 19
  %s39 = sld [smem:[%s38]]
  %s40 = scalar_lea.smem %s0, 20
  %s41 = sld [smem:[%s40]]
  %s42 = scalar_lea.smem %s0, 21
  %s43 = sld [smem:[%s42]]
  %s44 = scalar_lea.smem %s0, 22
  %s45 = sld [smem:[%s44]]
  %s46 = scalar_lea.smem %s0, 23
  %s47 = sld [smem:[%s46]]
  %s48 = scalar_lea.smem %s0, 24
  %s49 = sld [smem:[%s48]]
  %s50 = scalar_lea.smem %s0, 25
  %s51 = sld [smem:[%s50]]
  %s52 = scalar_lea.smem %s0, 26
  %s53 = sld [smem:[%s52]]
  %s54 = scalar_lea.smem %s0, 27
  %s55 = sld [smem:[%s54]]
  %s56 = scalar_lea.smem %s0, 28
  %s57 = sld [smem:[%s56]]
  %s58 = scalar_lea.smem %s0, 29
  %s59 = sld [smem:[%s58]]
  %s60 = scalar_lea.smem %s0, 30
  %s61 = sld [smem:[%s60]]
  %s62 = scalar_lea.smem %s0, 31
  %s63 = sld [smem:[%s62]]
  %s64 = scalar_lea.smem %s0, 32
  %s65 = sld [smem:[%s64]]
  %s66 = scalar_lea.smem %s0, 33
  %s67 = sld [smem:[%s66]]
  %s68 = scalar_lea.smem %s0, 34
  %s69 = sld [smem:[%s68]]
  %s70 = scalar_lea.smem %s0, 35
  %s71 = sld [smem:[%s70]]
  %s72 = scalar_lea.smem %s0, 36
  %s73 = sld [smem:[%s72]]
  %s74 = scalar_lea.smem %s0, 37
  %s75 = sld [smem:[%s74]]
  %s76 = scalar_lea.smem %s0, 38
  %s77 = sld [smem:[%s76]]
  %s78 = scalar_lea.smem %s0, 39
  %s79 = sld [smem:[%s78]]
  %s80 = scalar_lea.smem %s0, 40
  %s81 = sld [smem:[%s80]]
  %s82 = scalar_lea.smem %s0, 41
  %s83 = sld [smem:[%s82]]
  %s84 = scalar_lea.smem %s0, 42
  %s85 = sld [smem:[%s84]]
  %s86 = scalar_lea.smem %s0, 43
  %s87 = sld [smem:[%s86]]
  %s88 = scalar_lea.smem %s0, 44
  %s89 = sld [smem:[%s88]]
  %s90 = scalar_lea.smem %s0, 45
  %s91 = sld [smem:[%s90]]
  %s92 = scalar_lea.smem %s0, 46
  %s93 = sld [smem:[%s92]]
  %s94 = sld [smem:[#allocation0]]
  $region217: #{incremental_net_forward.1} parent=0
    _
  %s96 = ssub.s32 1, %s94
  %s97 = scalar_select 0, %s96, %s94
  loop: start=0, step=1, limit=4
  $region2: #{incremental_net_forward.1} parent=0 // loop_pre_header
    _
  $region3: #{incremental_net_forward.1} parent=0 // loop_header
    %s99 = sphi 0, %s103
    %p100 = scmp.ge.s32.totalorder %s99, 4
    %s109 = sphi 0, %s111
    %s112 = sphi 0, %s109
    %s113 = sphi 0, %s112
    %s129 = sphi 0, %s113
    %s133 = sphi 0, %s133
    %s135 = sphi 0, %s133
    %s136 = sphi 0, %s135
    %s150 = sphi 0, %s136
    %s154 = sphi 0, %s154
    %s156 = sphi 0, %s154
    %s157 = sphi 0, %s156
    %s171 = sphi 0, %s157
    %s175 = sphi 0, %s175
    %s177 = sphi 0, %s175
    %s178 = sphi 0, %s177
    %s192 = sphi 0, %s178
    %s196 = sphi 0, %s196
    %s198 = sphi 0, %s196
    %s199 = sphi 0, %s198
    %s213 = sphi 0, %s199
    %s217 = sphi 0, %s217
    %s219 = sphi 0, %s217
    %s220 = sphi 0, %s219
    %s234 = sphi 0, %s220
    %s238 = sphi 0, %s238
    %s240 = sphi 0, %s238
    %s241 = sphi 0, %s240
    %s255 = sphi 0, %s241
    %s259 = sphi 0, %s259
    %s261 = sphi 0, %s259
    %s262 = sphi 0, %s261
    %s276 = sphi 0, %s262
    %s280 = sphi 0, %s280
    %s282 = sphi 0, %s280
    %s283 = sphi 0, %s282
    %s297 = sphi 0, %s283
    %s301 = sphi 0, %s301
    %s303 = sphi 0, %s301
    %s304 = sphi 0, %s303
    %s318 = sphi 0, %s304
    %s322 = sphi 0, %s322
    %s324 = sphi 0, %s322
    %s325 = sphi 0, %s324
    %s339 = sphi 0, %s325
    %s343 = sphi 0, %s343
    %s345 = sphi 0, %s343
    %s346 = sphi 0, %s345
    %s360 = sphi 0, %s346
    %s364 = sphi 0, %s364
    %s366 = sphi 0, %s364
    %s367 = sphi 0, %s366
    %s381 = sphi 0, %s367
    %s385 = sphi 0, %s385
    %s387 = sphi 0, %s385
    %s388 = sphi 0, %s387
    %s402 = sphi 0, %s388
    %s406 = sphi 0, %s406
    %s408 = sphi 0, %s406
    %s409 = sphi 0, %s408
    %s423 = sphi 0, %s409
    %s427 = sphi 0, %s427
    %s429 = sphi 0, %s427
    %s430 = sphi 0, %s429
    %s444 = sphi 0, %s430
    %s448 = sphi 0, %s448
    %s450 = sphi 0, %s448
    %s451 = sphi 0, %s450
    %s465 = sphi 0, %s451
    %s469 = sphi 0, %s469
    %s471 = sphi 0, %s469
    %s472 = sphi 0, %s471
    %s486 = sphi 0, %s472
    %s490 = sphi 0, %s490
    %s492 = sphi 0, %s490
    %s493 = sphi 0, %s492
    %s507 = sphi 0, %s493
    %s511 = sphi 0, %s511
    %s513 = sphi 0, %s511
    %s514 = sphi 0, %s513
    %s528 = sphi 0, %s514
    %s532 = sphi 0, %s532
    %s534 = sphi 0, %s532
    %s535 = sphi 0, %s534
    %s549 = sphi 0, %s535
    %s553 = sphi 0, %s553
    %s555 = sphi 0, %s553
    %s556 = sphi 0, %s555
    %s570 = sphi 0, %s556
    %s574 = sphi 0, %s574
    %s576 = sphi 0, %s574
    %s577 = sphi 0, %s576
    %s591 = sphi 0, %s577
    %s595 = sphi 0, %s595
    %s597 = sphi 0, %s595
    %s598 = sphi 0, %s597
    %s612 = sphi 0, %s598
    %s616 = sphi 0, %s616
    %s618 = sphi 0, %s616
    %s619 = sphi 0, %s618
    %s633 = sphi 0, %s619
    %s637 = sphi 0, %s637
    %s639 = sphi 0, %s637
    %s640 = sphi 0, %s639
    %s654 = sphi 0, %s640
    %s658 = sphi 0, %s658
    %s660 = sphi 0, %s658
    %s661 = sphi 0, %s660
    %s675 = sphi 0, %s661
    %s679 = sphi 0, %s679
    %s681 = sphi 0, %s679
    %s682 = sphi 0, %s681
    %s696 = sphi 0, %s682
    %s700 = sphi 0, %s700
    %s702 = sphi 0, %s700
    %s703 = sphi 0, %s702
    %s717 = sphi 0, %s703
    %s721 = sphi 0, %s721
    %s723 = sphi 0, %s721
    %s724 = sphi 0, %s723
    %s738 = sphi 0, %s724
    %s742 = sphi 0, %s742
    %s744 = sphi 0, %s742
    %s745 = sphi 0, %s744
    %s759 = sphi 0, %s745
    %s763 = sphi 0, %s763
    %s765 = sphi 0, %s763
    %s766 = sphi 0, %s765
    %s780 = sphi 0, %s766
    %s784 = sphi 0, %s784
    %s786 = sphi 0, %s784
    %s787 = sphi 0, %s786
    %s801 = sphi 0, %s787
    %s805 = sphi 0, %s805
    %s807 = sphi 0, %s805
    %s808 = sphi 0, %s807
    %s822 = sphi 0, %s808
    %s826 = sphi 0, %s826
    %s828 = sphi 0, %s826
    %s829 = sphi 0, %s828
    %s843 = sphi 0, %s829
    %s847 = sphi 0, %s847
    %s849 = sphi 0, %s847
    %s850 = sphi 0, %s849
    %s864 = sphi 0, %s850
    %s868 = sphi 0, %s868
    %s870 = sphi 0, %s868
    %s871 = sphi 0, %s870
    %s885 = sphi 0, %s871
    %s889 = sphi 0, %s889
    %s891 = sphi 0, %s889
    %s892 = sphi 0, %s891
    %s906 = sphi 0, %s892
    %s910 = sphi 0, %s910
    %s912 = sphi 0, %s910
    %s913 = sphi 0, %s912
    %s927 = sphi 0, %s913
    %s931 = sphi 0, %s931
    %s933 = sphi 0, %s931
    %s934 = sphi 0, %s933
    %s948 = sphi 0, %s934
    %s952 = sphi 0, %s952
    %s954 = sphi 0, %s952
    %s955 = sphi 0, %s954
    %s969 = sphi 0, %s955
    %s973 = sphi 0, %s973
    %s975 = sphi 0, %s973
    %s976 = sphi 0, %s975
    %s990 = sphi 0, %s976
    %s994 = sphi 0, %s994
    %s996 = sphi 0, %s994
    %s997 = sphi 0, %s996
    %s1011 = sphi 0, %s997
    %s1015 = sphi 0, %s1015
    %s1017 = sphi 0, %s1015
    %s1018 = sphi 0, %s1017
    %s1032 = sphi 0, %s1018
    %s1036 = sphi 0, %s1036
    %s1038 = sphi 0, %s1036
    %s1039 = sphi 0, %s1038
    %s1053 = sphi 0, %s1039
    %s1057 = sphi 0, %s1057
    %s1059 = sphi 0, %s1057
    %s1060 = sphi 0, %s1059
    %s1074 = sphi 0, %s1060
    %s1080 = sphi 0, %s1082
    %s1083 = sphi 0, %s1080
    %s1084 = sphi 0, %s1083
    %s1100 = sphi 0, %s1084
  $region4: #{incremental_net_forward.1} parent=0 // loop_header_branch
    %102 = sbr.rel (%p100) target = $region8
  $region5: #{incremental_net_forward.1} parent=0 // loop_body
    %s104 = ssub.s32 %s99, 1
    %s105 = ssub.s32 %s99, 2
    %s106 = sadd.s32 %s99, 1
    %s107 = ssub.s32 %s99, %s106
    %p108 = scmp.eq.s32.totalorder %s107, 0
    %s110 = sadd.s32 %s109, 1
    %s111 = scalar_select %p108, %s109, %s110
    %p114 = pneg %p108
    %p115 = scmp.eq.s32.totalorder %s99, 1
    %p116 = por %p114, %p115
    %p117 = scmp.ne.s32.totalorder %s109, %s112
    %p118 = scmp.eq.s32.totalorder %s99, 0
    %p119 = por %p117, %p118
    %p120 = scmp.ne.s32.totalorder %s109, %s112
    %p121 = scmp.eq.s32.totalorder %s104, 1
    %p122 = por %p120, %p121
    %p123 = scmp.ne.s32.totalorder %s112, %s113
    %p124 = scmp.eq.s32.totalorder %s104, 0
    %p125 = por %p123, %p124
    %p126 = scmp.ne.s32.totalorder %s112, %s113
    %p127 = scmp.eq.s32.totalorder %s105, 1
    %p128 = por %p126, %p127
    %p130 = scmp.ne.s32.totalorder %s113, %s129
    %p131 = scmp.eq.s32.totalorder %s105, 0
    %p132 = por %p130, %p131
    %s134 = sadd.s32 %s133, 1
    %p137 = scmp.eq.s32.totalorder %s99, 1
    %p138 = scmp.ne.s32.totalorder %s133, %s135
    %p139 = scmp.eq.s32.totalorder %s99, 0
    %p140 = por %p138, %p139
    %p141 = scmp.ne.s32.totalorder %s133, %s135
    %p142 = scmp.eq.s32.totalorder %s104, 1
    %p143 = por %p141, %p142
    %p144 = scmp.ne.s32.totalorder %s135, %s136
    %p145 = scmp.eq.s32.totalorder %s104, 0
    %p146 = por %p144, %p145
    %p147 = scmp.ne.s32.totalorder %s135, %s136
    %p148 = scmp.eq.s32.totalorder %s105, 1
    %p149 = por %p147, %p148
    %p151 = scmp.ne.s32.totalorder %s136, %s150
    %p152 = scmp.eq.s32.totalorder %s105, 0
    %p153 = por %p151, %p152
    %s155 = sadd.s32 %s154, 1
    %p158 = scmp.eq.s32.totalorder %s99, 1
    %p159 = scmp.ne.s32.totalorder %s154, %s156
    %p160 = scmp.eq.s32.totalorder %s99, 0
    %p161 = por %p159, %p160
    %p162 = scmp.ne.s32.totalorder %s154, %s156
    %p163 = scmp.eq.s32.totalorder %s104, 1
    %p164 = por %p162, %p163
    %p165 = scmp.ne.s32.totalorder %s156, %s157
    %p166 = scmp.eq.s32.totalorder %s104, 0
    %p167 = por %p165, %p166
    %p168 = scmp.ne.s32.totalorder %s156, %s157
    %p169 = scmp.eq.s32.totalorder %s105, 1
    %p170 = por %p168, %p169
    %p172 = scmp.ne.s32.totalorder %s157, %s171
    %p173 = scmp.eq.s32.totalorder %s105, 0
    %p174 = por %p172, %p173
    %s176 = sadd.s32 %s175, 1
    %p179 = scmp.eq.s32.totalorder %s99, 1
    %p180 = scmp.ne.s32.totalorder %s175, %s177
    %p181 = scmp.eq.s32.totalorder %s99, 0
    %p182 = por %p180, %p181
    %p183 = scmp.ne.s32.totalorder %s175, %s177
    %p184 = scmp.eq.s32.totalorder %s104, 1
    %p185 = por %p183, %p184
    %p186 = scmp.ne.s32.totalorder %s177, %s178
    %p187 = scmp.eq.s32.totalorder %s104, 0
    %p188 = por %p186, %p187
    %p189 = scmp.ne.s32.totalorder %s177, %s178
    %p190 = scmp.eq.s32.totalorder %s105, 1
    %p191 = por %p189, %p190
    %p193 = scmp.ne.s32.totalorder %s178, %s192
    %p194 = scmp.eq.s32.totalorder %s105, 0
    %p195 = por %p193, %p194
    %s197 = sadd.s32 %s196, 1
    %p200 = scmp.eq.s32.totalorder %s99, 1
    %p201 = scmp.ne.s32.totalorder %s196, %s198
    %p202 = scmp.eq.s32.totalorder %s99, 0
    %p203 = por %p201, %p202
    %p204 = scmp.ne.s32.totalorder %s196, %s198
    %p205 = scmp.eq.s32.totalorder %s104, 1
    %p206 = por %p204, %p205
    %p207 = scmp.ne.s32.totalorder %s198, %s199
    %p208 = scmp.eq.s32.totalorder %s104, 0
    %p209 = por %p207, %p208
    %p210 = scmp.ne.s32.totalorder %s198, %s199
    %p211 = scmp.eq.s32.totalorder %s105, 1
    %p212 = por %p210, %p211
    %p214 = scmp.ne.s32.totalorder %s199, %s213
    %p215 = scmp.eq.s32.totalorder %s105, 0
    %p216 = por %p214, %p215
    %s218 = sadd.s32 %s217, 1
    %p221 = scmp.eq.s32.totalorder %s99, 1
    %p222 = scmp.ne.s32.totalorder %s217, %s219
    %p223 = scmp.eq.s32.totalorder %s99, 0
    %p224 = por %p222, %p223
    %p225 = scmp.ne.s32.totalorder %s217, %s219
    %p226 = scmp.eq.s32.totalorder %s104, 1
    %p227 = por %p225, %p226
    %p228 = scmp.ne.s32.totalorder %s219, %s220
    %p229 = scmp.eq.s32.totalorder %s104, 0
    %p230 = por %p228, %p229
    %p231 = scmp.ne.s32.totalorder %s219, %s220
    %p232 = scmp.eq.s32.totalorder %s105, 1
    %p233 = por %p231, %p232
    %p235 = scmp.ne.s32.totalorder %s220, %s234
    %p236 = scmp.eq.s32.totalorder %s105, 0
    %p237 = por %p235, %p236
    %s239 = sadd.s32 %s238, 1
    %p242 = scmp.eq.s32.totalorder %s99, 1
    %p243 = scmp.ne.s32.totalorder %s238, %s240
    %p244 = scmp.eq.s32.totalorder %s99, 0
    %p245 = por %p243, %p244
    %p246 = scmp.ne.s32.totalorder %s238, %s240
    %p247 = scmp.eq.s32.totalorder %s104, 1
    %p248 = por %p246, %p247
    %p249 = scmp.ne.s32.totalorder %s240, %s241
    %p250 = scmp.eq.s32.totalorder %s104, 0
    %p251 = por %p249, %p250
    %p252 = scmp.ne.s32.totalorder %s240, %s241
    %p253 = scmp.eq.s32.totalorder %s105, 1
    %p254 = por %p252, %p253
    %p256 = scmp.ne.s32.totalorder %s241, %s255
    %p257 = scmp.eq.s32.totalorder %s105, 0
    %p258 = por %p256, %p257
    %s260 = sadd.s32 %s259, 1
    %p263 = scmp.eq.s32.totalorder %s99, 1
    %p264 = scmp.ne.s32.totalorder %s259, %s261
    %p265 = scmp.eq.s32.totalorder %s99, 0
    %p266 = por %p264, %p265
    %p267 = scmp.ne.s32.totalorder %s259, %s261
    %p268 = scmp.eq.s32.totalorder %s104, 1
    %p269 = por %p267, %p268
    %p270 = scmp.ne.s32.totalorder %s261, %s262
    %p271 = scmp.eq.s32.totalorder %s104, 0
    %p272 = por %p270, %p271
    %p273 = scmp.ne.s32.totalorder %s261, %s262
    %p274 = scmp.eq.s32.totalorder %s105, 1
    %p275 = por %p273, %p274
    %p277 = scmp.ne.s32.totalorder %s262, %s276
    %p278 = scmp.eq.s32.totalorder %s105, 0
    %p279 = por %p277, %p278
    %s281 = sadd.s32 %s280, 1
    %p284 = scmp.eq.s32.totalorder %s99, 1
    %p285 = scmp.ne.s32.totalorder %s280, %s282
    %p286 = scmp.eq.s32.totalorder %s99, 0
    %p287 = por %p285, %p286
    %p288 = scmp.ne.s32.totalorder %s280, %s282
    %p289 = scmp.eq.s32.totalorder %s104, 1
    %p290 = por %p288, %p289
    %p291 = scmp.ne.s32.totalorder %s282, %s283
    %p292 = scmp.eq.s32.totalorder %s104, 0
    %p293 = por %p291, %p292
    %p294 = scmp.ne.s32.totalorder %s282, %s283
    %p295 = scmp.eq.s32.totalorder %s105, 1
    %p296 = por %p294, %p295
    %p298 = scmp.ne.s32.totalorder %s283, %s297
    %p299 = scmp.eq.s32.totalorder %s105, 0
    %p300 = por %p298, %p299
    %s302 = sadd.s32 %s301, 1
    %p305 = scmp.eq.s32.totalorder %s99, 1
    %p306 = scmp.ne.s32.totalorder %s301, %s303
    %p307 = scmp.eq.s32.totalorder %s99, 0
    %p308 = por %p306, %p307
    %p309 = scmp.ne.s32.totalorder %s301, %s303
    %p310 = scmp.eq.s32.totalorder %s104, 1
    %p311 = por %p309, %p310
    %p312 = scmp.ne.s32.totalorder %s303, %s304
    %p313 = scmp.eq.s32.totalorder %s104, 0
    %p314 = por %p312, %p313
    %p315 = scmp.ne.s32.totalorder %s303, %s304
    %p316 = scmp.eq.s32.totalorder %s105, 1
    %p317 = por %p315, %p316
    %p319 = scmp.ne.s32.totalorder %s304, %s318
    %p320 = scmp.eq.s32.totalorder %s105, 0
    %p321 = por %p319, %p320
    %s323 = sadd.s32 %s322, 1
    %p326 = scmp.eq.s32.totalorder %s99, 1
    %p327 = scmp.ne.s32.totalorder %s322, %s324
    %p328 = scmp.eq.s32.totalorder %s99, 0
    %p329 = por %p327, %p328
    %p330 = scmp.ne.s32.totalorder %s322, %s324
    %p331 = scmp.eq.s32.totalorder %s104, 1
    %p332 = por %p330, %p331
    %p333 = scmp.ne.s32.totalorder %s324, %s325
    %p334 = scmp.eq.s32.totalorder %s104, 0
    %p335 = por %p333, %p334
    %p336 = scmp.ne.s32.totalorder %s324, %s325
    %p337 = scmp.eq.s32.totalorder %s105, 1
    %p338 = por %p336, %p337
    %p340 = scmp.ne.s32.totalorder %s325, %s339
    %p341 = scmp.eq.s32.totalorder %s105, 0
    %p342 = por %p340, %p341
    %s344 = sadd.s32 %s343, 1
    %p347 = scmp.eq.s32.totalorder %s99, 1
    %p348 = scmp.ne.s32.totalorder %s343, %s345
    %p349 = scmp.eq.s32.totalorder %s99, 0
    %p350 = por %p348, %p349
    %p351 = scmp.ne.s32.totalorder %s343, %s345
    %p352 = scmp.eq.s32.totalorder %s104, 1
    %p353 = por %p351, %p352
    %p354 = scmp.ne.s32.totalorder %s345, %s346
    %p355 = scmp.eq.s32.totalorder %s104, 0
    %p356 = por %p354, %p355
    %p357 = scmp.ne.s32.totalorder %s345, %s346
    %p358 = scmp.eq.s32.totalorder %s105, 1
    %p359 = por %p357, %p358
    %p361 = scmp.ne.s32.totalorder %s346, %s360
    %p362 = scmp.eq.s32.totalorder %s105, 0
    %p363 = por %p361, %p362
    %s365 = sadd.s32 %s364, 1
    %p368 = scmp.eq.s32.totalorder %s99, 1
    %p369 = scmp.ne.s32.totalorder %s364, %s366
    %p370 = scmp.eq.s32.totalorder %s99, 0
    %p371 = por %p369, %p370
    %p372 = scmp.ne.s32.totalorder %s364, %s366
    %p373 = scmp.eq.s32.totalorder %s104, 1
    %p374 = por %p372, %p373
    %p375 = scmp.ne.s32.totalorder %s366, %s367
    %p376 = scmp.eq.s32.totalorder %s104, 0
    %p377 = por %p375, %p376
    %p378 = scmp.ne.s32.totalorder %s366, %s367
    %p379 = scmp.eq.s32.totalorder %s105, 1
    %p380 = por %p378, %p379
    %p382 = scmp.ne.s32.totalorder %s367, %s381
    %p383 = scmp.eq.s32.totalorder %s105, 0
    %p384 = por %p382, %p383
    %s386 = sadd.s32 %s385, 1
    %p389 = scmp.eq.s32.totalorder %s99, 1
    %p390 = scmp.ne.s32.totalorder %s385, %s387
    %p391 = scmp.eq.s32.totalorder %s99, 0
    %p392 = por %p390, %p391
    %p393 = scmp.ne.s32.totalorder %s385, %s387
    %p394 = scmp.eq.s32.totalorder %s104, 1
    %p395 = por %p393, %p394
    %p396 = scmp.ne.s32.totalorder %s387, %s388
    %p397 = scmp.eq.s32.totalorder %s104, 0
    %p398 = por %p396, %p397
    %p399 = scmp.ne.s32.totalorder %s387, %s388
    %p400 = scmp.eq.s32.totalorder %s105, 1
    %p401 = por %p399, %p400
    %p403 = scmp.ne.s32.totalorder %s388, %s402
    %p404 = scmp.eq.s32.totalorder %s105, 0
    %p405 = por %p403, %p404
    %s407 = sadd.s32 %s406, 1
    %p410 = scmp.eq.s32.totalorder %s99, 1
    %p411 = scmp.ne.s32.totalorder %s406, %s408
    %p412 = scmp.eq.s32.totalorder %s99, 0
    %p413 = por %p411, %p412
    %p414 = scmp.ne.s32.totalorder %s406, %s408
    %p415 = scmp.eq.s32.totalorder %s104, 1
    %p416 = por %p414, %p415
    %p417 = scmp.ne.s32.totalorder %s408, %s409
    %p418 = scmp.eq.s32.totalorder %s104, 0
    %p419 = por %p417, %p418
    %p420 = scmp.ne.s32.totalorder %s408, %s409
    %p421 = scmp.eq.s32.totalorder %s105, 1
    %p422 = por %p420, %p421
    %p424 = scmp.ne.s32.totalorder %s409, %s423
    %p425 = scmp.eq.s32.totalorder %s105, 0
    %p426 = por %p424, %p425
    %s428 = sadd.s32 %s427, 1
    %p431 = scmp.eq.s32.totalorder %s99, 1
    %p432 = scmp.ne.s32.totalorder %s427, %s429
    %p433 = scmp.eq.s32.totalorder %s99, 0
    %p434 = por %p432, %p433
    %p435 = scmp.ne.s32.totalorder %s427, %s429
    %p436 = scmp.eq.s32.totalorder %s104, 1
    %p437 = por %p435, %p436
    %p438 = scmp.ne.s32.totalorder %s429, %s430
    %p439 = scmp.eq.s32.totalorder %s104, 0
    %p440 = por %p438, %p439
    %p441 = scmp.ne.s32.totalorder %s429, %s430
    %p442 = scmp.eq.s32.totalorder %s105, 1
    %p443 = por %p441, %p442
    %p445 = scmp.ne.s32.totalorder %s430, %s444
    %p446 = scmp.eq.s32.totalorder %s105, 0
    %p447 = por %p445, %p446
    %s449 = sadd.s32 %s448, 1
    %p452 = scmp.eq.s32.totalorder %s99, 1
    %p453 = scmp.ne.s32.totalorder %s448, %s450
    %p454 = scmp.eq.s32.totalorder %s99, 0
    %p455 = por %p453, %p454
    %p456 = scmp.ne.s32.totalorder %s448, %s450
    %p457 = scmp.eq.s32.totalorder %s104, 1
    %p458 = por %p456, %p457
    %p459 = scmp.ne.s32.totalorder %s450, %s451
    %p460 = scmp.eq.s32.totalorder %s104, 0
    %p461 = por %p459, %p460
    %p462 = scmp.ne.s32.totalorder %s450, %s451
    %p463 = scmp.eq.s32.totalorder %s105, 1
    %p464 = por %p462, %p463
    %p466 = scmp.ne.s32.totalorder %s451, %s465
    %p467 = scmp.eq.s32.totalorder %s105, 0
    %p468 = por %p466, %p467
    %s470 = sadd.s32 %s469, 1
    %p473 = scmp.eq.s32.totalorder %s99, 1
    %p474 = scmp.ne.s32.totalorder %s469, %s471
    %p475 = scmp.eq.s32.totalorder %s99, 0
    %p476 = por %p474, %p475
    %p477 = scmp.ne.s32.totalorder %s469, %s471
    %p478 = scmp.eq.s32.totalorder %s104, 1
    %p479 = por %p477, %p478
    %p480 = scmp.ne.s32.totalorder %s471, %s472
    %p481 = scmp.eq.s32.totalorder %s104, 0
    %p482 = por %p480, %p481
    %p483 = scmp.ne.s32.totalorder %s471, %s472
    %p484 = scmp.eq.s32.totalorder %s105, 1
    %p485 = por %p483, %p484
    %p487 = scmp.ne.s32.totalorder %s472, %s486
    %p488 = scmp.eq.s32.totalorder %s105, 0
    %p489 = por %p487, %p488
    %s491 = sadd.s32 %s490, 1
    %p494 = scmp.eq.s32.totalorder %s99, 1
    %p495 = scmp.ne.s32.totalorder %s490, %s492
    %p496 = scmp.eq.s32.totalorder %s99, 0
    %p497 = por %p495, %p496
    %p498 = scmp.ne.s32.totalorder %s490, %s492
    %p499 = scmp.eq.s32.totalorder %s104, 1
    %p500 = por %p498, %p499
    %p501 = scmp.ne.s32.totalorder %s492, %s493
    %p502 = scmp.eq.s32.totalorder %s104, 0
    %p503 = por %p501, %p502
    %p504 = scmp.ne.s32.totalorder %s492, %s493
    %p505 = scmp.eq.s32.totalorder %s105, 1
    %p506 = por %p504, %p505
    %p508 = scmp.ne.s32.totalorder %s493, %s507
    %p509 = scmp.eq.s32.totalorder %s105, 0
    %p510 = por %p508, %p509
    %s512 = sadd.s32 %s511, 1
    %p515 = scmp.eq.s32.totalorder %s99, 1
    %p516 = scmp.ne.s32.totalorder %s511, %s513
    %p517 = scmp.eq.s32.totalorder %s99, 0
    %p518 = por %p516, %p517
    %p519 = scmp.ne.s32.totalorder %s511, %s513
    %p520 = scmp.eq.s32.totalorder %s104, 1
    %p521 = por %p519, %p520
    %p522 = scmp.ne.s32.totalorder %s513, %s514
    %p523 = scmp.eq.s32.totalorder %s104, 0
    %p524 = por %p522, %p523
    %p525 = scmp.ne.s32.totalorder %s513, %s514
    %p526 = scmp.eq.s32.totalorder %s105, 1
    %p527 = por %p525, %p526
    %p529 = scmp.ne.s32.totalorder %s514, %s528
    %p530 = scmp.eq.s32.totalorder %s105, 0
    %p531 = por %p529, %p530
    %s533 = sadd.s32 %s532, 1
    %p536 = scmp.eq.s32.totalorder %s99, 1
    %p537 = scmp.ne.s32.totalorder %s532, %s534
    %p538 = scmp.eq.s32.totalorder %s99, 0
    %p539 = por %p537, %p538
    %p540 = scmp.ne.s32.totalorder %s532, %s534
    %p541 = scmp.eq.s32.totalorder %s104, 1
    %p542 = por %p540, %p541
    %p543 = scmp.ne.s32.totalorder %s534, %s535
    %p544 = scmp.eq.s32.totalorder %s104, 0
    %p545 = por %p543, %p544
    %p546 = scmp.ne.s32.totalorder %s534, %s535
    %p547 = scmp.eq.s32.totalorder %s105, 1
    %p548 = por %p546, %p547
    %p550 = scmp.ne.s32.totalorder %s535, %s549
    %p551 = scmp.eq.s32.totalorder %s105, 0
    %p552 = por %p550, %p551
    %s554 = sadd.s32 %s553, 1
    %p557 = scmp.eq.s32.totalorder %s99, 1
    %p558 = scmp.ne.s32.totalorder %s553, %s555
    %p559 = scmp.eq.s32.totalorder %s99, 0
    %p560 = por %p558, %p559
    %p561 = scmp.ne.s32.totalorder %s553, %s555
    %p562 = scmp.eq.s32.totalorder %s104, 1
    %p563 = por %p561, %p562
    %p564 = scmp.ne.s32.totalorder %s555, %s556
    %p565 = scmp.eq.s32.totalorder %s104, 0
    %p566 = por %p564, %p565
    %p567 = scmp.ne.s32.totalorder %s555, %s556
    %p568 = scmp.eq.s32.totalorder %s105, 1
    %p569 = por %p567, %p568
    %p571 = scmp.ne.s32.totalorder %s556, %s570
    %p572 = scmp.eq.s32.totalorder %s105, 0
    %p573 = por %p571, %p572
    %s575 = sadd.s32 %s574, 1
    %p578 = scmp.eq.s32.totalorder %s99, 1
    %p579 = scmp.ne.s32.totalorder %s574, %s576
    %p580 = scmp.eq.s32.totalorder %s99, 0
    %p581 = por %p579, %p580
    %p582 = scmp.ne.s32.totalorder %s574, %s576
    %p583 = scmp.eq.s32.totalorder %s104, 1
    %p584 = por %p582, %p583
    %p585 = scmp.ne.s32.totalorder %s576, %s577
    %p586 = scmp.eq.s32.totalorder %s104, 0
    %p587 = por %p585, %p586
    %p588 = scmp.ne.s32.totalorder %s576, %s577
    %p589 = scmp.eq.s32.totalorder %s105, 1
    %p590 = por %p588, %p589
    %p592 = scmp.ne.s32.totalorder %s577, %s591
    %p593 = scmp.eq.s32.totalorder %s105, 0
    %p594 = por %p592, %p593
    %s596 = sadd.s32 %s595, 1
    %p599 = scmp.eq.s32.totalorder %s99, 1
    %p600 = scmp.ne.s32.totalorder %s595, %s597
    %p601 = scmp.eq.s32.totalorder %s99, 0
    %p602 = por %p600, %p601
    %p603 = scmp.ne.s32.totalorder %s595, %s597
    %p604 = scmp.eq.s32.totalorder %s104, 1
    %p605 = por %p603, %p604
    %p606 = scmp.ne.s32.totalorder %s597, %s598
    %p607 = scmp.eq.s32.totalorder %s104, 0
    %p608 = por %p606, %p607
    %p609 = scmp.ne.s32.totalorder %s597, %s598
    %p610 = scmp.eq.s32.totalorder %s105, 1
    %p611 = por %p609, %p610
    %p613 = scmp.ne.s32.totalorder %s598, %s612
    %p614 = scmp.eq.s32.totalorder %s105, 0
    %p615 = por %p613, %p614
    %s617 = sadd.s32 %s616, 1
    %p620 = scmp.eq.s32.totalorder %s99, 1
    %p621 = scmp.ne.s32.totalorder %s616, %s618
    %p622 = scmp.eq.s32.totalorder %s99, 0
    %p623 = por %p621, %p622
    %p624 = scmp.ne.s32.totalorder %s616, %s618
    %p625 = scmp.eq.s32.totalorder %s104, 1
    %p626 = por %p624, %p625
    %p627 = scmp.ne.s32.totalorder %s618, %s619
    %p628 = scmp.eq.s32.totalorder %s104, 0
    %p629 = por %p627, %p628
    %p630 = scmp.ne.s32.totalorder %s618, %s619
    %p631 = scmp.eq.s32.totalorder %s105, 1
    %p632 = por %p630, %p631
    %p634 = scmp.ne.s32.totalorder %s619, %s633
    %p635 = scmp.eq.s32.totalorder %s105, 0
    %p636 = por %p634, %p635
    %s638 = sadd.s32 %s637, 1
    %p641 = scmp.eq.s32.totalorder %s99, 1
    %p642 = scmp.ne.s32.totalorder %s637, %s639
    %p643 = scmp.eq.s32.totalorder %s99, 0
    %p644 = por %p642, %p643
    %p645 = scmp.ne.s32.totalorder %s637, %s639
    %p646 = scmp.eq.s32.totalorder %s104, 1
    %p647 = por %p645, %p646
    %p648 = scmp.ne.s32.totalorder %s639, %s640
    %p649 = scmp.eq.s32.totalorder %s104, 0
    %p650 = por %p648, %p649
    %p651 = scmp.ne.s32.totalorder %s639, %s640
    %p652 = scmp.eq.s32.totalorder %s105, 1
    %p653 = por %p651, %p652
    %p655 = scmp.ne.s32.totalorder %s640, %s654
    %p656 = scmp.eq.s32.totalorder %s105, 0
    %p657 = por %p655, %p656
    %s659 = sadd.s32 %s658, 1
    %p662 = scmp.eq.s32.totalorder %s99, 1
    %p663 = scmp.ne.s32.totalorder %s658, %s660
    %p664 = scmp.eq.s32.totalorder %s99, 0
    %p665 = por %p663, %p664
    %p666 = scmp.ne.s32.totalorder %s658, %s660
    %p667 = scmp.eq.s32.totalorder %s104, 1
    %p668 = por %p666, %p667
    %p669 = scmp.ne.s32.totalorder %s660, %s661
    %p670 = scmp.eq.s32.totalorder %s104, 0
    %p671 = por %p669, %p670
    %p672 = scmp.ne.s32.totalorder %s660, %s661
    %p673 = scmp.eq.s32.totalorder %s105, 1
    %p674 = por %p672, %p673
    %p676 = scmp.ne.s32.totalorder %s661, %s675
    %p677 = scmp.eq.s32.totalorder %s105, 0
    %p678 = por %p676, %p677
    %s680 = sadd.s32 %s679, 1
    %p683 = scmp.eq.s32.totalorder %s99, 1
    %p684 = scmp.ne.s32.totalorder %s679, %s681
    %p685 = scmp.eq.s32.totalorder %s99, 0
    %p686 = por %p684, %p685
    %p687 = scmp.ne.s32.totalorder %s679, %s681
    %p688 = scmp.eq.s32.totalorder %s104, 1
    %p689 = por %p687, %p688
    %p690 = scmp.ne.s32.totalorder %s681, %s682
    %p691 = scmp.eq.s32.totalorder %s104, 0
    %p692 = por %p690, %p691
    %p693 = scmp.ne.s32.totalorder %s681, %s682
    %p694 = scmp.eq.s32.totalorder %s105, 1
    %p695 = por %p693, %p694
    %p697 = scmp.ne.s32.totalorder %s682, %s696
    %p698 = scmp.eq.s32.totalorder %s105, 0
    %p699 = por %p697, %p698
    %s701 = sadd.s32 %s700, 1
    %p704 = scmp.eq.s32.totalorder %s99, 1
    %p705 = scmp.ne.s32.totalorder %s700, %s702
    %p706 = scmp.eq.s32.totalorder %s99, 0
    %p707 = por %p705, %p706
    %p708 = scmp.ne.s32.totalorder %s700, %s702
    %p709 = scmp.eq.s32.totalorder %s104, 1
    %p710 = por %p708, %p709
    %p711 = scmp.ne.s32.totalorder %s702, %s703
    %p712 = scmp.eq.s32.totalorder %s104, 0
    %p713 = por %p711, %p712
    %p714 = scmp.ne.s32.totalorder %s702, %s703
    %p715 = scmp.eq.s32.totalorder %s105, 1
    %p716 = por %p714, %p715
    %p718 = scmp.ne.s32.totalorder %s703, %s717
    %p719 = scmp.eq.s32.totalorder %s105, 0
    %p720 = por %p718, %p719
    %s722 = sadd.s32 %s721, 1
    %p725 = scmp.eq.s32.totalorder %s99, 1
    %p726 = scmp.ne.s32.totalorder %s721, %s723
    %p727 = scmp.eq.s32.totalorder %s99, 0
    %p728 = por %p726, %p727
    %p729 = scmp.ne.s32.totalorder %s721, %s723
    %p730 = scmp.eq.s32.totalorder %s104, 1
    %p731 = por %p729, %p730
    %p732 = scmp.ne.s32.totalorder %s723, %s724
    %p733 = scmp.eq.s32.totalorder %s104, 0
    %p734 = por %p732, %p733
    %p735 = scmp.ne.s32.totalorder %s723, %s724
    %p736 = scmp.eq.s32.totalorder %s105, 1
    %p737 = por %p735, %p736
    %p739 = scmp.ne.s32.totalorder %s724, %s738
    %p740 = scmp.eq.s32.totalorder %s105, 0
    %p741 = por %p739, %p740
    %s743 = sadd.s32 %s742, 1
    %p746 = scmp.eq.s32.totalorder %s99, 1
    %p747 = scmp.ne.s32.totalorder %s742, %s744
    %p748 = scmp.eq.s32.totalorder %s99, 0
    %p749 = por %p747, %p748
    %p750 = scmp.ne.s32.totalorder %s742, %s744
    %p751 = scmp.eq.s32.totalorder %s104, 1
    %p752 = por %p750, %p751
    %p753 = scmp.ne.s32.totalorder %s744, %s745
    %p754 = scmp.eq.s32.totalorder %s104, 0
    %p755 = por %p753, %p754
    %p756 = scmp.ne.s32.totalorder %s744, %s745
    %p757 = scmp.eq.s32.totalorder %s105, 1
    %p758 = por %p756, %p757
    %p760 = scmp.ne.s32.totalorder %s745, %s759
    %p761 = scmp.eq.s32.totalorder %s105, 0
    %p762 = por %p760, %p761
    %s764 = sadd.s32 %s763, 1
    %p767 = scmp.eq.s32.totalorder %s99, 1
    %p768 = scmp.ne.s32.totalorder %s763, %s765
    %p769 = scmp.eq.s32.totalorder %s99, 0
    %p770 = por %p768, %p769
    %p771 = scmp.ne.s32.totalorder %s763, %s765
    %p772 = scmp.eq.s32.totalorder %s104, 1
    %p773 = por %p771, %p772
    %p774 = scmp.ne.s32.totalorder %s765, %s766
    %p775 = scmp.eq.s32.totalorder %s104, 0
    %p776 = por %p774, %p775
    %p777 = scmp.ne.s32.totalorder %s765, %s766
    %p778 = scmp.eq.s32.totalorder %s105, 1
    %p779 = por %p777, %p778
    %p781 = scmp.ne.s32.totalorder %s766, %s780
    %p782 = scmp.eq.s32.totalorder %s105, 0
    %p783 = por %p781, %p782
    %s785 = sadd.s32 %s784, 1
    %p788 = scmp.eq.s32.totalorder %s99, 1
    %p789 = scmp.ne.s32.totalorder %s784, %s786
    %p790 = scmp.eq.s32.totalorder %s99, 0
    %p791 = por %p789, %p790
    %p792 = scmp.ne.s32.totalorder %s784, %s786
    %p793 = scmp.eq.s32.totalorder %s104, 1
    %p794 = por %p792, %p793
    %p795 = scmp.ne.s32.totalorder %s786, %s787
    %p796 = scmp.eq.s32.totalorder %s104, 0
    %p797 = por %p795, %p796
    %p798 = scmp.ne.s32.totalorder %s786, %s787
    %p799 = scmp.eq.s32.totalorder %s105, 1
    %p800 = por %p798, %p799
    %p802 = scmp.ne.s32.totalorder %s787, %s801
    %p803 = scmp.eq.s32.totalorder %s105, 0
    %p804 = por %p802, %p803
    %s806 = sadd.s32 %s805, 1
    %p809 = scmp.eq.s32.totalorder %s99, 1
    %p810 = scmp.ne.s32.totalorder %s805, %s807
    %p811 = scmp.eq.s32.totalorder %s99, 0
    %p812 = por %p810, %p811
    %p813 = scmp.ne.s32.totalorder %s805, %s807
    %p814 = scmp.eq.s32.totalorder %s104, 1
    %p815 = por %p813, %p814
    %p816 = scmp.ne.s32.totalorder %s807, %s808
    %p817 = scmp.eq.s32.totalorder %s104, 0
    %p818 = por %p816, %p817
    %p819 = scmp.ne.s32.totalorder %s807, %s808
    %p820 = scmp.eq.s32.totalorder %s105, 1
    %p821 = por %p819, %p820
    %p823 = scmp.ne.s32.totalorder %s808, %s822
    %p824 = scmp.eq.s32.totalorder %s105, 0
    %p825 = por %p823, %p824
    %s827 = sadd.s32 %s826, 1
    %p830 = scmp.eq.s32.totalorder %s99, 1
    %p831 = scmp.ne.s32.totalorder %s826, %s828
    %p832 = scmp.eq.s32.totalorder %s99, 0
    %p833 = por %p831, %p832
    %p834 = scmp.ne.s32.totalorder %s826, %s828
    %p835 = scmp.eq.s32.totalorder %s104, 1
    %p836 = por %p834, %p835
    %p837 = scmp.ne.s32.totalorder %s828, %s829
    %p838 = scmp.eq.s32.totalorder %s104, 0
    %p839 = por %p837, %p838
    %p840 = scmp.ne.s32.totalorder %s828, %s829
    %p841 = scmp.eq.s32.totalorder %s105, 1
    %p842 = por %p840, %p841
    %p844 = scmp.ne.s32.totalorder %s829, %s843
    %p845 = scmp.eq.s32.totalorder %s105, 0
    %p846 = por %p844, %p845
    %s848 = sadd.s32 %s847, 1
    %p851 = scmp.eq.s32.totalorder %s99, 1
    %p852 = scmp.ne.s32.totalorder %s847, %s849
    %p853 = scmp.eq.s32.totalorder %s99, 0
    %p854 = por %p852, %p853
    %p855 = scmp.ne.s32.totalorder %s847, %s849
    %p856 = scmp.eq.s32.totalorder %s104, 1
    %p857 = por %p855, %p856
    %p858 = scmp.ne.s32.totalorder %s849, %s850
    %p859 = scmp.eq.s32.totalorder %s104, 0
    %p860 = por %p858, %p859
    %p861 = scmp.ne.s32.totalorder %s849, %s850
    %p862 = scmp.eq.s32.totalorder %s105, 1
    %p863 = por %p861, %p862
    %p865 = scmp.ne.s32.totalorder %s850, %s864
    %p866 = scmp.eq.s32.totalorder %s105, 0
    %p867 = por %p865, %p866
    %s869 = sadd.s32 %s868, 1
    %p872 = scmp.eq.s32.totalorder %s99, 1
    %p873 = scmp.ne.s32.totalorder %s868, %s870
    %p874 = scmp.eq.s32.totalorder %s99, 0
    %p875 = por %p873, %p874
    %p876 = scmp.ne.s32.totalorder %s868, %s870
    %p877 = scmp.eq.s32.totalorder %s104, 1
    %p878 = por %p876, %p877
    %p879 = scmp.ne.s32.totalorder %s870, %s871
    %p880 = scmp.eq.s32.totalorder %s104, 0
    %p881 = por %p879, %p880
    %p882 = scmp.ne.s32.totalorder %s870, %s871
    %p883 = scmp.eq.s32.totalorder %s105, 1
    %p884 = por %p882, %p883
    %p886 = scmp.ne.s32.totalorder %s871, %s885
    %p887 = scmp.eq.s32.totalorder %s105, 0
    %p888 = por %p886, %p887
    %s890 = sadd.s32 %s889, 1
    %p893 = scmp.eq.s32.totalorder %s99, 1
    %p894 = scmp.ne.s32.totalorder %s889, %s891
    %p895 = scmp.eq.s32.totalorder %s99, 0
    %p896 = por %p894, %p895
    %p897 = scmp.ne.s32.totalorder %s889, %s891
    %p898 = scmp.eq.s32.totalorder %s104, 1
    %p899 = por %p897, %p898
    %p900 = scmp.ne.s32.totalorder %s891, %s892
    %p901 = scmp.eq.s32.totalorder %s104, 0
    %p902 = por %p900, %p901
    %p903 = scmp.ne.s32.totalorder %s891, %s892
    %p904 = scmp.eq.s32.totalorder %s105, 1
    %p905 = por %p903, %p904
    %p907 = scmp.ne.s32.totalorder %s892, %s906
    %p908 = scmp.eq.s32.totalorder %s105, 0
    %p909 = por %p907, %p908
    %s911 = sadd.s32 %s910, 1
    %p914 = scmp.eq.s32.totalorder %s99, 1
    %p915 = scmp.ne.s32.totalorder %s910, %s912
    %p916 = scmp.eq.s32.totalorder %s99, 0
    %p917 = por %p915, %p916
    %p918 = scmp.ne.s32.totalorder %s910, %s912
    %p919 = scmp.eq.s32.totalorder %s104, 1
    %p920 = por %p918, %p919
    %p921 = scmp.ne.s32.totalorder %s912, %s913
    %p922 = scmp.eq.s32.totalorder %s104, 0
    %p923 = por %p921, %p922
    %p924 = scmp.ne.s32.totalorder %s912, %s913
    %p925 = scmp.eq.s32.totalorder %s105, 1
    %p926 = por %p924, %p925
    %p928 = scmp.ne.s32.totalorder %s913, %s927
    %p929 = scmp.eq.s32.totalorder %s105, 0
    %p930 = por %p928, %p929
    %s932 = sadd.s32 %s931, 1
    %p935 = scmp.eq.s32.totalorder %s99, 1
    %p936 = scmp.ne.s32.totalorder %s931, %s933
    %p937 = scmp.eq.s32.totalorder %s99, 0
    %p938 = por %p936, %p937
    %p939 = scmp.ne.s32.totalorder %s931, %s933
    %p940 = scmp.eq.s32.totalorder %s104, 1
    %p941 = por %p939, %p940
    %p942 = scmp.ne.s32.totalorder %s933, %s934
    %p943 = scmp.eq.s32.totalorder %s104, 0
    %p944 = por %p942, %p943
    %p945 = scmp.ne.s32.totalorder %s933, %s934
    %p946 = scmp.eq.s32.totalorder %s105, 1
    %p947 = por %p945, %p946
    %p949 = scmp.ne.s32.totalorder %s934, %s948
    %p950 = scmp.eq.s32.totalorder %s105, 0
    %p951 = por %p949, %p950
    %s953 = sadd.s32 %s952, 1
    %p956 = scmp.eq.s32.totalorder %s99, 1
    %p957 = scmp.ne.s32.totalorder %s952, %s954
    %p958 = scmp.eq.s32.totalorder %s99, 0
    %p959 = por %p957, %p958
    %p960 = scmp.ne.s32.totalorder %s952, %s954
    %p961 = scmp.eq.s32.totalorder %s104, 1
    %p962 = por %p960, %p961
    %p963 = scmp.ne.s32.totalorder %s954, %s955
    %p964 = scmp.eq.s32.totalorder %s104, 0
    %p965 = por %p963, %p964
    %p966 = scmp.ne.s32.totalorder %s954, %s955
    %p967 = scmp.eq.s32.totalorder %s105, 1
    %p968 = por %p966, %p967
    %p970 = scmp.ne.s32.totalorder %s955, %s969
    %p971 = scmp.eq.s32.totalorder %s105, 0
    %p972 = por %p970, %p971
    %s974 = sadd.s32 %s973, 1
    %p977 = scmp.eq.s32.totalorder %s99, 1
    %p978 = scmp.ne.s32.totalorder %s973, %s975
    %p979 = scmp.eq.s32.totalorder %s99, 0
    %p980 = por %p978, %p979
    %p981 = scmp.ne.s32.totalorder %s973, %s975
    %p982 = scmp.eq.s32.totalorder %s104, 1
    %p983 = por %p981, %p982
    %p984 = scmp.ne.s32.totalorder %s975, %s976
    %p985 = scmp.eq.s32.totalorder %s104, 0
    %p986 = por %p984, %p985
    %p987 = scmp.ne.s32.totalorder %s975, %s976
    %p988 = scmp.eq.s32.totalorder %s105, 1
    %p989 = por %p987, %p988
    %p991 = scmp.ne.s32.totalorder %s976, %s990
    %p992 = scmp.eq.s32.totalorder %s105, 0
    %p993 = por %p991, %p992
    %s995 = sadd.s32 %s994, 1
    %p998 = scmp.eq.s32.totalorder %s99, 1
    %p999 = scmp.ne.s32.totalorder %s994, %s996
    %p1000 = scmp.eq.s32.totalorder %s99, 0
    %p1001 = por %p999, %p1000
    %p1002 = scmp.ne.s32.totalorder %s994, %s996
    %p1003 = scmp.eq.s32.totalorder %s104, 1
    %p1004 = por %p1002, %p1003
    %p1005 = scmp.ne.s32.totalorder %s996, %s997
    %p1006 = scmp.eq.s32.totalorder %s104, 0
    %p1007 = por %p1005, %p1006
    %p1008 = scmp.ne.s32.totalorder %s996, %s997
    %p1009 = scmp.eq.s32.totalorder %s105, 1
    %p1010 = por %p1008, %p1009
    %p1012 = scmp.ne.s32.totalorder %s997, %s1011
    %p1013 = scmp.eq.s32.totalorder %s105, 0
    %p1014 = por %p1012, %p1013
    %s1016 = sadd.s32 %s1015, 1
    %p1019 = scmp.eq.s32.totalorder %s99, 1
    %p1020 = scmp.ne.s32.totalorder %s1015, %s1017
    %p1021 = scmp.eq.s32.totalorder %s99, 0
    %p1022 = por %p1020, %p1021
    %p1023 = scmp.ne.s32.totalorder %s1015, %s1017
    %p1024 = scmp.eq.s32.totalorder %s104, 1
    %p1025 = por %p1023, %p1024
    %p1026 = scmp.ne.s32.totalorder %s1017, %s1018
    %p1027 = scmp.eq.s32.totalorder %s104, 0
    %p1028 = por %p1026, %p1027
    %p1029 = scmp.ne.s32.totalorder %s1017, %s1018
    %p1030 = scmp.eq.s32.totalorder %s105, 1
    %p1031 = por %p1029, %p1030
    %p1033 = scmp.ne.s32.totalorder %s1018, %s1032
    %p1034 = scmp.eq.s32.totalorder %s105, 0
    %p1035 = por %p1033, %p1034
    %s1037 = sadd.s32 %s1036, 1
    %p1040 = scmp.eq.s32.totalorder %s99, 1
    %p1041 = scmp.ne.s32.totalorder %s1036, %s1038
    %p1042 = scmp.eq.s32.totalorder %s99, 0
    %p1043 = por %p1041, %p1042
    %p1044 = scmp.ne.s32.totalorder %s1036, %s1038
    %p1045 = scmp.eq.s32.totalorder %s104, 1
    %p1046 = por %p1044, %p1045
    %p1047 = scmp.ne.s32.totalorder %s1038, %s1039
    %p1048 = scmp.eq.s32.totalorder %s104, 0
    %p1049 = por %p1047, %p1048
    %p1050 = scmp.ne.s32.totalorder %s1038, %s1039
    %p1051 = scmp.eq.s32.totalorder %s105, 1
    %p1052 = por %p1050, %p1051
    %p1054 = scmp.ne.s32.totalorder %s1039, %s1053
    %p1055 = scmp.eq.s32.totalorder %s105, 0
    %p1056 = por %p1054, %p1055
    %s1058 = sadd.s32 %s1057, 1
    %p1061 = scmp.eq.s32.totalorder %s99, 1
    %p1062 = scmp.ne.s32.totalorder %s1057, %s1059
    %p1063 = scmp.eq.s32.totalorder %s99, 0
    %p1064 = por %p1062, %p1063
    %p1065 = scmp.ne.s32.totalorder %s1057, %s1059
    %p1066 = scmp.eq.s32.totalorder %s104, 1
    %p1067 = por %p1065, %p1066
    %p1068 = scmp.ne.s32.totalorder %s1059, %s1060
    %p1069 = scmp.eq.s32.totalorder %s104, 0
    %p1070 = por %p1068, %p1069
    %p1071 = scmp.ne.s32.totalorder %s1059, %s1060
    %p1072 = scmp.eq.s32.totalorder %s105, 1
    %p1073 = por %p1071, %p1072
    %p1075 = scmp.ne.s32.totalorder %s1060, %s1074
    %p1076 = scmp.eq.s32.totalorder %s105, 0
    %p1077 = por %p1075, %p1076
    %s1078 = ssub.s32 %s99, %s106
    %p1079 = scmp.eq.s32.totalorder %s1078, 0
    %s1081 = sadd.s32 %s1080, 1
    %s1082 = scalar_select %p1079, %s1080, %s1081
    %p1085 = pneg %p1079
    %p1086 = scmp.eq.s32.totalorder %s99, 1
    %p1087 = por %p1085, %p1086
    %p1088 = scmp.ne.s32.totalorder %s1080, %s1083
    %p1089 = scmp.eq.s32.totalorder %s99, 0
    %p1090 = por %p1088, %p1089
    %p1091 = scmp.ne.s32.totalorder %s1080, %s1083
    %p1092 = scmp.eq.s32.totalorder %s104, 1
    %p1093 = por %p1091, %p1092
    %p1094 = scmp.ne.s32.totalorder %s1083, %s1084
    %p1095 = scmp.eq.s32.totalorder %s104, 0
    %p1096 = por %p1094, %p1095
    %p1097 = scmp.ne.s32.totalorder %s1083, %s1084
    %p1098 = scmp.eq.s32.totalorder %s105, 1
    %p1099 = por %p1097, %p1098
    %p1101 = scmp.ne.s32.totalorder %s1084, %s1100
    %p1102 = scmp.eq.s32.totalorder %s105, 0
    %p1103 = por %p1101, %p1102
    %p1104 = scmp.le.s32.totalorder 1, %s99
    %p1105 = scmp.lt.s32.totalorder %s99, 3
    %p1106 = pnand %p1104, %p1105
    %p1107 = pneg %p1106
    // Predicated region
    $region9: #{incremental_net_forward.1} parent=5 // pred_check
      _
    $region10: #{incremental_net_forward.1} parent=5 // pred_check_branch
      %1109 = sbr.rel (%p1106) target = $region12
    $region11: #{incremental_net_forward.1} parent=5 // pred_region
      %s1110 = ssub.s32 %s99, 1
      // Predicated region
      $region13: #{incremental_net_forward.1} parent=11 // pred_check
        %p1111 = pneg %p146
      $region14: #{incremental_net_forward.1} parent=11 // pred_check_branch
        %1113 = sbr.rel (%p1111) target = $region16
      $region15: #{incremental_net_forward.1} parent=11 // pred_region
        _
      $region16: #{incremental_net_forward.1} parent=11 // pred_fallthru
        _
      // Predicated region
      $region17: #{incremental_net_forward.1} parent=11 // pred_check
        %p1114 = pneg %p167
      $region18: #{incremental_net_forward.1} parent=11 // pred_check_branch
        %1116 = sbr.rel (%p1114) target = $region20
      $region19: #{incremental_net_forward.1} parent=11 // pred_region
        _
      $region20: #{incremental_net_forward.1} parent=11 // pred_fallthru
        _
      // Predicated region
      $region21: #{incremental_net_forward.1} parent=11 // pred_check
        %p1117 = pneg %p188
      $region22: #{incremental_net_forward.1} parent=11 // pred_check_branch
        %1119 = sbr.rel (%p1117) target = $region24
      $region23: #{incremental_net_forward.1} parent=11 // pred_region
        _
      $region24: #{incremental_net_forward.1} parent=11 // pred_fallthru
        _
      // Predicated region
      $region25: #{incremental_net_forward.1} parent=11 // pred_check
        %p1120 = pneg %p209
      $region26: #{incremental_net_forward.1} parent=11 // pred_check_branch
        %1122 = sbr.rel (%p1120) target = $region28
      $region27: #{incremental_net_forward.1} parent=11 // pred_region
        _
      $region28: #{incremental_net_forward.1} parent=11 // pred_fallthru
        _
      // Predicated region
      $region29: #{incremental_net_forward.1} parent=11 // pred_check
        %p1123 = pneg %p230
      $region30: #{incremental_net_forward.1} parent=11 // pred_check_branch
        %1125 = sbr.rel (%p1123) target = $region32
      $region31: #{incremental_net_forward.1} parent=11 // pred_region
        _
      $region32: #{incremental_net_forward.1} parent=11 // pred_fallthru
        _
      // Predicated region
      $region33: #{incremental_net_forward.1} parent=11 // pred_check
        %p1126 = pneg %p251
      $region34: #{incremental_net_forward.1} parent=11 // pred_check_branch
        %1128 = sbr.rel (%p1126) target = $region36
      $region35: #{incremental_net_forward.1} parent=11 // pred_region
        _
      $region36: #{incremental_net_forward.1} parent=11 // pred_fallthru
        _
      // Predicated region
      $region37: #{incremental_net_forward.1} parent=11 // pred_check
        %p1129 = pneg %p272
      $region38: #{incremental_net_forward.1} parent=11 // pred_check_branch
        %1131 = sbr.rel (%p1129) target = $region40
      $region39: #{incremental_net_forward.1} parent=11 // pred_region
        _
      $region40: #{incremental_net_forward.1} parent=11 // pred_fallthru
        _
      // Predicated region
      $region41: #{incremental_net_forward.1} parent=11 // pred_check
        %p1132 = pneg %p293
      $region42: #{incremental_net_forward.1} parent=11 // pred_check_branch
        %1134 = sbr.rel (%p1132) target = $region44
      $region43: #{incremental_net_forward.1} parent=11 // pred_region
        _
      $region44: #{incremental_net_forward.1} parent=11 // pred_fallthru
        _
      // Predicated region
      $region45: #{incremental_net_forward.1} parent=11 // pred_check
        %p1135 = pneg %p314
      $region46: #{incremental_net_forward.1} parent=11 // pred_check_branch
        %1137 = sbr.rel (%p1135) target = $region48
      $region47: #{incremental_net_forward.1} parent=11 // pred_region
        _
      $region48: #{incremental_net_forward.1} parent=11 // pred_fallthru
        _
      // Predicated region
      $region49: #{incremental_net_forward.1} parent=11 // pred_check
        %p1138 = pneg %p335
      $region50: #{incremental_net_forward.1} parent=11 // pred_check_branch
        %1140 = sbr.rel (%p1138) target = $region52
      $region51: #{incremental_net_forward.1} parent=11 // pred_region
        _
      $region52: #{incremental_net_forward.1} parent=11 // pred_fallthru
        _
      // Predicated region
      $region53: #{incremental_net_forward.1} parent=11 // pred_check
        %p1141 = pneg %p356
      $region54: #{incremental_net_forward.1} parent=11 // pred_check_branch
        %1143 = sbr.rel (%p1141) target = $region56
      $region55: #{incremental_net_forward.1} parent=11 // pred_region
        _
      $region56: #{incremental_net_forward.1} parent=11 // pred_fallthru
        _
      // Predicated region
      $region57: #{incremental_net_forward.1} parent=11 // pred_check
        %p1144 = pneg %p377
      $region58: #{incremental_net_forward.1} parent=11 // pred_check_branch
        %1146 = sbr.rel (%p1144) target = $region60
      $region59: #{incremental_net_forward.1} parent=11 // pred_region
        _
      $region60: #{incremental_net_forward.1} parent=11 // pred_fallthru
        _
      // Predicated region
      $region61: #{incremental_net_forward.1} parent=11 // pred_check
        %p1147 = pneg %p398
      $region62: #{incremental_net_forward.1} parent=11 // pred_check_branch
        %1149 = sbr.rel (%p1147) target = $region64
      $region63: #{incremental_net_forward.1} parent=11 // pred_region
        _
      $region64: #{incremental_net_forward.1} parent=11 // pred_fallthru
        _
      // Predicated region
      $region65: #{incremental_net_forward.1} parent=11 // pred_check
        %p1150 = pneg %p419
      $region66: #{incremental_net_forward.1} parent=11 // pred_check_branch
        %1152 = sbr.rel (%p1150) target = $region68
      $region67: #{incremental_net_forward.1} parent=11 // pred_region
        _
      $region68: #{incremental_net_forward.1} parent=11 // pred_fallthru
        _
      // Predicated region
      $region69: #{incremental_net_forward.1} parent=11 // pred_check
        %p1153 = pneg %p440
      $region70: #{incremental_net_forward.1} parent=11 // pred_check_branch
        %1155 = sbr.rel (%p1153) target = $region72
      $region71: #{incremental_net_forward.1} parent=11 // pred_region
        _
      $region72: #{incremental_net_forward.1} parent=11 // pred_fallthru
        _
      // Predicated region
      $region73: #{incremental_net_forward.1} parent=11 // pred_check
        %p1156 = pneg %p461
      $region74: #{incremental_net_forward.1} parent=11 // pred_check_branch
        %1158 = sbr.rel (%p1156) target = $region76
      $region75: #{incremental_net_forward.1} parent=11 // pred_region
        _
      $region76: #{incremental_net_forward.1} parent=11 // pred_fallthru
        _
      // Predicated region
      $region77: #{incremental_net_forward.1} parent=11 // pred_check
        %p1159 = pneg %p482
      $region78: #{incremental_net_forward.1} parent=11 // pred_check_branch
        %1161 = sbr.rel (%p1159) target = $region80
      $region79: #{incremental_net_forward.1} parent=11 // pred_region
        _
      $region80: #{incremental_net_forward.1} parent=11 // pred_fallthru
        _
      // Predicated region
      $region81: #{incremental_net_forward.1} parent=11 // pred_check
        %p1162 = pneg %p503
      $region82: #{incremental_net_forward.1} parent=11 // pred_check_branch
        %1164 = sbr.rel (%p1162) target = $region84
      $region83: #{incremental_net_forward.1} parent=11 // pred_region
        _
      $region84: #{incremental_net_forward.1} parent=11 // pred_fallthru
        _
      // Predicated region
      $region85: #{incremental_net_forward.1} parent=11 // pred_check
        %p1165 = pneg %p524
      $region86: #{incremental_net_forward.1} parent=11 // pred_check_branch
        %1167 = sbr.rel (%p1165) target = $region88
      $region87: #{incremental_net_forward.1} parent=11 // pred_region
        _
      $region88: #{incremental_net_forward.1} parent=11 // pred_fallthru
        _
      // Predicated region
      $region89: #{incremental_net_forward.1} parent=11 // pred_check
        %p1168 = pneg %p545
      $region90: #{incremental_net_forward.1} parent=11 // pred_check_branch
        %1170 = sbr.rel (%p1168) target = $region92
      $region91: #{incremental_net_forward.1} parent=11 // pred_region
        _
      $region92: #{incremental_net_forward.1} parent=11 // pred_fallthru
        _
      // Predicated region
      $region93: #{incremental_net_forward.1} parent=11 // pred_check
        %p1171 = pneg %p566
      $region94: #{incremental_net_forward.1} parent=11 // pred_check_branch
        %1173 = sbr.rel (%p1171) target = $region96
      $region95: #{incremental_net_forward.1} parent=11 // pred_region
        _
      $region96: #{incremental_net_forward.1} parent=11 // pred_fallthru
        _
      // Predicated region
      $region97: #{incremental_net_forward.1} parent=11 // pred_check
        %p1174 = pneg %p587
      $region98: #{incremental_net_forward.1} parent=11 // pred_check_branch
        %1176 = sbr.rel (%p1174) target = $region100
      $region99: #{incremental_net_forward.1} parent=11 // pred_region
        _
      $region100: #{incremental_net_forward.1} parent=11 // pred_fallthru
        _
      // Predicated region
      $region101: #{incremental_net_forward.1} parent=11 // pred_check
        %p1177 = pneg %p608
      $region102: #{incremental_net_forward.1} parent=11 // pred_check_branch
        %1179 = sbr.rel (%p1177) target = $region104
      $region103: #{incremental_net_forward.1} parent=11 // pred_region
        _
      $region104: #{incremental_net_forward.1} parent=11 // pred_fallthru
        _
      // Predicated region
      $region105: #{incremental_net_forward.1} parent=11 // pred_check
        %p1180 = pneg %p629
      $region106: #{incremental_net_forward.1} parent=11 // pred_check_branch
        %1182 = sbr.rel (%p1180) target = $region108
      $region107: #{incremental_net_forward.1} parent=11 // pred_region
        _
      $region108: #{incremental_net_forward.1} parent=11 // pred_fallthru
        _
      // Predicated region
      $region109: #{incremental_net_forward.1} parent=11 // pred_check
        %p1183 = pneg %p650
      $region110: #{incremental_net_forward.1} parent=11 // pred_check_branch
        %1185 = sbr.rel (%p1183) target = $region112
      $region111: #{incremental_net_forward.1} parent=11 // pred_region
        _
      $region112: #{incremental_net_forward.1} parent=11 // pred_fallthru
        _
      // Predicated region
      $region113: #{incremental_net_forward.1} parent=11 // pred_check
        %p1186 = pneg %p671
      $region114: #{incremental_net_forward.1} parent=11 // pred_check_branch
        %1188 = sbr.rel (%p1186) target = $region116
      $region115: #{incremental_net_forward.1} parent=11 // pred_region
        _
      $region116: #{incremental_net_forward.1} parent=11 // pred_fallthru
        _
      // Predicated region
      $region117: #{incremental_net_forward.1} parent=11 // pred_check
        %p1189 = pneg %p692
      $region118: #{incremental_net_forward.1} parent=11 // pred_check_branch
        %1191 = sbr.rel (%p1189) target = $region120
      $region119: #{incremental_net_forward.1} parent=11 // pred_region
        _
      $region120: #{incremental_net_forward.1} parent=11 // pred_fallthru
        _
      // Predicated region
      $region121: #{incremental_net_forward.1} parent=11 // pred_check
        %p1192 = pneg %p713
      $region122: #{incremental_net_forward.1} parent=11 // pred_check_branch
        %1194 = sbr.rel (%p1192) target = $region124
      $region123: #{incremental_net_forward.1} parent=11 // pred_region
        _
      $region124: #{incremental_net_forward.1} parent=11 // pred_fallthru
        _
      // Predicated region
      $region125: #{incremental_net_forward.1} parent=11 // pred_check
        %p1195 = pneg %p734
      $region126: #{incremental_net_forward.1} parent=11 // pred_check_branch
        %1197 = sbr.rel (%p1195) target = $region128
      $region127: #{incremental_net_forward.1} parent=11 // pred_region
        _
      $region128: #{incremental_net_forward.1} parent=11 // pred_fallthru
        _
      // Predicated region
      $region129: #{incremental_net_forward.1} parent=11 // pred_check
        %p1198 = pneg %p755
      $region130: #{incremental_net_forward.1} parent=11 // pred_check_branch
        %1200 = sbr.rel (%p1198) target = $region132
      $region131: #{incremental_net_forward.1} parent=11 // pred_region
        _
      $region132: #{incremental_net_forward.1} parent=11 // pred_fallthru
        _
      // Predicated region
      $region133: #{incremental_net_forward.1} parent=11 // pred_check
        %p1201 = pneg %p776
      $region134: #{incremental_net_forward.1} parent=11 // pred_check_branch
        %1203 = sbr.rel (%p1201) target = $region136
      $region135: #{incremental_net_forward.1} parent=11 // pred_region
        _
      $region136: #{incremental_net_forward.1} parent=11 // pred_fallthru
        _
      // Predicated region
      $region137: #{incremental_net_forward.1} parent=11 // pred_check
        %p1204 = pneg %p797
      $region138: #{incremental_net_forward.1} parent=11 // pred_check_branch
        %1206 = sbr.rel (%p1204) target = $region140
      $region139: #{incremental_net_forward.1} parent=11 // pred_region
        _
      $region140: #{incremental_net_forward.1} parent=11 // pred_fallthru
        _
      // Predicated region
      $region141: #{incremental_net_forward.1} parent=11 // pred_check
        %p1207 = pneg %p818
      $region142: #{incremental_net_forward.1} parent=11 // pred_check_branch
        %1209 = sbr.rel (%p1207) target = $region144
      $region143: #{incremental_net_forward.1} parent=11 // pred_region
        _
      $region144: #{incremental_net_forward.1} parent=11 // pred_fallthru
        _
      // Predicated region
      $region145: #{incremental_net_forward.1} parent=11 // pred_check
        %p1210 = pneg %p839
      $region146: #{incremental_net_forward.1} parent=11 // pred_check_branch
        %1212 = sbr.rel (%p1210) target = $region148
      $region147: #{incremental_net_forward.1} parent=11 // pred_region
        _
      $region148: #{incremental_net_forward.1} parent=11 // pred_fallthru
        _
      // Predicated region
      $region149: #{incremental_net_forward.1} parent=11 // pred_check
        %p1213 = pneg %p860
      $region150: #{incremental_net_forward.1} parent=11 // pred_check_branch
        %1215 = sbr.rel (%p1213) target = $region152
      $region151: #{incremental_net_forward.1} parent=11 // pred_region
        _
      $region152: #{incremental_net_forward.1} parent=11 // pred_fallthru
        _
      // Predicated region
      $region153: #{incremental_net_forward.1} parent=11 // pred_check
        %p1216 = pneg %p881
      $region154: #{incremental_net_forward.1} parent=11 // pred_check_branch
        %1218 = sbr.rel (%p1216) target = $region156
      $region155: #{incremental_net_forward.1} parent=11 // pred_region
        _
      $region156: #{incremental_net_forward.1} parent=11 // pred_fallthru
        _
      // Predicated region
      $region157: #{incremental_net_forward.1} parent=11 // pred_check
        %p1219 = pneg %p902
      $region158: #{incremental_net_forward.1} parent=11 // pred_check_branch
        %1221 = sbr.rel (%p1219) target = $region160
      $region159: #{incremental_net_forward.1} parent=11 // pred_region
        _
      $region160: #{incremental_net_forward.1} parent=11 // pred_fallthru
        _
      // Predicated region
      $region161: #{incremental_net_forward.1} parent=11 // pred_check
        %p1222 = pneg %p923
      $region162: #{incremental_net_forward.1} parent=11 // pred_check_branch
        %1224 = sbr.rel (%p1222) target = $region164
      $region163: #{incremental_net_forward.1} parent=11 // pred_region
        _
      $region164: #{incremental_net_forward.1} parent=11 // pred_fallthru
        _
      // Predicated region
      $region165: #{incremental_net_forward.1} parent=11 // pred_check
        %p1225 = pneg %p944
      $region166: #{incremental_net_forward.1} parent=11 // pred_check_branch
        %1227 = sbr.rel (%p1225) target = $region168
      $region167: #{incremental_net_forward.1} parent=11 // pred_region
        _
      $region168: #{incremental_net_forward.1} parent=11 // pred_fallthru
        _
      // Predicated region
      $region169: #{incremental_net_forward.1} parent=11 // pred_check
        %p1228 = pneg %p965
      $region170: #{incremental_net_forward.1} parent=11 // pred_check_branch
        %1230 = sbr.rel (%p1228) target = $region172
      $region171: #{incremental_net_forward.1} parent=11 // pred_region
        _
      $region172: #{incremental_net_forward.1} parent=11 // pred_fallthru
        _
      // Predicated region
      $region173: #{incremental_net_forward.1} parent=11 // pred_check
        %p1231 = pneg %p986
      $region174: #{incremental_net_forward.1} parent=11 // pred_check_branch
        %1233 = sbr.rel (%p1231) target = $region176
      $region175: #{incremental_net_forward.1} parent=11 // pred_region
        _
      $region176: #{incremental_net_forward.1} parent=11 // pred_fallthru
        _
      // Predicated region
      $region177: #{incremental_net_forward.1} parent=11 // pred_check
        %p1234 = pneg %p1007
      $region178: #{incremental_net_forward.1} parent=11 // pred_check_branch
        %1236 = sbr.rel (%p1234) target = $region180
      $region179: #{incremental_net_forward.1} parent=11 // pred_region
        _
      $region180: #{incremental_net_forward.1} parent=11 // pred_fallthru
        _
      // Predicated region
      $region181: #{incremental_net_forward.1} parent=11 // pred_check
        %p1237 = pneg %p1028
      $region182: #{incremental_net_forward.1} parent=11 // pred_check_branch
        %1239 = sbr.rel (%p1237) target = $region184
      $region183: #{incremental_net_forward.1} parent=11 // pred_region
        _
      $region184: #{incremental_net_forward.1} parent=11 // pred_fallthru
        _
      // Predicated region
      $region185: #{incremental_net_forward.1} parent=11 // pred_check
        %p1240 = pneg %p1049
      $region186: #{incremental_net_forward.1} parent=11 // pred_check_branch
        %1242 = sbr.rel (%p1240) target = $region188
      $region187: #{incremental_net_forward.1} parent=11 // pred_region
        _
      $region188: #{incremental_net_forward.1} parent=11 // pred_fallthru
        _
      // Predicated region
      $region189: #{incremental_net_forward.1} parent=11 // pred_check
        %p1243 = pneg %p1070
      $region190: #{incremental_net_forward.1} parent=11 // pred_check_branch
        %1245 = sbr.rel (%p1243) target = $region192
      $region191: #{incremental_net_forward.1} parent=11 // pred_region
        _
      $region192: #{incremental_net_forward.1} parent=11 // pred_fallthru
        _
    $region12: #{incremental_net_forward.1} parent=5 // pred_fallthru
      _
    %p1246 = scmp.lt.s32.totalorder %s99, 2
    // Predicated region
    $region193: #{incremental_net_forward.1} parent=5 // pred_check
      %p1247 = pneg %p1246
    $region194: #{incremental_net_forward.1} parent=5 // pred_check_branch
      %1249 = sbr.rel (%p1247) target = $region196
    $region195: #{incremental_net_forward.1} parent=5 // pred_region
      // Predicated region
      $region197: #{incremental_net_forward.1} parent=195 // pred_check
        %p1250 = pneg %p119
      $region198: #{incremental_net_forward.1} parent=195 // pred_check_branch
        %1252 = sbr.rel (%p1250) target = $region200
      $region199: #{incremental_net_forward.1} parent=195 // pred_region
        %p1253 = scmp.lt.s32.totalorder %s99, 1
        %s1254 = scalar_select %p1253, %s99, 1
        %s1255 = smul.addr %s1254, 2
        %s1256 = smul.addr %s1255, 8
        %s1257 = scalar_lea.vmem %s1, %s1256
      $region200: #{incremental_net_forward.1} parent=195 // pred_fallthru
        _
    $region196: #{incremental_net_forward.1} parent=5 // pred_fallthru
      _
    %p1258 = scmp.le.s32.totalorder 1, %s99
    %p1259 = scmp.lt.s32.totalorder %s99, 3
    %p1260 = pnand %p1258, %p1259
    %p1261 = pneg %p1260
    // Predicated region
    $region201: #{incremental_net_forward.1} parent=5 // pred_check
      _
    $region202: #{incremental_net_forward.1} parent=5 // pred_check_branch
      %1263 = sbr.rel (%p1260) target = $region204
    $region203: #{incremental_net_forward.1} parent=5 // pred_region
      %s1264 = ssub.s32 %s99, 1
      %p1265 = scmp.lt.s32.totalorder %s104, 1
      %s1266 = scalar_select %p1265, %s104, 1
      %s1267 = smul.addr %s1266, 2
      %s1268 = smul.addr %s1267, 8
      %s1269 = scalar_lea.vmem %s1, %s1268
      %p1270 = pneg %p125
      %p1271 = pneg %p122
      %p1272 = pneg %p146
      %p1273 = pneg %p143
      %p1274 = pneg %p167
      %p1275 = pneg %p164
      %p1276 = pneg %p188
      %p1277 = pneg %p185
      %p1278 = pneg %p209
      %p1279 = pneg %p206
      %p1280 = pneg %p230
      %p1281 = pneg %p227
      %p1282 = pneg %p251
      %p1283 = pneg %p248
      %p1284 = pneg %p272
      %p1285 = pneg %p269
      %p1286 = pneg %p293
      %p1287 = pneg %p290
      %p1288 = pneg %p314
      %p1289 = pneg %p311
      %p1290 = pneg %p335
      %p1291 = pneg %p332
      %p1292 = pneg %p356
      %p1293 = pneg %p353
      %p1294 = pneg %p377
      %p1295 = pneg %p374
      %p1296 = pneg %p398
      %p1297 = pneg %p395
      %p1298 = pneg %p419
      %p1299 = pneg %p416
      %p1300 = pneg %p440
      %p1301 = pneg %p437
      %p1302 = pneg %p461
      %p1303 = pneg %p458
      %p1304 = pneg %p482
      %p1305 = pneg %p479
      %p1306 = pneg %p503
      %p1307 = pneg %p500
      %p1308 = pneg %p524
      %p1309 = pneg %p521
      %p1310 = pneg %p545
      %p1311 = pneg %p542
      %p1312 = pneg %p566
      %p1313 = pneg %p563
      %p1314 = pneg %p587
      %p1315 = pneg %p584
      %p1316 = pneg %p608
      %p1317 = pneg %p605
      %p1318 = pneg %p629
      %p1319 = pneg %p626
      %p1320 = pneg %p650
      %p1321 = pneg %p647
      %p1322 = pneg %p671
      %p1323 = pneg %p668
      %p1324 = pneg %p692
      %p1325 = pneg %p689
      %p1326 = pneg %p713
      %p1327 = pneg %p710
      %p1328 = pneg %p734
      %p1329 = pneg %p731
      %p1330 = pneg %p755
      %p1331 = pneg %p752
      %p1332 = pneg %p776
      %p1333 = pneg %p773
      %p1334 = pneg %p797
      %p1335 = pneg %p794
      %p1336 = pneg %p818
      %p1337 = pneg %p815
      %p1338 = pneg %p839
      %p1339 = pneg %p836
      %p1340 = pneg %p860
      %p1341 = pneg %p857
      %p1342 = pneg %p881
      %p1343 = pneg %p878
      %p1344 = pneg %p902
      %p1345 = pneg %p899
      %p1346 = pneg %p923
      %p1347 = pneg %p920
      %p1348 = pneg %p944
      %p1349 = pneg %p941
      %p1350 = pneg %p965
      %p1351 = pneg %p962
      %p1352 = pneg %p986
      %p1353 = pneg %p983
      %p1354 = pneg %p1007
      %p1355 = pneg %p1004
      %p1356 = pneg %p1028
      %p1357 = pneg %p1025
      %p1358 = pneg %p1049
      %p1359 = pneg %p1046
      %p1360 = pneg %p1070
      %p1361 = pneg %p1067
      %p1362 = pneg %p1096
      %p1363 = pneg %p1093
      %p1364 = scmp.lt.s32.totalorder %s104, 1
      %s1365 = scalar_select %p1364, %s104, 1
      %s1366 = smul.addr %s1365, 16
      %s1367 = smul.addr %s1366, 8
      %s1368 = scalar_lea.vmem %s93, %s1367
      %p1369 = scmp.lt.s32.totalorder %s104, 1
      %s1370 = scalar_select %p1369, %s104, 1
      %s1371 = smul.addr %s1370, 2
      %s1372 = smul.addr %s1371, 8
      %s1373 = scalar_lea.vmem %s1, %s1372
      %p1374 = scmp.lt.s32.totalorder %s104, 1
      %s1375 = scalar_select %p1374, %s104, 1
      %s1376 = smul.addr %s1375, 16
      %s1377 = smul.addr %s1376, 8
      %s1378 = scalar_lea.vmem %s93, %s1377
      %v1380 = vld [vmem:[%s1373] sm:$0xff]
      %v1381 = vld [vmem:[%s1373 + $0x8] sm:$0xff]
      %v1382 = vlaneseq
      %v1383 = vand.u32 %v1382, 127
      %v1384 = vadd.s32 %v1383, 128
      %v1385 = vand.u32 %v1383, 15
      %v1386 = vand.u32 %v1384, 15
      %vm1387 = vcmp.ge.s32.totalorder %v1383, 16
      %vm1388 = vcmp.ge.s32.totalorder %v1384, 16
      %vm1389 = vcmp.lt.s32.totalorder %v1383, 240
      %vm1390 = vcmp.lt.s32.totalorder %v1384, 240
      %vm1391 = vcmp.gt.s32.totalorder %v1385, 0
      %vm1392 = vcmp.gt.s32.totalorder %v1386, 0
      %vm1393 = vcmp.lt.s32.totalorder %v1385, 15
      %vm1394 = vcmp.lt.s32.totalorder %v1386, 15
      %1395 = vrot.lane.b32.xlu0 %v1380, 17
      %v1396 = vpop.permute.xlu0 %1395
      %1397 = vrot.lane.b32.xlu0 %v1381, 17
      %v1398 = vpop.permute.xlu0 %1397
      %vm1399 = vcmp.lt.s32.totalorder %v1383, 17
      %v1400 = vsel %vm1399, %v1396, %v1398
      %v1401 = vsel %vm1399, %v1398, %v1396
      %vm1402 = vmand %vm1387, %vm1391
      %vm1403 = vmand %vm1388, %vm1392
      %v1404 = vsel %vm1402, 1, 0
      %v1405 = vsel %vm1403, 1, 0
      %vm1406 = vcmp.eq.s32.totalorder %v1404, 1
      %vm1407 = vcmp.eq.s32.totalorder %v1405, 1
      %v1408 = vsel %vm1406, %v1401, 0.0
      %v1409 = vsel %vm1407, %v1400, 0.0
      %1410 = vrot.lane.b32.xlu0 %v1380, 16
      %v1411 = vpop.permute.xlu0 %1410
      %1412 = vrot.lane.b32.xlu0 %v1381, 16
      %v1413 = vpop.permute.xlu0 %1412
      %vm1414 = vcmp.lt.s32.totalorder %v1383, 16
      %v1415 = vsel %vm1414, %v1411, %v1413
      %v1416 = vsel %vm1414, %v1413, %v1411
      %v1417 = vsel %vm1387, 1, 0
      %v1418 = vsel %vm1388, 1, 0
      %vm1419 = vcmp.eq.s32.totalorder %v1417, 1
      %vm1420 = vcmp.eq.s32.totalorder %v1418, 1
      %v1421 = vsel %vm1419, %v1416, 0.0
      %v1422 = vsel %vm1420, %v1415, 0.0
      %1423 = vrot.lane.b32.xlu0 %v1380, 15
      %v1424 = vpop.permute.xlu0 %1423
      %1425 = vrot.lane.b32.xlu0 %v1381, 15
      %v1426 = vpop.permute.xlu0 %1425
      %vm1427 = vcmp.lt.s32.totalorder %v1383, 15
      %v1428 = vsel %vm1427, %v1424, %v1426
      %v1429 = vsel %vm1427, %v1426, %v1424
      %vm1430 = vmand %vm1387, %vm1393
      %vm1431 = vmand %vm1388, %vm1394
      %v1432 = vsel %vm1430, 1, 0
      %v1433 = vsel %vm1431, 1, 0
      %vm1434 = vcmp.eq.s32.totalorder %v1432, 1
      %vm1435 = vcmp.eq.s32.totalorder %v1433, 1
      %v1436 = vsel %vm1434, %v1429, 0.0
      %v1437 = vsel %vm1435, %v1428, 0.0
      %1438 = vrot.lane.b32.xlu0 %v1380, 1
      %v1439 = vpop.permute.xlu0 %1438
      %1440 = vrot.lane.b32.xlu0 %v1381, 1
      %v1441 = vpop.permute.xlu0 %1440
      %vm1442 = vcmp.lt.s32.totalorder %v1383, 1
      %v1443 = vsel %vm1442, %v1439, %v1441
      %v1444 = vsel %vm1442, %v1441, %v1439
      %v1445 = vsel %vm1391, 1, 0
      %v1446 = vsel %vm1392, 1, 0
      %vm1447 = vcmp.eq.s32.totalorder %v1445, 1
      %vm1448 = vcmp.eq.s32.totalorder %v1446, 1
      %v1449 = vsel %vm1447, %v1444, 0.0
      %v1450 = vsel %vm1448, %v1443, 0.0
      %1451 = vrot.lane.b32.xlu0 %v1380, 127
      %v1452 = vpop.permute.xlu0 %1451
      %1453 = vrot.lane.b32.xlu0 %v1381, 127
      %v1454 = vpop.permute.xlu0 %1453
      %vm1455 = vcmp.lt.s32.totalorder %v1383, 127
      %v1456 = vsel %vm1455, %v1452, %v1454
      %v1457 = vsel %vm1455, %v1454, %v1452
      %v1458 = vsel %vm1393, 1, 0
      %v1459 = vsel %vm1394, 1, 0
      %vm1460 = vcmp.eq.s32.totalorder %v1458, 1
      %vm1461 = vcmp.eq.s32.totalorder %v1459, 1
      %v1462 = vsel %vm1460, %v1456, 0.0
      %v1463 = vsel %vm1461, %v1457, 0.0
      %1464 = vrot.lane.b32.xlu0 %v1380, 113
      %v1465 = vpop.permute.xlu0 %1464
      %1466 = vrot.lane.b32.xlu0 %v1381, 113
      %v1467 = vpop.permute.xlu0 %1466
      %vm1468 = vcmp.lt.s32.totalorder %v1383, 113
      %v1469 = vsel %vm1468, %v1465, %v1467
      %v1470 = vsel %vm1468, %v1467, %v1465
      %vm1471 = vmand %vm1389, %vm1391
      %vm1472 = vmand %vm1390, %vm1392
      %v1473 = vsel %vm1471, 1, 0
      %v1474 = vsel %vm1472, 1, 0
      %vm1475 = vcmp.eq.s32.totalorder %v1473, 1
      %vm1476 = vcmp.eq.s32.totalorder %v1474, 1
      %v1477 = vsel %vm1475, %v1469, 0.0
      %v1478 = vsel %vm1476, %v1470, 0.0
      %1479 = vrot.lane.b32.xlu0 %v1380, 112
      %v1480 = vpop.permute.xlu0 %1479
      %1481 = vrot.lane.b32.xlu0 %v1381, 112
      %v1482 = vpop.permute.xlu0 %1481
      %vm1483 = vcmp.lt.s32.totalorder %v1383, 112
      %v1484 = vsel %vm1483, %v1480, %v1482
      %v1485 = vsel %vm1483, %v1482, %v1480
      %v1486 = vsel %vm1389, 1, 0
      %v1487 = vsel %vm1390, 1, 0
      %vm1488 = vcmp.eq.s32.totalorder %v1486, 1
      %vm1489 = vcmp.eq.s32.totalorder %v1487, 1
      %v1490 = vsel %vm1488, %v1484, 0.0
      %v1491 = vsel %vm1489, %v1485, 0.0
      %1492 = vrot.lane.b32.xlu0 %v1380, 111
      %v1493 = vpop.permute.xlu0 %1492
      %1494 = vrot.lane.b32.xlu0 %v1381, 111
      %v1495 = vpop.permute.xlu0 %1494
      %vm1496 = vcmp.lt.s32.totalorder %v1383, 111
      %v1497 = vsel %vm1496, %v1493, %v1495
      %v1498 = vsel %vm1496, %v1495, %v1493
      %vm1499 = vmand %vm1389, %vm1393
      %vm1500 = vmand %vm1390, %vm1394
      %v1501 = vsel %vm1499, 1, 0
      %v1502 = vsel %vm1500, 1, 0
      %vm1503 = vcmp.eq.s32.totalorder %v1501, 1
      %vm1504 = vcmp.eq.s32.totalorder %v1502, 1
      %v1505 = vsel %vm1503, %v1497, 0.0
      %v1506 = vsel %vm1504, %v1498, 0.0
      %v1507 = vpack.c.bf16 %v1421, %v1408
      %v1508 = vpack.c.bf16 %v1422, %v1409
      %v1509 = vpack.c.bf16 %v1449, %v1436
      %v1510 = vpack.c.bf16 %v1450, %v1437
      %v1511 = vpack.c.bf16 %v1462, %v1380
      %v1512 = vpack.c.bf16 %v1463, %v1381
      %v1513 = vpack.c.bf16 %v1490, %v1477
      %v1514 = vpack.c.bf16 %v1491, %v1478
      %v1515 = vpack.c.bf16 %v1505, %v1505
      %v1516 = vpack.c.bf16 %v1506, %v1506
      %v1517 = vld [vmem:[%s85] sm:$0xf]
      %v1518 = vld [vmem:[%s83] sm:$0xff]
      %1520 = vset.pattern.permute.xlu0 0
      %1521 = vperm.xlu0 %1520, %v1518
      %v1522 = vpop.permute.xlu0 %1521
      %vm1524 = vcmask 588800
      %v1526 = vsel %vm1524, %v1517, 0
      %vm1528 = vcmask 1043456
      %v1530 = vsel %vm1528, %v1515, 0
      %v1533 = vsel %vm1528, %v1516, 0
      %1535 = vmatprep.subr.bf16.mxu0 %v1508
      %1536 = vmatpush1.bf16.msra.mxu0 %v1507
      %1537 = vmatprep.subr.bf16.mxu0 %v1510
      %1538 = vmatpush1.bf16.msra.mxu0 %v1509
      %1539 = vmatprep.subr.bf16.mxu0 %v1512
      %1540 = vmatpush1.bf16.msra.mxu0 %v1511
      %1541 = vmatprep.subr.bf16.mxu0 %v1514
      %1542 = vmatpush1.bf16.msra.mxu0 %v1513
      %1543 = vmatprep.subr.bf16.mxu0 %v1533
      %1544 = vmatpush1.bf16.msra.mxu0 %v1530
      %1545 = vmatprep.subr.bf16.mxu0 0
      %1546 = vmatpush1.bf16.msra.mxu0 0
      %1547 = vmatprep.subr.bf16.mxu0 0
      %1548 = vmatpush1.bf16.msra.mxu0 0
      %1549 = vmatprep.subr.bf16.mxu0 0
      %1550 = vmatpush1.bf16.msra.mxu0 0
      %1551 = vmatprep.subr.bf16.mxu0 0
      %1552 = vmatpush1.bf16.msra.mxu0 0
      %1553 = vmatprep.subr.bf16.mxu0 0
      %1554 = vmatpush1.bf16.msra.mxu0 0
      %1555 = vmatprep.subr.bf16.mxu0 0
      %1556 = vmatpush1.bf16.msra.mxu0 0
      %1557 = vmatprep.subr.bf16.mxu0 0
      %1558 = vmatpush1.bf16.msra.mxu0 0
      %1559 = vmatprep.subr.bf16.mxu0 0
      %1560 = vmatpush1.bf16.msra.mxu0 0
      %1561 = vmatprep.subr.bf16.mxu0 0
      %1562 = vmatpush1.bf16.msra.mxu0 0
      %1563 = vmatprep.subr.bf16.mxu0 0
      %1564 = vmatpush1.bf16.msra.mxu0 0
      %1565 = vmatprep.subr.bf16.mxu0 0
      %1566 = vmatpush1.bf16.msra.mxu0 0
      %1567 = vmatprep.mubr.bf16.mxu0 0
      %1568 = vmatmul.mubr.bf16.gmra.mrb[0].mxu0 %v1526
      %v1569 = vpop.f32.mrb[0].mxu0
      %v1570 = vadd.f32 %v1522, %v1569
      %v1571 = vpop.f32.mrb[0].mxu0
      %v1572 = vadd.f32 %v1522, %v1571
      %v1573 = vpop.f32.mrb[0].mxu0
      %v1574 = vpop.f32.mrb[0].mxu0
      %1575 = vdwg.mxu0
      %v1576 = vmax.f32 %v1570, 0.0
      %v1577 = vmax.f32 %v1572, 0.0
      %1578 = vrot.lane.b32.xlu0 %v1576, 17
      %v1579 = vpop.permute.xlu0 %1578
      %1580 = vrot.lane.b32.xlu0 %v1577, 17
      %v1581 = vpop.permute.xlu0 %1580
      %v1582 = vsel %vm1399, %v1579, %v1581
      %v1583 = vsel %vm1399, %v1581, %v1579
      %v1584 = vsel %vm1406, %v1583, 0.0
      %v1585 = vsel %vm1407, %v1582, 0.0
      %1586 = vrot.lane.b32.xlu0 %v1576, 16
      %v1587 = vpop.permute.xlu0 %1586
      %1588 = vrot.lane.b32.xlu0 %v1577, 16
      %v1589 = vpop.permute.xlu0 %1588
      %v1590 = vsel %vm1414, %v1587, %v1589
      %v1591 = vsel %vm1414, %v1589, %v1587
      %v1592 = vsel %vm1419, %v1591, 0.0
      %v1593 = vsel %vm1420, %v1590, 0.0
      %1594 = vrot.lane.b32.xlu0 %v1576, 15
      %v1595 = vpop.permute.xlu0 %1594
      %1596 = vrot.lane.b32.xlu0 %v1577, 15
      %v1597 = vpop.permute.xlu0 %1596
      %v1598 = vsel %vm1427, %v1595, %v1597
      %v1599 = vsel %vm1427, %v1597, %v1595
      %v1600 = vsel %vm1434, %v1599, 0.0
      %v1601 = vsel %vm1435, %v1598, 0.0
      %1602 = vrot.lane.b32.xlu0 %v1576, 1
      %v1603 = vpop.permute.xlu0 %1602
      %1604 = vrot.lane.b32.xlu0 %v1577, 1
      %v1605 = vpop.permute.xlu0 %1604
      %v1606 = vsel %vm1442, %v1603, %v1605
      %v1607 = vsel %vm1442, %v1605, %v1603
      %v1608 = vsel %vm1447, %v1607, 0.0
      %v1609 = vsel %vm1448, %v1606, 0.0
      %1610 = vrot.lane.b32.xlu0 %v1576, 127
      %v1611 = vpop.permute.xlu0 %1610
      %1612 = vrot.lane.b32.xlu0 %v1577, 127
      %v1613 = vpop.permute.xlu0 %1612
      %v1614 = vsel %vm1455, %v1611, %v1613
      %v1615 = vsel %vm1455, %v1613, %v1611
      %v1616 = vsel %vm1460, %v1614, 0.0
      %v1617 = vsel %vm1461, %v1615, 0.0
      %1618 = vrot.lane.b32.xlu0 %v1576, 113
      %v1619 = vpop.permute.xlu0 %1618
      %1620 = vrot.lane.b32.xlu0 %v1577, 113
      %v1621 = vpop.permute.xlu0 %1620
      %v1622 = vsel %vm1468, %v1619, %v1621
      %v1623 = vsel %vm1468, %v1621, %v1619
      %v1624 = vsel %vm1475, %v1622, 0.0
      %v1625 = vsel %vm1476, %v1623, 0.0
      %1626 = vrot.lane.b32.xlu0 %v1576, 112
      %v1627 = vpop.permute.xlu0 %1626
      %1628 = vrot.lane.b32.xlu0 %v1577, 112
      %v1629 = vpop.permute.xlu0 %1628
      %v1630 = vsel %vm1483, %v1627, %v1629
      %v1631 = vsel %vm1483, %v1629, %v1627
      %v1632 = vsel %vm1488, %v1630, 0.0
      %v1633 = vsel %vm1489, %v1631, 0.0
      %1634 = vrot.lane.b32.xlu0 %v1576, 111
      %v1635 = vpop.permute.xlu0 %1634
      %1636 = vrot.lane.b32.xlu0 %v1577, 111
      %v1637 = vpop.permute.xlu0 %1636
      %v1638 = vsel %vm1496, %v1635, %v1637
      %v1639 = vsel %vm1496, %v1637, %v1635
      %v1640 = vsel %vm1503, %v1638, 0.0
      %v1641 = vsel %vm1504, %v1639, 0.0
      %v1642 = vpack.c.bf16 %v1592, %v1584
      %v1643 = vpack.c.bf16 %v1593, %v1585
      %v1644 = vpack.c.bf16 %v1608, %v1600
      %v1645 = vpack.c.bf16 %v1609, %v1601
      %v1646 = vpack.c.bf16 %v1616, %v1576
      %v1647 = vpack.c.bf16 %v1617, %v1577
      %v1648 = vpack.c.bf16 %v1632, %v1624
      %v1649 = vpack.c.bf16 %v1633, %v1625
      %v1650 = vpack.c.bf16 %v1640, %v1640
      %v1651 = vpack.c.bf16 %v1641, %v1641
      %v1652 = vld [vmem:[%s9] sm:$0xf]
      %v1653 = vld [vmem:[%s7] sm:$0xff]
      %1655 = vset.pattern.permute.xlu0 0
      %1656 = vperm.xlu0 %1655, %v1653
      %v1657 = vpop.permute.xlu0 %1656
      %v1660 = vsel %vm1524, %v1652, 0
      %v1663 = vsel %vm1528, %v1650, 0
      %v1666 = vsel %vm1528, %v1651, 0
      %1668 = vmatprep.subr.bf16.mxu0 %v1643
      %1669 = vmatpush1.bf16.msra.mxu0 %v1642
      %1670 = vmatprep.subr.bf16.mxu0 %v1645
      %1671 = vmatpush1.bf16.msra.mxu0 %v1644
      %1672 = vmatprep.subr.bf16.mxu0 %v1647
      %1673 = vmatpush1.bf16.msra.mxu0 %v1646
      %1674 = vmatprep.subr.bf16.mxu0 %v1649
      %1675 = vmatpush1.bf16.msra.mxu0 %v1648
      %1676 = vmatprep.subr.bf16.mxu0 %v1666
      %1677 = vmatpush1.bf16.msra.mxu0 %v1663
      %1678 = vmatprep.subr.bf16.mxu0 0
      %1679 = vmatpush1.bf16.msra.mxu0 0
      %1680 = vmatprep.subr.bf16.mxu0 0
      %1681 = vmatpush1.bf16.msra.mxu0 0
      %1682 = vmatprep.subr.bf16.mxu0 0
      %1683 = vmatpush1.bf16.msra.mxu0 0
      %1684 = vmatprep.subr.bf16.mxu0 0
      %1685 = vmatpush1.bf16.msra.mxu0 0
      %1686 = vmatprep.subr.bf16.mxu0 0
      %1687 = vmatpush1.bf16.msra.mxu0 0
      %1688 = vmatprep.subr.bf16.mxu0 0
      %1689 = vmatpush1.bf16.msra.mxu0 0
      %1690 = vmatprep.subr.bf16.mxu0 0
      %1691 = vmatpush1.bf16.msra.mxu0 0
      %1692 = vmatprep.subr.bf16.mxu0 0
      %1693 = vmatpush1.bf16.msra.mxu0 0
      %1694 = vmatprep.subr.bf16.mxu0 0
      %1695 = vmatpush1.bf16.msra.mxu0 0
      %1696 = vmatprep.subr.bf16.mxu0 0
      %1697 = vmatpush1.bf16.msra.mxu0 0
      %1698 = vmatprep.subr.bf16.mxu0 0
      %1699 = vmatpush1.bf16.msra.mxu0 0
      %1700 = vmatprep.mubr.bf16.mxu0 0
      %1701 = vmatmul.mubr.bf16.gmra.mrb[0].mxu0 %v1660
      %v1702 = vpop.f32.mrb[0].mxu0
      %v1703 = vadd.f32 %v1657, %v1702
      %v1704 = vpop.f32.mrb[0].mxu0
      %v1705 = vadd.f32 %v1657, %v1704
      %v1706 = vpop.f32.mrb[0].mxu0
      %v1707 = vpop.f32.mrb[0].mxu0
      %1708 = vdwg.mxu0
      %v1709 = vmax.f32 %v1703, 0.0
      %v1710 = vmax.f32 %v1705, 0.0
      %1711 = vrot.lane.b32.xlu0 %v1709, 17
      %v1712 = vpop.permute.xlu0 %1711
      %1713 = vrot.lane.b32.xlu0 %v1710, 17
      %v1714 = vpop.permute.xlu0 %1713
      %v1715 = vsel %vm1399, %v1712, %v1714
      %v1716 = vsel %vm1399, %v1714, %v1712
      %v1717 = vsel %vm1406, %v1716, 0.0
      %v1718 = vsel %vm1407, %v1715, 0.0
      %1719 = vrot.lane.b32.xlu0 %v1709, 16
      %v1720 = vpop.permute.xlu0 %1719
      %1721 = vrot.lane.b32.xlu0 %v1710, 16
      %v1722 = vpop.permute.xlu0 %1721
      %v1723 = vsel %vm1414, %v1720, %v1722
      %v1724 = vsel %vm1414, %v1722, %v1720
      %v1725 = vsel %vm1419, %v1724, 0.0
      %v1726 = vsel %vm1420, %v1723, 0.0
      %1727 = vrot.lane.b32.xlu0 %v1709, 15
      %v1728 = vpop.permute.xlu0 %1727
      %1729 = vrot.lane.b32.xlu0 %v1710, 15
      %v1730 = vpop.permute.xlu0 %1729
      %v1731 = vsel %vm1427, %v1728, %v1730
      %v1732 = vsel %vm1427, %v1730, %v1728
      %v1733 = vsel %vm1434, %v1732, 0.0
      %v1734 = vsel %vm1435, %v1731, 0.0
      %1735 = vrot.lane.b32.xlu0 %v1709, 1
      %v1736 = vpop.permute.xlu0 %1735
      %1737 = vrot.lane.b32.xlu0 %v1710, 1
      %v1738 = vpop.permute.xlu0 %1737
      %v1739 = vsel %vm1442, %v1736, %v1738
      %v1740 = vsel %vm1442, %v1738, %v1736
      %v1741 = vsel %vm1447, %v1740, 0.0
      %v1742 = vsel %vm1448, %v1739, 0.0
      %1743 = vrot.lane.b32.xlu0 %v1709, 127
      %v1744 = vpop.permute.xlu0 %1743
      %1745 = vrot.lane.b32.xlu0 %v1710, 127
      %v1746 = vpop.permute.xlu0 %1745
      %v1747 = vsel %vm1455, %v1744, %v1746
      %v1748 = vsel %vm1455, %v1746, %v1744
      %v1749 = vsel %vm1460, %v1747, 0.0
      %v1750 = vsel %vm1461, %v1748, 0.0
      %1751 = vrot.lane.b32.xlu0 %v1709, 113
      %v1752 = vpop.permute.xlu0 %1751
      %1753 = vrot.lane.b32.xlu0 %v1710, 113
      %v1754 = vpop.permute.xlu0 %1753
      %v1755 = vsel %vm1468, %v1752, %v1754
      %v1756 = vsel %vm1468, %v1754, %v1752
      %v1757 = vsel %vm1475, %v1755, 0.0
      %v1758 = vsel %vm1476, %v1756, 0.0
      %1759 = vrot.lane.b32.xlu0 %v1709, 112
      %v1760 = vpop.permute.xlu0 %1759
      %1761 = vrot.lane.b32.xlu0 %v1710, 112
      %v1762 = vpop.permute.xlu0 %1761
      %v1763 = vsel %vm1483, %v1760, %v1762
      %v1764 = vsel %vm1483, %v1762, %v1760
      %v1765 = vsel %vm1488, %v1763, 0.0
      %v1766 = vsel %vm1489, %v1764, 0.0
      %1767 = vrot.lane.b32.xlu0 %v1709, 111
      %v1768 = vpop.permute.xlu0 %1767
      %1769 = vrot.lane.b32.xlu0 %v1710, 111
      %v1770 = vpop.permute.xlu0 %1769
      %v1771 = vsel %vm1496, %v1768, %v1770
      %v1772 = vsel %vm1496, %v1770, %v1768
      %v1773 = vsel %vm1503, %v1771, 0.0
      %v1774 = vsel %vm1504, %v1772, 0.0
      %v1775 = vpack.c.bf16 %v1725, %v1717
      %v1776 = vpack.c.bf16 %v1726, %v1718
      %v1777 = vpack.c.bf16 %v1741, %v1733
      %v1778 = vpack.c.bf16 %v1742, %v1734
      %v1779 = vpack.c.bf16 %v1749, %v1709
      %v1780 = vpack.c.bf16 %v1750, %v1710
      %v1781 = vpack.c.bf16 %v1765, %v1757
      %v1782 = vpack.c.bf16 %v1766, %v1758
      %v1783 = vpack.c.bf16 %v1773, %v1773
      %v1784 = vpack.c.bf16 %v1774, %v1774
      %v1785 = vld [vmem:[%s13] sm:$0xf]
      %v1786 = vld [vmem:[%s11] sm:$0xff]
      %1788 = vset.pattern.permute.xlu0 0
      %1789 = vperm.xlu0 %1788, %v1786
      %v1790 = vpop.permute.xlu0 %1789
      %v1793 = vsel %vm1524, %v1785, 0
      %v1796 = vsel %vm1528, %v1783, 0
      %v1799 = vsel %vm1528, %v1784, 0
      %1801 = vmatprep.subr.bf16.mxu0 %v1776
      %1802 = vmatpush1.bf16.msra.mxu0 %v1775
      %1803 = vmatprep.subr.bf16.mxu0 %v1778
      %1804 = vmatpush1.bf16.msra.mxu0 %v1777
      %1805 = vmatprep.subr.bf16.mxu0 %v1780
      %1806 = vmatpush1.bf16.msra.mxu0 %v1779
      %1807 = vmatprep.subr.bf16.mxu0 %v1782
      %1808 = vmatpush1.bf16.msra.mxu0 %v1781
      %1809 = vmatprep.subr.bf16.mxu0 %v1799
      %1810 = vmatpush1.bf16.msra.mxu0 %v1796
      %1811 = vmatprep.subr.bf16.mxu0 0
      %1812 = vmatpush1.bf16.msra.mxu0 0
      %1813 = vmatprep.subr.bf16.mxu0 0
      %1814 = vmatpush1.bf16.msra.mxu0 0
      %1815 = vmatprep.subr.bf16.mxu0 0
      %1816 = vmatpush1.bf16.msra.mxu0 0
      %1817 = vmatprep.subr.bf16.mxu0 0
      %1818 = vmatpush1.bf16.msra.mxu0 0
      %1819 = vmatprep.subr.bf16.mxu0 0
      %1820 = vmatpush1.bf16.msra.mxu0 0
      %1821 = vmatprep.subr.bf16.mxu0 0
      %1822 = vmatpush1.bf16.msra.mxu0 0
      %1823 = vmatprep.subr.bf16.mxu0 0
      %1824 = vmatpush1.bf16.msra.mxu0 0
      %1825 = vmatprep.subr.bf16.mxu0 0
      %1826 = vmatpush1.bf16.msra.mxu0 0
      %1827 = vmatprep.subr.bf16.mxu0 0
      %1828 = vmatpush1.bf16.msra.mxu0 0
      %1829 = vmatprep.subr.bf16.mxu0 0
      %1830 = vmatpush1.bf16.msra.mxu0 0
      %1831 = vmatprep.subr.bf16.mxu0 0
      %1832 = vmatpush1.bf16.msra.mxu0 0
      %1833 = vmatprep.mubr.bf16.mxu0 0
      %1834 = vmatmul.mubr.bf16.gmra.mrb[0].mxu0 %v1793
      %v1835 = vpop.f32.mrb[0].mxu0
      %v1836 = vadd.f32 %v1790, %v1835
      %v1837 = vpop.f32.mrb[0].mxu0
      %v1838 = vadd.f32 %v1790, %v1837
      %v1839 = vpop.f32.mrb[0].mxu0
      %v1840 = vpop.f32.mrb[0].mxu0
      %1841 = vdwg.mxu0
      %v1842 = vadd.f32 %v1836, %v1576
      %v1843 = vadd.f32 %v1838, %v1577
      %v1844 = vmax.f32 %v1842, 0.0
      %v1845 = vmax.f32 %v1843, 0.0
      %1846 = vrot.lane.b32.xlu0 %v1844, 17
      %v1847 = vpop.permute.xlu0 %1846
      %1848 = vrot.lane.b32.xlu0 %v1845, 17
      %v1849 = vpop.permute.xlu0 %1848
      %v1850 = vsel %vm1399, %v1847, %v1849
      %v1851 = vsel %vm1399, %v1849, %v1847
      %v1852 = vsel %vm1406, %v1851, 0.0
      %v1853 = vsel %vm1407, %v1850, 0.0
      %1854 = vrot.lane.b32.xlu0 %v1844, 16
      %v1855 = vpop.permute.xlu0 %1854
      %1856 = vrot.lane.b32.xlu0 %v1845, 16
      %v1857 = vpop.permute.xlu0 %1856
      %v1858 = vsel %vm1414, %v1855, %v1857
      %v1859 = vsel %vm1414, %v1857, %v1855
      %v1860 = vsel %vm1419, %v1859, 0.0
      %v1861 = vsel %vm1420, %v1858, 0.0
      %1862 = vrot.lane.b32.xlu0 %v1844, 15
      %v1863 = vpop.permute.xlu0 %1862
      %1864 = vrot.lane.b32.xlu0 %v1845, 15
      %v1865 = vpop.permute.xlu0 %1864
      %v1866 = vsel %vm1427, %v1863, %v1865
      %v1867 = vsel %vm1427, %v1865, %v1863
      %v1868 = vsel %vm1434, %v1867, 0.0
      %v1869 = vsel %vm1435, %v1866, 0.0
      %1870 = vrot.lane.b32.xlu0 %v1844, 1
      %v1871 = vpop.permute.xlu0 %1870
      %1872 = vrot.lane.b32.xlu0 %v1845, 1
      %v1873 = vpop.permute.xlu0 %1872
      %v1874 = vsel %vm1442, %v1871, %v1873
      %v1875 = vsel %vm1442, %v1873, %v1871
      %v1876 = vsel %vm1447, %v1875, 0.0
      %v1877 = vsel %vm1448, %v1874, 0.0
      %1878 = vrot.lane.b32.xlu0 %v1844, 127
      %v1879 = vpop.permute.xlu0 %1878
      %1880 = vrot.lane.b32.xlu0 %v1845, 127
      %v1881 = vpop.permute.xlu0 %1880
      %v1882 = vsel %vm1455, %v1879, %v1881
      %v1883 = vsel %vm1455, %v1881, %v1879
      %v1884 = vsel %vm1460, %v1882, 0.0
      %v1885 = vsel %vm1461, %v1883, 0.0
      %1886 = vrot.lane.b32.xlu0 %v1844, 113
      %v1887 = vpop.permute.xlu0 %1886
      %1888 = vrot.lane.b32.xlu0 %v1845, 113
      %v1889 = vpop.permute.xlu0 %1888
      %v1890 = vsel %vm1468, %v1887, %v1889
      %v1891 = vsel %vm1468, %v1889, %v1887
      %v1892 = vsel %vm1475, %v1890, 0.0
      %v1893 = vsel %vm1476, %v1891, 0.0
      %1894 = vrot.lane.b32.xlu0 %v1844, 112
      %v1895 = vpop.permute.xlu0 %1894
      %1896 = vrot.lane.b32.xlu0 %v1845, 112
      %v1897 = vpop.permute.xlu0 %1896
      %v1898 = vsel %vm1483, %v1895, %v1897
      %v1899 = vsel %vm1483, %v1897, %v1895
      %v1900 = vsel %vm1488, %v1898, 0.0
      %v1901 = vsel %vm1489, %v1899, 0.0
      %1902 = vrot.lane.b32.xlu0 %v1844, 111
      %v1903 = vpop.permute.xlu0 %1902
      %1904 = vrot.lane.b32.xlu0 %v1845, 111
      %v1905 = vpop.permute.xlu0 %1904
      %v1906 = vsel %vm1496, %v1903, %v1905
      %v1907 = vsel %vm1496, %v1905, %v1903
      %v1908 = vsel %vm1503, %v1906, 0.0
      %v1909 = vsel %vm1504, %v1907, 0.0
      %v1910 = vpack.c.bf16 %v1860, %v1852
      %v1911 = vpack.c.bf16 %v1861, %v1853
      %v1912 = vpack.c.bf16 %v1876, %v1868
      %v1913 = vpack.c.bf16 %v1877, %v1869
      %v1914 = vpack.c.bf16 %v1884, %v1844
      %v1915 = vpack.c.bf16 %v1885, %v1845
      %v1916 = vpack.c.bf16 %v1900, %v1892
      %v1917 = vpack.c.bf16 %v1901, %v1893
      %v1918 = vpack.c.bf16 %v1908, %v1908
      %v1919 = vpack.c.bf16 %v1909, %v1909
      %v1920 = vld [vmem:[%s17] sm:$0xf]
      %v1921 = vld [vmem:[%s15] sm:$0xff]
      %1923 = vset.pattern.permute.xlu0 0
      %1924 = vperm.xlu0 %1923, %v1921
      %v1925 = vpop.permute.xlu0 %1924
      %v1928 = vsel %vm1524, %v1920, 0
      %v1931 = vsel %vm1528, %v1918, 0
      %v1934 = vsel %vm1528, %v1919, 0
      %1936 = vmatprep.subr.bf16.mxu0 %v1911
      %1937 = vmatpush1.bf16.msra.mxu0 %v1910
      %1938 = vmatprep.subr.bf16.mxu0 %v1913
      %1939 = vmatpush1.bf16.msra.mxu0 %v1912
      %1940 = vmatprep.subr.bf16.mxu0 %v1915
      %1941 = vmatpush1.bf16.msra.mxu0 %v1914
      %1942 = vmatprep.subr.bf16.mxu0 %v1917
      %1943 = vmatpush1.bf16.msra.mxu0 %v1916
      %1944 = vmatprep.subr.bf16.mxu0 %v1934
      %1945 = vmatpush1.bf16.msra.mxu0 %v1931
      %1946 = vmatprep.subr.bf16.mxu0 0
      %1947 = vmatpush1.bf16.msra.mxu0 0
      %1948 = vmatprep.subr.bf16.mxu0 0
      %1949 = vmatpush1.bf16.msra.mxu0 0
      %1950 = vmatprep.subr.bf16.mxu0 0
      %1951 = vmatpush1.bf16.msra.mxu0 0
      %1952 = vmatprep.subr.bf16.mxu0 0
      %1953 = vmatpush1.bf16.msra.mxu0 0
      %1954 = vmatprep.subr.bf16.mxu0 0
      %1955 = vmatpush1.bf16.msra.mxu0 0
      %1956 = vmatprep.subr.bf16.mxu0 0
      %1957 = vmatpush1.bf16.msra.mxu0 0
      %1958 = vmatprep.subr.bf16.mxu0 0
      %1959 = vmatpush1.bf16.msra.mxu0 0
      %1960 = vmatprep.subr.bf16.mxu0 0
      %1961 = vmatpush1.bf16.msra.mxu0 0
      %1962 = vmatprep.subr.bf16.mxu0 0
      %1963 = vmatpush1.bf16.msra.mxu0 0
      %1964 = vmatprep.subr.bf16.mxu0 0
      %1965 = vmatpush1.bf16.msra.mxu0 0
      %1966 = vmatprep.subr.bf16.mxu0 0
      %1967 = vmatpush1.bf16.msra.mxu0 0
      %1968 = vmatprep.mubr.bf16.mxu0 0
      %1969 = vmatmul.mubr.bf16.gmra.mrb[0].mxu0 %v1928
      %v1970 = vpop.f32.mrb[0].mxu0
      %v1971 = vadd.f32 %v1925, %v1970
      %v1972 = vpop.f32.mrb[0].mxu0
      %v1973 = vadd.f32 %v1925, %v1972
      %v1974 = vpop.f32.mrb[0].mxu0
      %v1975 = vpop.f32.mrb[0].mxu0
      %1976 = vdwg.mxu0
      %v1977 = vmax.f32 %v1971, 0.0
      %v1978 = vmax.f32 %v1973, 0.0
      %1979 = vrot.lane.b32.xlu0 %v1977, 17
      %v1980 = vpop.permute.xlu0 %1979
      %1981 = vrot.lane.b32.xlu0 %v1978, 17
      %v1982 = vpop.permute.xlu0 %1981
      %v1983 = vsel %vm1399, %v1980, %v1982
      %v1984 = vsel %vm1399, %v1982, %v1980
      %v1985 = vsel %vm1406, %v1984, 0.0
      %v1986 = vsel %vm1407, %v1983, 0.0
      %1987 = vrot.lane.b32.xlu0 %v1977, 16
      %v1988 = vpop.permute.xlu0 %1987
      %1989 = vrot.lane.b32.xlu0 %v1978, 16
      %v1990 = vpop.permute.xlu0 %1989
      %v1991 = vsel %vm1414, %v1988, %v1990
      %v1992 = vsel %vm1414, %v1990, %v1988
      %v1993 = vsel %vm1419, %v1992, 0.0
      %v1994 = vsel %vm1420, %v1991, 0.0
      %1995 = vrot.lane.b32.xlu0 %v1977, 15
      %v1996 = vpop.permute.xlu0 %1995
      %1997 = vrot.lane.b32.xlu0 %v1978, 15
      %v1998 = vpop.permute.xlu0 %1997
      %v1999 = vsel %vm1427, %v1996, %v1998
      %v2000 = vsel %vm1427, %v1998, %v1996
      %v2001 = vsel %vm1434, %v2000, 0.0
      %v2002 = vsel %vm1435, %v1999, 0.0
      %2003 = vrot.lane.b32.xlu0 %v1977, 1
      %v2004 = vpop.permute.xlu0 %2003
      %2005 = vrot.lane.b32.xlu0 %v1978, 1
      %v2006 = vpop.permute.xlu0 %2005
      %v2007 = vsel %vm1442, %v2004, %v2006
      %v2008 = vsel %vm1442, %v2006, %v2004
      %v2009 = vsel %vm1447, %v2008, 0.0
      %v2010 = vsel %vm1448, %v2007, 0.0
      %2011 = vrot.lane.b32.xlu0 %v1977, 127
      %v2012 = vpop.permute.xlu0 %2011
      %2013 = vrot.lane.b32.xlu0 %v1978, 127
      %v2014 = vpop.permute.xlu0 %2013
      %v2015 = vsel %vm1455, %v2012, %v2014
      %v2016 = vsel %vm1455, %v2014, %v2012
      %v2017 = vsel %vm1460, %v2015, 0.0
      %v2018 = vsel %vm1461, %v2016, 0.0
      %2019 = vrot.lane.b32.xlu0 %v1977, 113
      %v2020 = vpop.permute.xlu0 %2019
      %2021 = vrot.lane.b32.xlu0 %v1978, 113
      %v2022 = vpop.permute.xlu0 %2021
      %v2023 = vsel %vm1468, %v2020, %v2022
      %v2024 = vsel %vm1468, %v2022, %v2020
      %v2025 = vsel %vm1475, %v2023, 0.0
      %v2026 = vsel %vm1476, %v2024, 0.0
      %2027 = vrot.lane.b32.xlu0 %v1977, 112
      %v2028 = vpop.permute.xlu0 %2027
      %2029 = vrot.lane.b32.xlu0 %v1978, 112
      %v2030 = vpop.permute.xlu0 %2029
      %v2031 = vsel %vm1483, %v2028, %v2030
      %v2032 = vsel %vm1483, %v2030, %v2028
      %v2033 = vsel %vm1488, %v2031, 0.0
      %v2034 = vsel %vm1489, %v2032, 0.0
      %2035 = vrot.lane.b32.xlu0 %v1977, 111
      %v2036 = vpop.permute.xlu0 %2035
      %2037 = vrot.lane.b32.xlu0 %v1978, 111
      %v2038 = vpop.permute.xlu0 %2037
      %v2039 = vsel %vm1496, %v2036, %v2038
      %v2040 = vsel %vm1496, %v2038, %v2036
      %v2041 = vsel %vm1503, %v2039, 0.0
      %v2042 = vsel %vm1504, %v2040, 0.0
      %v2043 = vpack.c.bf16 %v1993, %v1985
      %v2044 = vpack.c.bf16 %v1994, %v1986
      %v2045 = vpack.c.bf16 %v2009, %v2001
      %v2046 = vpack.c.bf16 %v2010, %v2002
      %v2047 = vpack.c.bf16 %v2017, %v1977
      %v2048 = vpack.c.bf16 %v2018, %v1978
      %v2049 = vpack.c.bf16 %v2033, %v2025
      %v2050 = vpack.c.bf16 %v2034, %v2026
      %v2051 = vpack.c.bf16 %v2041, %v2041
      %v2052 = vpack.c.bf16 %v2042, %v2042
      %v2053 = vld [vmem:[%s21] sm:$0xf]
      %v2054 = vld [vmem:[%s19] sm:$0xff]
      %2056 = vset.pattern.permute.xlu0 0
      %2057 = vperm.xlu0 %2056, %v2054
      %v2058 = vpop.permute.xlu0 %2057
      %v2061 = vsel %vm1524, %v2053, 0
      %v2064 = vsel %vm1528, %v2051, 0
      %v2067 = vsel %vm1528, %v2052, 0
      %2069 = vmatprep.subr.bf16.mxu0 %v2044
      %2070 = vmatpush1.bf16.msra.mxu0 %v2043
      %2071 = vmatprep.subr.bf16.mxu0 %v2046
      %2072 = vmatpush1.bf16.msra.mxu0 %v2045
      %2073 = vmatprep.subr.bf16.mxu0 %v2048
      %2074 = vmatpush1.bf16.msra.mxu0 %v2047
      %2075 = vmatprep.subr.bf16.mxu0 %v2050
      %2076 = vmatpush1.bf16.msra.mxu0 %v2049
      %2077 = vmatprep.subr.bf16.mxu0 %v2067
      %2078 = vmatpush1.bf16.msra.mxu0 %v2064
      %2079 = vmatprep.subr.bf16.mxu0 0
      %2080 = vmatpush1.bf16.msra.mxu0 0
      %2081 = vmatprep.subr.bf16.mxu0 0
      %2082 = vmatpush1.bf16.msra.mxu0 0
      %2083 = vmatprep.subr.bf16.mxu0 0
      %2084 = vmatpush1.bf16.msra.mxu0 0
      %2085 = vmatprep.subr.bf16.mxu0 0
      %2086 = vmatpush1.bf16.msra.mxu0 0
      %2087 = vmatprep.subr.bf16.mxu0 0
      %2088 = vmatpush1.bf16.msra.mxu0 0
      %2089 = vmatprep.subr.bf16.mxu0 0
      %2090 = vmatpush1.bf16.msra.mxu0 0
      %2091 = vmatprep.subr.bf16.mxu0 0
      %2092 = vmatpush1.bf16.msra.mxu0 0
      %2093 = vmatprep.subr.bf16.mxu0 0
      %2094 = vmatpush1.bf16.msra.mxu0 0
      %2095 = vmatprep.subr.bf16.mxu0 0
      %2096 = vmatpush1.bf16.msra.mxu0 0
      %2097 = vmatprep.subr.bf16.mxu0 0
      %2098 = vmatpush1.bf16.msra.mxu0 0
      %2099 = vmatprep.subr.bf16.mxu0 0
      %2100 = vmatpush1.bf16.msra.mxu0 0
      %2101 = vmatprep.mubr.bf16.mxu0 0
      %2102 = vmatmul.mubr.bf16.gmra.mrb[0].mxu0 %v2061
      %v2103 = vpop.f32.mrb[0].mxu0
      %v2104 = vadd.f32 %v2058, %v2103
      %v2105 = vpop.f32.mrb[0].mxu0
      %v2106 = vadd.f32 %v2058, %v2105
      %v2107 = vpop.f32.mrb[0].mxu0
      %v2108 = vpop.f32.mrb[0].mxu0
      %2109 = vdwg.mxu0
      %v2110 = vadd.f32 %v2104, %v1844
      %v2111 = vadd.f32 %v2106, %v1845
      %v2112 = vmax.f32 %v2110, 0.0
      %v2113 = vmax.f32 %v2111, 0.0
      %v2114 = vld [vmem:[%s91] sm:$0xff]
      %v2115 = vld [vmem:[%s91 + $0x8] sm:$0xff]
      %v2116 = vld [vmem:[%s91 + $0x10] sm:$0xff]
      %v2117 = vld [vmem:[%s91 + $0x18] sm:$0xff]
      %v2118 = vld [vmem:[%s91 + $0x20] sm:$0xff]
      %v2119 = vld [vmem:[%s91 + $0x28] sm:$0xff]
      %v2120 = vld [vmem:[%s91 + $0x30] sm:$0xff]
      %v2121 = vld [vmem:[%s91 + $0x38] sm:$0xff]
      %v2122 = vld [vmem:[%s91 + $0x40] sm:$0xff]
      %v2123 = vld [vmem:[%s91 + $0x48] sm:$0xff]
      %v2124 = vld [vmem:[%s91 + $0x50] sm:$0xff]
      %v2125 = vld [vmem:[%s91 + $0x58] sm:$0xff]
      %v2126 = vld [vmem:[%s91 + $0x60] sm:$0xff]
      %v2127 = vld [vmem:[%s91 + $0x68] sm:$0xff]
      %v2128 = vld [vmem:[%s91 + $0x70] sm:$0xff]
      %v2129 = vld [vmem:[%s91 + $0x78] sm:$0xff]
      %v2130 = vld [vmem:[%s91 + $0x80] sm:$0xff]
      %v2131 = vld [vmem:[%s91 + $0x88] sm:$0xff]
      %v2132 = vld [vmem:[%s91 + $0x90] sm:$0xff]
      %v2133 = vld [vmem:[%s91 + $0x98] sm:$0xff]
      %v2134 = vld [vmem:[%s91 + $0xa0] sm:$0xff]
      %v2135 = vld [vmem:[%s91 + $0xa8] sm:$0xff]
      %v2136 = vld [vmem:[%s91 + $0xb0] sm:$0xff]
      %v2137 = vld [vmem:[%s91 + $0xb8] sm:$0xff]
      %v2138 = vld [vmem:[%s91 + $0xc0] sm:$0xff]
      %v2139 = vld [vmem:[%s91 + $0xc8] sm:$0xff]
      %v2140 = vld [vmem:[%s91 + $0xd0] sm:$0xff]
      %v2141 = vld [vmem:[%s91 + $0xd8] sm:$0xff]
      %v2142 = vld [vmem:[%s91 + $0xe0] sm:$0xff]
      %v2143 = vld [vmem:[%s91 + $0xe8] sm:$0xff]
      %v2144 = vld [vmem:[%s91 + $0xf0] sm:$0xff]
      %v2145 = vld [vmem:[%s91 + $0xf8] sm:$0xff]
      %2146 = vmatprep.subr.mxu0 0.0
      %2147 = vmatpush1.msra.mxu0 %v2114
      %2148 = vmatprep.subr.mxu0 0.0
      %2149 = vmatpush1.msra.mxu0 %v2115
      %2150 = vmatprep.subr.mxu0 0.0
      %2151 = vmatpush1.msra.mxu0 %v2116
      %2152 = vmatprep.subr.mxu0 0.0
      %2153 = vmatpush1.msra.mxu0 %v2117
      %2154 = vmatprep.subr.mxu0 0.0
      %2155 = vmatpush1.msra.mxu0 %v2118
      %2156 = vmatprep.subr.mxu0 0.0
      %2157 = vmatpush1.msra.mxu0 %v2119
      %2158 = vmatprep.subr.mxu0 0.0
      %2159 = vmatpush1.msra.mxu0 %v2120
      %2160 = vmatprep.subr.mxu0 0.0
      %2161 = vmatpush1.msra.mxu0 %v2121
      %2162 = vmatprep.subr.mxu0 0.0
      %2163 = vmatpush1.msra.mxu0 %v2122
      %2164 = vmatprep.subr.mxu0 0.0
      %2165 = vmatpush1.msra.mxu0 %v2123
      %2166 = vmatprep.subr.mxu0 0.0
      %2167 = vmatpush1.msra.mxu0 %v2124
      %2168 = vmatprep.subr.mxu0 0.0
      %2169 = vmatpush1.msra.mxu0 %v2125
      %2170 = vmatprep.subr.mxu0 0.0
      %2171 = vmatpush1.msra.mxu0 %v2126
      %2172 = vmatprep.subr.mxu0 0.0
      %2173 = vmatpush1.msra.mxu0 %v2127
      %2174 = vmatprep.subr.mxu0 0.0
      %2175 = vmatpush1.msra.mxu0 %v2128
      %2176 = vmatprep.subr.mxu0 0.0
      %2177 = vmatpush1.msra.mxu0 %v2129
      %2178 = vmatprep.subr.mxu0 0.0
      %2179 = vmatpush1.msra.mxu0 %v2130
      %2180 = vmatprep.subr.mxu0 0.0
      %2181 = vmatpush1.msra.mxu0 %v2131
      %2182 = vmatprep.subr.mxu0 0.0
      %2183 = vmatpush1.msra.mxu0 %v2132
      %2184 = vmatprep.subr.mxu0 0.0
      %2185 = vmatpush1.msra.mxu0 %v2133
      %2186 = vmatprep.subr.mxu0 0.0
      %2187 = vmatpush1.msra.mxu0 %v2134
      %2188 = vmatprep.subr.mxu0 0.0
      %2189 = vmatpush1.msra.mxu0 %v2135
      %2190 = vmatprep.subr.mxu0 0.0
      %2191 = vmatpush1.msra.mxu0 %v2136
      %2192 = vmatprep.subr.mxu0 0.0
      %2193 = vmatpush1.msra.mxu0 %v2137
      %2194 = vmatprep.subr.mxu0 0.0
      %2195 = vmatpush1.msra.mxu0 %v2138
      %2196 = vmatprep.subr.mxu0 0.0
      %2197 = vmatpush1.msra.mxu0 %v2139
      %2198 = vmatprep.subr.mxu0 0.0
      %2199 = vmatpush1.msra.mxu0 %v2140
      %2200 = vmatprep.subr.mxu0 0.0
      %2201 = vmatpush1.msra.mxu0 %v2141
      %2202 = vmatprep.subr.mxu0 0.0
      %2203 = vmatpush1.msra.mxu0 %v2142
      %2204 = vmatprep.subr.mxu0 0.0
      %2205 = vmatpush1.msra.mxu0 %v2143
      %2206 = vmatprep.subr.mxu0 0.0
      %2207 = vmatpush1.msra.mxu0 %v2144
      %2208 = vmatprep.subr.mxu0 0.0
      %2209 = vmatpush1.msra.mxu0 %v2145
      %2210 = vmatprep.mubr.f32.mxu0 %v2113
      %2211 = vmatmul.mubr.f32.gmra.mrb[0].mxu0 %v2112
      %v2212 = vpop.f32.mrb[0].mxu0
      %v2213 = vadd.f32 0.0, %v2212
      %v2214 = vpop.f32.mrb[0].mxu0
      %2215 = vdwg.mxu0
      %v2216 = vld [vmem:[%s33] sm:$0xf]
      %v2217 = vld [vmem:[%s33 + $0x4] sm:$0xf]
      %v2218 = vpack.c.bf16 %v2213, %v2213
      %v2219 = vld [vmem:[%s31] sm:$0xff]
      %v2220 = vld [vmem:[%s31 + $0x8] sm:$0xff]
      %2222 = vset.pattern.permute.xlu0 0
      %2223 = vperm.xlu0 %2222, %v2219
      %v2224 = vpop.permute.xlu0 %2223
      %2227 = vset.pattern.permute.xlu0 0
      %2228 = vperm.xlu0 %2227, %v2220
      %v2229 = vpop.permute.xlu0 %2228
      %v2233 = vunpack.c.l.b16 %v2216
      %v2234 = vunpack.c.l.b16 %v2217
      %v2235 = vpack.c.b16 %v2234, %v2233
      %vm2236 = vcmask 64512
      %v2238 = vsel %vm2236, %v2235, 0
      %v2241 = vsel %vm1528, %v2218, 0
      %2243 = vmatprep.subr.bf16.mxu0 0
      %2244 = vmatpush1.bf16.msra.mxu0 %v2241
      %2245 = vmatprep.subr.bf16.mxu0 0
      %2246 = vmatpush1.bf16.msra.mxu0 0
      %2247 = vmatprep.subr.bf16.mxu0 0
      %2248 = vmatpush1.bf16.msra.mxu0 0
      %2249 = vmatprep.subr.bf16.mxu0 0
      %2250 = vmatpush1.bf16.msra.mxu0 0
      %2251 = vmatprep.subr.bf16.mxu0 0
      %2252 = vmatpush1.bf16.msra.mxu0 0
      %2253 = vmatprep.subr.bf16.mxu0 0
      %2254 = vmatpush1.bf16.msra.mxu0 0
      %2255 = vmatprep.subr.bf16.mxu0 0
      %2256 = vmatpush1.bf16.msra.mxu0 0
      %2257 = vmatprep.subr.bf16.mxu0 0
      %2258 = vmatpush1.bf16.msra.mxu0 0
      %2259 = vmatprep.subr.bf16.mxu0 0
      %2260 = vmatpush1.bf16.msra.mxu0 0
      %2261 = vmatprep.subr.bf16.mxu0 0
      %2262 = vmatpush1.bf16.msra.mxu0 0
      %2263 = vmatprep.subr.bf16.mxu0 0
      %2264 = vmatpush1.bf16.msra.mxu0 0
      %2265 = vmatprep.subr.bf16.mxu0 0
      %2266 = vmatpush1.bf16.msra.mxu0 0
      %2267 = vmatprep.subr.bf16.mxu0 0
      %2268 = vmatpush1.bf16.msra.mxu0 0
      %2269 = vmatprep.subr.bf16.mxu0 0
      %2270 = vmatpush1.bf16.msra.mxu0 0
      %2271 = vmatprep.subr.bf16.mxu0 0
      %2272 = vmatpush1.bf16.msra.mxu0 0
      %2273 = vmatprep.subr.bf16.mxu0 0
      %2274 = vmatpush1.bf16.msra.mxu0 0
      %2275 = vmatprep.mubr.bf16.mxu0 0
      %2276 = vmatmul.mubr.bf16.gmra.mrb[0].mxu0 %v2238
      %v2277 = vpop.f32.mrb[0].mxu0
      %v2278 = vadd.f32 %v2224, %v2277
      %v2279 = vpop.f32.mrb[0].mxu0
      %v2280 = vpop.f32.mrb[0].mxu0
      %v2281 = vadd.f32 %v2229, %v2280
      %v2282 = vpop.f32.mrb[0].mxu0
      %2283 = vdwg.mxu0
      %2284 = vrot.lane.b32.xlu0 %v2112, 17
      %v2285 = vpop.permute.xlu0 %2284
      %2286 = vrot.lane.b32.xlu0 %v2113, 17
      %v2287 = vpop.permute.xlu0 %2286
      %v2288 = vsel %vm1399, %v2285, %v2287
      %v2289 = vsel %vm1399, %v2287, %v2285
      %v2290 = vsel %vm1406, %v2289, 0.0
      %v2291 = vsel %vm1407, %v2288, 0.0
      %2292 = vrot.lane.b32.xlu0 %v2112, 16
      %v2293 = vpop.permute.xlu0 %2292
      %2294 = vrot.lane.b32.xlu0 %v2113, 16
      %v2295 = vpop.permute.xlu0 %2294
      %v2296 = vsel %vm1414, %v2293, %v2295
      %v2297 = vsel %vm1414, %v2295, %v2293
      %v2298 = vsel %vm1419, %v2297, 0.0
      %v2299 = vsel %vm1420, %v2296, 0.0
      %2300 = vrot.lane.b32.xlu0 %v2112, 15
      %v2301 = vpop.permute.xlu0 %2300
      %2302 = vrot.lane.b32.xlu0 %v2113, 15
      %v2303 = vpop.permute.xlu0 %2302
      %v2304 = vsel %vm1427, %v2301, %v2303
      %v2305 = vsel %vm1427, %v2303, %v2301
      %v2306 = vsel %vm1434, %v2305, 0.0
      %v2307 = vsel %vm1435, %v2304, 0.0
      %2308 = vrot.lane.b32.xlu0 %v2112, 1
      %v2309 = vpop.permute.xlu0 %2308
      %2310 = vrot.lane.b32.xlu0 %v2113, 1
      %v2311 = vpop.permute.xlu0 %2310
      %v2312 = vsel %vm1442, %v2309, %v2311
      %v2313 = vsel %vm1442, %v2311, %v2309
      %v2314 = vsel %vm1447, %v2313, 0.0
      %v2315 = vsel %vm1448, %v2312, 0.0
      %2316 = vrot.lane.b32.xlu0 %v2112, 127
      %v2317 = vpop.permute.xlu0 %2316
      %2318 = vrot.lane.b32.xlu0 %v2113, 127
      %v2319 = vpop.permute.xlu0 %2318
      %v2320 = vsel %vm1455, %v2317, %v2319
      %v2321 = vsel %vm1455, %v2319, %v2317
      %v2322 = vsel %vm1460, %v2320, 0.0
      %v2323 = vsel %vm1461, %v2321, 0.0
      %2324 = vrot.lane.b32.xlu0 %v2112, 113
      %v2325 = vpop.permute.xlu0 %2324
      %2326 = vrot.lane.b32.xlu0 %v2113, 113
      %v2327 = vpop.permute.xlu0 %2326
      %v2328 = vsel %vm1468, %v2325, %v2327
      %v2329 = vsel %vm1468, %v2327, %v2325
      %v2330 = vsel %vm1475, %v2328, 0.0
      %v2331 = vsel %vm1476, %v2329, 0.0
      %2332 = vrot.lane.b32.xlu0 %v2112, 112
      %v2333 = vpop.permute.xlu0 %2332
      %2334 = vrot.lane.b32.xlu0 %v2113, 112
      %v2335 = vpop.permute.xlu0 %2334
      %v2336 = vsel %vm1483, %v2333, %v2335
      %v2337 = vsel %vm1483, %v2335, %v2333
      %v2338 = vsel %vm1488, %v2336, 0.0
      %v2339 = vsel %vm1489, %v2337, 0.0
      %2340 = vrot.lane.b32.xlu0 %v2112, 111
      %v2341 = vpop.permute.xlu0 %2340
      %2342 = vrot.lane.b32.xlu0 %v2113, 111
      %v2343 = vpop.permute.xlu0 %2342
      %v2344 = vsel %vm1496, %v2341, %v2343
      %v2345 = vsel %vm1496, %v2343, %v2341
      %v2346 = vsel %vm1503, %v2344, 0.0
      %v2347 = vsel %vm1504, %v2345, 0.0
      %v2348 = vpack.c.bf16 %v2298, %v2290
      %v2349 = vpack.c.bf16 %v2299, %v2291
      %v2350 = vpack.c.bf16 %v2314, %v2306
      %v2351 = vpack.c.bf16 %v2315, %v2307
      %v2352 = vpack.c.bf16 %v2322, %v2112
      %v2353 = vpack.c.bf16 %v2323, %v2113
      %v2354 = vpack.c.bf16 %v2338, %v2330
      %v2355 = vpack.c.bf16 %v2339, %v2331
      %v2356 = vpack.c.bf16 %v2346, %v2346
      %v2357 = vpack.c.bf16 %v2347, %v2347
      %v2358 = vld [vmem:[%s25] sm:$0xf]
      %v2359 = vld [vmem:[%s25 + $0x4] sm:$0xf]
      %v2362 = vunpack.c.l.b16 %v2358
      %v2363 = vunpack.c.l.b16 %v2359
      %v2364 = vpack.c.b16 %v2363, %v2362
      %v2366 = vsel %vm1524, %v2364, 0
      %v2369 = vsel %vm1528, %v2356, 0
      %v2372 = vsel %vm1528, %v2357, 0
      %2374 = vmatprep.subr.bf16.mxu0 %v2349
      %2375 = vmatpush1.bf16.msra.mxu0 %v2348
      %2376 = vmatprep.subr.bf16.mxu0 %v2351
      %2377 = vmatpush1.bf16.msra.mxu0 %v2350
      %2378 = vmatprep.subr.bf16.mxu0 %v2353
      %2379 = vmatpush1.bf16.msra.mxu0 %v2352
      %2380 = vmatprep.subr.bf16.mxu0 %v2355
      %2381 = vmatpush1.bf16.msra.mxu0 %v2354
      %2382 = vmatprep.subr.bf16.mxu0 %v2372
      %2383 = vmatpush1.bf16.msra.mxu0 %v2369
      %2384 = vmatprep.subr.bf16.mxu0 0
      %2385 = vmatpush1.bf16.msra.mxu0 0
      %2386 = vmatprep.subr.bf16.mxu0 0
      %2387 = vmatpush1.bf16.msra.mxu0 0
      %2388 = vmatprep.subr.bf16.mxu0 0
      %2389 = vmatpush1.bf16.msra.mxu0 0
      %2390 = vmatprep.subr.bf16.mxu0 0
      %2391 = vmatpush1.bf16.msra.mxu0 0
      %2392 = vmatprep.subr.bf16.mxu0 0
      %2393 = vmatpush1.bf16.msra.mxu0 0
      %2394 = vmatprep.subr.bf16.mxu0 0
      %2395 = vmatpush1.bf16.msra.mxu0 0
      %2396 = vmatprep.subr.bf16.mxu0 0
      %2397 = vmatpush1.bf16.msra.mxu0 0
      %2398 = vmatprep.subr.bf16.mxu0 0
      %2399 = vmatpush1.bf16.msra.mxu0 0
      %2400 = vmatprep.subr.bf16.mxu0 0
      %2401 = vmatpush1.bf16.msra.mxu0 0
      %2402 = vmatprep.subr.bf16.mxu0 0
      %2403 = vmatpush1.bf16.msra.mxu0 0
      %2404 = vmatprep.subr.bf16.mxu0 0
      %2405 = vmatpush1.bf16.msra.mxu0 0
      %2406 = vmatprep.mubr.bf16.mxu0 0
      %2407 = vmatmul.mubr.bf16.gmra.mrb[0].mxu0 %v2366
      %v2408 = vpop.f32.mrb[0].mxu0
      %v2409 = vadd.f32 0.0, %v2408
      %v2410 = vpop.f32.mrb[0].mxu0
      %v2411 = vadd.f32 0.0, %v2410
      %v2412 = vpop.f32.mrb[0].mxu0
      %v2413 = vadd.f32 0.0, %v2412
      %v2414 = vpop.f32.mrb[0].mxu0
      %v2415 = vadd.f32 0.0, %v2414
      %2416 = vdwg.mxu0
      %v2417 = vld [vmem:[%s23] sm:$0xff]
      %v2418 = vld [vmem:[%s23 + $0x8] sm:$0xff]
      %2420 = vset.pattern.permute.xlu0 0
      %2421 = vperm.xlu0 %2420, %v2417
      %v2422 = vpop.permute.xlu0 %2421
      %2425 = vset.pattern.permute.xlu0 0
      %2426 = vperm.xlu0 %2425, %v2418
      %v2427 = vpop.permute.xlu0 %2426
      %2429 = vmatprep.subr.mxu0 0.0
      %2430 = vmatpush1.msra.mxu0 %v2114
      %2431 = vmatprep.subr.mxu0 0.0
      %2432 = vmatpush1.msra.mxu0 %v2115
      %2433 = vmatprep.subr.mxu0 0.0
      %2434 = vmatpush1.msra.mxu0 %v2116
      %2435 = vmatprep.subr.mxu0 0.0
      %2436 = vmatpush1.msra.mxu0 %v2117
      %2437 = vmatprep.subr.mxu0 0.0
      %2438 = vmatpush1.msra.mxu0 %v2118
      %2439 = vmatprep.subr.mxu0 0.0
      %2440 = vmatpush1.msra.mxu0 %v2119
      %2441 = vmatprep.subr.mxu0 0.0
      %2442 = vmatpush1.msra.mxu0 %v2120
      %2443 = vmatprep.subr.mxu0 0.0
      %2444 = vmatpush1.msra.mxu0 %v2121
      %2445 = vmatprep.subr.mxu0 0.0
      %2446 = vmatpush1.msra.mxu0 %v2122
      %2447 = vmatprep.subr.mxu0 0.0
      %2448 = vmatpush1.msra.mxu0 %v2123
      %2449 = vmatprep.subr.mxu0 0.0
      %2450 = vmatpush1.msra.mxu0 %v2124
      %2451 = vmatprep.subr.mxu0 0.0
      %2452 = vmatpush1.msra.mxu0 %v2125
      %2453 = vmatprep.subr.mxu0 0.0
      %2454 = vmatpush1.msra.mxu0 %v2126
      %2455 = vmatprep.subr.mxu0 0.0
      %2456 = vmatpush1.msra.mxu0 %v2127
      %2457 = vmatprep.subr.mxu0 0.0
      %2458 = vmatpush1.msra.mxu0 %v2128
      %2459 = vmatprep.subr.mxu0 0.0
      %2460 = vmatpush1.msra.mxu0 %v2129
      %2461 = vmatprep.subr.mxu0 0.0
      %2462 = vmatpush1.msra.mxu0 %v2130
      %2463 = vmatprep.subr.mxu0 0.0
      %2464 = vmatpush1.msra.mxu0 %v2131
      %2465 = vmatprep.subr.mxu0 0.0
      %2466 = vmatpush1.msra.mxu0 %v2132
      %2467 = vmatprep.subr.mxu0 0.0
      %2468 = vmatpush1.msra.mxu0 %v2133
      %2469 = vmatprep.subr.mxu0 0.0
      %2470 = vmatpush1.msra.mxu0 %v2134
      %2471 = vmatprep.subr.mxu0 0.0
      %2472 = vmatpush1.msra.mxu0 %v2135
      %2473 = vmatprep.subr.mxu0 0.0
      %2474 = vmatpush1.msra.mxu0 %v2136
      %2475 = vmatprep.subr.mxu0 0.0
      %2476 = vmatpush1.msra.mxu0 %v2137
      %2477 = vmatprep.subr.mxu0 0.0
      %2478 = vmatpush1.msra.mxu0 %v2138
      %2479 = vmatprep.subr.mxu0 0.0
      %2480 = vmatpush1.msra.mxu0 %v2139
      %2481 = vmatprep.subr.mxu0 0.0
      %2482 = vmatpush1.msra.mxu0 %v2140
      %2483 = vmatprep.subr.mxu0 0.0
      %2484 = vmatpush1.msra.mxu0 %v2141
      %2485 = vmatprep.subr.mxu0 0.0
      %2486 = vmatpush1.msra.mxu0 %v2142
      %2487 = vmatprep.subr.mxu0 0.0
      %2488 = vmatpush1.msra.mxu0 %v2143
      %2489 = vmatprep.subr.mxu0 0.0
      %2490 = vmatpush1.msra.mxu0 %v2144
      %2491 = vmatprep.subr.mxu0 0.0
      %2492 = vmatpush1.msra.mxu0 %v2145
      %2493 = vmatprep.mubr.f32.mxu0 %v2411
      %2494 = vmatmul.mubr.f32.gmra.mrb[0].mxu0 %v2409
      %v2495 = vpop.f32.mrb[0].mxu0
      %v2496 = vadd.f32 %v2422, %v2495
      %v2497 = vpop.f32.mrb[0].mxu0
      %2498 = vmatprep.mubr.f32.mxu0 %v2415
      %2499 = vmatmul.mubr.f32.gmra.mrb[0].mxu0 %v2413
      %v2500 = vpop.f32.mrb[0].mxu0
      %v2501 = vadd.f32 %v2427, %v2500
      %v2502 = vpop.f32.mrb[0].mxu0
      %2503 = vdwg.mxu0
      %v2504 = vmax.f32 %v2496, 0.0
      %v2505 = vmax.f32 %v2501, 0.0
      %v2506 = vand.u32 %v1383, 7
      %vm2507 = vcmp.ge.s32.totalorder %v1383, 8
      %vm2508 = vcmp.lt.s32.totalorder %v1383, 56
      %vm2509 = vcmp.gt.s32.totalorder %v2506, 0
      %vm2510 = vcmp.lt.s32.totalorder %v2506, 7
      %vm2511 = vcmask 1048064
      %2512 = vrot.lane.b32.xlu0 %v2504, 64
      %v2513 = vpop.permute.xlu0 %2512
      %v2514 = vsel %vm2511, %v2513, %v2504
      %2515 = vrot.lane.b32.xlu0 %v2505, 64
      %v2516 = vpop.permute.xlu0 %2515
      %v2517 = vsel %vm2511, %v2516, %v2505
      %2518 = vrot.lane.b32.xlu0 %v2514, 64
      %v2519 = vpop.permute.xlu0 %2518
      %2520 = vrot.lane.b32.xlu0 %v2517, 64
      %v2521 = vpop.permute.xlu0 %2520
      %v2522 = vsel %vm2511, %v2519, %v2504
      %v2523 = vsel %vm2511, %v2521, %v2505
      %vm2524 = vmand %vm2507, %vm2509
      %v2525 = vsel %vm2524, 1, 0
      %vm2526 = vcmp.eq.s32.totalorder %v2525, 1
      %2529 = vrot.lane.b32.xlu0 %v2522, 73
      %v2530 = vpop.permute.xlu0 %2529
      %2531 = vrot.lane.b32.xlu0 %v2523, 73
      %v2532 = vpop.permute.xlu0 %2531
      %v2535 = vsel %vm2526, %v2530, 0.0
      %v2536 = vsel %vm2526, %v2532, 0.0
      %v2537 = vsel %vm2507, 1, 0
      %vm2538 = vcmp.eq.s32.totalorder %v2537, 1
      %2539 = vrot.lane.b32.xlu0 %v2522, 72
      %v2540 = vpop.permute.xlu0 %2539
      %2541 = vrot.lane.b32.xlu0 %v2523, 72
      %v2542 = vpop.permute.xlu0 %2541
      %v2545 = vsel %vm2538, %v2540, 0.0
      %v2546 = vsel %vm2538, %v2542, 0.0
      %vm2547 = vmand %vm2507, %vm2510
      %v2548 = vsel %vm2547, 1, 0
      %vm2549 = vcmp.eq.s32.totalorder %v2548, 1
      %2550 = vrot.lane.b32.xlu0 %v2522, 71
      %v2551 = vpop.permute.xlu0 %2550
      %2552 = vrot.lane.b32.xlu0 %v2523, 71
      %v2553 = vpop.permute.xlu0 %2552
      %v2556 = vsel %vm2549, %v2551, 0.0
      %v2557 = vsel %vm2549, %v2553, 0.0
      %v2558 = vsel %vm2509, 1, 0
      %vm2559 = vcmp.eq.s32.totalorder %v2558, 1
      %2560 = vrot.lane.b32.xlu0 %v2522, 65
      %v2561 = vpop.permute.xlu0 %2560
      %2562 = vrot.lane.b32.xlu0 %v2523, 65
      %v2563 = vpop.permute.xlu0 %2562
      %v2566 = vsel %vm2559, %v2561, 0.0
      %v2567 = vsel %vm2559, %v2563, 0.0
      %v2568 = vsel %vm2510, 1, 0
      %vm2569 = vcmp.eq.s32.totalorder %v2568, 1
      %2570 = vrot.lane.b32.xlu0 %v2522, 127
      %v2571 = vpop.permute.xlu0 %2570
      %2572 = vrot.lane.b32.xlu0 %v2523, 127
      %v2573 = vpop.permute.xlu0 %2572
      %v2576 = vsel %vm2569, %v2571, 0.0
      %v2577 = vsel %vm2569, %v2573, 0.0
      %vm2578 = vmand %vm2508, %vm2509
      %v2579 = vsel %vm2578, 1, 0
      %vm2580 = vcmp.eq.s32.totalorder %v2579, 1
      %2581 = vrot.lane.b32.xlu0 %v2522, 121
      %v2582 = vpop.permute.xlu0 %2581
      %2583 = vrot.lane.b32.xlu0 %v2523, 121
      %v2584 = vpop.permute.xlu0 %2583
      %v2587 = vsel %vm2580, %v2582, 0.0
      %v2588 = vsel %vm2580, %v2584, 0.0
      %v2589 = vsel %vm2508, 1, 0
      %vm2590 = vcmp.eq.s32.totalorder %v2589, 1
      %2591 = vrot.lane.b32.xlu0 %v2522, 120
      %v2592 = vpop.permute.xlu0 %2591
      %2593 = vrot.lane.b32.xlu0 %v2523, 120
      %v2594 = vpop.permute.xlu0 %2593
      %v2597 = vsel %vm2590, %v2592, 0.0
      %v2598 = vsel %vm2590, %v2594, 0.0
      %vm2599 = vmand %vm2508, %vm2510
      %v2600 = vsel %vm2599, 1, 0
      %vm2601 = vcmp.eq.s32.totalorder %v2600, 1
      %2602 = vrot.lane.b32.xlu0 %v2522, 119
      %v2603 = vpop.permute.xlu0 %2602
      %2604 = vrot.lane.b32.xlu0 %v2523, 119
      %v2605 = vpop.permute.xlu0 %2604
      %v2608 = vsel %vm2601, %v2603, 0.0
      %v2609 = vsel %vm2601, %v2605, 0.0
      %v2610 = vpack.c.bf16 %v2536, %v2535
      %v2611 = vpack.c.bf16 %v2546, %v2545
      %v2612 = vpack.c.bf16 %v2557, %v2556
      %v2613 = vpack.c.bf16 %v2567, %v2566
      %v2614 = vpack.c.bf16 %v2505, %v2504
      %v2615 = vpack.c.bf16 %v2577, %v2576
      %v2616 = vpack.c.bf16 %v2588, %v2587
      %v2617 = vpack.c.bf16 %v2598, %v2597
      %v2618 = vpack.c.bf16 %v2609, %v2608
      %v2619 = vld [vmem:[%s29] sm:$0xff]
      %v2620 = vld [vmem:[%s29 + $0x8] sm:$0xff]
      %v2621 = vld [vmem:[%s27] sm:$0xff]
      %v2622 = vld [vmem:[%s27 + $0x8] sm:$0xff]
      %2624 = vset.pattern.permute.xlu0 0
      %2625 = vperm.xlu0 %2624, %v2621
      %v2626 = vpop.permute.xlu0 %2625
      %2629 = vset.pattern.permute.xlu0 0
      %2630 = vperm.xlu0 %2629, %v2622
      %v2631 = vpop.permute.xlu0 %2630
      %v2635 = vunpack.c.l.b16 %v2619
      %v2636 = vunpack.c.h.b16 %v2619
      %v2637 = vunpack.c.l.b16 %v2620
      %v2638 = vunpack.c.h.b16 %v2620
      %v2639 = vpack.c.b16 %v2637, %v2635
      %v2640 = vpack.c.b16 %v2638, %v2636
      %vm2642 = vcmask 130048
      %v2644 = vsel %vm2642, %v2640, 0
      %2646 = vmatprep.subr.bf16.mxu0 0
      %2647 = vmatpush1.bf16.msra.mxu0 %v2610
      %2648 = vmatprep.subr.bf16.mxu0 0
      %2649 = vmatpush1.bf16.msra.mxu0 %v2611
      %2650 = vmatprep.subr.bf16.mxu0 0
      %2651 = vmatpush1.bf16.msra.mxu0 %v2612
      %2652 = vmatprep.subr.bf16.mxu0 0
      %2653 = vmatpush1.bf16.msra.mxu0 %v2613
      %2654 = vmatprep.subr.bf16.mxu0 0
      %2655 = vmatpush1.bf16.msra.mxu0 %v2614
      %2656 = vmatprep.subr.bf16.mxu0 0
      %2657 = vmatpush1.bf16.msra.mxu0 %v2615
      %2658 = vmatprep.subr.bf16.mxu0 0
      %2659 = vmatpush1.bf16.msra.mxu0 %v2616
      %2660 = vmatprep.subr.bf16.mxu0 0
      %2661 = vmatpush1.bf16.msra.mxu0 %v2617
      %2662 = vmatprep.subr.bf16.mxu0 0
      %2663 = vmatpush1.bf16.msra.mxu0 %v2618
      %2664 = vmatprep.subr.bf16.mxu0 0
      %2665 = vmatpush1.bf16.msra.mxu0 0
      %2666 = vmatprep.subr.bf16.mxu0 0
      %2667 = vmatpush1.bf16.msra.mxu0 0
      %2668 = vmatprep.subr.bf16.mxu0 0
      %2669 = vmatpush1.bf16.msra.mxu0 0
      %2670 = vmatprep.subr.bf16.mxu0 0
      %2671 = vmatpush1.bf16.msra.mxu0 0
      %2672 = vmatprep.subr.bf16.mxu0 0
      %2673 = vmatpush1.bf16.msra.mxu0 0
      %2674 = vmatprep.subr.bf16.mxu0 0
      %2675 = vmatpush1.bf16.msra.mxu0 0
      %2676 = vmatprep.subr.bf16.mxu0 0
      %2677 = vmatpush1.bf16.msra.mxu0 0
      %2678 = vmatprep.mubr.bf16.mxu0 %v2644
      %2679 = vmatmul.mubr.bf16.gmra.mrb[0].mxu0 %v2639
      %v2680 = vpop.f32.mrb[0].mxu0
      %v2681 = vadd.f32 %v2626, %v2680
      %v2682 = vpop.f32.mrb[0].mxu0
      %v2683 = vpop.f32.mrb[0].mxu0
      %v2684 = vadd.f32 %v2631, %v2683
      %v2685 = vpop.f32.mrb[0].mxu0
      %2686 = vdwg.mxu0
      %v2687 = vadd.f32 %v2681, %v2278
      %v2688 = vadd.f32 %v2684, %v2281
      %v2689 = vmax.f32 %v2687, 0.0
      %v2690 = vmax.f32 %v2688, 0.0
      %2691 = vrot.lane.b32.xlu0 %v2689, 64
      %v2692 = vpop.permute.xlu0 %2691
      %v2693 = vsel %vm2511, %v2692, %v2689
      %2694 = vrot.lane.b32.xlu0 %v2690, 64
      %v2695 = vpop.permute.xlu0 %2694
      %v2696 = vsel %vm2511, %v2695, %v2690
      %2697 = vrot.lane.b32.xlu0 %v2693, 64
      %v2698 = vpop.permute.xlu0 %2697
      %2699 = vrot.lane.b32.xlu0 %v2696, 64
      %v2700 = vpop.permute.xlu0 %2699
      %v2701 = vsel %vm2511, %v2698, %v2689
      %v2702 = vsel %vm2511, %v2700, %v2690
      %2705 = vrot.lane.b32.xlu0 %v2701, 73
      %v2706 = vpop.permute.xlu0 %2705
      %2707 = vrot.lane.b32.xlu0 %v2702, 73
      %v2708 = vpop.permute.xlu0 %2707
      %v2711 = vsel %vm2526, %v2706, 0.0
      %v2712 = vsel %vm2526, %v2708, 0.0
      %2713 = vrot.lane.b32.xlu0 %v2701, 72
      %v2714 = vpop.permute.xlu0 %2713
      %2715 = vrot.lane.b32.xlu0 %v2702, 72
      %v2716 = vpop.permute.xlu0 %2715
      %v2719 = vsel %vm2538, %v2714, 0.0
      %v2720 = vsel %vm2538, %v2716, 0.0
      %2721 = vrot.lane.b32.xlu0 %v2701, 71
      %v2722 = vpop.permute.xlu0 %2721
      %2723 = vrot.lane.b32.xlu0 %v2702, 71
      %v2724 = vpop.permute.xlu0 %2723
      %v2727 = vsel %vm2549, %v2722, 0.0
      %v2728 = vsel %vm2549, %v2724, 0.0
      %2729 = vrot.lane.b32.xlu0 %v2701, 65
      %v2730 = vpop.permute.xlu0 %2729
      %2731 = vrot.lane.b32.xlu0 %v2702, 65
      %v2732 = vpop.permute.xlu0 %2731
      %v2735 = vsel %vm2559, %v2730, 0.0
      %v2736 = vsel %vm2559, %v2732, 0.0
      %2737 = vrot.lane.b32.xlu0 %v2701, 127
      %v2738 = vpop.permute.xlu0 %2737
      %2739 = vrot.lane.b32.xlu0 %v2702, 127
      %v2740 = vpop.permute.xlu0 %2739
      %v2743 = vsel %vm2569, %v2738, 0.0
      %v2744 = vsel %vm2569, %v2740, 0.0
      %2745 = vrot.lane.b32.xlu0 %v2701, 121
      %v2746 = vpop.permute.xlu0 %2745
      %2747 = vrot.lane.b32.xlu0 %v2702, 121
      %v2748 = vpop.permute.xlu0 %2747
      %v2751 = vsel %vm2580, %v2746, 0.0
      %v2752 = vsel %vm2580, %v2748, 0.0
      %2753 = vrot.lane.b32.xlu0 %v2701, 120
      %v2754 = vpop.permute.xlu0 %2753
      %2755 = vrot.lane.b32.xlu0 %v2702, 120
      %v2756 = vpop.permute.xlu0 %2755
      %v2759 = vsel %vm2590, %v2754, 0.0
      %v2760 = vsel %vm2590, %v2756, 0.0
      %2761 = vrot.lane.b32.xlu0 %v2701, 119
      %v2762 = vpop.permute.xlu0 %2761
      %2763 = vrot.lane.b32.xlu0 %v2702, 119
      %v2764 = vpop.permute.xlu0 %2763
      %v2767 = vsel %vm2601, %v2762, 0.0
      %v2768 = vsel %vm2601, %v2764, 0.0
      %v2769 = vpack.c.bf16 %v2712, %v2711
      %v2770 = vpack.c.bf16 %v2720, %v2719
      %v2771 = vpack.c.bf16 %v2728, %v2727
      %v2772 = vpack.c.bf16 %v2736, %v2735
      %v2773 = vpack.c.bf16 %v2690, %v2689
      %v2774 = vpack.c.bf16 %v2744, %v2743
      %v2775 = vpack.c.bf16 %v2752, %v2751
      %v2776 = vpack.c.bf16 %v2760, %v2759
      %v2777 = vpack.c.bf16 %v2768, %v2767
      %v2778 = vld [vmem:[%s37] sm:$0xff]
      %v2779 = vld [vmem:[%s37 + $0x8] sm:$0xff]
      %v2780 = vld [vmem:[%s35] sm:$0xff]
      %v2781 = vld [vmem:[%s35 + $0x8] sm:$0xff]
      %2783 = vset.pattern.permute.xlu0 0
      %2784 = vperm.xlu0 %2783, %v2780
      %v2785 = vpop.permute.xlu0 %2784
      %2788 = vset.pattern.permute.xlu0 0
      %2789 = vperm.xlu0 %2788, %v2781
      %v2790 = vpop.permute.xlu0 %2789
      %v2794 = vunpack.c.l.b16 %v2778
      %v2795 = vunpack.c.h.b16 %v2778
      %v2796 = vunpack.c.l.b16 %v2779
      %v2797 = vunpack.c.h.b16 %v2779
      %v2798 = vpack.c.b16 %v2796, %v2794
      %v2799 = vpack.c.b16 %v2797, %v2795
      %v2802 = vsel %vm2642, %v2799, 0
      %2804 = vmatprep.subr.bf16.mxu0 0
      %2805 = vmatpush1.bf16.msra.mxu0 %v2769
      %2806 = vmatprep.subr.bf16.mxu0 0
      %2807 = vmatpush1.bf16.msra.mxu0 %v2770
      %2808 = vmatprep.subr.bf16.mxu0 0
      %2809 = vmatpush1.bf16.msra.mxu0 %v2771
      %2810 = vmatprep.subr.bf16.mxu0 0
      %2811 = vmatpush1.bf16.msra.mxu0 %v2772
      %2812 = vmatprep.subr.bf16.mxu0 0
      %2813 = vmatpush1.bf16.msra.mxu0 %v2773
      %2814 = vmatprep.subr.bf16.mxu0 0
      %2815 = vmatpush1.bf16.msra.mxu0 %v2774
      %2816 = vmatprep.subr.bf16.mxu0 0
      %2817 = vmatpush1.bf16.msra.mxu0 %v2775
      %2818 = vmatprep.subr.bf16.mxu0 0
      %2819 = vmatpush1.bf16.msra.mxu0 %v2776
      %2820 = vmatprep.subr.bf16.mxu0 0
      %2821 = vmatpush1.bf16.msra.mxu0 %v2777
      %2822 = vmatprep.subr.bf16.mxu0 0
      %2823 = vmatpush1.bf16.msra.mxu0 0
      %2824 = vmatprep.subr.bf16.mxu0 0
      %2825 = vmatpush1.bf16.msra.mxu0 0
      %2826 = vmatprep.subr.bf16.mxu0 0
      %2827 = vmatpush1.bf16.msra.mxu0 0
      %2828 = vmatprep.subr.bf16.mxu0 0
      %2829 = vmatpush1.bf16.msra.mxu0 0
      %2830 = vmatprep.subr.bf16.mxu0 0
      %2831 = vmatpush1.bf16.msra.mxu0 0
      %2832 = vmatprep.subr.bf16.mxu0 0
      %2833 = vmatpush1.bf16.msra.mxu0 0
      %2834 = vmatprep.subr.bf16.mxu0 0
      %2835 = vmatpush1.bf16.msra.mxu0 0
      %2836 = vmatprep.mubr.bf16.mxu0 %v2802
      %2837 = vmatmul.mubr.bf16.gmra.mrb[0].mxu0 %v2798
      %v2838 = vpop.f32.mrb[0].mxu0
      %v2839 = vadd.f32 %v2785, %v2838
      %v2840 = vpop.f32.mrb[0].mxu0
      %v2841 = vpop.f32.mrb[0].mxu0
      %v2842 = vadd.f32 %v2790, %v2841
      %v2843 = vpop.f32.mrb[0].mxu0
      %2844 = vdwg.mxu0
      %v2845 = vmax.f32 %v2839, 0.0
      %v2846 = vmax.f32 %v2842, 0.0
      %2847 = vrot.lane.b32.xlu0 %v2845, 64
      %v2848 = vpop.permute.xlu0 %2847
      %v2849 = vsel %vm2511, %v2848, %v2845
      %2850 = vrot.lane.b32.xlu0 %v2846, 64
      %v2851 = vpop.permute.xlu0 %2850
      %v2852 = vsel %vm2511, %v2851, %v2846
      %2853 = vrot.lane.b32.xlu0 %v2849, 64
      %v2854 = vpop.permute.xlu0 %2853
      %2855 = vrot.lane.b32.xlu0 %v2852, 64
      %v2856 = vpop.permute.xlu0 %2855
      %v2857 = vsel %vm2511, %v2854, %v2845
      %v2858 = vsel %vm2511, %v2856, %v2846
      %2861 = vrot.lane.b32.xlu0 %v2857, 73
      %v2862 = vpop.permute.xlu0 %2861
      %2863 = vrot.lane.b32.xlu0 %v2858, 73
      %v2864 = vpop.permute.xlu0 %2863
      %v2867 = vsel %vm2526, %v2862, 0.0
      %v2868 = vsel %vm2526, %v2864, 0.0
      %2869 = vrot.lane.b32.xlu0 %v2857, 72
      %v2870 = vpop.permute.xlu0 %2869
      %2871 = vrot.lane.b32.xlu0 %v2858, 72
      %v2872 = vpop.permute.xlu0 %2871
      %v2875 = vsel %vm2538, %v2870, 0.0
      %v2876 = vsel %vm2538, %v2872, 0.0
      %2877 = vrot.lane.b32.xlu0 %v2857, 71
      %v2878 = vpop.permute.xlu0 %2877
      %2879 = vrot.lane.b32.xlu0 %v2858, 71
      %v2880 = vpop.permute.xlu0 %2879
      %v2883 = vsel %vm2549, %v2878, 0.0
      %v2884 = vsel %vm2549, %v2880, 0.0
      %2885 = vrot.lane.b32.xlu0 %v2857, 65
      %v2886 = vpop.permute.xlu0 %2885
      %2887 = vrot.lane.b32.xlu0 %v2858, 65
      %v2888 = vpop.permute.xlu0 %2887
      %v2891 = vsel %vm2559, %v2886, 0.0
      %v2892 = vsel %vm2559, %v2888, 0.0
      %2893 = vrot.lane.b32.xlu0 %v2857, 127
      %v2894 = vpop.permute.xlu0 %2893
      %2895 = vrot.lane.b32.xlu0 %v2858, 127
      %v2896 = vpop.permute.xlu0 %2895
      %v2899 = vsel %vm2569, %v2894, 0.0
      %v2900 = vsel %vm2569, %v2896, 0.0
      %2901 = vrot.lane.b32.xlu0 %v2857, 121
      %v2902 = vpop.permute.xlu0 %2901
      %2903 = vrot.lane.b32.xlu0 %v2858, 121
      %v2904 = vpop.permute.xlu0 %2903
      %v2907 = vsel %vm2580, %v2902, 0.0
      %v2908 = vsel %vm2580, %v2904, 0.0
      %2909 = vrot.lane.b32.xlu0 %v2857, 120
      %v2910 = vpop.permute.xlu0 %2909
      %2911 = vrot.lane.b32.xlu0 %v2858, 120
      %v2912 = vpop.permute.xlu0 %2911
      %v2915 = vsel %vm2590, %v2910, 0.0
      %v2916 = vsel %vm2590, %v2912, 0.0
      %2917 = vrot.lane.b32.xlu0 %v2857, 119
      %v2918 = vpop.permute.xlu0 %2917
      %2919 = vrot.lane.b32.xlu0 %v2858, 119
      %v2920 = vpop.permute.xlu0 %2919
      %v2923 = vsel %vm2601, %v2918, 0.0
      %v2924 = vsel %vm2601, %v2920, 0.0
      %v2925 = vpack.c.bf16 %v2868, %v2867
      %v2926 = vpack.c.bf16 %v2876, %v2875
      %v2927 = vpack.c.bf16 %v2884, %v2883
      %v2928 = vpack.c.bf16 %v2892, %v2891
      %v2929 = vpack.c.bf16 %v2846, %v2845
      %v2930 = vpack.c.bf16 %v2900, %v2899
      %v2931 = vpack.c.bf16 %v2908, %v2907
      %v2932 = vpack.c.bf16 %v2916, %v2915
      %v2933 = vpack.c.bf16 %v2924, %v2923
      %v2934 = vld [vmem:[%s41] sm:$0xff]
      %v2935 = vld [vmem:[%s41 + $0x8] sm:$0xff]
      %v2936 = vld [vmem:[%s39] sm:$0xff]
      %v2937 = vld [vmem:[%s39 + $0x8] sm:$0xff]
      %2939 = vset.pattern.permute.xlu0 0
      %2940 = vperm.xlu0 %2939, %v2936
      %v2941 = vpop.permute.xlu0 %2940
      %2944 = vset.pattern.permute.xlu0 0
      %2945 = vperm.xlu0 %2944, %v2937
      %v2946 = vpop.permute.xlu0 %2945
      %v2950 = vunpack.c.l.b16 %v2934
      %v2951 = vunpack.c.h.b16 %v2934
      %v2952 = vunpack.c.l.b16 %v2935
      %v2953 = vunpack.c.h.b16 %v2935
      %v2954 = vpack.c.b16 %v2952, %v2950
      %v2955 = vpack.c.b16 %v2953, %v2951
      %v2958 = vsel %vm2642, %v2955, 0
      %2960 = vmatprep.subr.bf16.mxu0 0
      %2961 = vmatpush1.bf16.msra.mxu0 %v2925
      %2962 = vmatprep.subr.bf16.mxu0 0
      %2963 = vmatpush1.bf16.msra.mxu0 %v2926
      %2964 = vmatprep.subr.bf16.mxu0 0
      %2965 = vmatpush1.bf16.msra.mxu0 %v2927
      %2966 = vmatprep.subr.bf16.mxu0 0
      %2967 = vmatpush1.bf16.msra.mxu0 %v2928
      %2968 = vmatprep.subr.bf16.mxu0 0
      %2969 = vmatpush1.bf16.msra.mxu0 %v2929
      %2970 = vmatprep.subr.bf16.mxu0 0
      %2971 = vmatpush1.bf16.msra.mxu0 %v2930
      %2972 = vmatprep.subr.bf16.mxu0 0
      %2973 = vmatpush1.bf16.msra.mxu0 %v2931
      %2974 = vmatprep.subr.bf16.mxu0 0
      %2975 = vmatpush1.bf16.msra.mxu0 %v2932
      %2976 = vmatprep.subr.bf16.mxu0 0
      %2977 = vmatpush1.bf16.msra.mxu0 %v2933
      %2978 = vmatprep.subr.bf16.mxu0 0
      %2979 = vmatpush1.bf16.msra.mxu0 0
      %2980 = vmatprep.subr.bf16.mxu0 0
      %2981 = vmatpush1.bf16.msra.mxu0 0
      %2982 = vmatprep.subr.bf16.mxu0 0
      %2983 = vmatpush1.bf16.msra.mxu0 0
      %2984 = vmatprep.subr.bf16.mxu0 0
      %2985 = vmatpush1.bf16.msra.mxu0 0
      %2986 = vmatprep.subr.bf16.mxu0 0
      %2987 = vmatpush1.bf16.msra.mxu0 0
      %2988 = vmatprep.subr.bf16.mxu0 0
      %2989 = vmatpush1.bf16.msra.mxu0 0
      %2990 = vmatprep.subr.bf16.mxu0 0
      %2991 = vmatpush1.bf16.msra.mxu0 0
      %2992 = vmatprep.mubr.bf16.mxu0 %v2958
      %2993 = vmatmul.mubr.bf16.gmra.mrb[0].mxu0 %v2954
      %v2994 = vpop.f32.mrb[0].mxu0
      %v2995 = vadd.f32 %v2941, %v2994
      %v2996 = vpop.f32.mrb[0].mxu0
      %v2997 = vpop.f32.mrb[0].mxu0
      %v2998 = vadd.f32 %v2946, %v2997
      %v2999 = vpop.f32.mrb[0].mxu0
      %3000 = vdwg.mxu0
      %v3001 = vadd.f32 %v2995, %v2689
      %v3002 = vadd.f32 %v2998, %v2690
      %v3003 = vmax.f32 %v3001, 0.0
      %v3004 = vmax.f32 %v3002, 0.0
      %v3005 = vld [vmem:[%s89] sm:$0xff]
      %v3006 = vld [vmem:[%s89 + $0x8] sm:$0xff]
      %v3007 = vld [vmem:[%s89 + $0x10] sm:$0xff]
      %v3008 = vld [vmem:[%s89 + $0x18] sm:$0xff]
      %v3009 = vld [vmem:[%s89 + $0x20] sm:$0xff]
      %v3010 = vld [vmem:[%s89 + $0x28] sm:$0xff]
      %v3011 = vld [vmem:[%s89 + $0x30] sm:$0xff]
      %v3012 = vld [vmem:[%s89 + $0x38] sm:$0xff]
      %vm3013 = vcmask 523264
      %v3015 = vsel %vm3013, %v3003, 0
      %v3018 = vsel %vm3013, %v3004, 0
      %3020 = vmatprep.subr.mxu0 0.0
      %3021 = vmatpush1.msra.mxu0 %v3005
      %3022 = vmatprep.subr.mxu0 0.0
      %3023 = vmatpush1.msra.mxu0 %v3006
      %3024 = vmatprep.subr.mxu0 0.0
      %3025 = vmatpush1.msra.mxu0 %v3007
      %3026 = vmatprep.subr.mxu0 0.0
      %3027 = vmatpush1.msra.mxu0 %v3008
      %3028 = vmatprep.subr.mxu0 0.0
      %3029 = vmatpush1.msra.mxu0 %v3009
      %3030 = vmatprep.subr.mxu0 0.0
      %3031 = vmatpush1.msra.mxu0 %v3010
      %3032 = vmatprep.subr.mxu0 0.0
      %3033 = vmatpush1.msra.mxu0 %v3011
      %3034 = vmatprep.subr.mxu0 0.0
      %3035 = vmatpush1.msra.mxu0 %v3012
      %3036 = vmatprep.subr.mxu0 0.0
      %3037 = vmatpush1.msra.mxu0 0.0
      %3038 = vmatprep.subr.mxu0 0.0
      %3039 = vmatpush1.msra.mxu0 0.0
      %3040 = vmatprep.subr.mxu0 0.0
      %3041 = vmatpush1.msra.mxu0 0.0
      %3042 = vmatprep.subr.mxu0 0.0
      %3043 = vmatpush1.msra.mxu0 0.0
      %3044 = vmatprep.subr.mxu0 0.0
      %3045 = vmatpush1.msra.mxu0 0.0
      %3046 = vmatprep.subr.mxu0 0.0
      %3047 = vmatpush1.msra.mxu0 0.0
      %3048 = vmatprep.subr.mxu0 0.0
      %3049 = vmatpush1.msra.mxu0 0.0
      %3050 = vmatprep.subr.mxu0 0.0
      %3051 = vmatpush1.msra.mxu0 0.0
      %3052 = vmatprep.subr.mxu0 0.0
      %3053 = vmatpush1.msra.mxu0 0.0
      %3054 = vmatprep.subr.mxu0 0.0
      %3055 = vmatpush1.msra.mxu0 0.0
      %3056 = vmatprep.subr.mxu0 0.0
      %3057 = vmatpush1.msra.mxu0 0.0
      %3058 = vmatprep.subr.mxu0 0.0
      %3059 = vmatpush1.msra.mxu0 0.0
      %3060 = vmatprep.subr.mxu0 0.0
      %3061 = vmatpush1.msra.mxu0 0.0
      %3062 = vmatprep.subr.mxu0 0.0
      %3063 = vmatpush1.msra.mxu0 0.0
      %3064 = vmatprep.subr.mxu0 0.0
      %3065 = vmatpush1.msra.mxu0 0.0
      %3066 = vmatprep.subr.mxu0 0.0
      %3067 = vmatpush1.msra.mxu0 0.0
      %3068 = vmatprep.subr.mxu0 0.0
      %3069 = vmatpush1.msra.mxu0 0.0
      %3070 = vmatprep.subr.mxu0 0.0
      %3071 = vmatpush1.msra.mxu0 0.0
      %3072 = vmatprep.subr.mxu0 0.0
      %3073 = vmatpush1.msra.mxu0 0.0
      %3074 = vmatprep.subr.mxu0 0.0
      %3075 = vmatpush1.msra.mxu0 0.0
      %3076 = vmatprep.subr.mxu0 0.0
      %3077 = vmatpush1.msra.mxu0 0.0
      %3078 = vmatprep.subr.mxu0 0.0
      %3079 = vmatpush1.msra.mxu0 0.0
      %3080 = vmatprep.subr.mxu0 0.0
      %3081 = vmatpush1.msra.mxu0 0.0
      %3082 = vmatprep.subr.mxu0 0.0
      %3083 = vmatpush1.msra.mxu0 0.0
      %3084 = vmatprep.mubr.f32.mxu0 0.0
      %3085 = vmatmul.mubr.f32.gmra.mrb[0].mxu0 %v3015
      %v3086 = vpop.f32.mrb[0].mxu0
      %v3087 = vadd.f32 0.0, %v3086
      %v3088 = vpop.f32.mrb[0].mxu0
      %3089 = vmatprep.mubr.f32.mxu0 0.0
      %3090 = vmatmul.mubr.f32.gmra.mrb[0].mxu0 %v3018
      %v3091 = vpop.f32.mrb[0].mxu0
      %v3092 = vadd.f32 0.0, %v3091
      %v3093 = vpop.f32.mrb[0].mxu0
      %3094 = vdwg.mxu0
      %v3095 = vld [vmem:[%s53] sm:$0xf]
      %v3096 = vld [vmem:[%s53 + $0x4] sm:$0xf]
      %v3097 = vld [vmem:[%s53 + $0x8] sm:$0xf]
      %v3098 = vld [vmem:[%s53 + $0xc] sm:$0xf]
      %v3099 = vpack.c.bf16 %v3092, %v3087
      %v3100 = vld [vmem:[%s51] sm:$0xff]
      %v3101 = vld [vmem:[%s51 + $0x8] sm:$0xff]
      %v3102 = vld [vmem:[%s51 + $0x10] sm:$0xff]
      %v3103 = vld [vmem:[%s51 + $0x18] sm:$0xff]
      %3105 = vset.pattern.permute.xlu0 0
      %3106 = vperm.xlu0 %3105, %v3100
      %v3107 = vpop.permute.xlu0 %3106
      %3110 = vset.pattern.permute.xlu0 0
      %3111 = vperm.xlu0 %3110, %v3101
      %v3112 = vpop.permute.xlu0 %3111
      %3115 = vset.pattern.permute.xlu0 0
      %3116 = vperm.xlu0 %3115, %v3102
      %v3117 = vpop.permute.xlu0 %3116
      %3120 = vset.pattern.permute.xlu0 0
      %3121 = vperm.xlu0 %3120, %v3103
      %v3122 = vpop.permute.xlu0 %3121
      %v3128 = vunpack.c.l.b16 %v3095
      %v3129 = vunpack.c.l.b16 %v3096
      %v3130 = vunpack.c.l.b16 %v3097
      %v3131 = vunpack.c.l.b16 %v3098
      %v3132 = vpack.c.b16 %v3129, %v3128
      %v3133 = vpack.c.b16 %v3131, %v3130
      %v3135 = vsel %vm2642, %v3132, 0
      %v3138 = vsel %vm2642, %v3133, 0
      %3140 = vmatprep.subr.bf16.mxu0 0
      %3141 = vmatpush1.bf16.msra.mxu0 %v3099
      %3142 = vmatprep.subr.bf16.mxu0 0
      %3143 = vmatpush1.bf16.msra.mxu0 0
      %3144 = vmatprep.subr.bf16.mxu0 0
      %3145 = vmatpush1.bf16.msra.mxu0 0
      %3146 = vmatprep.subr.bf16.mxu0 0
      %3147 = vmatpush1.bf16.msra.mxu0 0
      %3148 = vmatprep.subr.bf16.mxu0 0
      %3149 = vmatpush1.bf16.msra.mxu0 0
      %3150 = vmatprep.subr.bf16.mxu0 0
      %3151 = vmatpush1.bf16.msra.mxu0 0
      %3152 = vmatprep.subr.bf16.mxu0 0
      %3153 = vmatpush1.bf16.msra.mxu0 0
      %3154 = vmatprep.subr.bf16.mxu0 0
      %3155 = vmatpush1.bf16.msra.mxu0 0
      %3156 = vmatprep.subr.bf16.mxu0 0
      %3157 = vmatpush1.bf16.msra.mxu0 0
      %3158 = vmatprep.subr.bf16.mxu0 0
      %3159 = vmatpush1.bf16.msra.mxu0 0
      %3160 = vmatprep.subr.bf16.mxu0 0
      %3161 = vmatpush1.bf16.msra.mxu0 0
      %3162 = vmatprep.subr.bf16.mxu0 0
      %3163 = vmatpush1.bf16.msra.mxu0 0
      %3164 = vmatprep.subr.bf16.mxu0 0
      %3165 = vmatpush1.bf16.msra.mxu0 0
      %3166 = vmatprep.subr.bf16.mxu0 0
      %3167 = vmatpush1.bf16.msra.mxu0 0
      %3168 = vmatprep.subr.bf16.mxu0 0
      %3169 = vmatpush1.bf16.msra.mxu0 0
      %3170 = vmatprep.subr.bf16.mxu0 0
      %3171 = vmatpush1.bf16.msra.mxu0 0
      %3172 = vmatprep.mubr.bf16.mxu0 0
      %3173 = vmatmul.mubr.bf16.gmra.mrb[0].mxu0 %v3135
      %v3174 = vpop.f32.mrb[0].mxu0
      %v3175 = vadd.f32 %v3107, %v3174
      %v3176 = vpop.f32.mrb[0].mxu0
      %v3177 = vpop.f32.mrb[0].mxu0
      %v3178 = vadd.f32 %v3112, %v3177
      %v3179 = vpop.f32.mrb[0].mxu0
      %3180 = vmatprep.mubr.bf16.mxu0 0
      %3181 = vmatmul.mubr.bf16.gmra.mrb[0].mxu0 %v3138
      %v3182 = vpop.f32.mrb[0].mxu0
      %v3183 = vadd.f32 %v3117, %v3182
      %v3184 = vpop.f32.mrb[0].mxu0
      %v3185 = vpop.f32.mrb[0].mxu0
      %v3186 = vadd.f32 %v3122, %v3185
      %v3187 = vpop.f32.mrb[0].mxu0
      %3188 = vdwg.mxu0
      %3189 = vrot.lane.b32.xlu0 %v3003, 64
      %v3190 = vpop.permute.xlu0 %3189
      %v3191 = vsel %vm2511, %v3190, %v3003
      %3192 = vrot.lane.b32.xlu0 %v3004, 64
      %v3193 = vpop.permute.xlu0 %3192
      %v3194 = vsel %vm2511, %v3193, %v3004
      %3195 = vrot.lane.b32.xlu0 %v3191, 64
      %v3196 = vpop.permute.xlu0 %3195
      %3197 = vrot.lane.b32.xlu0 %v3194, 64
      %v3198 = vpop.permute.xlu0 %3197
      %v3199 = vsel %vm2511, %v3196, %v3003
      %v3200 = vsel %vm2511, %v3198, %v3004
      %3203 = vrot.lane.b32.xlu0 %v3199, 73
      %v3204 = vpop.permute.xlu0 %3203
      %3205 = vrot.lane.b32.xlu0 %v3200, 73
      %v3206 = vpop.permute.xlu0 %3205
      %v3209 = vsel %vm2526, %v3204, 0.0
      %v3210 = vsel %vm2526, %v3206, 0.0
      %3211 = vrot.lane.b32.xlu0 %v3199, 72
      %v3212 = vpop.permute.xlu0 %3211
      %3213 = vrot.lane.b32.xlu0 %v3200, 72
      %v3214 = vpop.permute.xlu0 %3213
      %v3217 = vsel %vm2538, %v3212, 0.0
      %v3218 = vsel %vm2538, %v3214, 0.0
      %3219 = vrot.lane.b32.xlu0 %v3199, 71
      %v3220 = vpop.permute.xlu0 %3219
      %3221 = vrot.lane.b32.xlu0 %v3200, 71
      %v3222 = vpop.permute.xlu0 %3221
      %v3225 = vsel %vm2549, %v3220, 0.0
      %v3226 = vsel %vm2549, %v3222, 0.0
      %3227 = vrot.lane.b32.xlu0 %v3199, 65
      %v3228 = vpop.permute.xlu0 %3227
      %3229 = vrot.lane.b32.xlu0 %v3200, 65
      %v3230 = vpop.permute.xlu0 %3229
      %v3233 = vsel %vm2559, %v3228, 0.0
      %v3234 = vsel %vm2559, %v3230, 0.0
      %3235 = vrot.lane.b32.xlu0 %v3199, 127
      %v3236 = vpop.permute.xlu0 %3235
      %3237 = vrot.lane.b32.xlu0 %v3200, 127
      %v3238 = vpop.permute.xlu0 %3237
      %v3241 = vsel %vm2569, %v3236, 0.0
      %v3242 = vsel %vm2569, %v3238, 0.0
      %3243 = vrot.lane.b32.xlu0 %v3199, 121
      %v3244 = vpop.permute.xlu0 %3243
      %3245 = vrot.lane.b32.xlu0 %v3200, 121
      %v3246 = vpop.permute.xlu0 %3245
      %v3249 = vsel %vm2580, %v3244, 0.0
      %v3250 = vsel %vm2580, %v3246, 0.0
      %3251 = vrot.lane.b32.xlu0 %v3199, 120
      %v3252 = vpop.permute.xlu0 %3251
      %3253 = vrot.lane.b32.xlu0 %v3200, 120
      %v3254 = vpop.permute.xlu0 %3253
      %v3257 = vsel %vm2590, %v3252, 0.0
      %v3258 = vsel %vm2590, %v3254, 0.0
      %3259 = vrot.lane.b32.xlu0 %v3199, 119
      %v3260 = vpop.permute.xlu0 %3259
      %3261 = vrot.lane.b32.xlu0 %v3200, 119
      %v3262 = vpop.permute.xlu0 %3261
      %v3265 = vsel %vm2601, %v3260, 0.0
      %v3266 = vsel %vm2601, %v3262, 0.0
      %v3267 = vpack.c.bf16 %v3210, %v3209
      %v3268 = vpack.c.bf16 %v3218, %v3217
      %v3269 = vpack.c.bf16 %v3226, %v3225
      %v3270 = vpack.c.bf16 %v3234, %v3233
      %v3271 = vpack.c.bf16 %v3004, %v3003
      %v3272 = vpack.c.bf16 %v3242, %v3241
      %v3273 = vpack.c.bf16 %v3250, %v3249
      %v3274 = vpack.c.bf16 %v3258, %v3257
      %v3275 = vpack.c.bf16 %v3266, %v3265
      %v3276 = vld [vmem:[%s45] sm:$0xff]
      %v3277 = vld [vmem:[%s45 + $0x8] sm:$0xff]
      %v3278 = vld [vmem:[%s45 + $0x10] sm:$0xff]
      %v3279 = vld [vmem:[%s45 + $0x18] sm:$0xff]
      %v3284 = vunpack.c.l.b16 %v3276
      %v3285 = vunpack.c.h.b16 %v3276
      %v3286 = vunpack.c.l.b16 %v3277
      %v3287 = vunpack.c.h.b16 %v3277
      %v3288 = vunpack.c.l.b16 %v3278
      %v3289 = vunpack.c.h.b16 %v3278
      %v3290 = vunpack.c.l.b16 %v3279
      %v3291 = vunpack.c.h.b16 %v3279
      %v3292 = vpack.c.b16 %v3286, %v3284
      %v3293 = vpack.c.b16 %v3287, %v3285
      %v3294 = vpack.c.b16 %v3290, %v3288
      %v3295 = vpack.c.b16 %v3291, %v3289
      %v3299 = vsel %vm2642, %v3293, 0
      %v3302 = vsel %vm2642, %v3295, 0
      %3304 = vmatprep.subr.bf16.mxu0 0
      %3305 = vmatpush1.bf16.msra.mxu0 %v3267
      %3306 = vmatprep.subr.bf16.mxu0 0
      %3307 = vmatpush1.bf16.msra.mxu0 %v3268
      %3308 = vmatprep.subr.bf16.mxu0 0
      %3309 = vmatpush1.bf16.msra.mxu0 %v3269
      %3310 = vmatprep.subr.bf16.mxu0 0
      %3311 = vmatpush1.bf16.msra.mxu0 %v3270
      %3312 = vmatprep.subr.bf16.mxu0 0
      %3313 = vmatpush1.bf16.msra.mxu0 %v3271
      %3314 = vmatprep.subr.bf16.mxu0 0
      %3315 = vmatpush1.bf16.msra.mxu0 %v3272
      %3316 = vmatprep.subr.bf16.mxu0 0
      %3317 = vmatpush1.bf16.msra.mxu0 %v3273
      %3318 = vmatprep.subr.bf16.mxu0 0
      %3319 = vmatpush1.bf16.msra.mxu0 %v3274
      %3320 = vmatprep.subr.bf16.mxu0 0
      %3321 = vmatpush1.bf16.msra.mxu0 %v3275
      %3322 = vmatprep.subr.bf16.mxu0 0
      %3323 = vmatpush1.bf16.msra.mxu0 0
      %3324 = vmatprep.subr.bf16.mxu0 0
      %3325 = vmatpush1.bf16.msra.mxu0 0
      %3326 = vmatprep.subr.bf16.mxu0 0
      %3327 = vmatpush1.bf16.msra.mxu0 0
      %3328 = vmatprep.subr.bf16.mxu0 0
      %3329 = vmatpush1.bf16.msra.mxu0 0
      %3330 = vmatprep.subr.bf16.mxu0 0
      %3331 = vmatpush1.bf16.msra.mxu0 0
      %3332 = vmatprep.subr.bf16.mxu0 0
      %3333 = vmatpush1.bf16.msra.mxu0 0
      %3334 = vmatprep.subr.bf16.mxu0 0
      %3335 = vmatpush1.bf16.msra.mxu0 0
      %3336 = vmatprep.mubr.bf16.mxu0 %v3299
      %3337 = vmatmul.mubr.bf16.gmra.mrb[0].mxu0 %v3292
      %v3338 = vpop.f32.mrb[0].mxu0
      %v3339 = vadd.f32 0.0, %v3338
      %v3340 = vpop.f32.mrb[0].mxu0
      %v3341 = vpop.f32.mrb[0].mxu0
      %v3342 = vadd.f32 0.0, %v3341
      %v3343 = vpop.f32.mrb[0].mxu0
      %3344 = vmatprep.mubr.bf16.mxu0 %v3302
      %3345 = vmatmul.mubr.bf16.gmra.mrb[0].mxu0 %v3294
      %v3346 = vpop.f32.mrb[0].mxu0
      %v3347 = vadd.f32 0.0, %v3346
      %v3348 = vpop.f32.mrb[0].mxu0
      %v3349 = vpop.f32.mrb[0].mxu0
      %v3350 = vadd.f32 0.0, %v3349
      %v3351 = vpop.f32.mrb[0].mxu0
      %3352 = vdwg.mxu0
      %v3353 = vld [vmem:[%s43] sm:$0xff]
      %v3354 = vld [vmem:[%s43 + $0x8] sm:$0xff]
      %v3355 = vld [vmem:[%s43 + $0x10] sm:$0xff]
      %v3356 = vld [vmem:[%s43 + $0x18] sm:$0xff]
      %3358 = vset.pattern.permute.xlu0 0
      %3359 = vperm.xlu0 %3358, %v3353
      %v3360 = vpop.permute.xlu0 %3359
      %3363 = vset.pattern.permute.xlu0 0
      %3364 = vperm.xlu0 %3363, %v3354
      %v3365 = vpop.permute.xlu0 %3364
      %3368 = vset.pattern.permute.xlu0 0
      %3369 = vperm.xlu0 %3368, %v3355
      %v3370 = vpop.permute.xlu0 %3369
      %3373 = vset.pattern.permute.xlu0 0
      %3374 = vperm.xlu0 %3373, %v3356
      %v3375 = vpop.permute.xlu0 %3374
      %v3378 = vsel %vm3013, %v3339, 0
      %v3381 = vsel %vm3013, %v3342, 0
      %v3384 = vsel %vm3013, %v3347, 0
      %v3387 = vsel %vm3013, %v3350, 0
      %3389 = vmatprep.subr.mxu0 0.0
      %3390 = vmatpush1.msra.mxu0 %v3005
      %3391 = vmatprep.subr.mxu0 0.0
      %3392 = vmatpush1.msra.mxu0 %v3006
      %3393 = vmatprep.subr.mxu0 0.0
      %3394 = vmatpush1.msra.mxu0 %v3007
      %3395 = vmatprep.subr.mxu0 0.0
      %3396 = vmatpush1.msra.mxu0 %v3008
      %3397 = vmatprep.subr.mxu0 0.0
      %3398 = vmatpush1.msra.mxu0 %v3009
      %3399 = vmatprep.subr.mxu0 0.0
      %3400 = vmatpush1.msra.mxu0 %v3010
      %3401 = vmatprep.subr.mxu0 0.0
      %3402 = vmatpush1.msra.mxu0 %v3011
      %3403 = vmatprep.subr.mxu0 0.0
      %3404 = vmatpush1.msra.mxu0 %v3012
      %3405 = vmatprep.subr.mxu0 0.0
      %3406 = vmatpush1.msra.mxu0 0.0
      %3407 = vmatprep.subr.mxu0 0.0
      %3408 = vmatpush1.msra.mxu0 0.0
      %3409 = vmatprep.subr.mxu0 0.0
      %3410 = vmatpush1.msra.mxu0 0.0
      %3411 = vmatprep.subr.mxu0 0.0
      %3412 = vmatpush1.msra.mxu0 0.0
      %3413 = vmatprep.subr.mxu0 0.0
      %3414 = vmatpush1.msra.mxu0 0.0
      %3415 = vmatprep.subr.mxu0 0.0
      %3416 = vmatpush1.msra.mxu0 0.0
      %3417 = vmatprep.subr.mxu0 0.0
      %3418 = vmatpush1.msra.mxu0 0.0
      %3419 = vmatprep.subr.mxu0 0.0
      %3420 = vmatpush1.msra.mxu0 0.0
      %3421 = vmatprep.subr.mxu0 0.0
      %3422 = vmatpush1.msra.mxu0 0.0
      %3423 = vmatprep.subr.mxu0 0.0
      %3424 = vmatpush1.msra.mxu0 0.0
      %3425 = vmatprep.subr.mxu0 0.0
      %3426 = vmatpush1.msra.mxu0 0.0
      %3427 = vmatprep.subr.mxu0 0.0
      %3428 = vmatpush1.msra.mxu0 0.0
      %3429 = vmatprep.subr.mxu0 0.0
      %3430 = vmatpush1.msra.mxu0 0.0
      %3431 = vmatprep.subr.mxu0 0.0
      %3432 = vmatpush1.msra.mxu0 0.0
      %3433 = vmatprep.subr.mxu0 0.0
      %3434 = vmatpush1.msra.mxu0 0.0
      %3435 = vmatprep.subr.mxu0 0.0
      %3436 = vmatpush1.msra.mxu0 0.0
      %3437 = vmatprep.subr.mxu0 0.0
      %3438 = vmatpush1.msra.mxu0 0.0
      %3439 = vmatprep.subr.mxu0 0.0
      %3440 = vmatpush1.msra.mxu0 0.0
      %3441 = vmatprep.subr.mxu0 0.0
      %3442 = vmatpush1.msra.mxu0 0.0
      %3443 = vmatprep.subr.mxu0 0.0
      %3444 = vmatpush1.msra.mxu0 0.0
      %3445 = vmatprep.subr.mxu0 0.0
      %3446 = vmatpush1.msra.mxu0 0.0
      %3447 = vmatprep.subr.mxu0 0.0
      %3448 = vmatpush1.msra.mxu0 0.0
      %3449 = vmatprep.subr.mxu0 0.0
      %3450 = vmatpush1.msra.mxu0 0.0
      %3451 = vmatprep.subr.mxu0 0.0
      %3452 = vmatpush1.msra.mxu0 0.0
      %3453 = vmatprep.mubr.f32.mxu0 0.0
      %3454 = vmatmul.mubr.f32.gmra.mrb[0].mxu0 %v3378
      %v3455 = vpop.f32.mrb[0].mxu0
      %v3456 = vadd.f32 %v3360, %v3455
      %v3457 = vpop.f32.mrb[0].mxu0
      %3458 = vmatprep.mubr.f32.mxu0 0.0
      %3459 = vmatmul.mubr.f32.gmra.mrb[0].mxu0 %v3381
      %v3460 = vpop.f32.mrb[0].mxu0
      %v3461 = vadd.f32 %v3365, %v3460
      %v3462 = vpop.f32.mrb[0].mxu0
      %3463 = vmatprep.mubr.f32.mxu0 0.0
      %3464 = vmatmul.mubr.f32.gmra.mrb[0].mxu0 %v3384
      %v3465 = vpop.f32.mrb[0].mxu0
      %v3466 = vadd.f32 %v3370, %v3465
      %v3467 = vpop.f32.mrb[0].mxu0
      %3468 = vmatprep.mubr.f32.mxu0 0.0
      %3469 = vmatmul.mubr.f32.gmra.mrb[0].mxu0 %v3387
      %v3470 = vpop.f32.mrb[0].mxu0
      %v3471 = vadd.f32 %v3375, %v3470
      %v3472 = vpop.f32.mrb[0].mxu0
      %3473 = vdwg.mxu0
      %v3474 = vmax.f32 %v3456, 0.0
      %v3475 = vmax.f32 %v3461, 0.0
      %v3476 = vmax.f32 %v3466, 0.0
      %v3477 = vmax.f32 %v3471, 0.0
      %v3478 = vand.u32 %v1383, 3
      %vm3479 = vcmp.ge.s32.totalorder %v1383, 4
      %vm3480 = vcmp.lt.s32.totalorder %v1383, 12
      %vm3481 = vcmp.gt.s32.totalorder %v3478, 0
      %vm3482 = vcmp.lt.s32.totalorder %v3478, 3
      %vm3483 = vcmask 1047680
      %3484 = vrot.lane.b32.xlu0 %v3474, 16
      %v3485 = vpop.permute.xlu0 %3484
      %v3486 = vsel %vm3483, %v3485, %v3474
      %3487 = vrot.lane.b32.xlu0 %v3475, 16
      %v3488 = vpop.permute.xlu0 %3487
      %v3489 = vsel %vm3483, %v3488, %v3475
      %3490 = vrot.lane.b32.xlu0 %v3476, 16
      %v3491 = vpop.permute.xlu0 %3490
      %v3492 = vsel %vm3483, %v3491, %v3476
      %3493 = vrot.lane.b32.xlu0 %v3477, 16
      %v3494 = vpop.permute.xlu0 %3493
      %v3495 = vsel %vm3483, %v3494, %v3477
      %3496 = vrot.lane.b32.xlu0 %v3486, 16
      %v3497 = vpop.permute.xlu0 %3496
      %3498 = vrot.lane.b32.xlu0 %v3489, 16
      %v3499 = vpop.permute.xlu0 %3498
      %3500 = vrot.lane.b32.xlu0 %v3492, 16
      %v3501 = vpop.permute.xlu0 %3500
      %3502 = vrot.lane.b32.xlu0 %v3495, 16
      %v3503 = vpop.permute.xlu0 %3502
      %v3504 = vsel %vm3483, %v3497, %v3474
      %v3505 = vsel %vm3483, %v3499, %v3475
      %v3506 = vsel %vm3483, %v3501, %v3476
      %v3507 = vsel %vm3483, %v3503, %v3477
      %vm3508 = vmand %vm3479, %vm3481
      %v3509 = vsel %vm3508, 1, 0
      %vm3510 = vcmp.eq.s32.totalorder %v3509, 1
      %3515 = vrot.lane.b32.xlu0 %v3504, 117
      %v3516 = vpop.permute.xlu0 %3515
      %3517 = vrot.lane.b32.xlu0 %v3505, 117
      %v3518 = vpop.permute.xlu0 %3517
      %3519 = vrot.lane.b32.xlu0 %v3506, 117
      %v3520 = vpop.permute.xlu0 %3519
      %3521 = vrot.lane.b32.xlu0 %v3507, 117
      %v3522 = vpop.permute.xlu0 %3521
      %v3527 = vsel %vm3510, %v3516, 0.0
      %v3528 = vsel %vm3510, %v3518, 0.0
      %v3529 = vsel %vm3510, %v3520, 0.0
      %v3530 = vsel %vm3510, %v3522, 0.0
      %v3531 = vsel %vm3479, 1, 0
      %vm3532 = vcmp.eq.s32.totalorder %v3531, 1
      %3533 = vrot.lane.b32.xlu0 %v3504, 116
      %v3534 = vpop.permute.xlu0 %3533
      %3535 = vrot.lane.b32.xlu0 %v3505, 116
      %v3536 = vpop.permute.xlu0 %3535
      %3537 = vrot.lane.b32.xlu0 %v3506, 116
      %v3538 = vpop.permute.xlu0 %3537
      %3539 = vrot.lane.b32.xlu0 %v3507, 116
      %v3540 = vpop.permute.xlu0 %3539
      %v3545 = vsel %vm3532, %v3534, 0.0
      %v3546 = vsel %vm3532, %v3536, 0.0
      %v3547 = vsel %vm3532, %v3538, 0.0
      %v3548 = vsel %vm3532, %v3540, 0.0
      %vm3549 = vmand %vm3479, %vm3482
      %v3550 = vsel %vm3549, 1, 0
      %vm3551 = vcmp.eq.s32.totalorder %v3550, 1
      %3552 = vrot.lane.b32.xlu0 %v3504, 115
      %v3553 = vpop.permute.xlu0 %3552
      %3554 = vrot.lane.b32.xlu0 %v3505, 115
      %v3555 = vpop.permute.xlu0 %3554
      %3556 = vrot.lane.b32.xlu0 %v3506, 115
      %v3557 = vpop.permute.xlu0 %3556
      %3558 = vrot.lane.b32.xlu0 %v3507, 115
      %v3559 = vpop.permute.xlu0 %3558
      %v3564 = vsel %vm3551, %v3553, 0.0
      %v3565 = vsel %vm3551, %v3555, 0.0
      %v3566 = vsel %vm3551, %v3557, 0.0
      %v3567 = vsel %vm3551, %v3559, 0.0
      %v3568 = vsel %vm3481, 1, 0
      %vm3569 = vcmp.eq.s32.totalorder %v3568, 1
      %3570 = vrot.lane.b32.xlu0 %v3504, 113
      %v3571 = vpop.permute.xlu0 %3570
      %3572 = vrot.lane.b32.xlu0 %v3505, 113
      %v3573 = vpop.permute.xlu0 %3572
      %3574 = vrot.lane.b32.xlu0 %v3506, 113
      %v3575 = vpop.permute.xlu0 %3574
      %3576 = vrot.lane.b32.xlu0 %v3507, 113
      %v3577 = vpop.permute.xlu0 %3576
      %v3582 = vsel %vm3569, %v3571, 0.0
      %v3583 = vsel %vm3569, %v3573, 0.0
      %v3584 = vsel %vm3569, %v3575, 0.0
      %v3585 = vsel %vm3569, %v3577, 0.0
      %v3586 = vsel %vm3482, 1, 0
      %vm3587 = vcmp.eq.s32.totalorder %v3586, 1
      %3588 = vrot.lane.b32.xlu0 %v3504, 127
      %v3589 = vpop.permute.xlu0 %3588
      %3590 = vrot.lane.b32.xlu0 %v3505, 127
      %v3591 = vpop.permute.xlu0 %3590
      %3592 = vrot.lane.b32.xlu0 %v3506, 127
      %v3593 = vpop.permute.xlu0 %3592
      %3594 = vrot.lane.b32.xlu0 %v3507, 127
      %v3595 = vpop.permute.xlu0 %3594
      %v3600 = vsel %vm3587, %v3589, 0.0
      %v3601 = vsel %vm3587, %v3591, 0.0
      %v3602 = vsel %vm3587, %v3593, 0.0
      %v3603 = vsel %vm3587, %v3595, 0.0
      %vm3604 = vmand %vm3480, %vm3481
      %v3605 = vsel %vm3604, 1, 0
      %vm3606 = vcmp.eq.s32.totalorder %v3605, 1
      %3607 = vrot.lane.b32.xlu0 %v3504, 125
      %v3608 = vpop.permute.xlu0 %3607
      %3609 = vrot.lane.b32.xlu0 %v3505, 125
      %v3610 = vpop.permute.xlu0 %3609
      %3611 = vrot.lane.b32.xlu0 %v3506, 125
      %v3612 = vpop.permute.xlu0 %3611
      %3613 = vrot.lane.b32.xlu0 %v3507, 125
      %v3614 = vpop.permute.xlu0 %3613
      %v3619 = vsel %vm3606, %v3608, 0.0
      %v3620 = vsel %vm3606, %v3610, 0.0
      %v3621 = vsel %vm3606, %v3612, 0.0
      %v3622 = vsel %vm3606, %v3614, 0.0
      %v3623 = vsel %vm3480, 1, 0
      %vm3624 = vcmp.eq.s32.totalorder %v3623, 1
      %3625 = vrot.lane.b32.xlu0 %v3504, 124
      %v3626 = vpop.permute.xlu0 %3625
      %3627 = vrot.lane.b32.xlu0 %v3505, 124
      %v3628 = vpop.permute.xlu0 %3627
      %3629 = vrot.lane.b32.xlu0 %v3506, 124
      %v3630 = vpop.permute.xlu0 %3629
      %3631 = vrot.lane.b32.xlu0 %v3507, 124
      %v3632 = vpop.permute.xlu0 %3631
      %v3637 = vsel %vm3624, %v3626, 0.0
      %v3638 = vsel %vm3624, %v3628, 0.0
      %v3639 = vsel %vm3624, %v3630, 0.0
      %v3640 = vsel %vm3624, %v3632, 0.0
      %vm3641 = vmand %vm3480, %vm3482
      %v3642 = vsel %vm3641, 1, 0
      %vm3643 = vcmp.eq.s32.totalorder %v3642, 1
      %3644 = vrot.lane.b32.xlu0 %v3504, 123
      %v3645 = vpop.permute.xlu0 %3644
      %3646 = vrot.lane.b32.xlu0 %v3505, 123
      %v3647 = vpop.permute.xlu0 %3646
      %3648 = vrot.lane.b32.xlu0 %v3506, 123
      %v3649 = vpop.permute.xlu0 %3648
      %3650 = vrot.lane.b32.xlu0 %v3507, 123
      %v3651 = vpop.permute.xlu0 %3650
      %v3656 = vsel %vm3643, %v3645, 0.0
      %v3657 = vsel %vm3643, %v3647, 0.0
      %v3658 = vsel %vm3643, %v3649, 0.0
      %v3659 = vsel %vm3643, %v3651, 0.0
      %v3660 = vpack.c.bf16 %v3528, %v3527
      %v3661 = vpack.c.bf16 %v3530, %v3529
      %v3662 = vpack.c.bf16 %v3546, %v3545
      %v3663 = vpack.c.bf16 %v3548, %v3547
      %v3664 = vpack.c.bf16 %v3565, %v3564
      %v3665 = vpack.c.bf16 %v3567, %v3566
      %v3666 = vpack.c.bf16 %v3583, %v3582
      %v3667 = vpack.c.bf16 %v3585, %v3584
      %v3668 = vpack.c.bf16 %v3475, %v3474
      %v3669 = vpack.c.bf16 %v3477, %v3476
      %v3670 = vpack.c.bf16 %v3601, %v3600
      %v3671 = vpack.c.bf16 %v3603, %v3602
      %v3672 = vpack.c.bf16 %v3620, %v3619
      %v3673 = vpack.c.bf16 %v3622, %v3621
      %v3674 = vpack.c.bf16 %v3638, %v3637
      %v3675 = vpack.c.bf16 %v3640, %v3639
      %v3676 = vpack.c.bf16 %v3657, %v3656
      %v3677 = vpack.c.bf16 %v3659, %v3658
      %v3678 = vld [vmem:[%s49] sm:$0xff]
      %v3679 = vld [vmem:[%s49 + $0x8] sm:$0xf]
      %v3680 = vld [vmem:[%s49 + $0xc] sm:$0xff]
      %v3681 = vld [vmem:[%s49 + $0x14] sm:$0xf]
      %v3682 = vld [vmem:[%s49 + $0x18] sm:$0xff]
      %v3683 = vld [vmem:[%s49 + $0x20] sm:$0xf]
      %v3684 = vld [vmem:[%s49 + $0x24] sm:$0xff]
      %v3685 = vld [vmem:[%s49 + $0x2c] sm:$0xf]
      %v3686 = vld [vmem:[%s47] sm:$0xff]
      %v3687 = vld [vmem:[%s47 + $0x8] sm:$0xff]
      %v3688 = vld [vmem:[%s47 + $0x10] sm:$0xff]
      %v3689 = vld [vmem:[%s47 + $0x18] sm:$0xff]
      %3691 = vset.pattern.permute.xlu0 0
      %3692 = vperm.xlu0 %3691, %v3686
      %v3693 = vpop.permute.xlu0 %3692
      %3696 = vset.pattern.permute.xlu0 0
      %3697 = vperm.xlu0 %3696, %v3687
      %v3698 = vpop.permute.xlu0 %3697
      %3701 = vset.pattern.permute.xlu0 0
      %3702 = vperm.xlu0 %3701, %v3688
      %v3703 = vpop.permute.xlu0 %3702
      %3706 = vset.pattern.permute.xlu0 0
      %3707 = vperm.xlu0 %3706, %v3689
      %v3708 = vpop.permute.xlu0 %3707
      %v3718 = vunpack.c.l.b16 %v3678
      %v3719 = vunpack.c.h.b16 %v3678
      %v3720 = vunpack.c.l.b16 %v3679
      %v3721 = vunpack.c.l.b16 %v3680
      %v3722 = vunpack.c.h.b16 %v3680
      %v3723 = vunpack.c.l.b16 %v3681
      %v3724 = vunpack.c.l.b16 %v3682
      %v3725 = vunpack.c.h.b16 %v3682
      %v3726 = vunpack.c.l.b16 %v3683
      %v3727 = vunpack.c.l.b16 %v3684
      %v3728 = vunpack.c.h.b16 %v3684
      %v3729 = vunpack.c.l.b16 %v3685
      %v3730 = vpack.c.b16 %v3721, %v3718
      %v3731 = vpack.c.b16 %v3722, %v3719
      %v3732 = vpack.c.b16 %v3723, %v3720
      %v3733 = vpack.c.b16 %v3727, %v3724
      %v3734 = vpack.c.b16 %v3728, %v3725
      %v3735 = vpack.c.b16 %v3729, %v3726
      %vm3740 = vcmask 261120
      %v3742 = vsel %vm3740, %v3732, 0
      %v3745 = vsel %vm3740, %v3735, 0
      %3747 = vmatprep.subr.bf16.mxu0 0
      %3748 = vmatpush1.bf16.msra.mxu0 %v3660
      %3749 = vmatprep.subr.bf16.mxu0 0
      %3750 = vmatpush1.bf16.msra.mxu0 %v3661
      %3751 = vmatprep.subr.bf16.mxu0 0
      %3752 = vmatpush1.bf16.msra.mxu0 %v3662
      %3753 = vmatprep.subr.bf16.mxu0 0
      %3754 = vmatpush1.bf16.msra.mxu0 %v3663
      %3755 = vmatprep.subr.bf16.mxu0 0
      %3756 = vmatpush1.bf16.msra.mxu0 %v3664
      %3757 = vmatprep.subr.bf16.mxu0 0
      %3758 = vmatpush1.bf16.msra.mxu0 %v3665
      %3759 = vmatprep.subr.bf16.mxu0 0
      %3760 = vmatpush1.bf16.msra.mxu0 %v3666
      %3761 = vmatprep.subr.bf16.mxu0 0
      %3762 = vmatpush1.bf16.msra.mxu0 %v3667
      %3763 = vmatprep.subr.bf16.mxu0 0
      %3764 = vmatpush1.bf16.msra.mxu0 %v3668
      %3765 = vmatprep.subr.bf16.mxu0 0
      %3766 = vmatpush1.bf16.msra.mxu0 %v3669
      %3767 = vmatprep.subr.bf16.mxu0 0
      %3768 = vmatpush1.bf16.msra.mxu0 %v3670
      %3769 = vmatprep.subr.bf16.mxu0 0
      %3770 = vmatpush1.bf16.msra.mxu0 %v3671
      %3771 = vmatprep.subr.bf16.mxu0 0
      %3772 = vmatpush1.bf16.msra.mxu0 %v3672
      %3773 = vmatprep.subr.bf16.mxu0 0
      %3774 = vmatpush1.bf16.msra.mxu0 %v3673
      %3775 = vmatprep.subr.bf16.mxu0 0
      %3776 = vmatpush1.bf16.msra.mxu0 %v3674
      %3777 = vmatprep.subr.bf16.mxu0 0
      %3778 = vmatpush1.bf16.msra.mxu0 %v3675
      %3779 = vmatprep.mubr.bf16.mxu0 %v3731
      %3780 = vmatmul.mubr.bf16.gmra.mrb[0].mxu0 %v3730
      %v3781 = vpop.f32.mrb[0].mxu0
      %v3782 = vadd.f32 %v3693, %v3781
      %v3783 = vpop.f32.mrb[0].mxu0
      %v3784 = vpop.f32.mrb[0].mxu0
      %v3785 = vadd.f32 %v3698, %v3784
      %v3786 = vpop.f32.mrb[0].mxu0
      %3787 = vmatprep.mubr.bf16.mxu0 %v3734
      %3788 = vmatmul.mubr.bf16.gmra.mrb[0].mxu0 %v3733
      %v3789 = vpop.f32.mrb[0].mxu0
      %v3790 = vadd.f32 %v3703, %v3789
      %v3791 = vpop.f32.mrb[0].mxu0
      %v3792 = vpop.f32.mrb[0].mxu0
      %v3793 = vadd.f32 %v3708, %v3792
      %v3794 = vpop.f32.mrb[0].mxu0
      %3795 = vdwg.mxu0
      %3796 = vmatprep.subr.bf16.mxu0 0
      %3797 = vmatpush1.bf16.msra.mxu0 %v3676
      %3798 = vmatprep.subr.bf16.mxu0 0
      %3799 = vmatpush1.bf16.msra.mxu0 %v3677
      %3800 = vmatprep.subr.bf16.mxu0 0
      %3801 = vmatpush1.bf16.msra.mxu0 0
      %3802 = vmatprep.subr.bf16.mxu0 0
      %3803 = vmatpush1.bf16.msra.mxu0 0
      %3804 = vmatprep.subr.bf16.mxu0 0
      %3805 = vmatpush1.bf16.msra.mxu0 0
      %3806 = vmatprep.subr.bf16.mxu0 0
      %3807 = vmatpush1.bf16.msra.mxu0 0
      %3808 = vmatprep.subr.bf16.mxu0 0
      %3809 = vmatpush1.bf16.msra.mxu0 0
      %3810 = vmatprep.subr.bf16.mxu0 0
      %3811 = vmatpush1.bf16.msra.mxu0 0
      %3812 = vmatprep.subr.bf16.mxu0 0
      %3813 = vmatpush1.bf16.msra.mxu0 0
      %3814 = vmatprep.subr.bf16.mxu0 0
      %3815 = vmatpush1.bf16.msra.mxu0 0
      %3816 = vmatprep.subr.bf16.mxu0 0
      %3817 = vmatpush1.bf16.msra.mxu0 0
      %3818 = vmatprep.subr.bf16.mxu0 0
      %3819 = vmatpush1.bf16.msra.mxu0 0
      %3820 = vmatprep.subr.bf16.mxu0 0
      %3821 = vmatpush1.bf16.msra.mxu0 0
      %3822 = vmatprep.subr.bf16.mxu0 0
      %3823 = vmatpush1.bf16.msra.mxu0 0
      %3824 = vmatprep.subr.bf16.mxu0 0
      %3825 = vmatpush1.bf16.msra.mxu0 0
      %3826 = vmatprep.subr.bf16.mxu0 0
      %3827 = vmatpush1.bf16.msra.mxu0 0
      %3828 = vmatprep.mubr.bf16.mxu0 0
      %3829 = vmatmul.mubr.bf16.gmra.mrb[0].mxu0 %v3742
      %v3830 = vpop.f32.mrb[0].mxu0
      %v3831 = vadd.f32 %v3782, %v3830
      %v3832 = vpop.f32.mrb[0].mxu0
      %v3833 = vpop.f32.mrb[0].mxu0
      %v3834 = vadd.f32 %v3785, %v3833
      %v3835 = vpop.f32.mrb[0].mxu0
      %3836 = vmatprep.mubr.bf16.mxu0 0
      %3837 = vmatmul.mubr.bf16.gmra.mrb[0].mxu0 %v3745
      %v3838 = vpop.f32.mrb[0].mxu0
      %v3839 = vadd.f32 %v3790, %v3838
      %v3840 = vpop.f32.mrb[0].mxu0
      %v3841 = vpop.f32.mrb[0].mxu0
      %v3842 = vadd.f32 %v3793, %v3841
      %v3843 = vpop.f32.mrb[0].mxu0
      %3844 = vdwg.mxu0
      %v3845 = vadd.f32 %v3831, %v3175
      %v3846 = vadd.f32 %v3834, %v3178
      %v3847 = vadd.f32 %v3839, %v3183
      %v3848 = vadd.f32 %v3842, %v3186
      %v3849 = vmax.f32 %v3845, 0.0
      %v3850 = vmax.f32 %v3846, 0.0
      %v3851 = vmax.f32 %v3847, 0.0
      %v3852 = vmax.f32 %v3848, 0.0
      %3853 = vrot.lane.b32.xlu0 %v3849, 16
      %v3854 = vpop.permute.xlu0 %3853
      %v3855 = vsel %vm3483, %v3854, %v3849
      %3856 = vrot.lane.b32.xlu0 %v3850, 16
      %v3857 = vpop.permute.xlu0 %3856
      %v3858 = vsel %vm3483, %v3857, %v3850
      %3859 = vrot.lane.b32.xlu0 %v3851, 16
      %v3860 = vpop.permute.xlu0 %3859
      %v3861 = vsel %vm3483, %v3860, %v3851
      %3862 = vrot.lane.b32.xlu0 %v3852, 16
      %v3863 = vpop.permute.xlu0 %3862
      %v3864 = vsel %vm3483, %v3863, %v3852
      %3865 = vrot.lane.b32.xlu0 %v3855, 16
      %v3866 = vpop.permute.xlu0 %3865
      %3867 = vrot.lane.b32.xlu0 %v3858, 16
      %v3868 = vpop.permute.xlu0 %3867
      %3869 = vrot.lane.b32.xlu0 %v3861, 16
      %v3870 = vpop.permute.xlu0 %3869
      %3871 = vrot.lane.b32.xlu0 %v3864, 16
      %v3872 = vpop.permute.xlu0 %3871
      %v3873 = vsel %vm3483, %v3866, %v3849
      %v3874 = vsel %vm3483, %v3868, %v3850
      %v3875 = vsel %vm3483, %v3870, %v3851
      %v3876 = vsel %vm3483, %v3872, %v3852
      %3881 = vrot.lane.b32.xlu0 %v3873, 117
      %v3882 = vpop.permute.xlu0 %3881
      %3883 = vrot.lane.b32.xlu0 %v3874, 117
      %v3884 = vpop.permute.xlu0 %3883
      %3885 = vrot.lane.b32.xlu0 %v3875, 117
      %v3886 = vpop.permute.xlu0 %3885
      %3887 = vrot.lane.b32.xlu0 %v3876, 117
      %v3888 = vpop.permute.xlu0 %3887
      %v3893 = vsel %vm3510, %v3882, 0.0
      %v3894 = vsel %vm3510, %v3884, 0.0
      %v3895 = vsel %vm3510, %v3886, 0.0
      %v3896 = vsel %vm3510, %v3888, 0.0
      %3897 = vrot.lane.b32.xlu0 %v3873, 116
      %v3898 = vpop.permute.xlu0 %3897
      %3899 = vrot.lane.b32.xlu0 %v3874, 116
      %v3900 = vpop.permute.xlu0 %3899
      %3901 = vrot.lane.b32.xlu0 %v3875, 116
      %v3902 = vpop.permute.xlu0 %3901
      %3903 = vrot.lane.b32.xlu0 %v3876, 116
      %v3904 = vpop.permute.xlu0 %3903
      %v3909 = vsel %vm3532, %v3898, 0.0
      %v3910 = vsel %vm3532, %v3900, 0.0
      %v3911 = vsel %vm3532, %v3902, 0.0
      %v3912 = vsel %vm3532, %v3904, 0.0
      %3913 = vrot.lane.b32.xlu0 %v3873, 115
      %v3914 = vpop.permute.xlu0 %3913
      %3915 = vrot.lane.b32.xlu0 %v3874, 115
      %v3916 = vpop.permute.xlu0 %3915
      %3917 = vrot.lane.b32.xlu0 %v3875, 115
      %v3918 = vpop.permute.xlu0 %3917
      %3919 = vrot.lane.b32.xlu0 %v3876, 115
      %v3920 = vpop.permute.xlu0 %3919
      %v3925 = vsel %vm3551, %v3914, 0.0
      %v3926 = vsel %vm3551, %v3916, 0.0
      %v3927 = vsel %vm3551, %v3918, 0.0
      %v3928 = vsel %vm3551, %v3920, 0.0
      %3929 = vrot.lane.b32.xlu0 %v3873, 113
      %v3930 = vpop.permute.xlu0 %3929
      %3931 = vrot.lane.b32.xlu0 %v3874, 113
      %v3932 = vpop.permute.xlu0 %3931
      %3933 = vrot.lane.b32.xlu0 %v3875, 113
      %v3934 = vpop.permute.xlu0 %3933
      %3935 = vrot.lane.b32.xlu0 %v3876, 113
      %v3936 = vpop.permute.xlu0 %3935
      %v3941 = vsel %vm3569, %v3930, 0.0
      %v3942 = vsel %vm3569, %v3932, 0.0
      %v3943 = vsel %vm3569, %v3934, 0.0
      %v3944 = vsel %vm3569, %v3936, 0.0
      %3945 = vrot.lane.b32.xlu0 %v3873, 127
      %v3946 = vpop.permute.xlu0 %3945
      %3947 = vrot.lane.b32.xlu0 %v3874, 127
      %v3948 = vpop.permute.xlu0 %3947
      %3949 = vrot.lane.b32.xlu0 %v3875, 127
      %v3950 = vpop.permute.xlu0 %3949
      %3951 = vrot.lane.b32.xlu0 %v3876, 127
      %v3952 = vpop.permute.xlu0 %3951
      %v3957 = vsel %vm3587, %v3946, 0.0
      %v3958 = vsel %vm3587, %v3948, 0.0
      %v3959 = vsel %vm3587, %v3950, 0.0
      %v3960 = vsel %vm3587, %v3952, 0.0
      %3961 = vrot.lane.b32.xlu0 %v3873, 125
      %v3962 = vpop.permute.xlu0 %3961
      %3963 = vrot.lane.b32.xlu0 %v3874, 125
      %v3964 = vpop.permute.xlu0 %3963
      %3965 = vrot.lane.b32.xlu0 %v3875, 125
      %v3966 = vpop.permute.xlu0 %3965
      %3967 = vrot.lane.b32.xlu0 %v3876, 125
      %v3968 = vpop.permute.xlu0 %3967
      %v3973 = vsel %vm3606, %v3962, 0.0
      %v3974 = vsel %vm3606, %v3964, 0.0
      %v3975 = vsel %vm3606, %v3966, 0.0
      %v3976 = vsel %vm3606, %v3968, 0.0
      %3977 = vrot.lane.b32.xlu0 %v3873, 124
      %v3978 = vpop.permute.xlu0 %3977
      %3979 = vrot.lane.b32.xlu0 %v3874, 124
      %v3980 = vpop.permute.xlu0 %3979
      %3981 = vrot.lane.b32.xlu0 %v3875, 124
      %v3982 = vpop.permute.xlu0 %3981
      %3983 = vrot.lane.b32.xlu0 %v3876, 124
      %v3984 = vpop.permute.xlu0 %3983
      %v3989 = vsel %vm3624, %v3978, 0.0
      %v3990 = vsel %vm3624, %v3980, 0.0
      %v3991 = vsel %vm3624, %v3982, 0.0
      %v3992 = vsel %vm3624, %v3984, 0.0
      %3993 = vrot.lane.b32.xlu0 %v3873, 123
      %v3994 = vpop.permute.xlu0 %3993
      %3995 = vrot.lane.b32.xlu0 %v3874, 123
      %v3996 = vpop.permute.xlu0 %3995
      %3997 = vrot.lane.b32.xlu0 %v3875, 123
      %v3998 = vpop.permute.xlu0 %3997
      %3999 = vrot.lane.b32.xlu0 %v3876, 123
      %v4000 = vpop.permute.xlu0 %3999
      %v4005 = vsel %vm3643, %v3994, 0.0
      %v4006 = vsel %vm3643, %v3996, 0.0
      %v4007 = vsel %vm3643, %v3998, 0.0
      %v4008 = vsel %vm3643, %v4000, 0.0
      %v4009 = vpack.c.bf16 %v3894, %v3893
      %v4010 = vpack.c.bf16 %v3896, %v3895
      %v4011 = vpack.c.bf16 %v3910, %v3909
      %v4012 = vpack.c.bf16 %v3912, %v3911
      %v4013 = vpack.c.bf16 %v3926, %v3925
      %v4014 = vpack.c.bf16 %v3928, %v3927
      %v4015 = vpack.c.bf16 %v3942, %v3941
      %v4016 = vpack.c.bf16 %v3944, %v3943
      %v4017 = vpack.c.bf16 %v3850, %v3849
      %v4018 = vpack.c.bf16 %v3852, %v3851
      %v4019 = vpack.c.bf16 %v3958, %v3957
      %v4020 = vpack.c.bf16 %v3960, %v3959
      %v4021 = vpack.c.bf16 %v3974, %v3973
      %v4022 = vpack.c.bf16 %v3976, %v3975
      %v4023 = vpack.c.bf16 %v3990, %v3989
      %v4024 = vpack.c.bf16 %v3992, %v3991
      %v4025 = vpack.c.bf16 %v4006, %v4005
      %v4026 = vpack.c.bf16 %v4008, %v4007
      %v4027 = vld [vmem:[%s57] sm:$0xff]
      %v4028 = vld [vmem:[%s57 + $0x8] sm:$0xf]
      %v4029 = vld [vmem:[%s57 + $0xc] sm:$0xff]
      %v4030 = vld [vmem:[%s57 + $0x14] sm:$0xf]
      %v4031 = vld [vmem:[%s57 + $0x18] sm:$0xff]
      %v4032 = vld [vmem:[%s57 + $0x20] sm:$0xf]
      %v4033 = vld [vmem:[%s57 + $0x24] sm:$0xff]
      %v4034 = vld [vmem:[%s57 + $0x2c] sm:$0xf]
      %v4035 = vld [vmem:[%s55] sm:$0xff]
      %v4036 = vld [vmem:[%s55 + $0x8] sm:$0xff]
      %v4037 = vld [vmem:[%s55 + $0x10] sm:$0xff]
      %v4038 = vld [vmem:[%s55 + $0x18] sm:$0xff]
      %4040 = vset.pattern.permute.xlu0 0
      %4041 = vperm.xlu0 %4040, %v4035
      %v4042 = vpop.permute.xlu0 %4041
      %4045 = vset.pattern.permute.xlu0 0
      %4046 = vperm.xlu0 %4045, %v4036
      %v4047 = vpop.permute.xlu0 %4046
      %4050 = vset.pattern.permute.xlu0 0
      %4051 = vperm.xlu0 %4050, %v4037
      %v4052 = vpop.permute.xlu0 %4051
      %4055 = vset.pattern.permute.xlu0 0
      %4056 = vperm.xlu0 %4055, %v4038
      %v4057 = vpop.permute.xlu0 %4056
      %v4067 = vunpack.c.l.b16 %v4027
      %v4068 = vunpack.c.h.b16 %v4027
      %v4069 = vunpack.c.l.b16 %v4028
      %v4070 = vunpack.c.l.b16 %v4029
      %v4071 = vunpack.c.h.b16 %v4029
      %v4072 = vunpack.c.l.b16 %v4030
      %v4073 = vunpack.c.l.b16 %v4031
      %v4074 = vunpack.c.h.b16 %v4031
      %v4075 = vunpack.c.l.b16 %v4032
      %v4076 = vunpack.c.l.b16 %v4033
      %v4077 = vunpack.c.h.b16 %v4033
      %v4078 = vunpack.c.l.b16 %v4034
      %v4079 = vpack.c.b16 %v4070, %v4067
      %v4080 = vpack.c.b16 %v4071, %v4068
      %v4081 = vpack.c.b16 %v4072, %v4069
      %v4082 = vpack.c.b16 %v4076, %v4073
      %v4083 = vpack.c.b16 %v4077, %v4074
      %v4084 = vpack.c.b16 %v4078, %v4075
      %v4090 = vsel %vm3740, %v4081, 0
      %v4093 = vsel %vm3740, %v4084, 0
      %4095 = vmatprep.subr.bf16.mxu0 0
      %4096 = vmatpush1.bf16.msra.mxu0 %v4009
      %4097 = vmatprep.subr.bf16.mxu0 0
      %4098 = vmatpush1.bf16.msra.mxu0 %v4010
      %4099 = vmatprep.subr.bf16.mxu0 0
      %4100 = vmatpush1.bf16.msra.mxu0 %v4011
      %4101 = vmatprep.subr.bf16.mxu0 0
      %4102 = vmatpush1.bf16.msra.mxu0 %v4012
      %4103 = vmatprep.subr.bf16.mxu0 0
      %4104 = vmatpush1.bf16.msra.mxu0 %v4013
      %4105 = vmatprep.subr.bf16.mxu0 0
      %4106 = vmatpush1.bf16.msra.mxu0 %v4014
      %4107 = vmatprep.subr.bf16.mxu0 0
      %4108 = vmatpush1.bf16.msra.mxu0 %v4015
      %4109 = vmatprep.subr.bf16.mxu0 0
      %4110 = vmatpush1.bf16.msra.mxu0 %v4016
      %4111 = vmatprep.subr.bf16.mxu0 0
      %4112 = vmatpush1.bf16.msra.mxu0 %v4017
      %4113 = vmatprep.subr.bf16.mxu0 0
      %4114 = vmatpush1.bf16.msra.mxu0 %v4018
      %4115 = vmatprep.subr.bf16.mxu0 0
      %4116 = vmatpush1.bf16.msra.mxu0 %v4019
      %4117 = vmatprep.subr.bf16.mxu0 0
      %4118 = vmatpush1.bf16.msra.mxu0 %v4020
      %4119 = vmatprep.subr.bf16.mxu0 0
      %4120 = vmatpush1.bf16.msra.mxu0 %v4021
      %4121 = vmatprep.subr.bf16.mxu0 0
      %4122 = vmatpush1.bf16.msra.mxu0 %v4022
      %4123 = vmatprep.subr.bf16.mxu0 0
      %4124 = vmatpush1.bf16.msra.mxu0 %v4023
      %4125 = vmatprep.subr.bf16.mxu0 0
      %4126 = vmatpush1.bf16.msra.mxu0 %v4024
      %4127 = vmatprep.mubr.bf16.mxu0 %v4080
      %4128 = vmatmul.mubr.bf16.gmra.mrb[0].mxu0 %v4079
      %v4129 = vpop.f32.mrb[0].mxu0
      %v4130 = vadd.f32 %v4042, %v4129
      %v4131 = vpop.f32.mrb[0].mxu0
      %v4132 = vpop.f32.mrb[0].mxu0
      %v4133 = vadd.f32 %v4047, %v4132
      %v4134 = vpop.f32.mrb[0].mxu0
      %4135 = vmatprep.mubr.bf16.mxu0 %v4083
      %4136 = vmatmul.mubr.bf16.gmra.mrb[0].mxu0 %v4082
      %v4137 = vpop.f32.mrb[0].mxu0
      %v4138 = vadd.f32 %v4052, %v4137
      %v4139 = vpop.f32.mrb[0].mxu0
      %v4140 = vpop.f32.mrb[0].mxu0
      %v4141 = vadd.f32 %v4057, %v4140
      %v4142 = vpop.f32.mrb[0].mxu0
      %4143 = vdwg.mxu0
      %4144 = vmatprep.subr.bf16.mxu0 0
      %4145 = vmatpush1.bf16.msra.mxu0 %v4025
      %4146 = vmatprep.subr.bf16.mxu0 0
      %4147 = vmatpush1.bf16.msra.mxu0 %v4026
      %4148 = vmatprep.subr.bf16.mxu0 0
      %4149 = vmatpush1.bf16.msra.mxu0 0
      %4150 = vmatprep.subr.bf16.mxu0 0
      %4151 = vmatpush1.bf16.msra.mxu0 0
      %4152 = vmatprep.subr.bf16.mxu0 0
      %4153 = vmatpush1.bf16.msra.mxu0 0
      %4154 = vmatprep.subr.bf16.mxu0 0
      %4155 = vmatpush1.bf16.msra.mxu0 0
      %4156 = vmatprep.subr.bf16.mxu0 0
      %4157 = vmatpush1.bf16.msra.mxu0 0
      %4158 = vmatprep.subr.bf16.mxu0 0
      %4159 = vmatpush1.bf16.msra.mxu0 0
      %4160 = vmatprep.subr.bf16.mxu0 0
      %4161 = vmatpush1.bf16.msra.mxu0 0
      %4162 = vmatprep.subr.bf16.mxu0 0
      %4163 = vmatpush1.bf16.msra.mxu0 0
      %4164 = vmatprep.subr.bf16.mxu0 0
      %4165 = vmatpush1.bf16.msra.mxu0 0
      %4166 = vmatprep.subr.bf16.mxu0 0
      %4167 = vmatpush1.bf16.msra.mxu0 0
      %4168 = vmatprep.subr.bf16.mxu0 0
      %4169 = vmatpush1.bf16.msra.mxu0 0
      %4170 = vmatprep.subr.bf16.mxu0 0
      %4171 = vmatpush1.bf16.msra.mxu0 0
      %4172 = vmatprep.subr.bf16.mxu0 0
      %4173 = vmatpush1.bf16.msra.mxu0 0
      %4174 = vmatprep.subr.bf16.mxu0 0
      %4175 = vmatpush1.bf16.msra.mxu0 0
      %4176 = vmatprep.mubr.bf16.mxu0 0
      %4177 = vmatmul.mubr.bf16.gmra.mrb[0].mxu0 %v4090
      %v4178 = vpop.f32.mrb[0].mxu0
      %v4179 = vadd.f32 %v4130, %v4178
      %v4180 = vpop.f32.mrb[0].mxu0
      %v4181 = vpop.f32.mrb[0].mxu0
      %v4182 = vadd.f32 %v4133, %v4181
      %v4183 = vpop.f32.mrb[0].mxu0
      %4184 = vmatprep.mubr.bf16.mxu0 0
      %4185 = vmatmul.mubr.bf16.gmra.mrb[0].mxu0 %v4093
      %v4186 = vpop.f32.mrb[0].mxu0
      %v4187 = vadd.f32 %v4138, %v4186
      %v4188 = vpop.f32.mrb[0].mxu0
      %v4189 = vpop.f32.mrb[0].mxu0
      %v4190 = vadd.f32 %v4141, %v4189
      %v4191 = vpop.f32.mrb[0].mxu0
      %4192 = vdwg.mxu0
      %v4193 = vmax.f32 %v4179, 0.0
      %v4194 = vmax.f32 %v4182, 0.0
      %v4195 = vmax.f32 %v4187, 0.0
      %v4196 = vmax.f32 %v4190, 0.0
      %4197 = vrot.lane.b32.xlu0 %v4193, 16
      %v4198 = vpop.permute.xlu0 %4197
      %v4199 = vsel %vm3483, %v4198, %v4193
      %4200 = vrot.lane.b32.xlu0 %v4194, 16
      %v4201 = vpop.permute.xlu0 %4200
      %v4202 = vsel %vm3483, %v4201, %v4194
      %4203 = vrot.lane.b32.xlu0 %v4195, 16
      %v4204 = vpop.permute.xlu0 %4203
      %v4205 = vsel %vm3483, %v4204, %v4195
      %4206 = vrot.lane.b32.xlu0 %v4196, 16
      %v4207 = vpop.permute.xlu0 %4206
      %v4208 = vsel %vm3483, %v4207, %v4196
      %4209 = vrot.lane.b32.xlu0 %v4199, 16
      %v4210 = vpop.permute.xlu0 %4209
      %4211 = vrot.lane.b32.xlu0 %v4202, 16
      %v4212 = vpop.permute.xlu0 %4211
      %4213 = vrot.lane.b32.xlu0 %v4205, 16
      %v4214 = vpop.permute.xlu0 %4213
      %4215 = vrot.lane.b32.xlu0 %v4208, 16
      %v4216 = vpop.permute.xlu0 %4215
      %v4217 = vsel %vm3483, %v4210, %v4193
      %v4218 = vsel %vm3483, %v4212, %v4194
      %v4219 = vsel %vm3483, %v4214, %v4195
      %v4220 = vsel %vm3483, %v4216, %v4196
      %4225 = vrot.lane.b32.xlu0 %v4217, 117
      %v4226 = vpop.permute.xlu0 %4225
      %4227 = vrot.lane.b32.xlu0 %v4218, 117
      %v4228 = vpop.permute.xlu0 %4227
      %4229 = vrot.lane.b32.xlu0 %v4219, 117
      %v4230 = vpop.permute.xlu0 %4229
      %4231 = vrot.lane.b32.xlu0 %v4220, 117
      %v4232 = vpop.permute.xlu0 %4231
      %v4237 = vsel %vm3510, %v4226, 0.0
      %v4238 = vsel %vm3510, %v4228, 0.0
      %v4239 = vsel %vm3510, %v4230, 0.0
      %v4240 = vsel %vm3510, %v4232, 0.0
      %4241 = vrot.lane.b32.xlu0 %v4217, 116
      %v4242 = vpop.permute.xlu0 %4241
      %4243 = vrot.lane.b32.xlu0 %v4218, 116
      %v4244 = vpop.permute.xlu0 %4243
      %4245 = vrot.lane.b32.xlu0 %v4219, 116
      %v4246 = vpop.permute.xlu0 %4245
      %4247 = vrot.lane.b32.xlu0 %v4220, 116
      %v4248 = vpop.permute.xlu0 %4247
      %v4253 = vsel %vm3532, %v4242, 0.0
      %v4254 = vsel %vm3532, %v4244, 0.0
      %v4255 = vsel %vm3532, %v4246, 0.0
      %v4256 = vsel %vm3532, %v4248, 0.0
      %4257 = vrot.lane.b32.xlu0 %v4217, 115
      %v4258 = vpop.permute.xlu0 %4257
      %4259 = vrot.lane.b32.xlu0 %v4218, 115
      %v4260 = vpop.permute.xlu0 %4259
      %4261 = vrot.lane.b32.xlu0 %v4219, 115
      %v4262 = vpop.permute.xlu0 %4261
      %4263 = vrot.lane.b32.xlu0 %v4220, 115
      %v4264 = vpop.permute.xlu0 %4263
      %v4269 = vsel %vm3551, %v4258, 0.0
      %v4270 = vsel %vm3551, %v4260, 0.0
      %v4271 = vsel %vm3551, %v4262, 0.0
      %v4272 = vsel %vm3551, %v4264, 0.0
      %4273 = vrot.lane.b32.xlu0 %v4217, 113
      %v4274 = vpop.permute.xlu0 %4273
      %4275 = vrot.lane.b32.xlu0 %v4218, 113
      %v4276 = vpop.permute.xlu0 %4275
      %4277 = vrot.lane.b32.xlu0 %v4219, 113
      %v4278 = vpop.permute.xlu0 %4277
      %4279 = vrot.lane.b32.xlu0 %v4220, 113
      %v4280 = vpop.permute.xlu0 %4279
      %v4285 = vsel %vm3569, %v4274, 0.0
      %v4286 = vsel %vm3569, %v4276, 0.0
      %v4287 = vsel %vm3569, %v4278, 0.0
      %v4288 = vsel %vm3569, %v4280, 0.0
      %4289 = vrot.lane.b32.xlu0 %v4217, 127
      %v4290 = vpop.permute.xlu0 %4289
      %4291 = vrot.lane.b32.xlu0 %v4218, 127
      %v4292 = vpop.permute.xlu0 %4291
      %4293 = vrot.lane.b32.xlu0 %v4219, 127
      %v4294 = vpop.permute.xlu0 %4293
      %4295 = vrot.lane.b32.xlu0 %v4220, 127
      %v4296 = vpop.permute.xlu0 %4295
      %v4301 = vsel %vm3587, %v4290, 0.0
      %v4302 = vsel %vm3587, %v4292, 0.0
      %v4303 = vsel %vm3587, %v4294, 0.0
      %v4304 = vsel %vm3587, %v4296, 0.0
      %4305 = vrot.lane.b32.xlu0 %v4217, 125
      %v4306 = vpop.permute.xlu0 %4305
      %4307 = vrot.lane.b32.xlu0 %v4218, 125
      %v4308 = vpop.permute.xlu0 %4307
      %4309 = vrot.lane.b32.xlu0 %v4219, 125
      %v4310 = vpop.permute.xlu0 %4309
      %4311 = vrot.lane.b32.xlu0 %v4220, 125
      %v4312 = vpop.permute.xlu0 %4311
      %v4317 = vsel %vm3606, %v4306, 0.0
      %v4318 = vsel %vm3606, %v4308, 0.0
      %v4319 = vsel %vm3606, %v4310, 0.0
      %v4320 = vsel %vm3606, %v4312, 0.0
      %4321 = vrot.lane.b32.xlu0 %v4217, 124
      %v4322 = vpop.permute.xlu0 %4321
      %4323 = vrot.lane.b32.xlu0 %v4218, 124
      %v4324 = vpop.permute.xlu0 %4323
      %4325 = vrot.lane.b32.xlu0 %v4219, 124
      %v4326 = vpop.permute.xlu0 %4325
      %4327 = vrot.lane.b32.xlu0 %v4220, 124
      %v4328 = vpop.permute.xlu0 %4327
      %v4333 = vsel %vm3624, %v4322, 0.0
      %v4334 = vsel %vm3624, %v4324, 0.0
      %v4335 = vsel %vm3624, %v4326, 0.0
      %v4336 = vsel %vm3624, %v4328, 0.0
      %4337 = vrot.lane.b32.xlu0 %v4217, 123
      %v4338 = vpop.permute.xlu0 %4337
      %4339 = vrot.lane.b32.xlu0 %v4218, 123
      %v4340 = vpop.permute.xlu0 %4339
      %4341 = vrot.lane.b32.xlu0 %v4219, 123
      %v4342 = vpop.permute.xlu0 %4341
      %4343 = vrot.lane.b32.xlu0 %v4220, 123
      %v4344 = vpop.permute.xlu0 %4343
      %v4349 = vsel %vm3643, %v4338, 0.0
      %v4350 = vsel %vm3643, %v4340, 0.0
      %v4351 = vsel %vm3643, %v4342, 0.0
      %v4352 = vsel %vm3643, %v4344, 0.0
      %v4353 = vpack.c.bf16 %v4238, %v4237
      %v4354 = vpack.c.bf16 %v4240, %v4239
      %v4355 = vpack.c.bf16 %v4254, %v4253
      %v4356 = vpack.c.bf16 %v4256, %v4255
      %v4357 = vpack.c.bf16 %v4270, %v4269
      %v4358 = vpack.c.bf16 %v4272, %v4271
      %v4359 = vpack.c.bf16 %v4286, %v4285
      %v4360 = vpack.c.bf16 %v4288, %v4287
      %v4361 = vpack.c.bf16 %v4194, %v4193
      %v4362 = vpack.c.bf16 %v4196, %v4195
      %v4363 = vpack.c.bf16 %v4302, %v4301
      %v4364 = vpack.c.bf16 %v4304, %v4303
      %v4365 = vpack.c.bf16 %v4318, %v4317
      %v4366 = vpack.c.bf16 %v4320, %v4319
      %v4367 = vpack.c.bf16 %v4334, %v4333
      %v4368 = vpack.c.bf16 %v4336, %v4335
      %v4369 = vpack.c.bf16 %v4350, %v4349
      %v4370 = vpack.c.bf16 %v4352, %v4351
      %v4371 = vld [vmem:[%s61] sm:$0xff]
      %v4372 = vld [vmem:[%s61 + $0x8] sm:$0xf]
      %v4373 = vld [vmem:[%s61 + $0xc] sm:$0xff]
      %v4374 = vld [vmem:[%s61 + $0x14] sm:$0xf]
      %v4375 = vld [vmem:[%s61 + $0x18] sm:$0xff]
      %v4376 = vld [vmem:[%s61 + $0x20] sm:$0xf]
      %v4377 = vld [vmem:[%s61 + $0x24] sm:$0xff]
      %v4378 = vld [vmem:[%s61 + $0x2c] sm:$0xf]
      %v4379 = vld [vmem:[%s59] sm:$0xff]
      %v4380 = vld [vmem:[%s59 + $0x8] sm:$0xff]
      %v4381 = vld [vmem:[%s59 + $0x10] sm:$0xff]
      %v4382 = vld [vmem:[%s59 + $0x18] sm:$0xff]
      %4384 = vset.pattern.permute.xlu0 0
      %4385 = vperm.xlu0 %4384, %v4379
      %v4386 = vpop.permute.xlu0 %4385
      %4389 = vset.pattern.permute.xlu0 0
      %4390 = vperm.xlu0 %4389, %v4380
      %v4391 = vpop.permute.xlu0 %4390
      %4394 = vset.pattern.permute.xlu0 0
      %4395 = vperm.xlu0 %4394, %v4381
      %v4396 = vpop.permute.xlu0 %4395
      %4399 = vset.pattern.permute.xlu0 0
      %4400 = vperm.xlu0 %4399, %v4382
      %v4401 = vpop.permute.xlu0 %4400
      %v4411 = vunpack.c.l.b16 %v4371
      %v4412 = vunpack.c.h.b16 %v4371
      %v4413 = vunpack.c.l.b16 %v4372
      %v4414 = vunpack.c.l.b16 %v4373
      %v4415 = vunpack.c.h.b16 %v4373
      %v4416 = vunpack.c.l.b16 %v4374
      %v4417 = vunpack.c.l.b16 %v4375
      %v4418 = vunpack.c.h.b16 %v4375
      %v4419 = vunpack.c.l.b16 %v4376
      %v4420 = vunpack.c.l.b16 %v4377
      %v4421 = vunpack.c.h.b16 %v4377
      %v4422 = vunpack.c.l.b16 %v4378
      %v4423 = vpack.c.b16 %v4414, %v4411
      %v4424 = vpack.c.b16 %v4415, %v4412
      %v4425 = vpack.c.b16 %v4416, %v4413
      %v4426 = vpack.c.b16 %v4420, %v4417
      %v4427 = vpack.c.b16 %v4421, %v4418
      %v4428 = vpack.c.b16 %v4422, %v4419
      %v4434 = vsel %vm3740, %v4425, 0
      %v4437 = vsel %vm3740, %v4428, 0
      %4439 = vmatprep.subr.bf16.mxu0 0
      %4440 = vmatpush1.bf16.msra.mxu0 %v4353
      %4441 = vmatprep.subr.bf16.mxu0 0
      %4442 = vmatpush1.bf16.msra.mxu0 %v4354
      %4443 = vmatprep.subr.bf16.mxu0 0
      %4444 = vmatpush1.bf16.msra.mxu0 %v4355
      %4445 = vmatprep.subr.bf16.mxu0 0
      %4446 = vmatpush1.bf16.msra.mxu0 %v4356
      %4447 = vmatprep.subr.bf16.mxu0 0
      %4448 = vmatpush1.bf16.msra.mxu0 %v4357
      %4449 = vmatprep.subr.bf16.mxu0 0
      %4450 = vmatpush1.bf16.msra.mxu0 %v4358
      %4451 = vmatprep.subr.bf16.mxu0 0
      %4452 = vmatpush1.bf16.msra.mxu0 %v4359
      %4453 = vmatprep.subr.bf16.mxu0 0
      %4454 = vmatpush1.bf16.msra.mxu0 %v4360
      %4455 = vmatprep.subr.bf16.mxu0 0
      %4456 = vmatpush1.bf16.msra.mxu0 %v4361
      %4457 = vmatprep.subr.bf16.mxu0 0
      %4458 = vmatpush1.bf16.msra.mxu0 %v4362
      %4459 = vmatprep.subr.bf16.mxu0 0
      %4460 = vmatpush1.bf16.msra.mxu0 %v4363
      %4461 = vmatprep.subr.bf16.mxu0 0
      %4462 = vmatpush1.bf16.msra.mxu0 %v4364
      %4463 = vmatprep.subr.bf16.mxu0 0
      %4464 = vmatpush1.bf16.msra.mxu0 %v4365
      %4465 = vmatprep.subr.bf16.mxu0 0
      %4466 = vmatpush1.bf16.msra.mxu0 %v4366
      %4467 = vmatprep.subr.bf16.mxu0 0
      %4468 = vmatpush1.bf16.msra.mxu0 %v4367
      %4469 = vmatprep.subr.bf16.mxu0 0
      %4470 = vmatpush1.bf16.msra.mxu0 %v4368
      %4471 = vmatprep.mubr.bf16.mxu0 %v4424
      %4472 = vmatmul.mubr.bf16.gmra.mrb[0].mxu0 %v4423
      %v4473 = vpop.f32.mrb[0].mxu0
      %v4474 = vadd.f32 %v4386, %v4473
      %v4475 = vpop.f32.mrb[0].mxu0
      %v4476 = vpop.f32.mrb[0].mxu0
      %v4477 = vadd.f32 %v4391, %v4476
      %v4478 = vpop.f32.mrb[0].mxu0
      %4479 = vmatprep.mubr.bf16.mxu0 %v4427
      %4480 = vmatmul.mubr.bf16.gmra.mrb[0].mxu0 %v4426
      %v4481 = vpop.f32.mrb[0].mxu0
      %v4482 = vadd.f32 %v4396, %v4481
      %v4483 = vpop.f32.mrb[0].mxu0
      %v4484 = vpop.f32.mrb[0].mxu0
      %v4485 = vadd.f32 %v4401, %v4484
      %v4486 = vpop.f32.mrb[0].mxu0
      %4487 = vdwg.mxu0
      %4488 = vmatprep.subr.bf16.mxu0 0
      %4489 = vmatpush1.bf16.msra.mxu0 %v4369
      %4490 = vmatprep.subr.bf16.mxu0 0
      %4491 = vmatpush1.bf16.msra.mxu0 %v4370
      %4492 = vmatprep.subr.bf16.mxu0 0
      %4493 = vmatpush1.bf16.msra.mxu0 0
      %4494 = vmatprep.subr.bf16.mxu0 0
      %4495 = vmatpush1.bf16.msra.mxu0 0
      %4496 = vmatprep.subr.bf16.mxu0 0
      %4497 = vmatpush1.bf16.msra.mxu0 0
      %4498 = vmatprep.subr.bf16.mxu0 0
      %4499 = vmatpush1.bf16.msra.mxu0 0
      %4500 = vmatprep.subr.bf16.mxu0 0
      %4501 = vmatpush1.bf16.msra.mxu0 0
      %4502 = vmatprep.subr.bf16.mxu0 0
      %4503 = vmatpush1.bf16.msra.mxu0 0
      %4504 = vmatprep.subr.bf16.mxu0 0
      %4505 = vmatpush1.bf16.msra.mxu0 0
      %4506 = vmatprep.subr.bf16.mxu0 0
      %4507 = vmatpush1.bf16.msra.mxu0 0
      %4508 = vmatprep.subr.bf16.mxu0 0
      %4509 = vmatpush1.bf16.msra.mxu0 0
      %4510 = vmatprep.subr.bf16.mxu0 0
      %4511 = vmatpush1.bf16.msra.mxu0 0
      %4512 = vmatprep.subr.bf16.mxu0 0
      %4513 = vmatpush1.bf16.msra.mxu0 0
      %4514 = vmatprep.subr.bf16.mxu0 0
      %4515 = vmatpush1.bf16.msra.mxu0 0
      %4516 = vmatprep.subr.bf16.mxu0 0
      %4517 = vmatpush1.bf16.msra.mxu0 0
      %4518 = vmatprep.subr.bf16.mxu0 0
      %4519 = vmatpush1.bf16.msra.mxu0 0
      %4520 = vmatprep.mubr.bf16.mxu0 0
      %4521 = vmatmul.mubr.bf16.gmra.mrb[0].mxu0 %v4434
      %v4522 = vpop.f32.mrb[0].mxu0
      %v4523 = vadd.f32 %v4474, %v4522
      %v4524 = vpop.f32.mrb[0].mxu0
      %v4525 = vpop.f32.mrb[0].mxu0
      %v4526 = vadd.f32 %v4477, %v4525
      %v4527 = vpop.f32.mrb[0].mxu0
      %4528 = vmatprep.mubr.bf16.mxu0 0
      %4529 = vmatmul.mubr.bf16.gmra.mrb[0].mxu0 %v4437
      %v4530 = vpop.f32.mrb[0].mxu0
      %v4531 = vadd.f32 %v4482, %v4530
      %v4532 = vpop.f32.mrb[0].mxu0
      %v4533 = vpop.f32.mrb[0].mxu0
      %v4534 = vadd.f32 %v4485, %v4533
      %v4535 = vpop.f32.mrb[0].mxu0
      %4536 = vdwg.mxu0
      %v4537 = vadd.f32 %v4523, %v3849
      %v4538 = vadd.f32 %v4526, %v3850
      %v4539 = vadd.f32 %v4531, %v3851
      %v4540 = vadd.f32 %v4534, %v3852
      %v4541 = vmax.f32 %v4537, 0.0
      %v4542 = vmax.f32 %v4538, 0.0
      %v4543 = vmax.f32 %v4539, 0.0
      %v4544 = vmax.f32 %v4540, 0.0
      %v4545 = vld [vmem:[%s87] sm:$0xff]
      %v4546 = vld [vmem:[%s87 + $0x8] sm:$0xff]
      %v4548 = vsel %vm2642, %v4541, 0
      %v4551 = vsel %vm2642, %v4542, 0
      %v4554 = vsel %vm2642, %v4543, 0
      %v4557 = vsel %vm2642, %v4544, 0
      %4559 = vmatprep.subr.mxu0 0.0
      %4560 = vmatpush1.msra.mxu0 %v4545
      %4561 = vmatprep.subr.mxu0 0.0
      %4562 = vmatpush1.msra.mxu0 %v4546
      %4563 = vmatprep.subr.mxu0 0.0
      %4564 = vmatpush1.msra.mxu0 0.0
      %4565 = vmatprep.subr.mxu0 0.0
      %4566 = vmatpush1.msra.mxu0 0.0
      %4567 = vmatprep.subr.mxu0 0.0
      %4568 = vmatpush1.msra.mxu0 0.0
      %4569 = vmatprep.subr.mxu0 0.0
      %4570 = vmatpush1.msra.mxu0 0.0
      %4571 = vmatprep.subr.mxu0 0.0
      %4572 = vmatpush1.msra.mxu0 0.0
      %4573 = vmatprep.subr.mxu0 0.0
      %4574 = vmatpush1.msra.mxu0 0.0
      %4575 = vmatprep.subr.mxu0 0.0
      %4576 = vmatpush1.msra.mxu0 0.0
      %4577 = vmatprep.subr.mxu0 0.0
      %4578 = vmatpush1.msra.mxu0 0.0
      %4579 = vmatprep.subr.mxu0 0.0
      %4580 = vmatpush1.msra.mxu0 0.0
      %4581 = vmatprep.subr.mxu0 0.0
      %4582 = vmatpush1.msra.mxu0 0.0
      %4583 = vmatprep.subr.mxu0 0.0
      %4584 = vmatpush1.msra.mxu0 0.0
      %4585 = vmatprep.subr.mxu0 0.0
      %4586 = vmatpush1.msra.mxu0 0.0
      %4587 = vmatprep.subr.mxu0 0.0
      %4588 = vmatpush1.msra.mxu0 0.0
      %4589 = vmatprep.subr.mxu0 0.0
      %4590 = vmatpush1.msra.mxu0 0.0
      %4591 = vmatprep.subr.mxu0 0.0
      %4592 = vmatpush1.msra.mxu0 0.0
      %4593 = vmatprep.subr.mxu0 0.0
      %4594 = vmatpush1.msra.mxu0 0.0
      %4595 = vmatprep.subr.mxu0 0.0
      %4596 = vmatpush1.msra.mxu0 0.0
      %4597 = vmatprep.subr.mxu0 0.0
      %4598 = vmatpush1.msra.mxu0 0.0
      %4599 = vmatprep.subr.mxu0 0.0
      %4600 = vmatpush1.msra.mxu0 0.0
      %4601 = vmatprep.subr.mxu0 0.0
      %4602 = vmatpush1.msra.mxu0 0.0
      %4603 = vmatprep.subr.mxu0 0.0
      %4604 = vmatpush1.msra.mxu0 0.0
      %4605 = vmatprep.subr.mxu0 0.0
      %4606 = vmatpush1.msra.mxu0 0.0
      %4607 = vmatprep.subr.mxu0 0.0
      %4608 = vmatpush1.msra.mxu0 0.0
      %4609 = vmatprep.subr.mxu0 0.0
      %4610 = vmatpush1.msra.mxu0 0.0
      %4611 = vmatprep.subr.mxu0 0.0
      %4612 = vmatpush1.msra.mxu0 0.0
      %4613 = vmatprep.subr.mxu0 0.0
      %4614 = vmatpush1.msra.mxu0 0.0
      %4615 = vmatprep.subr.mxu0 0.0
      %4616 = vmatpush1.msra.mxu0 0.0
      %4617 = vmatprep.subr.mxu0 0.0
      %4618 = vmatpush1.msra.mxu0 0.0
      %4619 = vmatprep.subr.mxu0 0.0
      %4620 = vmatpush1.msra.mxu0 0.0
      %4621 = vmatprep.subr.mxu0 0.0
      %4622 = vmatpush1.msra.mxu0 0.0
      %4623 = vmatprep.mubr.f32.mxu0 0.0
      %4624 = vmatmul.mubr.f32.gmra.mrb[0].mxu0 %v4548
      %v4625 = vpop.f32.mrb[0].mxu0
      %v4626 = vadd.f32 0.0, %v4625
      %v4627 = vpop.f32.mrb[0].mxu0
      %4628 = vmatprep.mubr.f32.mxu0 0.0
      %4629 = vmatmul.mubr.f32.gmra.mrb[0].mxu0 %v4551
      %v4630 = vpop.f32.mrb[0].mxu0
      %v4631 = vadd.f32 0.0, %v4630
      %v4632 = vpop.f32.mrb[0].mxu0
      %4633 = vmatprep.mubr.f32.mxu0 0.0
      %4634 = vmatmul.mubr.f32.gmra.mrb[0].mxu0 %v4554
      %v4635 = vpop.f32.mrb[0].mxu0
      %v4636 = vadd.f32 0.0, %v4635
      %v4637 = vpop.f32.mrb[0].mxu0
      %4638 = vmatprep.mubr.f32.mxu0 0.0
      %4639 = vmatmul.mubr.f32.gmra.mrb[0].mxu0 %v4557
      %v4640 = vpop.f32.mrb[0].mxu0
      %v4641 = vadd.f32 0.0, %v4640
      %v4642 = vpop.f32.mrb[0].mxu0
      %4643 = vdwg.mxu0
      %v4644 = vld [vmem:[%s73] sm:$0xf]
      %v4645 = vld [vmem:[%s73 + $0x4] sm:$0xf]
      %v4646 = vld [vmem:[%s73 + $0x8] sm:$0xf]
      %v4647 = vld [vmem:[%s73 + $0xc] sm:$0xf]
      %v4648 = vld [vmem:[%s73 + $0x10] sm:$0xf]
      %v4649 = vld [vmem:[%s73 + $0x14] sm:$0xf]
      %v4650 = vld [vmem:[%s73 + $0x18] sm:$0xf]
      %v4651 = vld [vmem:[%s73 + $0x1c] sm:$0xf]
      %v4652 = vpack.c.bf16 %v4631, %v4626
      %v4653 = vpack.c.bf16 %v4641, %v4636
      %v4654 = vld [vmem:[%s71] sm:$0xff]
      %v4655 = vld [vmem:[%s71 + $0x8] sm:$0xff]
      %v4656 = vld [vmem:[%s71 + $0x10] sm:$0xff]
      %v4657 = vld [vmem:[%s71 + $0x18] sm:$0xff]
      %v4658 = vld [vmem:[%s71 + $0x20] sm:$0xff]
      %v4659 = vld [vmem:[%s71 + $0x28] sm:$0xff]
      %v4660 = vld [vmem:[%s71 + $0x30] sm:$0xff]
      %v4661 = vld [vmem:[%s71 + $0x38] sm:$0xff]
      %4663 = vset.pattern.permute.xlu0 0
      %4664 = vperm.xlu0 %4663, %v4654
      %v4665 = vpop.permute.xlu0 %4664
      %4668 = vset.pattern.permute.xlu0 0
      %4669 = vperm.xlu0 %4668, %v4655
      %v4670 = vpop.permute.xlu0 %4669
      %4673 = vset.pattern.permute.xlu0 0
      %4674 = vperm.xlu0 %4673, %v4656
      %v4675 = vpop.permute.xlu0 %4674
      %4678 = vset.pattern.permute.xlu0 0
      %4679 = vperm.xlu0 %4678, %v4657
      %v4680 = vpop.permute.xlu0 %4679
      %4683 = vset.pattern.permute.xlu0 0
      %4684 = vperm.xlu0 %4683, %v4658
      %v4685 = vpop.permute.xlu0 %4684
      %4688 = vset.pattern.permute.xlu0 0
      %4689 = vperm.xlu0 %4688, %v4659
      %v4690 = vpop.permute.xlu0 %4689
      %4693 = vset.pattern.permute.xlu0 0
      %4694 = vperm.xlu0 %4693, %v4660
      %v4695 = vpop.permute.xlu0 %4694
      %4698 = vset.pattern.permute.xlu0 0
      %4699 = vperm.xlu0 %4698, %v4661
      %v4700 = vpop.permute.xlu0 %4699
      %v4710 = vunpack.c.l.b16 %v4644
      %v4711 = vunpack.c.l.b16 %v4645
      %v4712 = vunpack.c.l.b16 %v4646
      %v4713 = vunpack.c.l.b16 %v4647
      %v4714 = vunpack.c.l.b16 %v4648
      %v4715 = vunpack.c.l.b16 %v4649
      %v4716 = vunpack.c.l.b16 %v4650
      %v4717 = vunpack.c.l.b16 %v4651
      %v4718 = vpack.c.b16 %v4711, %v4710
      %v4719 = vpack.c.b16 %v4713, %v4712
      %v4720 = vpack.c.b16 %v4715, %v4714
      %v4721 = vpack.c.b16 %v4717, %v4716
      %v4723 = vsel %vm3740, %v4718, 0
      %v4726 = vsel %vm3740, %v4719, 0
      %v4729 = vsel %vm3740, %v4720, 0
      %v4732 = vsel %vm3740, %v4721, 0
      %4734 = vmatprep.subr.bf16.mxu0 0
      %4735 = vmatpush1.bf16.msra.mxu0 %v4652
      %4736 = vmatprep.subr.bf16.mxu0 0
      %4737 = vmatpush1.bf16.msra.mxu0 %v4653
      %4738 = vmatprep.subr.bf16.mxu0 0
      %4739 = vmatpush1.bf16.msra.mxu0 0
      %4740 = vmatprep.subr.bf16.mxu0 0
      %4741 = vmatpush1.bf16.msra.mxu0 0
      %4742 = vmatprep.subr.bf16.mxu0 0
      %4743 = vmatpush1.bf16.msra.mxu0 0
      %4744 = vmatprep.subr.bf16.mxu0 0
      %4745 = vmatpush1.bf16.msra.mxu0 0
      %4746 = vmatprep.subr.bf16.mxu0 0
      %4747 = vmatpush1.bf16.msra.mxu0 0
      %4748 = vmatprep.subr.bf16.mxu0 0
      %4749 = vmatpush1.bf16.msra.mxu0 0
      %4750 = vmatprep.subr.bf16.mxu0 0
      %4751 = vmatpush1.bf16.msra.mxu0 0
      %4752 = vmatprep.subr.bf16.mxu0 0
      %4753 = vmatpush1.bf16.msra.mxu0 0
      %4754 = vmatprep.subr.bf16.mxu0 0
      %4755 = vmatpush1.bf16.msra.mxu0 0
      %4756 = vmatprep.subr.bf16.mxu0 0
      %4757 = vmatpush1.bf16.msra.mxu0 0
      %4758 = vmatprep.subr.bf16.mxu0 0
      %4759 = vmatpush1.bf16.msra.mxu0 0
      %4760 = vmatprep.subr.bf16.mxu0 0
      %4761 = vmatpush1.bf16.msra.mxu0 0
      %4762 = vmatprep.subr.bf16.mxu0 0
      %4763 = vmatpush1.bf16.msra.mxu0 0
      %4764 = vmatprep.subr.bf16.mxu0 0
      %4765 = vmatpush1.bf16.msra.mxu0 0
      %4766 = vmatprep.mubr.bf16.mxu0 0
      %4767 = vmatmul.mubr.bf16.gmra.mrb[0].mxu0 %v4723
      %v4768 = vpop.f32.mrb[0].mxu0
      %v4769 = vadd.f32 %v4665, %v4768
      %v4770 = vpop.f32.mrb[0].mxu0
      %v4771 = vpop.f32.mrb[0].mxu0
      %v4772 = vadd.f32 %v4670, %v4771
      %v4773 = vpop.f32.mrb[0].mxu0
      %4774 = vmatprep.mubr.bf16.mxu0 0
      %4775 = vmatmul.mubr.bf16.gmra.mrb[0].mxu0 %v4726
      %v4776 = vpop.f32.mrb[0].mxu0
      %v4777 = vadd.f32 %v4675, %v4776
      %v4778 = vpop.f32.mrb[0].mxu0
      %v4779 = vpop.f32.mrb[0].mxu0
      %v4780 = vadd.f32 %v4680, %v4779
      %v4781 = vpop.f32.mrb[0].mxu0
      %4782 = vmatprep.mubr.bf16.mxu0 0
      %4783 = vmatmul.mubr.bf16.gmra.mrb[0].mxu0 %v4729
      %v4784 = vpop.f32.mrb[0].mxu0
      %v4785 = vadd.f32 %v4685, %v4784
      %v4786 = vpop.f32.mrb[0].mxu0
      %v4787 = vpop.f32.mrb[0].mxu0
      %v4788 = vadd.f32 %v4690, %v4787
      %v4789 = vpop.f32.mrb[0].mxu0
      %4790 = vmatprep.mubr.bf16.mxu0 0
      %4791 = vmatmul.mubr.bf16.gmra.mrb[0].mxu0 %v4732
      %v4792 = vpop.f32.mrb[0].mxu0
      %v4793 = vadd.f32 %v4695, %v4792
      %v4794 = vpop.f32.mrb[0].mxu0
      %v4795 = vpop.f32.mrb[0].mxu0
      %v4796 = vadd.f32 %v4700, %v4795
      %v4797 = vpop.f32.mrb[0].mxu0
      %4798 = vdwg.mxu0
      %4799 = vrot.lane.b32.xlu0 %v4541, 16
      %v4800 = vpop.permute.xlu0 %4799
      %v4801 = vsel %vm3483, %v4800, %v4541
      %4802 = vrot.lane.b32.xlu0 %v4542, 16
      %v4803 = vpop.permute.xlu0 %4802
      %v4804 = vsel %vm3483, %v4803, %v4542
      %4805 = vrot.lane.b32.xlu0 %v4543, 16
      %v4806 = vpop.permute.xlu0 %4805
      %v4807 = vsel %vm3483, %v4806, %v4543
      %4808 = vrot.lane.b32.xlu0 %v4544, 16
      %v4809 = vpop.permute.xlu0 %4808
      %v4810 = vsel %vm3483, %v4809, %v4544
      %4811 = vrot.lane.b32.xlu0 %v4801, 16
      %v4812 = vpop.permute.xlu0 %4811
      %4813 = vrot.lane.b32.xlu0 %v4804, 16
      %v4814 = vpop.permute.xlu0 %4813
      %4815 = vrot.lane.b32.xlu0 %v4807, 16
      %v4816 = vpop.permute.xlu0 %4815
      %4817 = vrot.lane.b32.xlu0 %v4810, 16
      %v4818 = vpop.permute.xlu0 %4817
      %v4819 = vsel %vm3483, %v4812, %v4541
      %v4820 = vsel %vm3483, %v4814, %v4542
      %v4821 = vsel %vm3483, %v4816, %v4543
      %v4822 = vsel %vm3483, %v4818, %v4544
      %4827 = vrot.lane.b32.xlu0 %v4819, 117
      %v4828 = vpop.permute.xlu0 %4827
      %4829 = vrot.lane.b32.xlu0 %v4820, 117
      %v4830 = vpop.permute.xlu0 %4829
      %4831 = vrot.lane.b32.xlu0 %v4821, 117
      %v4832 = vpop.permute.xlu0 %4831
      %4833 = vrot.lane.b32.xlu0 %v4822, 117
      %v4834 = vpop.permute.xlu0 %4833
      %v4839 = vsel %vm3510, %v4828, 0.0
      %v4840 = vsel %vm3510, %v4830, 0.0
      %v4841 = vsel %vm3510, %v4832, 0.0
      %v4842 = vsel %vm3510, %v4834, 0.0
      %4843 = vrot.lane.b32.xlu0 %v4819, 116
      %v4844 = vpop.permute.xlu0 %4843
      %4845 = vrot.lane.b32.xlu0 %v4820, 116
      %v4846 = vpop.permute.xlu0 %4845
      %4847 = vrot.lane.b32.xlu0 %v4821, 116
      %v4848 = vpop.permute.xlu0 %4847
      %4849 = vrot.lane.b32.xlu0 %v4822, 116
      %v4850 = vpop.permute.xlu0 %4849
      %v4855 = vsel %vm3532, %v4844, 0.0
      %v4856 = vsel %vm3532, %v4846, 0.0
      %v4857 = vsel %vm3532, %v4848, 0.0
      %v4858 = vsel %vm3532, %v4850, 0.0
      %4859 = vrot.lane.b32.xlu0 %v4819, 115
      %v4860 = vpop.permute.xlu0 %4859
      %4861 = vrot.lane.b32.xlu0 %v4820, 115
      %v4862 = vpop.permute.xlu0 %4861
      %4863 = vrot.lane.b32.xlu0 %v4821, 115
      %v4864 = vpop.permute.xlu0 %4863
      %4865 = vrot.lane.b32.xlu0 %v4822, 115
      %v4866 = vpop.permute.xlu0 %4865
      %v4871 = vsel %vm3551, %v4860, 0.0
      %v4872 = vsel %vm3551, %v4862, 0.0
      %v4873 = vsel %vm3551, %v4864, 0.0
      %v4874 = vsel %vm3551, %v4866, 0.0
      %4875 = vrot.lane.b32.xlu0 %v4819, 113
      %v4876 = vpop.permute.xlu0 %4875
      %4877 = vrot.lane.b32.xlu0 %v4820, 113
      %v4878 = vpop.permute.xlu0 %4877
      %4879 = vrot.lane.b32.xlu0 %v4821, 113
      %v4880 = vpop.permute.xlu0 %4879
      %4881 = vrot.lane.b32.xlu0 %v4822, 113
      %v4882 = vpop.permute.xlu0 %4881
      %v4887 = vsel %vm3569, %v4876, 0.0
      %v4888 = vsel %vm3569, %v4878, 0.0
      %v4889 = vsel %vm3569, %v4880, 0.0
      %v4890 = vsel %vm3569, %v4882, 0.0
      %4891 = vrot.lane.b32.xlu0 %v4819, 127
      %v4892 = vpop.permute.xlu0 %4891
      %4893 = vrot.lane.b32.xlu0 %v4820, 127
      %v4894 = vpop.permute.xlu0 %4893
      %4895 = vrot.lane.b32.xlu0 %v4821, 127
      %v4896 = vpop.permute.xlu0 %4895
      %4897 = vrot.lane.b32.xlu0 %v4822, 127
      %v4898 = vpop.permute.xlu0 %4897
      %v4903 = vsel %vm3587, %v4892, 0.0
      %v4904 = vsel %vm3587, %v4894, 0.0
      %v4905 = vsel %vm3587, %v4896, 0.0
      %v4906 = vsel %vm3587, %v4898, 0.0
      %4907 = vrot.lane.b32.xlu0 %v4819, 125
      %v4908 = vpop.permute.xlu0 %4907
      %4909 = vrot.lane.b32.xlu0 %v4820, 125
      %v4910 = vpop.permute.xlu0 %4909
      %4911 = vrot.lane.b32.xlu0 %v4821, 125
      %v4912 = vpop.permute.xlu0 %4911
      %4913 = vrot.lane.b32.xlu0 %v4822, 125
      %v4914 = vpop.permute.xlu0 %4913
      %v4919 = vsel %vm3606, %v4908, 0.0
      %v4920 = vsel %vm3606, %v4910, 0.0
      %v4921 = vsel %vm3606, %v4912, 0.0
      %v4922 = vsel %vm3606, %v4914, 0.0
      %4923 = vrot.lane.b32.xlu0 %v4819, 124
      %v4924 = vpop.permute.xlu0 %4923
      %4925 = vrot.lane.b32.xlu0 %v4820, 124
      %v4926 = vpop.permute.xlu0 %4925
      %4927 = vrot.lane.b32.xlu0 %v4821, 124
      %v4928 = vpop.permute.xlu0 %4927
      %4929 = vrot.lane.b32.xlu0 %v4822, 124
      %v4930 = vpop.permute.xlu0 %4929
      %v4935 = vsel %vm3624, %v4924, 0.0
      %v4936 = vsel %vm3624, %v4926, 0.0
      %v4937 = vsel %vm3624, %v4928, 0.0
      %v4938 = vsel %vm3624, %v4930, 0.0
      %4939 = vrot.lane.b32.xlu0 %v4819, 123
      %v4940 = vpop.permute.xlu0 %4939
      %4941 = vrot.lane.b32.xlu0 %v4820, 123
      %v4942 = vpop.permute.xlu0 %4941
      %4943 = vrot.lane.b32.xlu0 %v4821, 123
      %v4944 = vpop.permute.xlu0 %4943
      %4945 = vrot.lane.b32.xlu0 %v4822, 123
      %v4946 = vpop.permute.xlu0 %4945
      %v4951 = vsel %vm3643, %v4940, 0.0
      %v4952 = vsel %vm3643, %v4942, 0.0
      %v4953 = vsel %vm3643, %v4944, 0.0
      %v4954 = vsel %vm3643, %v4946, 0.0
      %v4955 = vpack.c.bf16 %v4840, %v4839
      %v4956 = vpack.c.bf16 %v4842, %v4841
      %v4957 = vpack.c.bf16 %v4856, %v4855
      %v4958 = vpack.c.bf16 %v4858, %v4857
      %v4959 = vpack.c.bf16 %v4872, %v4871
      %v4960 = vpack.c.bf16 %v4874, %v4873
      %v4961 = vpack.c.bf16 %v4888, %v4887
      %v4962 = vpack.c.bf16 %v4890, %v4889
      %v4963 = vpack.c.bf16 %v4542, %v4541
      %v4964 = vpack.c.bf16 %v4544, %v4543
      %v4965 = vpack.c.bf16 %v4904, %v4903
      %v4966 = vpack.c.bf16 %v4906, %v4905
      %v4967 = vpack.c.bf16 %v4920, %v4919
      %v4968 = vpack.c.bf16 %v4922, %v4921
      %v4969 = vpack.c.bf16 %v4936, %v4935
      %v4970 = vpack.c.bf16 %v4938, %v4937
      %v4971 = vpack.c.bf16 %v4952, %v4951
      %v4972 = vpack.c.bf16 %v4954, %v4953
      %v4973 = vld [vmem:[%s65] sm:$0xff]
      %v4974 = vld [vmem:[%s65 + $0x8] sm:$0xf]
      %v4975 = vld [vmem:[%s65 + $0xc] sm:$0xff]
      %v4976 = vld [vmem:[%s65 + $0x14] sm:$0xf]
      %v4977 = vld [vmem:[%s65 + $0x18] sm:$0xff]
      %v4978 = vld [vmem:[%s65 + $0x20] sm:$0xf]
      %v4979 = vld [vmem:[%s65 + $0x24] sm:$0xff]
      %v4980 = vld [vmem:[%s65 + $0x2c] sm:$0xf]
      %v4981 = vld [vmem:[%s65 + $0x30] sm:$0xff]
      %v4982 = vld [vmem:[%s65 + $0x38] sm:$0xf]
      %v4983 = vld [vmem:[%s65 + $0x3c] sm:$0xff]
      %v4984 = vld [vmem:[%s65 + $0x44] sm:$0xf]
      %v4985 = vld [vmem:[%s65 + $0x48] sm:$0xff]
      %v4986 = vld [vmem:[%s65 + $0x50] sm:$0xf]
      %v4987 = vld [vmem:[%s65 + $0x54] sm:$0xff]
      %v4988 = vld [vmem:[%s65 + $0x5c] sm:$0xf]
      %v5005 = vunpack.c.l.b16 %v4973
      %v5006 = vunpack.c.h.b16 %v4973
      %v5007 = vunpack.c.l.b16 %v4974
      %v5008 = vunpack.c.l.b16 %v4975
      %v5009 = vunpack.c.h.b16 %v4975
      %v5010 = vunpack.c.l.b16 %v4976
      %v5011 = vunpack.c.l.b16 %v4977
      %v5012 = vunpack.c.h.b16 %v4977
      %v5013 = vunpack.c.l.b16 %v4978
      %v5014 = vunpack.c.l.b16 %v4979
      %v5015 = vunpack.c.h.b16 %v4979
      %v5016 = vunpack.c.l.b16 %v4980
      %v5017 = vunpack.c.l.b16 %v4981
      %v5018 = vunpack.c.h.b16 %v4981
      %v5019 = vunpack.c.l.b16 %v4982
      %v5020 = vunpack.c.l.b16 %v4983
      %v5021 = vunpack.c.h.b16 %v4983
      %v5022 = vunpack.c.l.b16 %v4984
      %v5023 = vunpack.c.l.b16 %v4985
      %v5024 = vunpack.c.h.b16 %v4985
      %v5025 = vunpack.c.l.b16 %v4986
      %v5026 = vunpack.c.l.b16 %v4987
      %v5027 = vunpack.c.h.b16 %v4987
      %v5028 = vunpack.c.l.b16 %v4988
      %v5029 = vpack.c.b16 %v5008, %v5005
      %v5030 = vpack.c.b16 %v5009, %v5006
      %v5031 = vpack.c.b16 %v5010, %v5007
      %v5032 = vpack.c.b16 %v5014, %v5011
      %v5033 = vpack.c.b16 %v5015, %v5012
      %v5034 = vpack.c.b16 %v5016, %v5013
      %v5035 = vpack.c.b16 %v5020, %v5017
      %v5036 = vpack.c.b16 %v5021, %v5018
      %v5037 = vpack.c.b16 %v5022, %v5019
      %v5038 = vpack.c.b16 %v5026, %v5023
      %v5039 = vpack.c.b16 %v5027, %v5024
      %v5040 = vpack.c.b16 %v5028, %v5025
      %v5050 = vsel %vm3740, %v5031, 0
      %v5053 = vsel %vm3740, %v5034, 0
      %v5056 = vsel %vm3740, %v5037, 0
      %v5059 = vsel %vm3740, %v5040, 0
      %5061 = vmatprep.subr.bf16.mxu0 0
      %5062 = vmatpush1.bf16.msra.mxu0 %v4955
      %5063 = vmatprep.subr.bf16.mxu0 0
      %5064 = vmatpush1.bf16.msra.mxu0 %v4956
      %5065 = vmatprep.subr.bf16.mxu0 0
      %5066 = vmatpush1.bf16.msra.mxu0 %v4957
      %5067 = vmatprep.subr.bf16.mxu0 0
      %5068 = vmatpush1.bf16.msra.mxu0 %v4958
      %5069 = vmatprep.subr.bf16.mxu0 0
      %5070 = vmatpush1.bf16.msra.mxu0 %v4959
      %5071 = vmatprep.subr.bf16.mxu0 0
      %5072 = vmatpush1.bf16.msra.mxu0 %v4960
      %5073 = vmatprep.subr.bf16.mxu0 0
      %5074 = vmatpush1.bf16.msra.mxu0 %v4961
      %5075 = vmatprep.subr.bf16.mxu0 0
      %5076 = vmatpush1.bf16.msra.mxu0 %v4962
      %5077 = vmatprep.subr.bf16.mxu0 0
      %5078 = vmatpush1.bf16.msra.mxu0 %v4963
      %5079 = vmatprep.subr.bf16.mxu0 0
      %5080 = vmatpush1.bf16.msra.mxu0 %v4964
      %5081 = vmatprep.subr.bf16.mxu0 0
      %5082 = vmatpush1.bf16.msra.mxu0 %v4965
      %5083 = vmatprep.subr.bf16.mxu0 0
      %5084 = vmatpush1.bf16.msra.mxu0 %v4966
      %5085 = vmatprep.subr.bf16.mxu0 0
      %5086 = vmatpush1.bf16.msra.mxu0 %v4967
      %5087 = vmatprep.subr.bf16.mxu0 0
      %5088 = vmatpush1.bf16.msra.mxu0 %v4968
      %5089 = vmatprep.subr.bf16.mxu0 0
      %5090 = vmatpush1.bf16.msra.mxu0 %v4969
      %5091 = vmatprep.subr.bf16.mxu0 0
      %5092 = vmatpush1.bf16.msra.mxu0 %v4970
      %5093 = vmatprep.mubr.bf16.mxu0 %v5030
      %5094 = vmatmul.mubr.bf16.gmra.mrb[0].mxu0 %v5029
      %v5095 = vpop.f32.mrb[0].mxu0
      %v5096 = vadd.f32 0.0, %v5095
      %v5097 = vpop.f32.mrb[0].mxu0
      %v5098 = vpop.f32.mrb[0].mxu0
      %v5099 = vadd.f32 0.0, %v5098
      %v5100 = vpop.f32.mrb[0].mxu0
      %5101 = vmatprep.mubr.bf16.mxu0 %v5033
      %5102 = vmatmul.mubr.bf16.gmra.mrb[0].mxu0 %v5032
      %v5103 = vpop.f32.mrb[0].mxu0
      %v5104 = vadd.f32 0.0, %v5103
      %v5105 = vpop.f32.mrb[0].mxu0
      %v5106 = vpop.f32.mrb[0].mxu0
      %v5107 = vadd.f32 0.0, %v5106
      %v5108 = vpop.f32.mrb[0].mxu0
      %5109 = vmatprep.mubr.bf16.mxu0 %v5036
      %5110 = vmatmul.mubr.bf16.gmra.mrb[0].mxu0 %v5035
      %v5111 = vpop.f32.mrb[0].mxu0
      %v5112 = vadd.f32 0.0, %v5111
      %v5113 = vpop.f32.mrb[0].mxu0
      %v5114 = vpop.f32.mrb[0].mxu0
      %v5115 = vadd.f32 0.0, %v5114
      %v5116 = vpop.f32.mrb[0].mxu0
      %5117 = vmatprep.mubr.bf16.mxu0 %v5039
      %5118 = vmatmul.mubr.bf16.gmra.mrb[0].mxu0 %v5038
      %v5119 = vpop.f32.mrb[0].mxu0
      %v5120 = vadd.f32 0.0, %v5119
      %v5121 = vpop.f32.mrb[0].mxu0
      %v5122 = vpop.f32.mrb[0].mxu0
      %v5123 = vadd.f32 0.0, %v5122
      %v5124 = vpop.f32.mrb[0].mxu0
      %5125 = vdwg.mxu0
      %5126 = vmatprep.subr.bf16.mxu0 0
      %5127 = vmatpush1.bf16.msra.mxu0 %v4971
      %5128 = vmatprep.subr.bf16.mxu0 0
      %5129 = vmatpush1.bf16.msra.mxu0 %v4972
      %5130 = vmatprep.subr.bf16.mxu0 0
      %5131 = vmatpush1.bf16.msra.mxu0 0
      %5132 = vmatprep.subr.bf16.mxu0 0
      %5133 = vmatpush1.bf16.msra.mxu0 0
      %5134 = vmatprep.subr.bf16.mxu0 0
      %5135 = vmatpush1.bf16.msra.mxu0 0
      %5136 = vmatprep.subr.bf16.mxu0 0
      %5137 = vmatpush1.bf16.msra.mxu0 0
      %5138 = vmatprep.subr.bf16.mxu0 0
      %5139 = vmatpush1.bf16.msra.mxu0 0
      %5140 = vmatprep.subr.bf16.mxu0 0
      %5141 = vmatpush1.bf16.msra.mxu0 0
      %5142 = vmatprep.subr.bf16.mxu0 0
      %5143 = vmatpush1.bf16.msra.mxu0 0
      %5144 = vmatprep.subr.bf16.mxu0 0
      %5145 = vmatpush1.bf16.msra.mxu0 0
      %5146 = vmatprep.subr.bf16.mxu0 0
      %5147 = vmatpush1.bf16.msra.mxu0 0
      %5148 = vmatprep.subr.bf16.mxu0 0
      %5149 = vmatpush1.bf16.msra.mxu0 0
      %5150 = vmatprep.subr.bf16.mxu0 0
      %5151 = vmatpush1.bf16.msra.mxu0 0
      %5152 = vmatprep.subr.bf16.mxu0 0
      %5153 = vmatpush1.bf16.msra.mxu0 0
      %5154 = vmatprep.subr.bf16.mxu0 0
      %5155 = vmatpush1.bf16.msra.mxu0 0
      %5156 = vmatprep.subr.bf16.mxu0 0
      %5157 = vmatpush1.bf16.msra.mxu0 0
      %5158 = vmatprep.mubr.bf16.mxu0 0
      %5159 = vmatmul.mubr.bf16.gmra.mrb[0].mxu0 %v5050
      %v5160 = vpop.f32.mrb[0].mxu0
      %v5161 = vadd.f32 %v5096, %v5160
      %v5162 = vpop.f32.mrb[0].mxu0
      %v5163 = vpop.f32.mrb[0].mxu0
      %v5164 = vadd.f32 %v5099, %v5163
      %v5165 = vpop.f32.mrb[0].mxu0
      %5166 = vmatprep.mubr.bf16.mxu0 0
      %5167 = vmatmul.mubr.bf16.gmra.mrb[0].mxu0 %v5053
      %v5168 = vpop.f32.mrb[0].mxu0
      %v5169 = vadd.f32 %v5104, %v5168
      %v5170 = vpop.f32.mrb[0].mxu0
      %v5171 = vpop.f32.mrb[0].mxu0
      %v5172 = vadd.f32 %v5107, %v5171
      %v5173 = vpop.f32.mrb[0].mxu0
      %5174 = vmatprep.mubr.bf16.mxu0 0
      %5175 = vmatmul.mubr.bf16.gmra.mrb[0].mxu0 %v5056
      %v5176 = vpop.f32.mrb[0].mxu0
      %v5177 = vadd.f32 %v5112, %v5176
      %v5178 = vpop.f32.mrb[0].mxu0
      %v5179 = vpop.f32.mrb[0].mxu0
      %v5180 = vadd.f32 %v5115, %v5179
      %v5181 = vpop.f32.mrb[0].mxu0
      %5182 = vmatprep.mubr.bf16.mxu0 0
      %5183 = vmatmul.mubr.bf16.gmra.mrb[0].mxu0 %v5059
      %v5184 = vpop.f32.mrb[0].mxu0
      %v5185 = vadd.f32 %v5120, %v5184
      %v5186 = vpop.f32.mrb[0].mxu0
      %v5187 = vpop.f32.mrb[0].mxu0
      %v5188 = vadd.f32 %v5123, %v5187
      %v5189 = vpop.f32.mrb[0].mxu0
      %5190 = vdwg.mxu0
      %v5191 = vld [vmem:[%s63] sm:$0xff]
      %v5192 = vld [vmem:[%s63 + $0x8] sm:$0xff]
      %v5193 = vld [vmem:[%s63 + $0x10] sm:$0xff]
      %v5194 = vld [vmem:[%s63 + $0x18] sm:$0xff]
      %v5195 = vld [vmem:[%s63 + $0x20] sm:$0xff]
      %v5196 = vld [vmem:[%s63 + $0x28] sm:$0xff]
      %v5197 = vld [vmem:[%s63 + $0x30] sm:$0xff]
      %v5198 = vld [vmem:[%s63 + $0x38] sm:$0xff]
      %5200 = vset.pattern.permute.xlu0 0
      %5201 = vperm.xlu0 %5200, %v5191
      %v5202 = vpop.permute.xlu0 %5201
      %5205 = vset.pattern.permute.xlu0 0
      %5206 = vperm.xlu0 %5205, %v5192
      %v5207 = vpop.permute.xlu0 %5206
      %5210 = vset.pattern.permute.xlu0 0
      %5211 = vperm.xlu0 %5210, %v5193
      %v5212 = vpop.permute.xlu0 %5211
      %5215 = vset.pattern.permute.xlu0 0
      %5216 = vperm.xlu0 %5215, %v5194
      %v5217 = vpop.permute.xlu0 %5216
      %5220 = vset.pattern.permute.xlu0 0
      %5221 = vperm.xlu0 %5220, %v5195
      %v5222 = vpop.permute.xlu0 %5221
      %5225 = vset.pattern.permute.xlu0 0
      %5226 = vperm.xlu0 %5225, %v5196
      %v5227 = vpop.permute.xlu0 %5226
      %5230 = vset.pattern.permute.xlu0 0
      %5231 = vperm.xlu0 %5230, %v5197
      %v5232 = vpop.permute.xlu0 %5231
      %5235 = vset.pattern.permute.xlu0 0
      %5236 = vperm.xlu0 %5235, %v5198
      %v5237 = vpop.permute.xlu0 %5236
      %v5240 = vsel %vm2642, %v5161, 0
      %v5243 = vsel %vm2642, %v5164, 0
      %v5246 = vsel %vm2642, %v5169, 0
      %v5249 = vsel %vm2642, %v5172, 0
      %v5252 = vsel %vm2642, %v5177, 0
      %v5255 = vsel %vm2642, %v5180, 0
      %v5258 = vsel %vm2642, %v5185, 0
      %v5261 = vsel %vm2642, %v5188, 0
      %5263 = vmatprep.subr.mxu0 0.0
      %5264 = vmatpush1.msra.mxu0 %v4545
      %5265 = vmatprep.subr.mxu0 0.0
      %5266 = vmatpush1.msra.mxu0 %v4546
      %5267 = vmatprep.subr.mxu0 0.0
      %5268 = vmatpush1.msra.mxu0 0.0
      %5269 = vmatprep.subr.mxu0 0.0
      %5270 = vmatpush1.msra.mxu0 0.0
      %5271 = vmatprep.subr.mxu0 0.0
      %5272 = vmatpush1.msra.mxu0 0.0
      %5273 = vmatprep.subr.mxu0 0.0
      %5274 = vmatpush1.msra.mxu0 0.0
      %5275 = vmatprep.subr.mxu0 0.0
      %5276 = vmatpush1.msra.mxu0 0.0
      %5277 = vmatprep.subr.mxu0 0.0
      %5278 = vmatpush1.msra.mxu0 0.0
      %5279 = vmatprep.subr.mxu0 0.0
      %5280 = vmatpush1.msra.mxu0 0.0
      %5281 = vmatprep.subr.mxu0 0.0
      %5282 = vmatpush1.msra.mxu0 0.0
      %5283 = vmatprep.subr.mxu0 0.0
      %5284 = vmatpush1.msra.mxu0 0.0
      %5285 = vmatprep.subr.mxu0 0.0
      %5286 = vmatpush1.msra.mxu0 0.0
      %5287 = vmatprep.subr.mxu0 0.0
      %5288 = vmatpush1.msra.mxu0 0.0
      %5289 = vmatprep.subr.mxu0 0.0
      %5290 = vmatpush1.msra.mxu0 0.0
      %5291 = vmatprep.subr.mxu0 0.0
      %5292 = vmatpush1.msra.mxu0 0.0
      %5293 = vmatprep.subr.mxu0 0.0
      %5294 = vmatpush1.msra.mxu0 0.0
      %5295 = vmatprep.subr.mxu0 0.0
      %5296 = vmatpush1.msra.mxu0 0.0
      %5297 = vmatprep.subr.mxu0 0.0
      %5298 = vmatpush1.msra.mxu0 0.0
      %5299 = vmatprep.subr.mxu0 0.0
      %5300 = vmatpush1.msra.mxu0 0.0
      %5301 = vmatprep.subr.mxu0 0.0
      %5302 = vmatpush1.msra.mxu0 0.0
      %5303 = vmatprep.subr.mxu0 0.0
      %5304 = vmatpush1.msra.mxu0 0.0
      %5305 = vmatprep.subr.mxu0 0.0
      %5306 = vmatpush1.msra.mxu0 0.0
      %5307 = vmatprep.subr.mxu0 0.0
      %5308 = vmatpush1.msra.mxu0 0.0
      %5309 = vmatprep.subr.mxu0 0.0
      %5310 = vmatpush1.msra.mxu0 0.0
      %5311 = vmatprep.subr.mxu0 0.0
      %5312 = vmatpush1.msra.mxu0 0.0
      %5313 = vmatprep.subr.mxu0 0.0
      %5314 = vmatpush1.msra.mxu0 0.0
      %5315 = vmatprep.subr.mxu0 0.0
      %5316 = vmatpush1.msra.mxu0 0.0
      %5317 = vmatprep.subr.mxu0 0.0
      %5318 = vmatpush1.msra.mxu0 0.0
      %5319 = vmatprep.subr.mxu0 0.0
      %5320 = vmatpush1.msra.mxu0 0.0
      %5321 = vmatprep.subr.mxu0 0.0
      %5322 = vmatpush1.msra.mxu0 0.0
      %5323 = vmatprep.subr.mxu0 0.0
      %5324 = vmatpush1.msra.mxu0 0.0
      %5325 = vmatprep.subr.mxu0 0.0
      %5326 = vmatpush1.msra.mxu0 0.0
      %5327 = vmatprep.mubr.f32.mxu0 0.0
      %5328 = vmatmul.mubr.f32.gmra.mrb[0].mxu0 %v5240
      %v5329 = vpop.f32.mrb[0].mxu0
      %v5330 = vadd.f32 %v5202, %v5329
      %v5331 = vpop.f32.mrb[0].mxu0
      %5332 = vmatprep.mubr.f32.mxu0 0.0
      %5333 = vmatmul.mubr.f32.gmra.mrb[0].mxu0 %v5243
      %v5334 = vpop.f32.mrb[0].mxu0
      %v5335 = vadd.f32 %v5207, %v5334
      %v5336 = vpop.f32.mrb[0].mxu0
      %5337 = vmatprep.mubr.f32.mxu0 0.0
      %5338 = vmatmul.mubr.f32.gmra.mrb[0].mxu0 %v5246
      %v5339 = vpop.f32.mrb[0].mxu0
      %v5340 = vadd.f32 %v5212, %v5339
      %v5341 = vpop.f32.mrb[0].mxu0
      %5342 = vmatprep.mubr.f32.mxu0 0.0
      %5343 = vmatmul.mubr.f32.gmra.mrb[0].mxu0 %v5249
      %v5344 = vpop.f32.mrb[0].mxu0
      %v5345 = vadd.f32 %v5217, %v5344
      %v5346 = vpop.f32.mrb[0].mxu0
      %5347 = vmatprep.mubr.f32.mxu0 0.0
      %5348 = vmatmul.mubr.f32.gmra.mrb[0].mxu0 %v5252
      %v5349 = vpop.f32.mrb[0].mxu0
      %v5350 = vadd.f32 %v5222, %v5349
      %v5351 = vpop.f32.mrb[0].mxu0
      %5352 = vmatprep.mubr.f32.mxu0 0.0
      %5353 = vmatmul.mubr.f32.gmra.mrb[0].mxu0 %v5255
      %v5354 = vpop.f32.mrb[0].mxu0
      %v5355 = vadd.f32 %v5227, %v5354
      %v5356 = vpop.f32.mrb[0].mxu0
      %5357 = vmatprep.mubr.f32.mxu0 0.0
      %5358 = vmatmul.mubr.f32.gmra.mrb[0].mxu0 %v5258
      %v5359 = vpop.f32.mrb[0].mxu0
      %v5360 = vadd.f32 %v5232, %v5359
      %v5361 = vpop.f32.mrb[0].mxu0
      %5362 = vmatprep.mubr.f32.mxu0 0.0
      %5363 = vmatmul.mubr.f32.gmra.mrb[0].mxu0 %v5261
      %v5364 = vpop.f32.mrb[0].mxu0
      %v5365 = vadd.f32 %v5237, %v5364
      %v5366 = vpop.f32.mrb[0].mxu0
      %5367 = vdwg.mxu0
      %v5368 = vmax.f32 %v5330, 0.0
      %v5369 = vmax.f32 %v5335, 0.0
      %v5370 = vmax.f32 %v5340, 0.0
      %v5371 = vmax.f32 %v5345, 0.0
      %v5372 = vmax.f32 %v5350, 0.0
      %v5373 = vmax.f32 %v5355, 0.0
      %v5374 = vmax.f32 %v5360, 0.0
      %v5375 = vmax.f32 %v5365, 0.0
      %v5376 = vand.u32 %v1383, 1
      %vm5377 = vcmp.ge.s32.totalorder %v1383, 2
      %vm5378 = vcmp.lt.s32.totalorder %v1383, 2
      %vm5379 = vcmp.gt.s32.totalorder %v5376, 0
      %vm5380 = vcmp.lt.s32.totalorder %v5376, 1
      %vm5381 = vcmask 1047584
      %5382 = vrot.lane.b32.xlu0 %v5368, 4
      %v5383 = vpop.permute.xlu0 %5382
      %v5384 = vsel %vm5381, %v5383, %v5368
      %5385 = vrot.lane.b32.xlu0 %v5369, 4
      %v5386 = vpop.permute.xlu0 %5385
      %v5387 = vsel %vm5381, %v5386, %v5369
      %5388 = vrot.lane.b32.xlu0 %v5370, 4
      %v5389 = vpop.permute.xlu0 %5388
      %v5390 = vsel %vm5381, %v5389, %v5370
      %5391 = vrot.lane.b32.xlu0 %v5371, 4
      %v5392 = vpop.permute.xlu0 %5391
      %v5393 = vsel %vm5381, %v5392, %v5371
      %5394 = vrot.lane.b32.xlu0 %v5372, 4
      %v5395 = vpop.permute.xlu0 %5394
      %v5396 = vsel %vm5381, %v5395, %v5372
      %5397 = vrot.lane.b32.xlu0 %v5373, 4
      %v5398 = vpop.permute.xlu0 %5397
      %v5399 = vsel %vm5381, %v5398, %v5373
      %5400 = vrot.lane.b32.xlu0 %v5374, 4
      %v5401 = vpop.permute.xlu0 %5400
      %v5402 = vsel %vm5381, %v5401, %v5374
      %5403 = vrot.lane.b32.xlu0 %v5375, 4
      %v5404 = vpop.permute.xlu0 %5403
      %v5405 = vsel %vm5381, %v5404, %v5375
      %5406 = vrot.lane.b32.xlu0 %v5384, 4
      %v5407 = vpop.permute.xlu0 %5406
      %5408 = vrot.lane.b32.xlu0 %v5387, 4
      %v5409 = vpop.permute.xlu0 %5408
      %5410 = vrot.lane.b32.xlu0 %v5390, 4
      %v5411 = vpop.permute.xlu0 %5410
      %5412 = vrot.lane.b32.xlu0 %v5393, 4
      %v5413 = vpop.permute.xlu0 %5412
      %5414 = vrot.lane.b32.xlu0 %v5396, 4
      %v5415 = vpop.permute.xlu0 %5414
      %5416 = vrot.lane.b32.xlu0 %v5399, 4
      %v5417 = vpop.permute.xlu0 %5416
      %5418 = vrot.lane.b32.xlu0 %v5402, 4
      %v5419 = vpop.permute.xlu0 %5418
      %5420 = vrot.lane.b32.xlu0 %v5405, 4
      %v5421 = vpop.permute.xlu0 %5420
      %v5422 = vsel %vm5381, %v5407, %v5368
      %v5423 = vsel %vm5381, %v5409, %v5369
      %v5424 = vsel %vm5381, %v5411, %v5370
      %v5425 = vsel %vm5381, %v5413, %v5371
      %v5426 = vsel %vm5381, %v5415, %v5372
      %v5427 = vsel %vm5381, %v5417, %v5373
      %v5428 = vsel %vm5381, %v5419, %v5374
      %v5429 = vsel %vm5381, %v5421, %v5375
      %vm5430 = vmand %vm5377, %vm5379
      %v5431 = vsel %vm5430, 1, 0
      %vm5432 = vcmp.eq.s32.totalorder %v5431, 1
      %5441 = vrot.lane.b32.xlu0 %v5422, 127
      %v5442 = vpop.permute.xlu0 %5441
      %5443 = vrot.lane.b32.xlu0 %v5423, 127
      %v5444 = vpop.permute.xlu0 %5443
      %5445 = vrot.lane.b32.xlu0 %v5424, 127
      %v5446 = vpop.permute.xlu0 %5445
      %5447 = vrot.lane.b32.xlu0 %v5425, 127
      %v5448 = vpop.permute.xlu0 %5447
      %5449 = vrot.lane.b32.xlu0 %v5426, 127
      %v5450 = vpop.permute.xlu0 %5449
      %5451 = vrot.lane.b32.xlu0 %v5427, 127
      %v5452 = vpop.permute.xlu0 %5451
      %5453 = vrot.lane.b32.xlu0 %v5428, 127
      %v5454 = vpop.permute.xlu0 %5453
      %5455 = vrot.lane.b32.xlu0 %v5429, 127
      %v5456 = vpop.permute.xlu0 %5455
      %v5465 = vsel %vm5432, %v5442, 0.0
      %v5466 = vsel %vm5432, %v5444, 0.0
      %v5467 = vsel %vm5432, %v5446, 0.0
      %v5468 = vsel %vm5432, %v5448, 0.0
      %v5469 = vsel %vm5432, %v5450, 0.0
      %v5470 = vsel %vm5432, %v5452, 0.0
      %v5471 = vsel %vm5432, %v5454, 0.0
      %v5472 = vsel %vm5432, %v5456, 0.0
      %v5473 = vsel %vm5377, 1, 0
      %vm5474 = vcmp.eq.s32.totalorder %v5473, 1
      %5475 = vrot.lane.b32.xlu0 %v5422, 126
      %v5476 = vpop.permute.xlu0 %5475
      %5477 = vrot.lane.b32.xlu0 %v5423, 126
      %v5478 = vpop.permute.xlu0 %5477
      %5479 = vrot.lane.b32.xlu0 %v5424, 126
      %v5480 = vpop.permute.xlu0 %5479
      %5481 = vrot.lane.b32.xlu0 %v5425, 126
      %v5482 = vpop.permute.xlu0 %5481
      %5483 = vrot.lane.b32.xlu0 %v5426, 126
      %v5484 = vpop.permute.xlu0 %5483
      %5485 = vrot.lane.b32.xlu0 %v5427, 126
      %v5486 = vpop.permute.xlu0 %5485
      %5487 = vrot.lane.b32.xlu0 %v5428, 126
      %v5488 = vpop.permute.xlu0 %5487
      %5489 = vrot.lane.b32.xlu0 %v5429, 126
      %v5490 = vpop.permute.xlu0 %5489
      %v5499 = vsel %vm5474, %v5476, 0.0
      %v5500 = vsel %vm5474, %v5478, 0.0
      %v5501 = vsel %vm5474, %v5480, 0.0
      %v5502 = vsel %vm5474, %v5482, 0.0
      %v5503 = vsel %vm5474, %v5484, 0.0
      %v5504 = vsel %vm5474, %v5486, 0.0
      %v5505 = vsel %vm5474, %v5488, 0.0
      %v5506 = vsel %vm5474, %v5490, 0.0
      %vm5507 = vmand %vm5377, %vm5380
      %v5508 = vsel %vm5507, 1, 0
      %vm5509 = vcmp.eq.s32.totalorder %v5508, 1
      %5510 = vrot.lane.b32.xlu0 %v5422, 125
      %v5511 = vpop.permute.xlu0 %5510
      %5512 = vrot.lane.b32.xlu0 %v5423, 125
      %v5513 = vpop.permute.xlu0 %5512
      %5514 = vrot.lane.b32.xlu0 %v5424, 125
      %v5515 = vpop.permute.xlu0 %5514
      %5516 = vrot.lane.b32.xlu0 %v5425, 125
      %v5517 = vpop.permute.xlu0 %5516
      %5518 = vrot.lane.b32.xlu0 %v5426, 125
      %v5519 = vpop.permute.xlu0 %5518
      %5520 = vrot.lane.b32.xlu0 %v5427, 125
      %v5521 = vpop.permute.xlu0 %5520
      %5522 = vrot.lane.b32.xlu0 %v5428, 125
      %v5523 = vpop.permute.xlu0 %5522
      %5524 = vrot.lane.b32.xlu0 %v5429, 125
      %v5525 = vpop.permute.xlu0 %5524
      %v5534 = vsel %vm5509, %v5511, 0.0
      %v5535 = vsel %vm5509, %v5513, 0.0
      %v5536 = vsel %vm5509, %v5515, 0.0
      %v5537 = vsel %vm5509, %v5517, 0.0
      %v5538 = vsel %vm5509, %v5519, 0.0
      %v5539 = vsel %vm5509, %v5521, 0.0
      %v5540 = vsel %vm5509, %v5523, 0.0
      %v5541 = vsel %vm5509, %v5525, 0.0
      %v5542 = vsel %vm5379, 1, 0
      %vm5543 = vcmp.eq.s32.totalorder %v5542, 1
      %v5544 = vsel %vm5543, %v5511, 0.0
      %v5545 = vsel %vm5543, %v5513, 0.0
      %v5546 = vsel %vm5543, %v5515, 0.0
      %v5547 = vsel %vm5543, %v5517, 0.0
      %v5548 = vsel %vm5543, %v5519, 0.0
      %v5549 = vsel %vm5543, %v5521, 0.0
      %v5550 = vsel %vm5543, %v5523, 0.0
      %v5551 = vsel %vm5543, %v5525, 0.0
      %v5552 = vsel %vm5380, 1, 0
      %vm5553 = vcmp.eq.s32.totalorder %v5552, 1
      %v5554 = vsel %vm5553, %v5442, 0.0
      %v5555 = vsel %vm5553, %v5444, 0.0
      %v5556 = vsel %vm5553, %v5446, 0.0
      %v5557 = vsel %vm5553, %v5448, 0.0
      %v5558 = vsel %vm5553, %v5450, 0.0
      %v5559 = vsel %vm5553, %v5452, 0.0
      %v5560 = vsel %vm5553, %v5454, 0.0
      %v5561 = vsel %vm5553, %v5456, 0.0
      %vm5562 = vmand %vm5378, %vm5379
      %v5563 = vsel %vm5562, 1, 0
      %vm5564 = vcmp.eq.s32.totalorder %v5563, 1
      %v5565 = vsel %vm5564, %v5442, 0.0
      %v5566 = vsel %vm5564, %v5444, 0.0
      %v5567 = vsel %vm5564, %v5446, 0.0
      %v5568 = vsel %vm5564, %v5448, 0.0
      %v5569 = vsel %vm5564, %v5450, 0.0
      %v5570 = vsel %vm5564, %v5452, 0.0
      %v5571 = vsel %vm5564, %v5454, 0.0
      %v5572 = vsel %vm5564, %v5456, 0.0
      %v5573 = vsel %vm5378, 1, 0
      %vm5574 = vcmp.eq.s32.totalorder %v5573, 1
      %v5575 = vsel %vm5574, %v5476, 0.0
      %v5576 = vsel %vm5574, %v5478, 0.0
      %v5577 = vsel %vm5574, %v5480, 0.0
      %v5578 = vsel %vm5574, %v5482, 0.0
      %v5579 = vsel %vm5574, %v5484, 0.0
      %v5580 = vsel %vm5574, %v5486, 0.0
      %v5581 = vsel %vm5574, %v5488, 0.0
      %v5582 = vsel %vm5574, %v5490, 0.0
      %vm5583 = vmand %vm5378, %vm5380
      %v5584 = vsel %vm5583, 1, 0
      %vm5585 = vcmp.eq.s32.totalorder %v5584, 1
      %v5586 = vsel %vm5585, %v5511, 0.0
      %v5587 = vsel %vm5585, %v5513, 0.0
      %v5588 = vsel %vm5585, %v5515, 0.0
      %v5589 = vsel %vm5585, %v5517, 0.0
      %v5590 = vsel %vm5585, %v5519, 0.0
      %v5591 = vsel %vm5585, %v5521, 0.0
      %v5592 = vsel %vm5585, %v5523, 0.0
      %v5593 = vsel %vm5585, %v5525, 0.0
      %v5594 = vpack.c.bf16 %v5466, %v5465
      %v5595 = vpack.c.bf16 %v5468, %v5467
      %v5596 = vpack.c.bf16 %v5470, %v5469
      %v5597 = vpack.c.bf16 %v5472, %v5471
      %v5598 = vpack.c.bf16 %v5500, %v5499
      %v5599 = vpack.c.bf16 %v5502, %v5501
      %v5600 = vpack.c.bf16 %v5504, %v5503
      %v5601 = vpack.c.bf16 %v5506, %v5505
      %v5602 = vpack.c.bf16 %v5535, %v5534
      %v5603 = vpack.c.bf16 %v5537, %v5536
      %v5604 = vpack.c.bf16 %v5539, %v5538
      %v5605 = vpack.c.bf16 %v5541, %v5540
      %v5606 = vpack.c.bf16 %v5545, %v5544
      %v5607 = vpack.c.bf16 %v5547, %v5546
      %v5608 = vpack.c.bf16 %v5549, %v5548
      %v5609 = vpack.c.bf16 %v5551, %v5550
      %v5610 = vpack.c.bf16 %v5369, %v5368
      %v5611 = vpack.c.bf16 %v5371, %v5370
      %v5612 = vpack.c.bf16 %v5373, %v5372
      %v5613 = vpack.c.bf16 %v5375, %v5374
      %v5614 = vpack.c.bf16 %v5555, %v5554
      %v5615 = vpack.c.bf16 %v5557, %v5556
      %v5616 = vpack.c.bf16 %v5559, %v5558
      %v5617 = vpack.c.bf16 %v5561, %v5560
      %v5618 = vpack.c.bf16 %v5566, %v5565
      %v5619 = vpack.c.bf16 %v5568, %v5567
      %v5620 = vpack.c.bf16 %v5570, %v5569
      %v5621 = vpack.c.bf16 %v5572, %v5571
      %v5622 = vpack.c.bf16 %v5576, %v5575
      %v5623 = vpack.c.bf16 %v5578, %v5577
      %v5624 = vpack.c.bf16 %v5580, %v5579
      %v5625 = vpack.c.bf16 %v5582, %v5581
      %v5626 = vpack.c.bf16 %v5587, %v5586
      %v5627 = vpack.c.bf16 %v5589, %v5588
      %v5628 = vpack.c.bf16 %v5591, %v5590
      %v5629 = vpack.c.bf16 %v5593, %v5592
      %v5630 = vld [vmem:[%s69] sm:$0xff]
      %v5631 = vld [vmem:[%s69 + $0x8] sm:$0xff]
      %v5632 = vld [vmem:[%s69 + $0x10] sm:$0xf]
      %v5633 = vld [vmem:[%s69 + $0x14] sm:$0xff]
      %v5634 = vld [vmem:[%s69 + $0x1c] sm:$0xff]
      %v5635 = vld [vmem:[%s69 + $0x24] sm:$0xf]
      %v5636 = vld [vmem:[%s69 + $0x28] sm:$0xff]
      %v5637 = vld [vmem:[%s69 + $0x30] sm:$0xff]
      %v5638 = vld [vmem:[%s69 + $0x38] sm:$0xf]
      %v5639 = vld [vmem:[%s69 + $0x3c] sm:$0xff]
      %v5640 = vld [vmem:[%s69 + $0x44] sm:$0xff]
      %v5641 = vld [vmem:[%s69 + $0x4c] sm:$0xf]
      %v5642 = vld [vmem:[%s69 + $0x50] sm:$0xff]
      %v5643 = vld [vmem:[%s69 + $0x58] sm:$0xff]
      %v5644 = vld [vmem:[%s69 + $0x60] sm:$0xf]
      %v5645 = vld [vmem:[%s69 + $0x64] sm:$0xff]
      %v5646 = vld [vmem:[%s69 + $0x6c] sm:$0xff]
      %v5647 = vld [vmem:[%s69 + $0x74] sm:$0xf]
      %v5648 = vld [vmem:[%s69 + $0x78] sm:$0xff]
      %v5649 = vld [vmem:[%s69 + $0x80] sm:$0xff]
      %v5650 = vld [vmem:[%s69 + $0x88] sm:$0xf]
      %v5651 = vld [vmem:[%s69 + $0x8c] sm:$0xff]
      %v5652 = vld [vmem:[%s69 + $0x94] sm:$0xff]
      %v5653 = vld [vmem:[%s69 + $0x9c] sm:$0xf]
      %v5654 = vld [vmem:[%s67] sm:$0xff]
      %v5655 = vld [vmem:[%s67 + $0x8] sm:$0xff]
      %v5656 = vld [vmem:[%s67 + $0x10] sm:$0xff]
      %v5657 = vld [vmem:[%s67 + $0x18] sm:$0xff]
      %v5658 = vld [vmem:[%s67 + $0x20] sm:$0xff]
      %v5659 = vld [vmem:[%s67 + $0x28] sm:$0xff]
      %v5660 = vld [vmem:[%s67 + $0x30] sm:$0xff]
      %v5661 = vld [vmem:[%s67 + $0x38] sm:$0xff]
      %5663 = vset.pattern.permute.xlu0 0
      %5664 = vperm.xlu0 %5663, %v5654
      %v5665 = vpop.permute.xlu0 %5664
      %5668 = vset.pattern.permute.xlu0 0
      %5669 = vperm.xlu0 %5668, %v5655
      %v5670 = vpop.permute.xlu0 %5669
      %5673 = vset.pattern.permute.xlu0 0
      %5674 = vperm.xlu0 %5673, %v5656
      %v5675 = vpop.permute.xlu0 %5674
      %5678 = vset.pattern.permute.xlu0 0
      %5679 = vperm.xlu0 %5678, %v5657
      %v5680 = vpop.permute.xlu0 %5679
      %5683 = vset.pattern.permute.xlu0 0
      %5684 = vperm.xlu0 %5683, %v5658
      %v5685 = vpop.permute.xlu0 %5684
      %5688 = vset.pattern.permute.xlu0 0
      %5689 = vperm.xlu0 %5688, %v5659
      %v5690 = vpop.permute.xlu0 %5689
      %5693 = vset.pattern.permute.xlu0 0
      %5694 = vperm.xlu0 %5693, %v5660
      %v5695 = vpop.permute.xlu0 %5694
      %5698 = vset.pattern.permute.xlu0 0
      %5699 = vperm.xlu0 %5698, %v5661
      %v5700 = vpop.permute.xlu0 %5699
      %v5726 = vunpack.c.l.b16 %v5630
      %v5727 = vunpack.c.h.b16 %v5630
      %v5728 = vunpack.c.l.b16 %v5631
      %v5729 = vunpack.c.h.b16 %v5631
      %v5730 = vunpack.c.l.b16 %v5632
      %v5731 = vunpack.c.l.b16 %v5633
      %v5732 = vunpack.c.h.b16 %v5633
      %v5733 = vunpack.c.l.b16 %v5634
      %v5734 = vunpack.c.h.b16 %v5634
      %v5735 = vunpack.c.l.b16 %v5635
      %v5736 = vunpack.c.l.b16 %v5636
      %v5737 = vunpack.c.h.b16 %v5636
      %v5738 = vunpack.c.l.b16 %v5637
      %v5739 = vunpack.c.h.b16 %v5637
      %v5740 = vunpack.c.l.b16 %v5638
      %v5741 = vunpack.c.l.b16 %v5639
      %v5742 = vunpack.c.h.b16 %v5639
      %v5743 = vunpack.c.l.b16 %v5640
      %v5744 = vunpack.c.h.b16 %v5640
      %v5745 = vunpack.c.l.b16 %v5641
      %v5746 = vunpack.c.l.b16 %v5642
      %v5747 = vunpack.c.h.b16 %v5642
      %v5748 = vunpack.c.l.b16 %v5643
      %v5749 = vunpack.c.h.b16 %v5643
      %v5750 = vunpack.c.l.b16 %v5644
      %v5751 = vunpack.c.l.b16 %v5645
      %v5752 = vunpack.c.h.b16 %v5645
      %v5753 = vunpack.c.l.b16 %v5646
      %v5754 = vunpack.c.h.b16 %v5646
      %v5755 = vunpack.c.l.b16 %v5647
      %v5756 = vunpack.c.l.b16 %v5648
      %v5757 = vunpack.c.h.b16 %v5648
      %v5758 = vunpack.c.l.b16 %v5649
      %v5759 = vunpack.c.h.b16 %v5649
      %v5760 = vunpack.c.l.b16 %v5650
      %v5761 = vunpack.c.l.b16 %v5651
      %v5762 = vunpack.c.h.b16 %v5651
      %v5763 = vunpack.c.l.b16 %v5652
      %v5764 = vunpack.c.h.b16 %v5652
      %v5765 = vunpack.c.l.b16 %v5653
      %v5766 = vpack.c.b16 %v5731, %v5726
      %v5767 = vpack.c.b16 %v5732, %v5727
      %v5768 = vpack.c.b16 %v5733, %v5728
      %v5769 = vpack.c.b16 %v5734, %v5729
      %v5770 = vpack.c.b16 %v5735, %v5730
      %v5771 = vpack.c.b16 %v5741, %v5736
      %v5772 = vpack.c.b16 %v5742, %v5737
      %v5773 = vpack.c.b16 %v5743, %v5738
      %v5774 = vpack.c.b16 %v5744, %v5739
      %v5775 = vpack.c.b16 %v5745, %v5740
      %v5776 = vpack.c.b16 %v5751, %v5746
      %v5777 = vpack.c.b16 %v5752, %v5747
      %v5778 = vpack.c.b16 %v5753, %v5748
      %v5779 = vpack.c.b16 %v5754, %v5749
      %v5780 = vpack.c.b16 %v5755, %v5750
      %v5781 = vpack.c.b16 %v5761, %v5756
      %v5782 = vpack.c.b16 %v5762, %v5757
      %v5783 = vpack.c.b16 %v5763, %v5758
      %v5784 = vpack.c.b16 %v5764, %v5759
      %v5785 = vpack.c.b16 %v5765, %v5760
      %v5803 = vsel %vm3013, %v5770, 0
      %v5806 = vsel %vm3013, %v5775, 0
      %v5809 = vsel %vm3013, %v5780, 0
      %v5812 = vsel %vm3013, %v5785, 0
      %5814 = vmatprep.subr.bf16.mxu0 0
      %5815 = vmatpush1.bf16.msra.mxu0 %v5594
      %5816 = vmatprep.subr.bf16.mxu0 0
      %5817 = vmatpush1.bf16.msra.mxu0 %v5595
      %5818 = vmatprep.subr.bf16.mxu0 0
      %5819 = vmatpush1.bf16.msra.mxu0 %v5596
      %5820 = vmatprep.subr.bf16.mxu0 0
      %5821 = vmatpush1.bf16.msra.mxu0 %v5597
      %5822 = vmatprep.subr.bf16.mxu0 0
      %5823 = vmatpush1.bf16.msra.mxu0 %v5598
      %5824 = vmatprep.subr.bf16.mxu0 0
      %5825 = vmatpush1.bf16.msra.mxu0 %v5599
      %5826 = vmatprep.subr.bf16.mxu0 0
      %5827 = vmatpush1.bf16.msra.mxu0 %v5600
      %5828 = vmatprep.subr.bf16.mxu0 0
      %5829 = vmatpush1.bf16.msra.mxu0 %v5601
      %5830 = vmatprep.subr.bf16.mxu0 0
      %5831 = vmatpush1.bf16.msra.mxu0 %v5602
      %5832 = vmatprep.subr.bf16.mxu0 0
      %5833 = vmatpush1.bf16.msra.mxu0 %v5603
      %5834 = vmatprep.subr.bf16.mxu0 0
      %5835 = vmatpush1.bf16.msra.mxu0 %v5604
      %5836 = vmatprep.subr.bf16.mxu0 0
      %5837 = vmatpush1.bf16.msra.mxu0 %v5605
      %5838 = vmatprep.subr.bf16.mxu0 0
      %5839 = vmatpush1.bf16.msra.mxu0 %v5606
      %5840 = vmatprep.subr.bf16.mxu0 0
      %5841 = vmatpush1.bf16.msra.mxu0 %v5607
      %5842 = vmatprep.subr.bf16.mxu0 0
      %5843 = vmatpush1.bf16.msra.mxu0 %v5608
      %5844 = vmatprep.subr.bf16.mxu0 0
      %5845 = vmatpush1.bf16.msra.mxu0 %v5609
      %5846 = vmatprep.mubr.bf16.mxu0 %v5767
      %5847 = vmatmul.mubr.bf16.gmra.mrb[0].mxu0 %v5766
      %v5848 = vpop.f32.mrb[0].mxu0
      %v5849 = vadd.f32 %v5665, %v5848
      %v5850 = vpop.f32.mrb[0].mxu0
      %v5851 = vpop.f32.mrb[0].mxu0
      %v5852 = vadd.f32 %v5670, %v5851
      %v5853 = vpop.f32.mrb[0].mxu0
      %5854 = vmatprep.mubr.bf16.mxu0 %v5772
      %5855 = vmatmul.mubr.bf16.gmra.mrb[0].mxu0 %v5771
      %v5856 = vpop.f32.mrb[0].mxu0
      %v5857 = vadd.f32 %v5675, %v5856
      %v5858 = vpop.f32.mrb[0].mxu0
      %v5859 = vpop.f32.mrb[0].mxu0
      %v5860 = vadd.f32 %v5680, %v5859
      %v5861 = vpop.f32.mrb[0].mxu0
      %5862 = vmatprep.mubr.bf16.mxu0 %v5777
      %5863 = vmatmul.mubr.bf16.gmra.mrb[0].mxu0 %v5776
      %v5864 = vpop.f32.mrb[0].mxu0
      %v5865 = vadd.f32 %v5685, %v5864
      %v5866 = vpop.f32.mrb[0].mxu0
      %v5867 = vpop.f32.mrb[0].mxu0
      %v5868 = vadd.f32 %v5690, %v5867
      %v5869 = vpop.f32.mrb[0].mxu0
      %5870 = vmatprep.mubr.bf16.mxu0 %v5782
      %5871 = vmatmul.mubr.bf16.gmra.mrb[0].mxu0 %v5781
      %v5872 = vpop.f32.mrb[0].mxu0
      %v5873 = vadd.f32 %v5695, %v5872
      %v5874 = vpop.f32.mrb[0].mxu0
      %v5875 = vpop.f32.mrb[0].mxu0
      %v5876 = vadd.f32 %v5700, %v5875
      %v5877 = vpop.f32.mrb[0].mxu0
      %5878 = vdwg.mxu0
      %5879 = vmatprep.subr.bf16.mxu0 0
      %5880 = vmatpush1.bf16.msra.mxu0 %v5610
      %5881 = vmatprep.subr.bf16.mxu0 0
      %5882 = vmatpush1.bf16.msra.mxu0 %v5611
      %5883 = vmatprep.subr.bf16.mxu0 0
      %5884 = vmatpush1.bf16.msra.mxu0 %v5612
      %5885 = vmatprep.subr.bf16.mxu0 0
      %5886 = vmatpush1.bf16.msra.mxu0 %v5613
      %5887 = vmatprep.subr.bf16.mxu0 0
      %5888 = vmatpush1.bf16.msra.mxu0 %v5614
      %5889 = vmatprep.subr.bf16.mxu0 0
      %5890 = vmatpush1.bf16.msra.mxu0 %v5615
      %5891 = vmatprep.subr.bf16.mxu0 0
      %5892 = vmatpush1.bf16.msra.mxu0 %v5616
      %5893 = vmatprep.subr.bf16.mxu0 0
      %5894 = vmatpush1.bf16.msra.mxu0 %v5617
      %5895 = vmatprep.subr.bf16.mxu0 0
      %5896 = vmatpush1.bf16.msra.mxu0 %v5618
      %5897 = vmatprep.subr.bf16.mxu0 0
      %5898 = vmatpush1.bf16.msra.mxu0 %v5619
      %5899 = vmatprep.subr.bf16.mxu0 0
      %5900 = vmatpush1.bf16.msra.mxu0 %v5620
      %5901 = vmatprep.subr.bf16.mxu0 0
      %5902 = vmatpush1.bf16.msra.mxu0 %v5621
      %5903 = vmatprep.subr.bf16.mxu0 0
      %5904 = vmatpush1.bf16.msra.mxu0 %v5622
      %5905 = vmatprep.subr.bf16.mxu0 0
      %5906 = vmatpush1.bf16.msra.mxu0 %v5623
      %5907 = vmatprep.subr.bf16.mxu0 0
      %5908 = vmatpush1.bf16.msra.mxu0 %v5624
      %5909 = vmatprep.subr.bf16.mxu0 0
      %5910 = vmatpush1.bf16.msra.mxu0 %v5625
      %5911 = vmatprep.mubr.bf16.mxu0 %v5769
      %5912 = vmatmul.mubr.bf16.gmra.mrb[0].mxu0 %v5768
      %v5913 = vpop.f32.mrb[0].mxu0
      %v5914 = vadd.f32 %v5849, %v5913
      %v5915 = vpop.f32.mrb[0].mxu0
      %v5916 = vpop.f32.mrb[0].mxu0
      %v5917 = vadd.f32 %v5852, %v5916
      %v5918 = vpop.f32.mrb[0].mxu0
      %5919 = vmatprep.mubr.bf16.mxu0 %v5774
      %5920 = vmatmul.mubr.bf16.gmra.mrb[0].mxu0 %v5773
      %v5921 = vpop.f32.mrb[0].mxu0
      %v5922 = vadd.f32 %v5857, %v5921
      %v5923 = vpop.f32.mrb[0].mxu0
      %v5924 = vpop.f32.mrb[0].mxu0
      %v5925 = vadd.f32 %v5860, %v5924
      %v5926 = vpop.f32.mrb[0].mxu0
      %5927 = vmatprep.mubr.bf16.mxu0 %v5779
      %5928 = vmatmul.mubr.bf16.gmra.mrb[0].mxu0 %v5778
      %v5929 = vpop.f32.mrb[0].mxu0
      %v5930 = vadd.f32 %v5865, %v5929
      %v5931 = vpop.f32.mrb[0].mxu0
      %v5932 = vpop.f32.mrb[0].mxu0
      %v5933 = vadd.f32 %v5868, %v5932
      %v5934 = vpop.f32.mrb[0].mxu0
      %5935 = vmatprep.mubr.bf16.mxu0 %v5784
      %5936 = vmatmul.mubr.bf16.gmra.mrb[0].mxu0 %v5783
      %v5937 = vpop.f32.mrb[0].mxu0
      %v5938 = vadd.f32 %v5873, %v5937
      %v5939 = vpop.f32.mrb[0].mxu0
      %v5940 = vpop.f32.mrb[0].mxu0
      %v5941 = vadd.f32 %v5876, %v5940
      %v5942 = vpop.f32.mrb[0].mxu0
      %5943 = vdwg.mxu0
      %5944 = vmatprep.subr.bf16.mxu0 0
      %5945 = vmatpush1.bf16.msra.mxu0 %v5626
      %5946 = vmatprep.subr.bf16.mxu0 0
      %5947 = vmatpush1.bf16.msra.mxu0 %v5627
      %5948 = vmatprep.subr.bf16.mxu0 0
      %5949 = vmatpush1.bf16.msra.mxu0 %v5628
      %5950 = vmatprep.subr.bf16.mxu0 0
      %5951 = vmatpush1.bf16.msra.mxu0 %v5629
      %5952 = vmatprep.subr.bf16.mxu0 0
      %5953 = vmatpush1.bf16.msra.mxu0 0
      %5954 = vmatprep.subr.bf16.mxu0 0
      %5955 = vmatpush1.bf16.msra.mxu0 0
      %5956 = vmatprep.subr.bf16.mxu0 0
      %5957 = vmatpush1.bf16.msra.mxu0 0
      %5958 = vmatprep.subr.bf16.mxu0 0
      %5959 = vmatpush1.bf16.msra.mxu0 0
      %5960 = vmatprep.subr.bf16.mxu0 0
      %5961 = vmatpush1.bf16.msra.mxu0 0
      %5962 = vmatprep.subr.bf16.mxu0 0
      %5963 = vmatpush1.bf16.msra.mxu0 0
      %5964 = vmatprep.subr.bf16.mxu0 0
      %5965 = vmatpush1.bf16.msra.mxu0 0
      %5966 = vmatprep.subr.bf16.mxu0 0
      %5967 = vmatpush1.bf16.msra.mxu0 0
      %5968 = vmatprep.subr.bf16.mxu0 0
      %5969 = vmatpush1.bf16.msra.mxu0 0
      %5970 = vmatprep.subr.bf16.mxu0 0
      %5971 = vmatpush1.bf16.msra.mxu0 0
      %5972 = vmatprep.subr.bf16.mxu0 0
      %5973 = vmatpush1.bf16.msra.mxu0 0
      %5974 = vmatprep.subr.bf16.mxu0 0
      %5975 = vmatpush1.bf16.msra.mxu0 0
      %5976 = vmatprep.mubr.bf16.mxu0 0
      %5977 = vmatmul.mubr.bf16.gmra.mrb[0].mxu0 %v5803
      %v5978 = vpop.f32.mrb[0].mxu0
      %v5979 = vadd.f32 %v5914, %v5978
      %v5980 = vpop.f32.mrb[0].mxu0
      %v5981 = vpop.f32.mrb[0].mxu0
      %v5982 = vadd.f32 %v5917, %v5981
      %v5983 = vpop.f32.mrb[0].mxu0
      %5984 = vmatprep.mubr.bf16.mxu0 0
      %5985 = vmatmul.mubr.bf16.gmra.mrb[0].mxu0 %v5806
      %v5986 = vpop.f32.mrb[0].mxu0
      %v5987 = vadd.f32 %v5922, %v5986
      %v5988 = vpop.f32.mrb[0].mxu0
      %v5989 = vpop.f32.mrb[0].mxu0
      %v5990 = vadd.f32 %v5925, %v5989
      %v5991 = vpop.f32.mrb[0].mxu0
      %5992 = vmatprep.mubr.bf16.mxu0 0
      %5993 = vmatmul.mubr.bf16.gmra.mrb[0].mxu0 %v5809
      %v5994 = vpop.f32.mrb[0].mxu0
      %v5995 = vadd.f32 %v5930, %v5994
      %v5996 = vpop.f32.mrb[0].mxu0
      %v5997 = vpop.f32.mrb[0].mxu0
      %v5998 = vadd.f32 %v5933, %v5997
      %v5999 = vpop.f32.mrb[0].mxu0
      %6000 = vmatprep.mubr.bf16.mxu0 0
      %6001 = vmatmul.mubr.bf16.gmra.mrb[0].mxu0 %v5812
      %v6002 = vpop.f32.mrb[0].mxu0
      %v6003 = vadd.f32 %v5938, %v6002
      %v6004 = vpop.f32.mrb[0].mxu0
      %v6005 = vpop.f32.mrb[0].mxu0
      %v6006 = vadd.f32 %v5941, %v6005
      %v6007 = vpop.f32.mrb[0].mxu0
      %6008 = vdwg.mxu0
      %v6009 = vadd.f32 %v5979, %v4769
      %v6010 = vadd.f32 %v5982, %v4772
      %v6011 = vadd.f32 %v5987, %v4777
      %v6012 = vadd.f32 %v5990, %v4780
      %v6013 = vadd.f32 %v5995, %v4785
      %v6014 = vadd.f32 %v5998, %v4788
      %v6015 = vadd.f32 %v6003, %v4793
      %v6016 = vadd.f32 %v6006, %v4796
      %v6017 = vmax.f32 %v6009, 0.0
      %v6018 = vmax.f32 %v6010, 0.0
      %v6019 = vmax.f32 %v6011, 0.0
      %v6020 = vmax.f32 %v6012, 0.0
      %v6021 = vmax.f32 %v6013, 0.0
      %v6022 = vmax.f32 %v6014, 0.0
      %v6023 = vmax.f32 %v6015, 0.0
      %v6024 = vmax.f32 %v6016, 0.0
      %6025 = vrot.lane.b32.xlu0 %v6017, 4
      %v6026 = vpop.permute.xlu0 %6025
      %v6027 = vsel %vm5381, %v6026, %v6017
      %6028 = vrot.lane.b32.xlu0 %v6018, 4
      %v6029 = vpop.permute.xlu0 %6028
      %v6030 = vsel %vm5381, %v6029, %v6018
      %6031 = vrot.lane.b32.xlu0 %v6019, 4
      %v6032 = vpop.permute.xlu0 %6031
      %v6033 = vsel %vm5381, %v6032, %v6019
      %6034 = vrot.lane.b32.xlu0 %v6020, 4
      %v6035 = vpop.permute.xlu0 %6034
      %v6036 = vsel %vm5381, %v6035, %v6020
      %6037 = vrot.lane.b32.xlu0 %v6021, 4
      %v6038 = vpop.permute.xlu0 %6037
      %v6039 = vsel %vm5381, %v6038, %v6021
      %6040 = vrot.lane.b32.xlu0 %v6022, 4
      %v6041 = vpop.permute.xlu0 %6040
      %v6042 = vsel %vm5381, %v6041, %v6022
      %6043 = vrot.lane.b32.xlu0 %v6023, 4
      %v6044 = vpop.permute.xlu0 %6043
      %v6045 = vsel %vm5381, %v6044, %v6023
      %6046 = vrot.lane.b32.xlu0 %v6024, 4
      %v6047 = vpop.permute.xlu0 %6046
      %v6048 = vsel %vm5381, %v6047, %v6024
      %6049 = vrot.lane.b32.xlu0 %v6027, 4
      %v6050 = vpop.permute.xlu0 %6049
      %6051 = vrot.lane.b32.xlu0 %v6030, 4
      %v6052 = vpop.permute.xlu0 %6051
      %6053 = vrot.lane.b32.xlu0 %v6033, 4
      %v6054 = vpop.permute.xlu0 %6053
      %6055 = vrot.lane.b32.xlu0 %v6036, 4
      %v6056 = vpop.permute.xlu0 %6055
      %6057 = vrot.lane.b32.xlu0 %v6039, 4
      %v6058 = vpop.permute.xlu0 %6057
      %6059 = vrot.lane.b32.xlu0 %v6042, 4
      %v6060 = vpop.permute.xlu0 %6059
      %6061 = vrot.lane.b32.xlu0 %v6045, 4
      %v6062 = vpop.permute.xlu0 %6061
      %6063 = vrot.lane.b32.xlu0 %v6048, 4
      %v6064 = vpop.permute.xlu0 %6063
      %v6065 = vsel %vm5381, %v6050, %v6017
      %v6066 = vsel %vm5381, %v6052, %v6018
      %v6067 = vsel %vm5381, %v6054, %v6019
      %v6068 = vsel %vm5381, %v6056, %v6020
      %v6069 = vsel %vm5381, %v6058, %v6021
      %v6070 = vsel %vm5381, %v6060, %v6022
      %v6071 = vsel %vm5381, %v6062, %v6023
      %v6072 = vsel %vm5381, %v6064, %v6024
      %6081 = vrot.lane.b32.xlu0 %v6065, 127
      %v6082 = vpop.permute.xlu0 %6081
      %6083 = vrot.lane.b32.xlu0 %v6066, 127
      %v6084 = vpop.permute.xlu0 %6083
      %6085 = vrot.lane.b32.xlu0 %v6067, 127
      %v6086 = vpop.permute.xlu0 %6085
      %6087 = vrot.lane.b32.xlu0 %v6068, 127
      %v6088 = vpop.permute.xlu0 %6087
      %6089 = vrot.lane.b32.xlu0 %v6069, 127
      %v6090 = vpop.permute.xlu0 %6089
      %6091 = vrot.lane.b32.xlu0 %v6070, 127
      %v6092 = vpop.permute.xlu0 %6091
      %6093 = vrot.lane.b32.xlu0 %v6071, 127
      %v6094 = vpop.permute.xlu0 %6093
      %6095 = vrot.lane.b32.xlu0 %v6072, 127
      %v6096 = vpop.permute.xlu0 %6095
      %v6105 = vsel %vm5432, %v6082, 0.0
      %v6106 = vsel %vm5432, %v6084, 0.0
      %v6107 = vsel %vm5432, %v6086, 0.0
      %v6108 = vsel %vm5432, %v6088, 0.0
      %v6109 = vsel %vm5432, %v6090, 0.0
      %v6110 = vsel %vm5432, %v6092, 0.0
      %v6111 = vsel %vm5432, %v6094, 0.0
      %v6112 = vsel %vm5432, %v6096, 0.0
      %6113 = vrot.lane.b32.xlu0 %v6065, 126
      %v6114 = vpop.permute.xlu0 %6113
      %6115 = vrot.lane.b32.xlu0 %v6066, 126
      %v6116 = vpop.permute.xlu0 %6115
      %6117 = vrot.lane.b32.xlu0 %v6067, 126
      %v6118 = vpop.permute.xlu0 %6117
      %6119 = vrot.lane.b32.xlu0 %v6068, 126
      %v6120 = vpop.permute.xlu0 %6119
      %6121 = vrot.lane.b32.xlu0 %v6069, 126
      %v6122 = vpop.permute.xlu0 %6121
      %6123 = vrot.lane.b32.xlu0 %v6070, 126
      %v6124 = vpop.permute.xlu0 %6123
      %6125 = vrot.lane.b32.xlu0 %v6071, 126
      %v6126 = vpop.permute.xlu0 %6125
      %6127 = vrot.lane.b32.xlu0 %v6072, 126
      %v6128 = vpop.permute.xlu0 %6127
      %v6137 = vsel %vm5474, %v6114, 0.0
      %v6138 = vsel %vm5474, %v6116, 0.0
      %v6139 = vsel %vm5474, %v6118, 0.0
      %v6140 = vsel %vm5474, %v6120, 0.0
      %v6141 = vsel %vm5474, %v6122, 0.0
      %v6142 = vsel %vm5474, %v6124, 0.0
      %v6143 = vsel %vm5474, %v6126, 0.0
      %v6144 = vsel %vm5474, %v6128, 0.0
      %6145 = vrot.lane.b32.xlu0 %v6065, 125
      %v6146 = vpop.permute.xlu0 %6145
      %6147 = vrot.lane.b32.xlu0 %v6066, 125
      %v6148 = vpop.permute.xlu0 %6147
      %6149 = vrot.lane.b32.xlu0 %v6067, 125
      %v6150 = vpop.permute.xlu0 %6149
      %6151 = vrot.lane.b32.xlu0 %v6068, 125
      %v6152 = vpop.permute.xlu0 %6151
      %6153 = vrot.lane.b32.xlu0 %v6069, 125
      %v6154 = vpop.permute.xlu0 %6153
      %6155 = vrot.lane.b32.xlu0 %v6070, 125
      %v6156 = vpop.permute.xlu0 %6155
      %6157 = vrot.lane.b32.xlu0 %v6071, 125
      %v6158 = vpop.permute.xlu0 %6157
      %6159 = vrot.lane.b32.xlu0 %v6072, 125
      %v6160 = vpop.permute.xlu0 %6159
      %v6169 = vsel %vm5509, %v6146, 0.0
      %v6170 = vsel %vm5509, %v6148, 0.0
      %v6171 = vsel %vm5509, %v6150, 0.0
      %v6172 = vsel %vm5509, %v6152, 0.0
      %v6173 = vsel %vm5509, %v6154, 0.0
      %v6174 = vsel %vm5509, %v6156, 0.0
      %v6175 = vsel %vm5509, %v6158, 0.0
      %v6176 = vsel %vm5509, %v6160, 0.0
      %v6177 = vsel %vm5543, %v6146, 0.0
      %v6178 = vsel %vm5543, %v6148, 0.0
      %v6179 = vsel %vm5543, %v6150, 0.0
      %v6180 = vsel %vm5543, %v6152, 0.0
      %v6181 = vsel %vm5543, %v6154, 0.0
      %v6182 = vsel %vm5543, %v6156, 0.0
      %v6183 = vsel %vm5543, %v6158, 0.0
      %v6184 = vsel %vm5543, %v6160, 0.0
      %v6185 = vsel %vm5553, %v6082, 0.0
      %v6186 = vsel %vm5553, %v6084, 0.0
      %v6187 = vsel %vm5553, %v6086, 0.0
      %v6188 = vsel %vm5553, %v6088, 0.0
      %v6189 = vsel %vm5553, %v6090, 0.0
      %v6190 = vsel %vm5553, %v6092, 0.0
      %v6191 = vsel %vm5553, %v6094, 0.0
      %v6192 = vsel %vm5553, %v6096, 0.0
      %v6193 = vsel %vm5564, %v6082, 0.0
      %v6194 = vsel %vm5564, %v6084, 0.0
      %v6195 = vsel %vm5564, %v6086, 0.0
      %v6196 = vsel %vm5564, %v6088, 0.0
      %v6197 = vsel %vm5564, %v6090, 0.0
      %v6198 = vsel %vm5564, %v6092, 0.0
      %v6199 = vsel %vm5564, %v6094, 0.0
      %v6200 = vsel %vm5564, %v6096, 0.0
      %v6201 = vsel %vm5574, %v6114, 0.0
      %v6202 = vsel %vm5574, %v6116, 0.0
      %v6203 = vsel %vm5574, %v6118, 0.0
      %v6204 = vsel %vm5574, %v6120, 0.0
      %v6205 = vsel %vm5574, %v6122, 0.0
      %v6206 = vsel %vm5574, %v6124, 0.0
      %v6207 = vsel %vm5574, %v6126, 0.0
      %v6208 = vsel %vm5574, %v6128, 0.0
      %v6209 = vsel %vm5585, %v6146, 0.0
      %v6210 = vsel %vm5585, %v6148, 0.0
      %v6211 = vsel %vm5585, %v6150, 0.0
      %v6212 = vsel %vm5585, %v6152, 0.0
      %v6213 = vsel %vm5585, %v6154, 0.0
      %v6214 = vsel %vm5585, %v6156, 0.0
      %v6215 = vsel %vm5585, %v6158, 0.0
      %v6216 = vsel %vm5585, %v6160, 0.0
      %v6217 = vpack.c.bf16 %v6106, %v6105
      %v6218 = vpack.c.bf16 %v6108, %v6107
      %v6219 = vpack.c.bf16 %v6110, %v6109
      %v6220 = vpack.c.bf16 %v6112, %v6111
      %v6221 = vpack.c.bf16 %v6138, %v6137
      %v6222 = vpack.c.bf16 %v6140, %v6139
      %v6223 = vpack.c.bf16 %v6142, %v6141
      %v6224 = vpack.c.bf16 %v6144, %v6143
      %v6225 = vpack.c.bf16 %v6170, %v6169
      %v6226 = vpack.c.bf16 %v6172, %v6171
      %v6227 = vpack.c.bf16 %v6174, %v6173
      %v6228 = vpack.c.bf16 %v6176, %v6175
      %v6229 = vpack.c.bf16 %v6178, %v6177
      %v6230 = vpack.c.bf16 %v6180, %v6179
      %v6231 = vpack.c.bf16 %v6182, %v6181
      %v6232 = vpack.c.bf16 %v6184, %v6183
      %v6233 = vpack.c.bf16 %v6018, %v6017
      %v6234 = vpack.c.bf16 %v6020, %v6019
      %v6235 = vpack.c.bf16 %v6022, %v6021
      %v6236 = vpack.c.bf16 %v6024, %v6023
      %v6237 = vpack.c.bf16 %v6186, %v6185
      %v6238 = vpack.c.bf16 %v6188, %v6187
      %v6239 = vpack.c.bf16 %v6190, %v6189
      %v6240 = vpack.c.bf16 %v6192, %v6191
      %v6241 = vpack.c.bf16 %v6194, %v6193
      %v6242 = vpack.c.bf16 %v6196, %v6195
      %v6243 = vpack.c.bf16 %v6198, %v6197
      %v6244 = vpack.c.bf16 %v6200, %v6199
      %v6245 = vpack.c.bf16 %v6202, %v6201
      %v6246 = vpack.c.bf16 %v6204, %v6203
      %v6247 = vpack.c.bf16 %v6206, %v6205
      %v6248 = vpack.c.bf16 %v6208, %v6207
      %v6249 = vpack.c.bf16 %v6210, %v6209
      %v6250 = vpack.c.bf16 %v6212, %v6211
      %v6251 = vpack.c.bf16 %v6214, %v6213
      %v6252 = vpack.c.bf16 %v6216, %v6215
      %v6253 = vld [vmem:[%s77] sm:$0xff]
      %v6254 = vld [vmem:[%s77 + $0x8] sm:$0xff]
      %v6255 = vld [vmem:[%s77 + $0x10] sm:$0xf]
      %v6256 = vld [vmem:[%s77 + $0x14] sm:$0xff]
      %v6257 = vld [vmem:[%s77 + $0x1c] sm:$0xff]
      %v6258 = vld [vmem:[%s77 + $0x24] sm:$0xf]
      %v6259 = vld [vmem:[%s77 + $0x28] sm:$0xff]
      %v6260 = vld [vmem:[%s77 + $0x30] sm:$0xff]
      %v6261 = vld [vmem:[%s77 + $0x38] sm:$0xf]
      %v6262 = vld [vmem:[%s77 + $0x3c] sm:$0xff]
      %v6263 = vld [vmem:[%s77 + $0x44] sm:$0xff]
      %v6264 = vld [vmem:[%s77 + $0x4c] sm:$0xf]
      %v6265 = vld [vmem:[%s77 + $0x50] sm:$0xff]
      %v6266 = vld [vmem:[%s77 + $0x58] sm:$0xff]
      %v6267 = vld [vmem:[%s77 + $0x60] sm:$0xf]
      %v6268 = vld [vmem:[%s77 + $0x64] sm:$0xff]
      %v6269 = vld [vmem:[%s77 + $0x6c] sm:$0xff]
      %v6270 = vld [vmem:[%s77 + $0x74] sm:$0xf]
      %v6271 = vld [vmem:[%s77 + $0x78] sm:$0xff]
      %v6272 = vld [vmem:[%s77 + $0x80] sm:$0xff]
      %v6273 = vld [vmem:[%s77 + $0x88] sm:$0xf]
      %v6274 = vld [vmem:[%s77 + $0x8c] sm:$0xff]
      %v6275 = vld [vmem:[%s77 + $0x94] sm:$0xff]
      %v6276 = vld [vmem:[%s77 + $0x9c] sm:$0xf]
      %v6277 = vld [vmem:[%s75] sm:$0xff]
      %v6278 = vld [vmem:[%s75 + $0x8] sm:$0xff]
      %v6279 = vld [vmem:[%s75 + $0x10] sm:$0xff]
      %v6280 = vld [vmem:[%s75 + $0x18] sm:$0xff]
      %v6281 = vld [vmem:[%s75 + $0x20] sm:$0xff]
      %v6282 = vld [vmem:[%s75 + $0x28] sm:$0xff]
      %v6283 = vld [vmem:[%s75 + $0x30] sm:$0xff]
      %v6284 = vld [vmem:[%s75 + $0x38] sm:$0xff]
      %6286 = vset.pattern.permute.xlu0 0
      %6287 = vperm.xlu0 %6286, %v6277
      %v6288 = vpop.permute.xlu0 %6287
      %6291 = vset.pattern.permute.xlu0 0
      %6292 = vperm.xlu0 %6291, %v6278
      %v6293 = vpop.permute.xlu0 %6292
      %6296 = vset.pattern.permute.xlu0 0
      %6297 = vperm.xlu0 %6296, %v6279
      %v6298 = vpop.permute.xlu0 %6297
      %6301 = vset.pattern.permute.xlu0 0
      %6302 = vperm.xlu0 %6301, %v6280
      %v6303 = vpop.permute.xlu0 %6302
      %6306 = vset.pattern.permute.xlu0 0
      %6307 = vperm.xlu0 %6306, %v6281
      %v6308 = vpop.permute.xlu0 %6307
      %6311 = vset.pattern.permute.xlu0 0
      %6312 = vperm.xlu0 %6311, %v6282
      %v6313 = vpop.permute.xlu0 %6312
      %6316 = vset.pattern.permute.xlu0 0
      %6317 = vperm.xlu0 %6316, %v6283
      %v6318 = vpop.permute.xlu0 %6317
      %6321 = vset.pattern.permute.xlu0 0
      %6322 = vperm.xlu0 %6321, %v6284
      %v6323 = vpop.permute.xlu0 %6322
      %v6349 = vunpack.c.l.b16 %v6253
      %v6350 = vunpack.c.h.b16 %v6253
      %v6351 = vunpack.c.l.b16 %v6254
      %v6352 = vunpack.c.h.b16 %v6254
      %v6353 = vunpack.c.l.b16 %v6255
      %v6354 = vunpack.c.l.b16 %v6256
      %v6355 = vunpack.c.h.b16 %v6256
      %v6356 = vunpack.c.l.b16 %v6257
      %v6357 = vunpack.c.h.b16 %v6257
      %v6358 = vunpack.c.l.b16 %v6258
      %v6359 = vunpack.c.l.b16 %v6259
      %v6360 = vunpack.c.h.b16 %v6259
      %v6361 = vunpack.c.l.b16 %v6260
      %v6362 = vunpack.c.h.b16 %v6260
      %v6363 = vunpack.c.l.b16 %v6261
      %v6364 = vunpack.c.l.b16 %v6262
      %v6365 = vunpack.c.h.b16 %v6262
      %v6366 = vunpack.c.l.b16 %v6263
      %v6367 = vunpack.c.h.b16 %v6263
      %v6368 = vunpack.c.l.b16 %v6264
      %v6369 = vunpack.c.l.b16 %v6265
      %v6370 = vunpack.c.h.b16 %v6265
      %v6371 = vunpack.c.l.b16 %v6266
      %v6372 = vunpack.c.h.b16 %v6266
      %v6373 = vunpack.c.l.b16 %v6267
      %v6374 = vunpack.c.l.b16 %v6268
      %v6375 = vunpack.c.h.b16 %v6268
      %v6376 = vunpack.c.l.b16 %v6269
      %v6377 = vunpack.c.h.b16 %v6269
      %v6378 = vunpack.c.l.b16 %v6270
      %v6379 = vunpack.c.l.b16 %v6271
      %v6380 = vunpack.c.h.b16 %v6271
      %v6381 = vunpack.c.l.b16 %v6272
      %v6382 = vunpack.c.h.b16 %v6272
      %v6383 = vunpack.c.l.b16 %v6273
      %v6384 = vunpack.c.l.b16 %v6274
      %v6385 = vunpack.c.h.b16 %v6274
      %v6386 = vunpack.c.l.b16 %v6275
      %v6387 = vunpack.c.h.b16 %v6275
      %v6388 = vunpack.c.l.b16 %v6276
      %v6389 = vpack.c.b16 %v6354, %v6349
      %v6390 = vpack.c.b16 %v6355, %v6350
      %v6391 = vpack.c.b16 %v6356, %v6351
      %v6392 = vpack.c.b16 %v6357, %v6352
      %v6393 = vpack.c.b16 %v6358, %v6353
      %v6394 = vpack.c.b16 %v6364, %v6359
      %v6395 = vpack.c.b16 %v6365, %v6360
      %v6396 = vpack.c.b16 %v6366, %v6361
      %v6397 = vpack.c.b16 %v6367, %v6362
      %v6398 = vpack.c.b16 %v6368, %v6363
      %v6399 = vpack.c.b16 %v6374, %v6369
      %v6400 = vpack.c.b16 %v6375, %v6370
      %v6401 = vpack.c.b16 %v6376, %v6371
      %v6402 = vpack.c.b16 %v6377, %v6372
      %v6403 = vpack.c.b16 %v6378, %v6373
      %v6404 = vpack.c.b16 %v6384, %v6379
      %v6405 = vpack.c.b16 %v6385, %v6380
      %v6406 = vpack.c.b16 %v6386, %v6381
      %v6407 = vpack.c.b16 %v6387, %v6382
      %v6408 = vpack.c.b16 %v6388, %v6383
      %v6426 = vsel %vm3013, %v6393, 0
      %v6429 = vsel %vm3013, %v6398, 0
      %v6432 = vsel %vm3013, %v6403, 0
      %v6435 = vsel %vm3013, %v6408, 0
      %6437 = vmatprep.subr.bf16.mxu0 0
      %6438 = vmatpush1.bf16.msra.mxu0 %v6217
      %6439 = vmatprep.subr.bf16.mxu0 0
      %6440 = vmatpush1.bf16.msra.mxu0 %v6218
      %6441 = vmatprep.subr.bf16.mxu0 0
      %6442 = vmatpush1.bf16.msra.mxu0 %v6219
      %6443 = vmatprep.subr.bf16.mxu0 0
      %6444 = vmatpush1.bf16.msra.mxu0 %v6220
      %6445 = vmatprep.subr.bf16.mxu0 0
      %6446 = vmatpush1.bf16.msra.mxu0 %v6221
      %6447 = vmatprep.subr.bf16.mxu0 0
      %6448 = vmatpush1.bf16.msra.mxu0 %v6222
      %6449 = vmatprep.subr.bf16.mxu0 0
      %6450 = vmatpush1.bf16.msra.mxu0 %v6223
      %6451 = vmatprep.subr.bf16.mxu0 0
      %6452 = vmatpush1.bf16.msra.mxu0 %v6224
      %6453 = vmatprep.subr.bf16.mxu0 0
      %6454 = vmatpush1.bf16.msra.mxu0 %v6225
      %6455 = vmatprep.subr.bf16.mxu0 0
      %6456 = vmatpush1.bf16.msra.mxu0 %v6226
      %6457 = vmatprep.subr.bf16.mxu0 0
      %6458 = vmatpush1.bf16.msra.mxu0 %v6227
      %6459 = vmatprep.subr.bf16.mxu0 0
      %6460 = vmatpush1.bf16.msra.mxu0 %v6228
      %6461 = vmatprep.subr.bf16.mxu0 0
      %6462 = vmatpush1.bf16.msra.mxu0 %v6229
      %6463 = vmatprep.subr.bf16.mxu0 0
      %6464 = vmatpush1.bf16.msra.mxu0 %v6230
      %6465 = vmatprep.subr.bf16.mxu0 0
      %6466 = vmatpush1.bf16.msra.mxu0 %v6231
      %6467 = vmatprep.subr.bf16.mxu0 0
      %6468 = vmatpush1.bf16.msra.mxu0 %v6232
      %6469 = vmatprep.mubr.bf16.mxu0 %v6390
      %6470 = vmatmul.mubr.bf16.gmra.mrb[0].mxu0 %v6389
      %v6471 = vpop.f32.mrb[0].mxu0
      %v6472 = vadd.f32 %v6288, %v6471
      %v6473 = vpop.f32.mrb[0].mxu0
      %v6474 = vpop.f32.mrb[0].mxu0
      %v6475 = vadd.f32 %v6293, %v6474
      %v6476 = vpop.f32.mrb[0].mxu0
      %6477 = vmatprep.mubr.bf16.mxu0 %v6395
      %6478 = vmatmul.mubr.bf16.gmra.mrb[0].mxu0 %v6394
      %v6479 = vpop.f32.mrb[0].mxu0
      %v6480 = vadd.f32 %v6298, %v6479
      %v6481 = vpop.f32.mrb[0].mxu0
      %v6482 = vpop.f32.mrb[0].mxu0
      %v6483 = vadd.f32 %v6303, %v6482
      %v6484 = vpop.f32.mrb[0].mxu0
      %6485 = vmatprep.mubr.bf16.mxu0 %v6400
      %6486 = vmatmul.mubr.bf16.gmra.mrb[0].mxu0 %v6399
      %v6487 = vpop.f32.mrb[0].mxu0
      %v6488 = vadd.f32 %v6308, %v6487
      %v6489 = vpop.f32.mrb[0].mxu0
      %v6490 = vpop.f32.mrb[0].mxu0
      %v6491 = vadd.f32 %v6313, %v6490
      %v6492 = vpop.f32.mrb[0].mxu0
      %6493 = vmatprep.mubr.bf16.mxu0 %v6405
      %6494 = vmatmul.mubr.bf16.gmra.mrb[0].mxu0 %v6404
      %v6495 = vpop.f32.mrb[0].mxu0
      %v6496 = vadd.f32 %v6318, %v6495
      %v6497 = vpop.f32.mrb[0].mxu0
      %v6498 = vpop.f32.mrb[0].mxu0
      %v6499 = vadd.f32 %v6323, %v6498
      %v6500 = vpop.f32.mrb[0].mxu0
      %6501 = vdwg.mxu0
      %6502 = vmatprep.subr.bf16.mxu0 0
      %6503 = vmatpush1.bf16.msra.mxu0 %v6233
      %6504 = vmatprep.subr.bf16.mxu0 0
      %6505 = vmatpush1.bf16.msra.mxu0 %v6234
      %6506 = vmatprep.subr.bf16.mxu0 0
      %6507 = vmatpush1.bf16.msra.mxu0 %v6235
      %6508 = vmatprep.subr.bf16.mxu0 0
      %6509 = vmatpush1.bf16.msra.mxu0 %v6236
      %6510 = vmatprep.subr.bf16.mxu0 0
      %6511 = vmatpush1.bf16.msra.mxu0 %v6237
      %6512 = vmatprep.subr.bf16.mxu0 0
      %6513 = vmatpush1.bf16.msra.mxu0 %v6238
      %6514 = vmatprep.subr.bf16.mxu0 0
      %6515 = vmatpush1.bf16.msra.mxu0 %v6239
      %6516 = vmatprep.subr.bf16.mxu0 0
      %6517 = vmatpush1.bf16.msra.mxu0 %v6240
      %6518 = vmatprep.subr.bf16.mxu0 0
      %6519 = vmatpush1.bf16.msra.mxu0 %v6241
      %6520 = vmatprep.subr.bf16.mxu0 0
      %6521 = vmatpush1.bf16.msra.mxu0 %v6242
      %6522 = vmatprep.subr.bf16.mxu0 0
      %6523 = vmatpush1.bf16.msra.mxu0 %v6243
      %6524 = vmatprep.subr.bf16.mxu0 0
      %6525 = vmatpush1.bf16.msra.mxu0 %v6244
      %6526 = vmatprep.subr.bf16.mxu0 0
      %6527 = vmatpush1.bf16.msra.mxu0 %v6245
      %6528 = vmatprep.subr.bf16.mxu0 0
      %6529 = vmatpush1.bf16.msra.mxu0 %v6246
      %6530 = vmatprep.subr.bf16.mxu0 0
      %6531 = vmatpush1.bf16.msra.mxu0 %v6247
      %6532 = vmatprep.subr.bf16.mxu0 0
      %6533 = vmatpush1.bf16.msra.mxu0 %v6248
      %6534 = vmatprep.mubr.bf16.mxu0 %v6392
      %6535 = vmatmul.mubr.bf16.gmra.mrb[0].mxu0 %v6391
      %v6536 = vpop.f32.mrb[0].mxu0
      %v6537 = vadd.f32 %v6472, %v6536
      %v6538 = vpop.f32.mrb[0].mxu0
      %v6539 = vpop.f32.mrb[0].mxu0
      %v6540 = vadd.f32 %v6475, %v6539
      %v6541 = vpop.f32.mrb[0].mxu0
      %6542 = vmatprep.mubr.bf16.mxu0 %v6397
      %6543 = vmatmul.mubr.bf16.gmra.mrb[0].mxu0 %v6396
      %v6544 = vpop.f32.mrb[0].mxu0
      %v6545 = vadd.f32 %v6480, %v6544
      %v6546 = vpop.f32.mrb[0].mxu0
      %v6547 = vpop.f32.mrb[0].mxu0
      %v6548 = vadd.f32 %v6483, %v6547
      %v6549 = vpop.f32.mrb[0].mxu0
      %6550 = vmatprep.mubr.bf16.mxu0 %v6402
      %6551 = vmatmul.mubr.bf16.gmra.mrb[0].mxu0 %v6401
      %v6552 = vpop.f32.mrb[0].mxu0
      %v6553 = vadd.f32 %v6488, %v6552
      %v6554 = vpop.f32.mrb[0].mxu0
      %v6555 = vpop.f32.mrb[0].mxu0
      %v6556 = vadd.f32 %v6491, %v6555
      %v6557 = vpop.f32.mrb[0].mxu0
      %6558 = vmatprep.mubr.bf16.mxu0 %v6407
      %6559 = vmatmul.mubr.bf16.gmra.mrb[0].mxu0 %v6406
      %v6560 = vpop.f32.mrb[0].mxu0
      %v6561 = vadd.f32 %v6496, %v6560
      %v6562 = vpop.f32.mrb[0].mxu0
      %v6563 = vpop.f32.mrb[0].mxu0
      %v6564 = vadd.f32 %v6499, %v6563
      %v6565 = vpop.f32.mrb[0].mxu0
      %6566 = vdwg.mxu0
      %6567 = vmatprep.subr.bf16.mxu0 0
      %6568 = vmatpush1.bf16.msra.mxu0 %v6249
      %6569 = vmatprep.subr.bf16.mxu0 0
      %6570 = vmatpush1.bf16.msra.mxu0 %v6250
      %6571 = vmatprep.subr.bf16.mxu0 0
      %6572 = vmatpush1.bf16.msra.mxu0 %v6251
      %6573 = vmatprep.subr.bf16.mxu0 0
      %6574 = vmatpush1.bf16.msra.mxu0 %v6252
      %6575 = vmatprep.subr.bf16.mxu0 0
      %6576 = vmatpush1.bf16.msra.mxu0 0
      %6577 = vmatprep.subr.bf16.mxu0 0
      %6578 = vmatpush1.bf16.msra.mxu0 0
      %6579 = vmatprep.subr.bf16.mxu0 0
      %6580 = vmatpush1.bf16.msra.mxu0 0
      %6581 = vmatprep.subr.bf16.mxu0 0
      %6582 = vmatpush1.bf16.msra.mxu0 0
      %6583 = vmatprep.subr.bf16.mxu0 0
      %6584 = vmatpush1.bf16.msra.mxu0 0
      %6585 = vmatprep.subr.bf16.mxu0 0
      %6586 = vmatpush1.bf16.msra.mxu0 0
      %6587 = vmatprep.subr.bf16.mxu0 0
      %6588 = vmatpush1.bf16.msra.mxu0 0
      %6589 = vmatprep.subr.bf16.mxu0 0
      %6590 = vmatpush1.bf16.msra.mxu0 0
      %6591 = vmatprep.subr.bf16.mxu0 0
      %6592 = vmatpush1.bf16.msra.mxu0 0
      %6593 = vmatprep.subr.bf16.mxu0 0
      %6594 = vmatpush1.bf16.msra.mxu0 0
      %6595 = vmatprep.subr.bf16.mxu0 0
      %6596 = vmatpush1.bf16.msra.mxu0 0
      %6597 = vmatprep.subr.bf16.mxu0 0
      %6598 = vmatpush1.bf16.msra.mxu0 0
      %6599 = vmatprep.mubr.bf16.mxu0 0
      %6600 = vmatmul.mubr.bf16.gmra.mrb[0].mxu0 %v6426
      %v6601 = vpop.f32.mrb[0].mxu0
      %v6602 = vadd.f32 %v6537, %v6601
      %v6603 = vpop.f32.mrb[0].mxu0
      %v6604 = vpop.f32.mrb[0].mxu0
      %v6605 = vadd.f32 %v6540, %v6604
      %v6606 = vpop.f32.mrb[0].mxu0
      %6607 = vmatprep.mubr.bf16.mxu0 0
      %6608 = vmatmul.mubr.bf16.gmra.mrb[0].mxu0 %v6429
      %v6609 = vpop.f32.mrb[0].mxu0
      %v6610 = vadd.f32 %v6545, %v6609
      %v6611 = vpop.f32.mrb[0].mxu0
      %v6612 = vpop.f32.mrb[0].mxu0
      %v6613 = vadd.f32 %v6548, %v6612
      %v6614 = vpop.f32.mrb[0].mxu0
      %6615 = vmatprep.mubr.bf16.mxu0 0
      %6616 = vmatmul.mubr.bf16.gmra.mrb[0].mxu0 %v6432
      %v6617 = vpop.f32.mrb[0].mxu0
      %v6618 = vadd.f32 %v6553, %v6617
      %v6619 = vpop.f32.mrb[0].mxu0
      %v6620 = vpop.f32.mrb[0].mxu0
      %v6621 = vadd.f32 %v6556, %v6620
      %v6622 = vpop.f32.mrb[0].mxu0
      %6623 = vmatprep.mubr.bf16.mxu0 0
      %6624 = vmatmul.mubr.bf16.gmra.mrb[0].mxu0 %v6435
      %v6625 = vpop.f32.mrb[0].mxu0
      %v6626 = vadd.f32 %v6561, %v6625
      %v6627 = vpop.f32.mrb[0].mxu0
      %v6628 = vpop.f32.mrb[0].mxu0
      %v6629 = vadd.f32 %v6564, %v6628
      %v6630 = vpop.f32.mrb[0].mxu0
      %6631 = vdwg.mxu0
      %v6632 = vmax.f32 %v6602, 0.0
      %v6633 = vmax.f32 %v6605, 0.0
      %v6634 = vmax.f32 %v6610, 0.0
      %v6635 = vmax.f32 %v6613, 0.0
      %v6636 = vmax.f32 %v6618, 0.0
      %v6637 = vmax.f32 %v6621, 0.0
      %v6638 = vmax.f32 %v6626, 0.0
      %v6639 = vmax.f32 %v6629, 0.0
      %6640 = vrot.lane.b32.xlu0 %v6632, 4
      %v6641 = vpop.permute.xlu0 %6640
      %v6642 = vsel %vm5381, %v6641, %v6632
      %6643 = vrot.lane.b32.xlu0 %v6633, 4
      %v6644 = vpop.permute.xlu0 %6643
      %v6645 = vsel %vm5381, %v6644, %v6633
      %6646 = vrot.lane.b32.xlu0 %v6634, 4
      %v6647 = vpop.permute.xlu0 %6646
      %v6648 = vsel %vm5381, %v6647, %v6634
      %6649 = vrot.lane.b32.xlu0 %v6635, 4
      %v6650 = vpop.permute.xlu0 %6649
      %v6651 = vsel %vm5381, %v6650, %v6635
      %6652 = vrot.lane.b32.xlu0 %v6636, 4
      %v6653 = vpop.permute.xlu0 %6652
      %v6654 = vsel %vm5381, %v6653, %v6636
      %6655 = vrot.lane.b32.xlu0 %v6637, 4
      %v6656 = vpop.permute.xlu0 %6655
      %v6657 = vsel %vm5381, %v6656, %v6637
      %6658 = vrot.lane.b32.xlu0 %v6638, 4
      %v6659 = vpop.permute.xlu0 %6658
      %v6660 = vsel %vm5381, %v6659, %v6638
      %6661 = vrot.lane.b32.xlu0 %v6639, 4
      %v6662 = vpop.permute.xlu0 %6661
      %v6663 = vsel %vm5381, %v6662, %v6639
      %6664 = vrot.lane.b32.xlu0 %v6642, 4
      %v6665 = vpop.permute.xlu0 %6664
      %6666 = vrot.lane.b32.xlu0 %v6645, 4
      %v6667 = vpop.permute.xlu0 %6666
      %6668 = vrot.lane.b32.xlu0 %v6648, 4
      %v6669 = vpop.permute.xlu0 %6668
      %6670 = vrot.lane.b32.xlu0 %v6651, 4
      %v6671 = vpop.permute.xlu0 %6670
      %6672 = vrot.lane.b32.xlu0 %v6654, 4
      %v6673 = vpop.permute.xlu0 %6672
      %6674 = vrot.lane.b32.xlu0 %v6657, 4
      %v6675 = vpop.permute.xlu0 %6674
      %6676 = vrot.lane.b32.xlu0 %v6660, 4
      %v6677 = vpop.permute.xlu0 %6676
      %6678 = vrot.lane.b32.xlu0 %v6663, 4
      %v6679 = vpop.permute.xlu0 %6678
      %v6680 = vsel %vm5381, %v6665, %v6632
      %v6681 = vsel %vm5381, %v6667, %v6633
      %v6682 = vsel %vm5381, %v6669, %v6634
      %v6683 = vsel %vm5381, %v6671, %v6635
      %v6684 = vsel %vm5381, %v6673, %v6636
      %v6685 = vsel %vm5381, %v6675, %v6637
      %v6686 = vsel %vm5381, %v6677, %v6638
      %v6687 = vsel %vm5381, %v6679, %v6639
      %6696 = vrot.lane.b32.xlu0 %v6680, 127
      %v6697 = vpop.permute.xlu0 %6696
      %6698 = vrot.lane.b32.xlu0 %v6681, 127
      %v6699 = vpop.permute.xlu0 %6698
      %6700 = vrot.lane.b32.xlu0 %v6682, 127
      %v6701 = vpop.permute.xlu0 %6700
      %6702 = vrot.lane.b32.xlu0 %v6683, 127
      %v6703 = vpop.permute.xlu0 %6702
      %6704 = vrot.lane.b32.xlu0 %v6684, 127
      %v6705 = vpop.permute.xlu0 %6704
      %6706 = vrot.lane.b32.xlu0 %v6685, 127
      %v6707 = vpop.permute.xlu0 %6706
      %6708 = vrot.lane.b32.xlu0 %v6686, 127
      %v6709 = vpop.permute.xlu0 %6708
      %6710 = vrot.lane.b32.xlu0 %v6687, 127
      %v6711 = vpop.permute.xlu0 %6710
      %v6720 = vsel %vm5432, %v6697, 0.0
      %v6721 = vsel %vm5432, %v6699, 0.0
      %v6722 = vsel %vm5432, %v6701, 0.0
      %v6723 = vsel %vm5432, %v6703, 0.0
      %v6724 = vsel %vm5432, %v6705, 0.0
      %v6725 = vsel %vm5432, %v6707, 0.0
      %v6726 = vsel %vm5432, %v6709, 0.0
      %v6727 = vsel %vm5432, %v6711, 0.0
      %6728 = vrot.lane.b32.xlu0 %v6680, 126
      %v6729 = vpop.permute.xlu0 %6728
      %6730 = vrot.lane.b32.xlu0 %v6681, 126
      %v6731 = vpop.permute.xlu0 %6730
      %6732 = vrot.lane.b32.xlu0 %v6682, 126
      %v6733 = vpop.permute.xlu0 %6732
      %6734 = vrot.lane.b32.xlu0 %v6683, 126
      %v6735 = vpop.permute.xlu0 %6734
      %6736 = vrot.lane.b32.xlu0 %v6684, 126
      %v6737 = vpop.permute.xlu0 %6736
      %6738 = vrot.lane.b32.xlu0 %v6685, 126
      %v6739 = vpop.permute.xlu0 %6738
      %6740 = vrot.lane.b32.xlu0 %v6686, 126
      %v6741 = vpop.permute.xlu0 %6740
      %6742 = vrot.lane.b32.xlu0 %v6687, 126
      %v6743 = vpop.permute.xlu0 %6742
      %v6752 = vsel %vm5474, %v6729, 0.0
      %v6753 = vsel %vm5474, %v6731, 0.0
      %v6754 = vsel %vm5474, %v6733, 0.0
      %v6755 = vsel %vm5474, %v6735, 0.0
      %v6756 = vsel %vm5474, %v6737, 0.0
      %v6757 = vsel %vm5474, %v6739, 0.0
      %v6758 = vsel %vm5474, %v6741, 0.0
      %v6759 = vsel %vm5474, %v6743, 0.0
      %6760 = vrot.lane.b32.xlu0 %v6680, 125
      %v6761 = vpop.permute.xlu0 %6760
      %6762 = vrot.lane.b32.xlu0 %v6681, 125
      %v6763 = vpop.permute.xlu0 %6762
      %6764 = vrot.lane.b32.xlu0 %v6682, 125
      %v6765 = vpop.permute.xlu0 %6764
      %6766 = vrot.lane.b32.xlu0 %v6683, 125
      %v6767 = vpop.permute.xlu0 %6766
      %6768 = vrot.lane.b32.xlu0 %v6684, 125
      %v6769 = vpop.permute.xlu0 %6768
      %6770 = vrot.lane.b32.xlu0 %v6685, 125
      %v6771 = vpop.permute.xlu0 %6770
      %6772 = vrot.lane.b32.xlu0 %v6686, 125
      %v6773 = vpop.permute.xlu0 %6772
      %6774 = vrot.lane.b32.xlu0 %v6687, 125
      %v6775 = vpop.permute.xlu0 %6774
      %v6784 = vsel %vm5509, %v6761, 0.0
      %v6785 = vsel %vm5509, %v6763, 0.0
      %v6786 = vsel %vm5509, %v6765, 0.0
      %v6787 = vsel %vm5509, %v6767, 0.0
      %v6788 = vsel %vm5509, %v6769, 0.0
      %v6789 = vsel %vm5509, %v6771, 0.0
      %v6790 = vsel %vm5509, %v6773, 0.0
      %v6791 = vsel %vm5509, %v6775, 0.0
      %v6792 = vsel %vm5543, %v6761, 0.0
      %v6793 = vsel %vm5543, %v6763, 0.0
      %v6794 = vsel %vm5543, %v6765, 0.0
      %v6795 = vsel %vm5543, %v6767, 0.0
      %v6796 = vsel %vm5543, %v6769, 0.0
      %v6797 = vsel %vm5543, %v6771, 0.0
      %v6798 = vsel %vm5543, %v6773, 0.0
      %v6799 = vsel %vm5543, %v6775, 0.0
      %v6800 = vsel %vm5553, %v6697, 0.0
      %v6801 = vsel %vm5553, %v6699, 0.0
      %v6802 = vsel %vm5553, %v6701, 0.0
      %v6803 = vsel %vm5553, %v6703, 0.0
      %v6804 = vsel %vm5553, %v6705, 0.0
      %v6805 = vsel %vm5553, %v6707, 0.0
      %v6806 = vsel %vm5553, %v6709, 0.0
      %v6807 = vsel %vm5553, %v6711, 0.0
      %v6808 = vsel %vm5564, %v6697, 0.0
      %v6809 = vsel %vm5564, %v6699, 0.0
      %v6810 = vsel %vm5564, %v6701, 0.0
      %v6811 = vsel %vm5564, %v6703, 0.0
      %v6812 = vsel %vm5564, %v6705, 0.0
      %v6813 = vsel %vm5564, %v6707, 0.0
      %v6814 = vsel %vm5564, %v6709, 0.0
      %v6815 = vsel %vm5564, %v6711, 0.0
      %v6816 = vsel %vm5574, %v6729, 0.0
      %v6817 = vsel %vm5574, %v6731, 0.0
      %v6818 = vsel %vm5574, %v6733, 0.0
      %v6819 = vsel %vm5574, %v6735, 0.0
      %v6820 = vsel %vm5574, %v6737, 0.0
      %v6821 = vsel %vm5574, %v6739, 0.0
      %v6822 = vsel %vm5574, %v6741, 0.0
      %v6823 = vsel %vm5574, %v6743, 0.0
      %v6824 = vsel %vm5585, %v6761, 0.0
      %v6825 = vsel %vm5585, %v6763, 0.0
      %v6826 = vsel %vm5585, %v6765, 0.0
      %v6827 = vsel %vm5585, %v6767, 0.0
      %v6828 = vsel %vm5585, %v6769, 0.0
      %v6829 = vsel %vm5585, %v6771, 0.0
      %v6830 = vsel %vm5585, %v6773, 0.0
      %v6831 = vsel %vm5585, %v6775, 0.0
      %v6832 = vpack.c.bf16 %v6721, %v6720
      %v6833 = vpack.c.bf16 %v6723, %v6722
      %v6834 = vpack.c.bf16 %v6725, %v6724
      %v6835 = vpack.c.bf16 %v6727, %v6726
      %v6836 = vpack.c.bf16 %v6753, %v6752
      %v6837 = vpack.c.bf16 %v6755, %v6754
      %v6838 = vpack.c.bf16 %v6757, %v6756
      %v6839 = vpack.c.bf16 %v6759, %v6758
      %v6840 = vpack.c.bf16 %v6785, %v6784
      %v6841 = vpack.c.bf16 %v6787, %v6786
      %v6842 = vpack.c.bf16 %v6789, %v6788
      %v6843 = vpack.c.bf16 %v6791, %v6790
      %v6844 = vpack.c.bf16 %v6793, %v6792
      %v6845 = vpack.c.bf16 %v6795, %v6794
      %v6846 = vpack.c.bf16 %v6797, %v6796
      %v6847 = vpack.c.bf16 %v6799, %v6798
      %v6848 = vpack.c.bf16 %v6633, %v6632
      %v6849 = vpack.c.bf16 %v6635, %v6634
      %v6850 = vpack.c.bf16 %v6637, %v6636
      %v6851 = vpack.c.bf16 %v6639, %v6638
      %v6852 = vpack.c.bf16 %v6801, %v6800
      %v6853 = vpack.c.bf16 %v6803, %v6802
      %v6854 = vpack.c.bf16 %v6805, %v6804
      %v6855 = vpack.c.bf16 %v6807, %v6806
      %v6856 = vpack.c.bf16 %v6809, %v6808
      %v6857 = vpack.c.bf16 %v6811, %v6810
      %v6858 = vpack.c.bf16 %v6813, %v6812
      %v6859 = vpack.c.bf16 %v6815, %v6814
      %v6860 = vpack.c.bf16 %v6817, %v6816
      %v6861 = vpack.c.bf16 %v6819, %v6818
      %v6862 = vpack.c.bf16 %v6821, %v6820
      %v6863 = vpack.c.bf16 %v6823, %v6822
      %v6864 = vpack.c.bf16 %v6825, %v6824
      %v6865 = vpack.c.bf16 %v6827, %v6826
      %v6866 = vpack.c.bf16 %v6829, %v6828
      %v6867 = vpack.c.bf16 %v6831, %v6830
      %v6868 = vld [vmem:[%s81] sm:$0xff]
      %v6869 = vld [vmem:[%s81 + $0x8] sm:$0xff]
      %v6870 = vld [vmem:[%s81 + $0x10] sm:$0xf]
      %v6871 = vld [vmem:[%s81 + $0x14] sm:$0xff]
      %v6872 = vld [vmem:[%s81 + $0x1c] sm:$0xff]
      %v6873 = vld [vmem:[%s81 + $0x24] sm:$0xf]
      %v6874 = vld [vmem:[%s81 + $0x28] sm:$0xff]
      %v6875 = vld [vmem:[%s81 + $0x30] sm:$0xff]
      %v6876 = vld [vmem:[%s81 + $0x38] sm:$0xf]
      %v6877 = vld [vmem:[%s81 + $0x3c] sm:$0xff]
      %v6878 = vld [vmem:[%s81 + $0x44] sm:$0xff]
      %v6879 = vld [vmem:[%s81 + $0x4c] sm:$0xf]
      %v6880 = vld [vmem:[%s81 + $0x50] sm:$0xff]
      %v6881 = vld [vmem:[%s81 + $0x58] sm:$0xff]
      %v6882 = vld [vmem:[%s81 + $0x60] sm:$0xf]
      %v6883 = vld [vmem:[%s81 + $0x64] sm:$0xff]
      %v6884 = vld [vmem:[%s81 + $0x6c] sm:$0xff]
      %v6885 = vld [vmem:[%s81 + $0x74] sm:$0xf]
      %v6886 = vld [vmem:[%s81 + $0x78] sm:$0xff]
      %v6887 = vld [vmem:[%s81 + $0x80] sm:$0xff]
      %v6888 = vld [vmem:[%s81 + $0x88] sm:$0xf]
      %v6889 = vld [vmem:[%s81 + $0x8c] sm:$0xff]
      %v6890 = vld [vmem:[%s81 + $0x94] sm:$0xff]
      %v6891 = vld [vmem:[%s81 + $0x9c] sm:$0xf]
      %v6892 = vld [vmem:[%s79] sm:$0xff]
      %v6893 = vld [vmem:[%s79 + $0x8] sm:$0xff]
      %v6894 = vld [vmem:[%s79 + $0x10] sm:$0xff]
      %v6895 = vld [vmem:[%s79 + $0x18] sm:$0xff]
      %v6896 = vld [vmem:[%s79 + $0x20] sm:$0xff]
      %v6897 = vld [vmem:[%s79 + $0x28] sm:$0xff]
      %v6898 = vld [vmem:[%s79 + $0x30] sm:$0xff]
      %v6899 = vld [vmem:[%s79 + $0x38] sm:$0xff]
      %6901 = vset.pattern.permute.xlu0 0
      %6902 = vperm.xlu0 %6901, %v6892
      %v6903 = vpop.permute.xlu0 %6902
      %6906 = vset.pattern.permute.xlu0 0
      %6907 = vperm.xlu0 %6906, %v6893
      %v6908 = vpop.permute.xlu0 %6907
      %6911 = vset.pattern.permute.xlu0 0
      %6912 = vperm.xlu0 %6911, %v6894
      %v6913 = vpop.permute.xlu0 %6912
      %6916 = vset.pattern.permute.xlu0 0
      %6917 = vperm.xlu0 %6916, %v6895
      %v6918 = vpop.permute.xlu0 %6917
      %6921 = vset.pattern.permute.xlu0 0
      %6922 = vperm.xlu0 %6921, %v6896
      %v6923 = vpop.permute.xlu0 %6922
      %6926 = vset.pattern.permute.xlu0 0
      %6927 = vperm.xlu0 %6926, %v6897
      %v6928 = vpop.permute.xlu0 %6927
      %6931 = vset.pattern.permute.xlu0 0
      %6932 = vperm.xlu0 %6931, %v6898
      %v6933 = vpop.permute.xlu0 %6932
      %6936 = vset.pattern.permute.xlu0 0
      %6937 = vperm.xlu0 %6936, %v6899
      %v6938 = vpop.permute.xlu0 %6937
      %v6964 = vunpack.c.l.b16 %v6868
      %v6965 = vunpack.c.h.b16 %v6868
      %v6966 = vunpack.c.l.b16 %v6869
      %v6967 = vunpack.c.h.b16 %v6869
      %v6968 = vunpack.c.l.b16 %v6870
      %v6969 = vunpack.c.l.b16 %v6871
      %v6970 = vunpack.c.h.b16 %v6871
      %v6971 = vunpack.c.l.b16 %v6872
      %v6972 = vunpack.c.h.b16 %v6872
      %v6973 = vunpack.c.l.b16 %v6873
      %v6974 = vunpack.c.l.b16 %v6874
      %v6975 = vunpack.c.h.b16 %v6874
      %v6976 = vunpack.c.l.b16 %v6875
      %v6977 = vunpack.c.h.b16 %v6875
      %v6978 = vunpack.c.l.b16 %v6876
      %v6979 = vunpack.c.l.b16 %v6877
      %v6980 = vunpack.c.h.b16 %v6877
      %v6981 = vunpack.c.l.b16 %v6878
      %v6982 = vunpack.c.h.b16 %v6878
      %v6983 = vunpack.c.l.b16 %v6879
      %v6984 = vunpack.c.l.b16 %v6880
      %v6985 = vunpack.c.h.b16 %v6880
      %v6986 = vunpack.c.l.b16 %v6881
      %v6987 = vunpack.c.h.b16 %v6881
      %v6988 = vunpack.c.l.b16 %v6882
      %v6989 = vunpack.c.l.b16 %v6883
      %v6990 = vunpack.c.h.b16 %v6883
      %v6991 = vunpack.c.l.b16 %v6884
      %v6992 = vunpack.c.h.b16 %v6884
      %v6993 = vunpack.c.l.b16 %v6885
      %v6994 = vunpack.c.l.b16 %v6886
      %v6995 = vunpack.c.h.b16 %v6886
      %v6996 = vunpack.c.l.b16 %v6887
      %v6997 = vunpack.c.h.b16 %v6887
      %v6998 = vunpack.c.l.b16 %v6888
      %v6999 = vunpack.c.l.b16 %v6889
      %v7000 = vunpack.c.h.b16 %v6889
      %v7001 = vunpack.c.l.b16 %v6890
      %v7002 = vunpack.c.h.b16 %v6890
      %v7003 = vunpack.c.l.b16 %v6891
      %v7004 = vpack.c.b16 %v6969, %v6964
      %v7005 = vpack.c.b16 %v6970, %v6965
      %v7006 = vpack.c.b16 %v6971, %v6966
      %v7007 = vpack.c.b16 %v6972, %v6967
      %v7008 = vpack.c.b16 %v6973, %v6968
      %v7009 = vpack.c.b16 %v6979, %v6974
      %v7010 = vpack.c.b16 %v6980, %v6975
      %v7011 = vpack.c.b16 %v6981, %v6976
      %v7012 = vpack.c.b16 %v6982, %v6977
      %v7013 = vpack.c.b16 %v6983, %v6978
      %v7014 = vpack.c.b16 %v6989, %v6984
      %v7015 = vpack.c.b16 %v6990, %v6985
      %v7016 = vpack.c.b16 %v6991, %v6986
      %v7017 = vpack.c.b16 %v6992, %v6987
      %v7018 = vpack.c.b16 %v6993, %v6988
      %v7019 = vpack.c.b16 %v6999, %v6994
      %v7020 = vpack.c.b16 %v7000, %v6995
      %v7021 = vpack.c.b16 %v7001, %v6996
      %v7022 = vpack.c.b16 %v7002, %v6997
      %v7023 = vpack.c.b16 %v7003, %v6998
      %v7041 = vsel %vm3013, %v7008, 0
      %v7044 = vsel %vm3013, %v7013, 0
      %v7047 = vsel %vm3013, %v7018, 0
      %v7050 = vsel %vm3013, %v7023, 0
      %7052 = vmatprep.subr.bf16.mxu0 0
      %7053 = vmatpush1.bf16.msra.mxu0 %v6832
      %7054 = vmatprep.subr.bf16.mxu0 0
      %7055 = vmatpush1.bf16.msra.mxu0 %v6833
      %7056 = vmatprep.subr.bf16.mxu0 0
      %7057 = vmatpush1.bf16.msra.mxu0 %v6834
      %7058 = vmatprep.subr.bf16.mxu0 0
      %7059 = vmatpush1.bf16.msra.mxu0 %v6835
      %7060 = vmatprep.subr.bf16.mxu0 0
      %7061 = vmatpush1.bf16.msra.mxu0 %v6836
      %7062 = vmatprep.subr.bf16.mxu0 0
      %7063 = vmatpush1.bf16.msra.mxu0 %v6837
      %7064 = vmatprep.subr.bf16.mxu0 0
      %7065 = vmatpush1.bf16.msra.mxu0 %v6838
      %7066 = vmatprep.subr.bf16.mxu0 0
      %7067 = vmatpush1.bf16.msra.mxu0 %v6839
      %7068 = vmatprep.subr.bf16.mxu0 0
      %7069 = vmatpush1.bf16.msra.mxu0 %v6840
      %7070 = vmatprep.subr.bf16.mxu0 0
      %7071 = vmatpush1.bf16.msra.mxu0 %v6841
      %7072 = vmatprep.subr.bf16.mxu0 0
      %7073 = vmatpush1.bf16.msra.mxu0 %v6842
      %7074 = vmatprep.subr.bf16.mxu0 0
      %7075 = vmatpush1.bf16.msra.mxu0 %v6843
      %7076 = vmatprep.subr.bf16.mxu0 0
      %7077 = vmatpush1.bf16.msra.mxu0 %v6844
      %7078 = vmatprep.subr.bf16.mxu0 0
      %7079 = vmatpush1.bf16.msra.mxu0 %v6845
      %7080 = vmatprep.subr.bf16.mxu0 0
      %7081 = vmatpush1.bf16.msra.mxu0 %v6846
      %7082 = vmatprep.subr.bf16.mxu0 0
      %7083 = vmatpush1.bf16.msra.mxu0 %v6847
      %7084 = vmatprep.mubr.bf16.mxu0 %v7005
      %7085 = vmatmul.mubr.bf16.gmra.mrb[0].mxu0 %v7004
      %v7086 = vpop.f32.mrb[0].mxu0
      %v7087 = vadd.f32 %v6903, %v7086
      %v7088 = vpop.f32.mrb[0].mxu0
      %v7089 = vpop.f32.mrb[0].mxu0
      %v7090 = vadd.f32 %v6908, %v7089
      %v7091 = vpop.f32.mrb[0].mxu0
      %7092 = vmatprep.mubr.bf16.mxu0 %v7010
      %7093 = vmatmul.mubr.bf16.gmra.mrb[0].mxu0 %v7009
      %v7094 = vpop.f32.mrb[0].mxu0
      %v7095 = vadd.f32 %v6913, %v7094
      %v7096 = vpop.f32.mrb[0].mxu0
      %v7097 = vpop.f32.mrb[0].mxu0
      %v7098 = vadd.f32 %v6918, %v7097
      %v7099 = vpop.f32.mrb[0].mxu0
      %7100 = vmatprep.mubr.bf16.mxu0 %v7015
      %7101 = vmatmul.mubr.bf16.gmra.mrb[0].mxu0 %v7014
      %v7102 = vpop.f32.mrb[0].mxu0
      %v7103 = vadd.f32 %v6923, %v7102
      %v7104 = vpop.f32.mrb[0].mxu0
      %v7105 = vpop.f32.mrb[0].mxu0
      %v7106 = vadd.f32 %v6928, %v7105
      %v7107 = vpop.f32.mrb[0].mxu0
      %7108 = vmatprep.mubr.bf16.mxu0 %v7020
      %7109 = vmatmul.mubr.bf16.gmra.mrb[0].mxu0 %v7019
      %v7110 = vpop.f32.mrb[0].mxu0
      %v7111 = vadd.f32 %v6933, %v7110
      %v7112 = vpop.f32.mrb[0].mxu0
      %v7113 = vpop.f32.mrb[0].mxu0
      %v7114 = vadd.f32 %v6938, %v7113
      %v7115 = vpop.f32.mrb[0].mxu0
      %7116 = vdwg.mxu0
      %7117 = vmatprep.subr.bf16.mxu0 0
      %7118 = vmatpush1.bf16.msra.mxu0 %v6848
      %7119 = vmatprep.subr.bf16.mxu0 0
      %7120 = vmatpush1.bf16.msra.mxu0 %v6849
      %7121 = vmatprep.subr.bf16.mxu0 0
      %7122 = vmatpush1.bf16.msra.mxu0 %v6850
      %7123 = vmatprep.subr.bf16.mxu0 0
      %7124 = vmatpush1.bf16.msra.mxu0 %v6851
      %7125 = vmatprep.subr.bf16.mxu0 0
      %7126 = vmatpush1.bf16.msra.mxu0 %v6852
      %7127 = vmatprep.subr.bf16.mxu0 0
      %7128 = vmatpush1.bf16.msra.mxu0 %v6853
      %7129 = vmatprep.subr.bf16.mxu0 0
      %7130 = vmatpush1.bf16.msra.mxu0 %v6854
      %7131 = vmatprep.subr.bf16.mxu0 0
      %7132 = vmatpush1.bf16.msra.mxu0 %v6855
      %7133 = vmatprep.subr.bf16.mxu0 0
      %7134 = vmatpush1.bf16.msra.mxu0 %v6856
      %7135 = vmatprep.subr.bf16.mxu0 0
      %7136 = vmatpush1.bf16.msra.mxu0 %v6857
      %7137 = vmatprep.subr.bf16.mxu0 0
      %7138 = vmatpush1.bf16.msra.mxu0 %v6858
      %7139 = vmatprep.subr.bf16.mxu0 0
      %7140 = vmatpush1.bf16.msra.mxu0 %v6859
      %7141 = vmatprep.subr.bf16.mxu0 0
      %7142 = vmatpush1.bf16.msra.mxu0 %v6860
      %7143 = vmatprep.subr.bf16.mxu0 0
      %7144 = vmatpush1.bf16.msra.mxu0 %v6861
      %7145 = vmatprep.subr.bf16.mxu0 0
      %7146 = vmatpush1.bf16.msra.mxu0 %v6862
      %7147 = vmatprep.subr.bf16.mxu0 0
      %7148 = vmatpush1.bf16.msra.mxu0 %v6863
      %7149 = vmatprep.mubr.bf16.mxu0 %v7007
      %7150 = vmatmul.mubr.bf16.gmra.mrb[0].mxu0 %v7006
      %v7151 = vpop.f32.mrb[0].mxu0
      %v7152 = vadd.f32 %v7087, %v7151
      %v7153 = vpop.f32.mrb[0].mxu0
      %v7154 = vpop.f32.mrb[0].mxu0
      %v7155 = vadd.f32 %v7090, %v7154
      %v7156 = vpop.f32.mrb[0].mxu0
      %7157 = vmatprep.mubr.bf16.mxu0 %v7012
      %7158 = vmatmul.mubr.bf16.gmra.mrb[0].mxu0 %v7011
      %v7159 = vpop.f32.mrb[0].mxu0
      %v7160 = vadd.f32 %v7095, %v7159
      %v7161 = vpop.f32.mrb[0].mxu0
      %v7162 = vpop.f32.mrb[0].mxu0
      %v7163 = vadd.f32 %v7098, %v7162
      %v7164 = vpop.f32.mrb[0].mxu0
      %7165 = vmatprep.mubr.bf16.mxu0 %v7017
      %7166 = vmatmul.mubr.bf16.gmra.mrb[0].mxu0 %v7016
      %v7167 = vpop.f32.mrb[0].mxu0
      %v7168 = vadd.f32 %v7103, %v7167
      %v7169 = vpop.f32.mrb[0].mxu0
      %v7170 = vpop.f32.mrb[0].mxu0
      %v7171 = vadd.f32 %v7106, %v7170
      %v7172 = vpop.f32.mrb[0].mxu0
      %7173 = vmatprep.mubr.bf16.mxu0 %v7022
      %7174 = vmatmul.mubr.bf16.gmra.mrb[0].mxu0 %v7021
      %v7175 = vpop.f32.mrb[0].mxu0
      %v7176 = vadd.f32 %v7111, %v7175
      %v7177 = vpop.f32.mrb[0].mxu0
      %v7178 = vpop.f32.mrb[0].mxu0
      %v7179 = vadd.f32 %v7114, %v7178
      %v7180 = vpop.f32.mrb[0].mxu0
      %7181 = vdwg.mxu0
      %7182 = vmatprep.subr.bf16.mxu0 0
      %7183 = vmatpush1.bf16.msra.mxu0 %v6864
      %7184 = vmatprep.subr.bf16.mxu0 0
      %7185 = vmatpush1.bf16.msra.mxu0 %v6865
      %7186 = vmatprep.subr.bf16.mxu0 0
      %7187 = vmatpush1.bf16.msra.mxu0 %v6866
      %7188 = vmatprep.subr.bf16.mxu0 0
      %7189 = vmatpush1.bf16.msra.mxu0 %v6867
      %7190 = vmatprep.subr.bf16.mxu0 0
      %7191 = vmatpush1.bf16.msra.mxu0 0
      %7192 = vmatprep.subr.bf16.mxu0 0
      %7193 = vmatpush1.bf16.msra.mxu0 0
      %7194 = vmatprep.subr.bf16.mxu0 0
      %7195 = vmatpush1.bf16.msra.mxu0 0
      %7196 = vmatprep.subr.bf16.mxu0 0
      %7197 = vmatpush1.bf16.msra.mxu0 0
      %7198 = vmatprep.subr.bf16.mxu0 0
      %7199 = vmatpush1.bf16.msra.mxu0 0
      %7200 = vmatprep.subr.bf16.mxu0 0
      %7201 = vmatpush1.bf16.msra.mxu0 0
      %7202 = vmatprep.subr.bf16.mxu0 0
      %7203 = vmatpush1.bf16.msra.mxu0 0
      %7204 = vmatprep.subr.bf16.mxu0 0
      %7205 = vmatpush1.bf16.msra.mxu0 0
      %7206 = vmatprep.subr.bf16.mxu0 0
      %7207 = vmatpush1.bf16.msra.mxu0 0
      %7208 = vmatprep.subr.bf16.mxu0 0
      %7209 = vmatpush1.bf16.msra.mxu0 0
      %7210 = vmatprep.subr.bf16.mxu0 0
      %7211 = vmatpush1.bf16.msra.mxu0 0
      %7212 = vmatprep.subr.bf16.mxu0 0
      %7213 = vmatpush1.bf16.msra.mxu0 0
      %7214 = vmatprep.mubr.bf16.mxu0 0
      %7215 = vmatmul.mubr.bf16.gmra.mrb[0].mxu0 %v7041
      %v7216 = vpop.f32.mrb[0].mxu0
      %v7217 = vadd.f32 %v7152, %v7216
      %v7218 = vpop.f32.mrb[0].mxu0
      %v7219 = vpop.f32.mrb[0].mxu0
      %v7220 = vadd.f32 %v7155, %v7219
      %v7221 = vpop.f32.mrb[0].mxu0
      %7222 = vmatprep.mubr.bf16.mxu0 0
      %7223 = vmatmul.mubr.bf16.gmra.mrb[0].mxu0 %v7044
      %v7224 = vpop.f32.mrb[0].mxu0
      %v7225 = vadd.f32 %v7160, %v7224
      %v7226 = vpop.f32.mrb[0].mxu0
      %v7227 = vpop.f32.mrb[0].mxu0
      %v7228 = vadd.f32 %v7163, %v7227
      %v7229 = vpop.f32.mrb[0].mxu0
      %7230 = vmatprep.mubr.bf16.mxu0 0
      %7231 = vmatmul.mubr.bf16.gmra.mrb[0].mxu0 %v7047
      %v7232 = vpop.f32.mrb[0].mxu0
      %v7233 = vadd.f32 %v7168, %v7232
      %v7234 = vpop.f32.mrb[0].mxu0
      %v7235 = vpop.f32.mrb[0].mxu0
      %v7236 = vadd.f32 %v7171, %v7235
      %v7237 = vpop.f32.mrb[0].mxu0
      %7238 = vmatprep.mubr.bf16.mxu0 0
      %7239 = vmatmul.mubr.bf16.gmra.mrb[0].mxu0 %v7050
      %v7240 = vpop.f32.mrb[0].mxu0
      %v7241 = vadd.f32 %v7176, %v7240
      %v7242 = vpop.f32.mrb[0].mxu0
      %v7243 = vpop.f32.mrb[0].mxu0
      %v7244 = vadd.f32 %v7179, %v7243
      %v7245 = vpop.f32.mrb[0].mxu0
      %7246 = vdwg.mxu0
      %v7247 = vadd.f32 %v7217, %v6017
      %v7248 = vadd.f32 %v7220, %v6018
      %v7249 = vadd.f32 %v7225, %v6019
      %v7250 = vadd.f32 %v7228, %v6020
      %v7251 = vadd.f32 %v7233, %v6021
      %v7252 = vadd.f32 %v7236, %v6022
      %v7253 = vadd.f32 %v7241, %v6023
      %v7254 = vadd.f32 %v7244, %v6024
      %v7255 = vmax.f32 %v7247, 0.0
      %v7256 = vmax.f32 %v7248, 0.0
      %v7257 = vmax.f32 %v7249, 0.0
      %v7258 = vmax.f32 %v7250, 0.0
      %v7259 = vmax.f32 %v7251, 0.0
      %v7260 = vmax.f32 %v7252, 0.0
      %v7261 = vmax.f32 %v7253, 0.0
      %v7262 = vmax.f32 %v7254, 0.0
      %v7263 = vld [vmem:[%s5] sm:$0xff]
      %v7264 = vld [vmem:[%s5 + $0x8] sm:$0xff]
      %v7265 = vld [vmem:[%s5 + $0x10] sm:$0xff]
      %v7266 = vld [vmem:[%s5 + $0x18] sm:$0xff]
      %v7267 = vld [vmem:[%s5 + $0x20] sm:$0xff]
      %v7268 = vld [vmem:[%s5 + $0x28] sm:$0xff]
      %v7269 = vld [vmem:[%s5 + $0x30] sm:$0xff]
      %v7270 = vld [vmem:[%s5 + $0x38] sm:$0xff]
      %v7271 = vld [vmem:[%s5 + $0x40] sm:$0xff]
      %v7272 = vld [vmem:[%s5 + $0x48] sm:$0xff]
      %v7273 = vld [vmem:[%s5 + $0x50] sm:$0xff]
      %v7274 = vld [vmem:[%s5 + $0x58] sm:$0xff]
      %v7275 = vld [vmem:[%s5 + $0x60] sm:$0xff]
      %v7276 = vld [vmem:[%s5 + $0x68] sm:$0xff]
      %v7277 = vld [vmem:[%s5 + $0x70] sm:$0xff]
      %v7278 = vld [vmem:[%s5 + $0x78] sm:$0xff]
      %v7280 = vsel %vm3013, %v7263, 0
      %v7283 = vsel %vm3013, %v7264, 0
      %v7286 = vsel %vm3013, %v7265, 0
      %v7289 = vsel %vm3013, %v7266, 0
      %v7292 = vsel %vm3013, %v7267, 0
      %v7295 = vsel %vm3013, %v7268, 0
      %v7298 = vsel %vm3013, %v7269, 0
      %v7301 = vsel %vm3013, %v7270, 0
      %v7304 = vsel %vm3013, %v7271, 0
      %v7307 = vsel %vm3013, %v7272, 0
      %v7310 = vsel %vm3013, %v7273, 0
      %v7313 = vsel %vm3013, %v7274, 0
      %v7316 = vsel %vm3013, %v7275, 0
      %v7319 = vsel %vm3013, %v7276, 0
      %v7322 = vsel %vm3013, %v7277, 0
      %v7325 = vsel %vm3013, %v7278, 0
      %7327 = vmatprep.subr.mxu0 0.0
      %7328 = vmatpush1.msra.mxu0 %v7255
      %7329 = vmatprep.subr.mxu0 0.0
      %7330 = vmatpush1.msra.mxu0 %v7256
      %7331 = vmatprep.subr.mxu0 0.0
      %7332 = vmatpush1.msra.mxu0 %v7257
      %7333 = vmatprep.subr.mxu0 0.0
      %7334 = vmatpush1.msra.mxu0 %v7258
      %7335 = vmatprep.subr.mxu0 0.0
      %7336 = vmatpush1.msra.mxu0 %v7259
      %7337 = vmatprep.subr.mxu0 0.0
      %7338 = vmatpush1.msra.mxu0 %v7260
      %7339 = vmatprep.subr.mxu0 0.0
      %7340 = vmatpush1.msra.mxu0 %v7261
      %7341 = vmatprep.subr.mxu0 0.0
      %7342 = vmatpush1.msra.mxu0 %v7262
      %7343 = vmatprep.subr.mxu0 0.0
      %7344 = vmatpush1.msra.mxu0 0.0
      %7345 = vmatprep.subr.mxu0 0.0
      %7346 = vmatpush1.msra.mxu0 0.0
      %7347 = vmatprep.subr.mxu0 0.0
      %7348 = vmatpush1.msra.mxu0 0.0
      %7349 = vmatprep.subr.mxu0 0.0
      %7350 = vmatpush1.msra.mxu0 0.0
      %7351 = vmatprep.subr.mxu0 0.0
      %7352 = vmatpush1.msra.mxu0 0.0
      %7353 = vmatprep.subr.mxu0 0.0
      %7354 = vmatpush1.msra.mxu0 0.0
      %7355 = vmatprep.subr.mxu0 0.0
      %7356 = vmatpush1.msra.mxu0 0.0
      %7357 = vmatprep.subr.mxu0 0.0
      %7358 = vmatpush1.msra.mxu0 0.0
      %7359 = vmatprep.subr.mxu0 0.0
      %7360 = vmatpush1.msra.mxu0 0.0
      %7361 = vmatprep.subr.mxu0 0.0
      %7362 = vmatpush1.msra.mxu0 0.0
      %7363 = vmatprep.subr.mxu0 0.0
      %7364 = vmatpush1.msra.mxu0 0.0
      %7365 = vmatprep.subr.mxu0 0.0
      %7366 = vmatpush1.msra.mxu0 0.0
      %7367 = vmatprep.subr.mxu0 0.0
      %7368 = vmatpush1.msra.mxu0 0.0
      %7369 = vmatprep.subr.mxu0 0.0
      %7370 = vmatpush1.msra.mxu0 0.0
      %7371 = vmatprep.subr.mxu0 0.0
      %7372 = vmatpush1.msra.mxu0 0.0
      %7373 = vmatprep.subr.mxu0 0.0
      %7374 = vmatpush1.msra.mxu0 0.0
      %7375 = vmatprep.subr.mxu0 0.0
      %7376 = vmatpush1.msra.mxu0 0.0
      %7377 = vmatprep.subr.mxu0 0.0
      %7378 = vmatpush1.msra.mxu0 0.0
      %7379 = vmatprep.subr.mxu0 0.0
      %7380 = vmatpush1.msra.mxu0 0.0
      %7381 = vmatprep.subr.mxu0 0.0
      %7382 = vmatpush1.msra.mxu0 0.0
      %7383 = vmatprep.subr.mxu0 0.0
      %7384 = vmatpush1.msra.mxu0 0.0
      %7385 = vmatprep.subr.mxu0 0.0
      %7386 = vmatpush1.msra.mxu0 0.0
      %7387 = vmatprep.subr.mxu0 0.0
      %7388 = vmatpush1.msra.mxu0 0.0
      %7389 = vmatprep.subr.mxu0 0.0
      %7390 = vmatpush1.msra.mxu0 0.0
      %7391 = vmatprep.mubr.f32.mxu0 0.0
      %7392 = vmatmul.mubr.f32.gmra.mrb[0].mxu0 %v7280
      %v7393 = vpop.f32.mrb[0].mxu0
      %v7394 = vadd.f32 0.0, %v7393
      %v7395 = vpop.f32.mrb[0].mxu0
      %7396 = vmatprep.mubr.f32.mxu0 0.0
      %7397 = vmatmul.mubr.f32.gmra.mrb[0].mxu0 %v7283
      %v7398 = vpop.f32.mrb[0].mxu0
      %v7399 = vadd.f32 0.0, %v7398
      %v7400 = vpop.f32.mrb[0].mxu0
      %7401 = vmatprep.mubr.f32.mxu0 0.0
      %7402 = vmatmul.mubr.f32.gmra.mrb[0].mxu0 %v7286
      %v7403 = vpop.f32.mrb[0].mxu0
      %v7404 = vadd.f32 0.0, %v7403
      %v7405 = vpop.f32.mrb[0].mxu0
      %7406 = vmatprep.mubr.f32.mxu0 0.0
      %7407 = vmatmul.mubr.f32.gmra.mrb[0].mxu0 %v7289
      %v7408 = vpop.f32.mrb[0].mxu0
      %v7409 = vadd.f32 0.0, %v7408
      %v7410 = vpop.f32.mrb[0].mxu0
      %7411 = vmatprep.mubr.f32.mxu0 0.0
      %7412 = vmatmul.mubr.f32.gmra.mrb[0].mxu0 %v7292
      %v7413 = vpop.f32.mrb[0].mxu0
      %v7414 = vadd.f32 0.0, %v7413
      %v7415 = vpop.f32.mrb[0].mxu0
      %7416 = vmatprep.mubr.f32.mxu0 0.0
      %7417 = vmatmul.mubr.f32.gmra.mrb[0].mxu0 %v7295
      %v7418 = vpop.f32.mrb[0].mxu0
      %v7419 = vadd.f32 0.0, %v7418
      %v7420 = vpop.f32.mrb[0].mxu0
      %7421 = vmatprep.mubr.f32.mxu0 0.0
      %7422 = vmatmul.mubr.f32.gmra.mrb[0].mxu0 %v7298
      %v7423 = vpop.f32.mrb[0].mxu0
      %v7424 = vadd.f32 0.0, %v7423
      %v7425 = vpop.f32.mrb[0].mxu0
      %7426 = vmatprep.mubr.f32.mxu0 0.0
      %7427 = vmatmul.mubr.f32.gmra.mrb[0].mxu0 %v7301
      %v7428 = vpop.f32.mrb[0].mxu0
      %v7429 = vadd.f32 0.0, %v7428
      %v7430 = vpop.f32.mrb[0].mxu0
      %7431 = vmatprep.mubr.f32.mxu0 0.0
      %7432 = vmatmul.mubr.f32.gmra.mrb[0].mxu0 %v7304
      %v7433 = vpop.f32.mrb[0].mxu0
      %v7434 = vadd.f32 0.0, %v7433
      %v7435 = vpop.f32.mrb[0].mxu0
      %7436 = vmatprep.mubr.f32.mxu0 0.0
      %7437 = vmatmul.mubr.f32.gmra.mrb[0].mxu0 %v7307
      %v7438 = vpop.f32.mrb[0].mxu0
      %v7439 = vadd.f32 0.0, %v7438
      %v7440 = vpop.f32.mrb[0].mxu0
      %7441 = vmatprep.mubr.f32.mxu0 0.0
      %7442 = vmatmul.mubr.f32.gmra.mrb[0].mxu0 %v7310
      %v7443 = vpop.f32.mrb[0].mxu0
      %v7444 = vadd.f32 0.0, %v7443
      %v7445 = vpop.f32.mrb[0].mxu0
      %7446 = vmatprep.mubr.f32.mxu0 0.0
      %7447 = vmatmul.mubr.f32.gmra.mrb[0].mxu0 %v7313
      %v7448 = vpop.f32.mrb[0].mxu0
      %v7449 = vadd.f32 0.0, %v7448
      %v7450 = vpop.f32.mrb[0].mxu0
      %7451 = vmatprep.mubr.f32.mxu0 0.0
      %7452 = vmatmul.mubr.f32.gmra.mrb[0].mxu0 %v7316
      %v7453 = vpop.f32.mrb[0].mxu0
      %v7454 = vadd.f32 0.0, %v7453
      %v7455 = vpop.f32.mrb[0].mxu0
      %7456 = vmatprep.mubr.f32.mxu0 0.0
      %7457 = vmatmul.mubr.f32.gmra.mrb[0].mxu0 %v7319
      %v7458 = vpop.f32.mrb[0].mxu0
      %v7459 = vadd.f32 0.0, %v7458
      %v7460 = vpop.f32.mrb[0].mxu0
      %7461 = vmatprep.mubr.f32.mxu0 0.0
      %7462 = vmatmul.mubr.f32.gmra.mrb[0].mxu0 %v7322
      %v7463 = vpop.f32.mrb[0].mxu0
      %v7464 = vadd.f32 0.0, %v7463
      %v7465 = vpop.f32.mrb[0].mxu0
      %7466 = vmatprep.mubr.f32.mxu0 0.0
      %7467 = vmatmul.mubr.f32.gmra.mrb[0].mxu0 %v7325
      %v7468 = vpop.f32.mrb[0].mxu0
      %v7469 = vadd.f32 0.0, %v7468
      %v7470 = vpop.f32.mrb[0].mxu0
      %7471 = vdwg.mxu0
      %vm7472 = vcmask 31744
      %v7473 = vsel %vm7472, %v7394, 0.0
      %7474 = vadd.xlane.f32.xlu0 %v7473
      %v7475 = vpop.xlane.xlu0 %7474
      %v7476 = vsel %vm7472, %v7399, 0.0
      %7477 = vadd.xlane.f32.xlu0 %v7476
      %v7478 = vpop.xlane.xlu0 %7477
      %v7479 = vsel %vm7472, %v7404, 0.0
      %7480 = vadd.xlane.f32.xlu0 %v7479
      %v7481 = vpop.xlane.xlu0 %7480
      %v7482 = vsel %vm7472, %v7409, 0.0
      %7483 = vadd.xlane.f32.xlu0 %v7482
      %v7484 = vpop.xlane.xlu0 %7483
      %v7485 = vsel %vm7472, %v7414, 0.0
      %7486 = vadd.xlane.f32.xlu0 %v7485
      %v7487 = vpop.xlane.xlu0 %7486
      %v7488 = vsel %vm7472, %v7419, 0.0
      %7489 = vadd.xlane.f32.xlu0 %v7488
      %v7490 = vpop.xlane.xlu0 %7489
      %v7491 = vsel %vm7472, %v7424, 0.0
      %7492 = vadd.xlane.f32.xlu0 %v7491
      %v7493 = vpop.xlane.xlu0 %7492
      %v7494 = vsel %vm7472, %v7429, 0.0
      %7495 = vadd.xlane.f32.xlu0 %v7494
      %v7496 = vpop.xlane.xlu0 %7495
      %v7497 = vsel %vm7472, %v7434, 0.0
      %7498 = vadd.xlane.f32.xlu0 %v7497
      %v7499 = vpop.xlane.xlu0 %7498
      %v7500 = vsel %vm7472, %v7439, 0.0
      %7501 = vadd.xlane.f32.xlu0 %v7500
      %v7502 = vpop.xlane.xlu0 %7501
      %v7503 = vsel %vm7472, %v7444, 0.0
      %7504 = vadd.xlane.f32.xlu0 %v7503
      %v7505 = vpop.xlane.xlu0 %7504
      %v7506 = vsel %vm7472, %v7449, 0.0
      %7507 = vadd.xlane.f32.xlu0 %v7506
      %v7508 = vpop.xlane.xlu0 %7507
      %v7509 = vsel %vm7472, %v7454, 0.0
      %7510 = vadd.xlane.f32.xlu0 %v7509
      %v7511 = vpop.xlane.xlu0 %7510
      %v7512 = vsel %vm7472, %v7459, 0.0
      %7513 = vadd.xlane.f32.xlu0 %v7512
      %v7514 = vpop.xlane.xlu0 %7513
      %v7515 = vsel %vm7472, %v7464, 0.0
      %7516 = vadd.xlane.f32.xlu0 %v7515
      %v7517 = vpop.xlane.xlu0 %7516
      %v7518 = vsel %vm7472, %v7469, 0.0
      %7519 = vadd.xlane.f32.xlu0 %v7518
      %v7520 = vpop.xlane.xlu0 %7519
      %v7521 = vrcp.pop 4.0
      %v7522 = vmul.f32 %v7475, %v7521
      %v7523 = vmul.f32 %v7478, %v7521
      %v7524 = vmul.f32 %v7481, %v7521
      %v7525 = vmul.f32 %v7484, %v7521
      %v7526 = vmul.f32 %v7487, %v7521
      %v7527 = vmul.f32 %v7490, %v7521
      %v7528 = vmul.f32 %v7493, %v7521
      %v7529 = vmul.f32 %v7496, %v7521
      %v7530 = vmul.f32 %v7499, %v7521
      %v7531 = vmul.f32 %v7502, %v7521
      %v7532 = vmul.f32 %v7505, %v7521
      %v7533 = vmul.f32 %v7508, %v7521
      %v7534 = vmul.f32 %v7511, %v7521
      %v7535 = vmul.f32 %v7514, %v7521
      %v7536 = vmul.f32 %v7517, %v7521
      %v7537 = vmul.f32 %v7520, %v7521
      %v7538 = vld [vmem:[%s3] sm:$0xff]
      %v7539 = vld [vmem:[%s3 + $0x8] sm:$0xff]
      %v7540 = vld [vmem:[%s3 + $0x10] sm:$0xff]
      %v7541 = vld [vmem:[%s3 + $0x18] sm:$0xff]
      %v7542 = vld [vmem:[%s3 + $0x20] sm:$0xff]
      %v7543 = vld [vmem:[%s3 + $0x28] sm:$0xff]
      %v7544 = vld [vmem:[%s3 + $0x30] sm:$0xff]
      %v7545 = vld [vmem:[%s3 + $0x38] sm:$0xff]
      %v7546 = vld [vmem:[%s3 + $0x40] sm:$0xff]
      %v7547 = vld [vmem:[%s3 + $0x48] sm:$0xff]
      %v7548 = vld [vmem:[%s3 + $0x50] sm:$0xff]
      %v7549 = vld [vmem:[%s3 + $0x58] sm:$0xff]
      %v7550 = vld [vmem:[%s3 + $0x60] sm:$0xff]
      %v7551 = vld [vmem:[%s3 + $0x68] sm:$0xff]
      %v7552 = vld [vmem:[%s3 + $0x70] sm:$0xff]
      %v7553 = vld [vmem:[%s3 + $0x78] sm:$0xff]
      %v7554 = vadd.f32 %v7522, %v7538
      %v7555 = vadd.f32 %v7523, %v7539
      %v7556 = vadd.f32 %v7524, %v7540
      %v7557 = vadd.f32 %v7525, %v7541
      %v7558 = vadd.f32 %v7526, %v7542
      %v7559 = vadd.f32 %v7527, %v7543
      %v7560 = vadd.f32 %v7528, %v7544
      %v7561 = vadd.f32 %v7529, %v7545
      %v7562 = vadd.f32 %v7530, %v7546
      %v7563 = vadd.f32 %v7531, %v7547
      %v7564 = vadd.f32 %v7532, %v7548
      %v7565 = vadd.f32 %v7533, %v7549
      %v7566 = vadd.f32 %v7534, %v7550
      %v7567 = vadd.f32 %v7535, %v7551
      %v7568 = vadd.f32 %v7536, %v7552
      %v7569 = vadd.f32 %v7537, %v7553
      %vm7570 = vcmask 7168
      %7571 = vst.msk [vmem:[%s1378] sm:$0xff] %vm7570, %v7554
      %7572 = vst.msk [vmem:[%s1378 + $0x8] sm:$0xff] %vm7570, %v7555
      %7573 = vst.msk [vmem:[%s1378 + $0x10] sm:$0xff] %vm7570, %v7556
      %7574 = vst.msk [vmem:[%s1378 + $0x18] sm:$0xff] %vm7570, %v7557
      %7575 = vst.msk [vmem:[%s1378 + $0x20] sm:$0xff] %vm7570, %v7558
      %7576 = vst.msk [vmem:[%s1378 + $0x28] sm:$0xff] %vm7570, %v7559
      %7577 = vst.msk [vmem:[%s1378 + $0x30] sm:$0xff] %vm7570, %v7560
      %7578 = vst.msk [vmem:[%s1378 + $0x38] sm:$0xff] %vm7570, %v7561
      %7579 = vst.msk [vmem:[%s1378 + $0x40] sm:$0xff] %vm7570, %v7562
      %7580 = vst.msk [vmem:[%s1378 + $0x48] sm:$0xff] %vm7570, %v7563
      %7581 = vst.msk [vmem:[%s1378 + $0x50] sm:$0xff] %vm7570, %v7564
      %7582 = vst.msk [vmem:[%s1378 + $0x58] sm:$0xff] %vm7570, %v7565
      %7583 = vst.msk [vmem:[%s1378 + $0x60] sm:$0xff] %vm7570, %v7566
      %7584 = vst.msk [vmem:[%s1378 + $0x68] sm:$0xff] %vm7570, %v7567
      %7585 = vst.msk [vmem:[%s1378 + $0x70] sm:$0xff] %vm7570, %v7568
      %7586 = vst.msk [vmem:[%s1378 + $0x78] sm:$0xff] %vm7570, %v7569
      %p7587 = scmp.lt.s32.totalorder %s104, 1
      %s7588 = scalar_select %p7587, %s104, 1
      %s7589 = smul.addr %s7588, 16
      %s7590 = smul.addr %s7589, 8
      %s7591 = scalar_lea.vmem %s93, %s7590
      // Predicated region
      $region205: #{incremental_net_forward.1} parent=203 // pred_check
        %p7592 = pneg %p1093
      $region206: #{incremental_net_forward.1} parent=203 // pred_check_branch
        %7594 = sbr.rel (%p7592) target = $region208
      $region207: #{incremental_net_forward.1} parent=203 // pred_region
        _
      $region208: #{incremental_net_forward.1} parent=203 // pred_fallthru
        _
    $region204: #{incremental_net_forward.1} parent=5 // pred_fallthru
      _
    %p7595 = scmp.le.s32.totalorder 2, %s99
    // Predicated region
    $region209: #{incremental_net_forward.1} parent=5 // pred_check
      %p7596 = pneg %p7595
    $region210: #{incremental_net_forward.1} parent=5 // pred_check_branch
      %7598 = sbr.rel (%p7596) target = $region212
    $region211: #{incremental_net_forward.1} parent=5 // pred_region
      %s7599 = ssub.s32 %s99, 2
      // Predicated region
      $region213: #{incremental_net_forward.1} parent=211 // pred_check
        %p7600 = pneg %p1099
      $region214: #{incremental_net_forward.1} parent=211 // pred_check_branch
        %7602 = sbr.rel (%p7600) target = $region216
      $region215: #{incremental_net_forward.1} parent=211 // pred_region
        %p7603 = scmp.lt.s32.totalorder %s105, 1
        %s7604 = scalar_select %p7603, %s105, 1
        %s7605 = smul.addr %s7604, 16
        %s7606 = smul.addr %s7605, 8
        %s7607 = scalar_lea.vmem %s93, %s7606
      $region216: #{incremental_net_forward.1} parent=211 // pred_fallthru
        _
    $region212: #{incremental_net_forward.1} parent=5 // pred_fallthru
      _
  $region6: #{incremental_net_forward.1} parent=0 // loop_footer
    %s103 = sadd.s32 1, %s99
  $region7: #{incremental_net_forward.1} parent=0 // loop_footer_branch
    %98 = sbr.rel target = $region3
  $region8: #{incremental_net_forward.1} parent=0 // loop_exit
    _

</llo_original>
